<compile_context>
chip_gen: v7x
topology: tpu7x:2x2x1
jax: 0.10.0
libtpu: 0.0.40
codegen_flags: <defaults>
</compile_context>

<pallas_src>
import jax
import jax.numpy as jnp
from jax.experimental import pallas as pl
from jax.experimental.pallas import tpu as pltpu

_EPS = 1e-5  # PyTorch BatchNorm2d default eps


# ---------------------------------------------------------------------------
# Fused kernel
# ---------------------------------------------------------------------------
def _resblock_kernel(x_ref, w1_ref, g1_ref, b1_ref, w2_ref, g2_ref, b2_ref,
                     out_ref, pad_ref):
    """Fused conv3x3 + BN + GLU + conv3x3 + BN + residual, all in VMEM.

    x_ref   : (N, C, H*W)    NCHW activations with spatial flattened (lanes)
    w*_ref  : (Cout, 9*Cin)  im2col weight matrix, k = (dh*3 + dw)*Cin + cin
    g*, b*  : (Cout, 1)      BatchNorm affine parameters
    out_ref : (N, C, H*W)
    pad_ref : (N, C, H+2, W+2) VMEM scratch for zero padding (reused by both
              convs; the border stays zero).
    """
    N, C, HW = x_ref.shape
    Hp, Wp = pad_ref.shape[2], pad_ref.shape[3]
    H, W = Hp - 2, Wp - 2

    x = x_ref[...]                                   # residual / conv1 input

    # Zero the padded scratch once; only the interior is rewritten afterwards.
    pad_ref[...] = jnp.zeros_like(pad_ref)

    def conv3x3(inp, w_ref):
        """inp: (N, Cin, H*W) -> (N, Cout, H*W); 3x3, stride 1, pad 1."""
        cin = inp.shape[1]
        # In-kernel padding: write the interior, borders are already zero.
        pad_ref[:, :, 1:H + 1, 1:W + 1] = inp.reshape(N, cin, H, W)
        xpad = pad_ref[...]
        # im2col: stack the 9 shifted taps along the contraction axis.
        taps = []
        for dh in range(3):
            for dw in range(3):
                taps.append(
                    xpad[:, :, dh:dh + H, dw:dw + W].reshape(N, cin, HW))
        col = jnp.concatenate(taps, axis=1)          # (N, 9*Cin, H*W)
        wmat = w_ref[...]                            # (Cout, 9*Cin)
        # One MXU matmul per batch element (K = 9*Cin), lane-dense output.
        outs = [jnp.dot(wmat, col[n], preferred_element_type=jnp.float32)
                for n in range(N)]
        return jnp.stack(outs, axis=0)               # (N, Cout, H*W)

    def batchnorm(a, g_ref, b_ref):
        """Training-mode BN over (N, H*W) per channel, single-pass stats."""
        m_total = a.shape[0] * a.shape[2]
        s = jnp.sum(jnp.sum(a, axis=2, keepdims=True), axis=0, keepdims=True)
        ss = jnp.sum(jnp.sum(a * a, axis=2, keepdims=True), axis=0,
                     keepdims=True)
        mean = s / m_total
        var = ss / m_total - mean * mean             # biased batch variance
        inv = jax.lax.rsqrt(var + _EPS)
        return (a - mean) * inv * g_ref[...] + b_ref[...]

    # conv3x3(C -> 2C) + BN + GLU (first half * sigmoid(second half))
    y1 = batchnorm(conv3x3(x, w1_ref), g1_ref, b1_ref)      # (N, 2C, H*W)
    h = y1[:, :C, :] * jax.nn.sigmoid(y1[:, C:, :])          # (N, C, H*W)

    # conv3x3(C -> C) + BN + residual add
    y2 = batchnorm(conv3x3(h, w2_ref), g2_ref, b2_ref)       # (N, C, H*W)
    out_ref[...] = y2 + x


# ---------------------------------------------------------------------------
# Wrapper
# ---------------------------------------------------------------------------
def _full_spec(shape):
    nd = len(shape)
    return pl.BlockSpec(shape, lambda i, nd=nd: (0,) * nd)


def res_block_forward(x_nchw, params):
    """ResBlock.forward.  x_nchw: (N, C, H, W) float32 -> (N, C, H, W)."""
    N, C, H, W = x_nchw.shape
    x_flat = x_nchw.reshape(N, C, H * W)             # contiguous -> free

    # PyTorch conv weights (Cout, Cin, 3, 3) -> im2col matrices (Cout, 9*Cin)
    # with k = (dh*3 + dw)*Cin + cin (matches the tap stacking order above).
    w1 = jnp.transpose(params["w1"], (0, 2, 3, 1)).reshape(2 * C, 9 * C)
    w2 = jnp.transpose(params["w2"], (0, 2, 3, 1)).reshape(C, 9 * C)
    g1 = params["g1"].reshape(2 * C, 1)
    b1 = params["b1"].reshape(2 * C, 1)
    g2 = params["g2"].reshape(C, 1)
    b2 = params["b2"].reshape(C, 1)

    out_shape = (N, C, H * W)
    out = pl.pallas_call(
        _resblock_kernel,
        out_shape=jax.ShapeDtypeStruct(out_shape, jnp.float32),
        grid=(1,),
        in_specs=[_full_spec(x_flat.shape), _full_spec(w1.shape),
                  _full_spec(g1.shape), _full_spec(b1.shape),
                  _full_spec(w2.shape), _full_spec(g2.shape),
                  _full_spec(b2.shape)],
        out_specs=_full_spec(out_shape),
        scratch_shapes=[pltpu.VMEM((N, C, H + 2, W + 2), jnp.float32)],
        compiler_params=pltpu.CompilerParams(
            dimension_semantics=("arbitrary",)),
    )(x_flat, w1, g1, b1, w2, g2, b2)
    return out.reshape(N, C, H, W)                   # contiguous -> free


# ---------------------------------------------------------------------------
# Pure-JAX reference (for correctness check)
# ---------------------------------------------------------------------------
def _ref_forward(x, params):
    def conv(a, w):
        return jax.lax.conv_general_dilated(
            a, w, (1, 1), "SAME",
            dimension_numbers=("NCHW", "OIHW", "NCHW"))

    def bn(a, g, b):
        m = jnp.mean(a, axis=(0, 2, 3), keepdims=True)
        v = jnp.mean((a - m) ** 2, axis=(0, 2, 3), keepdims=True)
        return ((a - m) * jax.lax.rsqrt(v + _EPS)
                * g.reshape(1, -1, 1, 1) + b.reshape(1, -1, 1, 1))

    h = bn(conv(x, params["w1"]), params["g1"], params["b1"])
    half = h.shape[1] // 2
    h = h[:, :half] * jax.nn.sigmoid(h[:, half:])
    h = bn(conv(h, params["w2"]), params["g2"], params["b2"])
    return h + x


# ---------------------------------------------------------------------------
# Main
# ---------------------------------------------------------------------------
if __name__ == "__main__":
    N, C, H, W = 2, 4, 16, 16  # channel_num = 4
    key = jax.random.PRNGKey(0)
    kx, k1, k2, kg1, kb1, kg2, kb2 = jax.random.split(key, 7)

    x = jax.random.normal(kx, (N, C, H, W), jnp.float32)

    fan_in = 9 * C
    params = {
        # conv weights in PyTorch OIHW layout: (Cout, Cin, 3, 3)
        "w1": jax.random.normal(k1, (2 * C, C, 3, 3), jnp.float32)
              * jnp.sqrt(2.0 / fan_in),
        "g1": 1.0 + 0.1 * jax.random.normal(kg1, (2 * C,), jnp.float32),
        "b1": 0.1 * jax.random.normal(kb1, (2 * C,), jnp.float32),
        "w2": jax.random.normal(k2, (C, C, 3, 3), jnp.float32)
              * jnp.sqrt(2.0 / fan_in),
        "g2": 1.0 + 0.1 * jax.random.normal(kg2, (C,), jnp.float32),
        "b2": 0.1 * jax.random.normal(kb2, (C,), jnp.float32),
    }

    out = jax.block_until_ready(res_block_forward(x, params))
    ref = jax.block_until_ready(_ref_forward(x, params))

    assert out.shape == (N, C, H, W)
    err = jnp.max(jnp.abs(out - ref))
    assert jnp.allclose(out, ref, atol=1e-4, rtol=1e-4), f"max abs err = {err}"
    print("KERNEL_OK")
</pallas_src>

<mosaic_0001>
module attributes {stable_mosaic.version = 11 : i64} {
  func.func @_resblock_kernel(%arg0: i32, %arg1: memref<2x4x256xf32, #tpu.memory_space<vmem>>, %arg2: memref<8x36xf32, #tpu.memory_space<vmem>>, %arg3: memref<8x1xf32, #tpu.memory_space<vmem>>, %arg4: memref<8x1xf32, #tpu.memory_space<vmem>>, %arg5: memref<4x36xf32, #tpu.memory_space<vmem>>, %arg6: memref<4x1xf32, #tpu.memory_space<vmem>>, %arg7: memref<4x1xf32, #tpu.memory_space<vmem>>, %arg8: memref<2x4x256xf32, #tpu.memory_space<vmem>>, %arg9: memref<2x4x18x18xf32, #tpu.memory_space<vmem>>) attributes {dimension_semantics = [#tpu.dimension_semantics<arbitrary>], iteration_bounds = array<i64: 1>, scalar_prefetch = 0 : i64, scratch_operands = 1 : i64, tpu.core_type = #tpu.core_type<tc>, window_params = [{pipeline_mode = #tpu.pipeline_mode<synchronous>, transform_indices = @transform_0, window_bounds = array<i64: 2, 4, 256>}, {pipeline_mode = #tpu.pipeline_mode<synchronous>, transform_indices = @transform_1, window_bounds = array<i64: 8, 36>}, {pipeline_mode = #tpu.pipeline_mode<synchronous>, transform_indices = @transform_2, window_bounds = array<i64: 8, 1>}, {pipeline_mode = #tpu.pipeline_mode<synchronous>, transform_indices = @transform_3, window_bounds = array<i64: 8, 1>}, {pipeline_mode = #tpu.pipeline_mode<synchronous>, transform_indices = @transform_4, window_bounds = array<i64: 4, 36>}, {pipeline_mode = #tpu.pipeline_mode<synchronous>, transform_indices = @transform_5, window_bounds = array<i64: 4, 1>}, {pipeline_mode = #tpu.pipeline_mode<synchronous>, transform_indices = @transform_6, window_bounds = array<i64: 4, 1>}, {pipeline_mode = #tpu.pipeline_mode<synchronous>, transform_indices = @transform_7, window_bounds = array<i64: 2, 4, 256>}]} {
    %c0 = arith.constant 0 : index
    %c0_0 = arith.constant 0 : index
    %c0_1 = arith.constant 0 : index
    %0 = vector.load %arg1[%c0, %c0_0, %c0_1] : memref<2x4x256xf32, #tpu.memory_space<vmem>>, vector<2x4x256xf32>
    %cst = arith.constant 0.000000e+00 : f32
    %1 = vector.broadcast %cst : f32 to vector<2x4x18x18xf32>
    %c0_2 = arith.constant 0 : index
    %c0_3 = arith.constant 0 : index
    %c0_4 = arith.constant 0 : index
    %c0_5 = arith.constant 0 : index
    %2 = vector.load %arg9[%c0_2, %c0_3, %c0_4, %c0_5] : memref<2x4x18x18xf32, #tpu.memory_space<vmem>>, vector<2x4x18x18xf32>
    tpu.vector_store %arg9[%c0_2, %c0_3, %c0_4, %c0_5], %1 {strides = array<i32>} : memref<2x4x18x18xf32, #tpu.memory_space<vmem>>, vector<2x4x18x18xf32>,
    %3 = vector.shape_cast %0 : vector<2x4x256xf32> to vector<2x4x16x16xf32>
    %c0_6 = arith.constant 0 : index
    %c0_7 = arith.constant 0 : index
    %c1 = arith.constant 1 : index
    %c1_8 = arith.constant 1 : index
    %4 = vector.load %arg9[%c0_6, %c0_7, %c1, %c1_8] : memref<2x4x18x18xf32, #tpu.memory_space<vmem>>, vector<2x4x16x16xf32>
    tpu.vector_store %arg9[%c0_6, %c0_7, %c1, %c1_8], %3 {strides = array<i32>} : memref<2x4x18x18xf32, #tpu.memory_space<vmem>>, vector<2x4x16x16xf32>,
    %c0_9 = arith.constant 0 : index
    %c0_10 = arith.constant 0 : index
    %c0_11 = arith.constant 0 : index
    %c0_12 = arith.constant 0 : index
    %5 = vector.load %arg9[%c0_9, %c0_10, %c0_11, %c0_12] : memref<2x4x18x18xf32, #tpu.memory_space<vmem>>, vector<2x4x18x18xf32>
    %6 = vector.extract_strided_slice %5 {offsets = [0, 0, 0, 0], sizes = [2, 4, 16, 16], strides = [1, 1, 1, 1]} : vector<2x4x18x18xf32> to vector<2x4x16x16xf32>
    %7 = vector.shape_cast %6 : vector<2x4x16x16xf32> to vector<2x4x256xf32>
    %8 = vector.extract_strided_slice %5 {offsets = [0, 0, 0, 1], sizes = [2, 4, 16, 16], strides = [1, 1, 1, 1]} : vector<2x4x18x18xf32> to vector<2x4x16x16xf32>
    %9 = vector.shape_cast %8 : vector<2x4x16x16xf32> to vector<2x4x256xf32>
    %10 = vector.extract_strided_slice %5 {offsets = [0, 0, 0, 2], sizes = [2, 4, 16, 16], strides = [1, 1, 1, 1]} : vector<2x4x18x18xf32> to vector<2x4x16x16xf32>
    %11 = vector.shape_cast %10 : vector<2x4x16x16xf32> to vector<2x4x256xf32>
    %12 = vector.extract_strided_slice %5 {offsets = [0, 0, 1, 0], sizes = [2, 4, 16, 16], strides = [1, 1, 1, 1]} : vector<2x4x18x18xf32> to vector<2x4x16x16xf32>
    %13 = vector.shape_cast %12 : vector<2x4x16x16xf32> to vector<2x4x256xf32>
    %14 = vector.extract_strided_slice %5 {offsets = [0, 0, 1, 1], sizes = [2, 4, 16, 16], strides = [1, 1, 1, 1]} : vector<2x4x18x18xf32> to vector<2x4x16x16xf32>
    %15 = vector.shape_cast %14 : vector<2x4x16x16xf32> to vector<2x4x256xf32>
    %16 = vector.extract_strided_slice %5 {offsets = [0, 0, 1, 2], sizes = [2, 4, 16, 16], strides = [1, 1, 1, 1]} : vector<2x4x18x18xf32> to vector<2x4x16x16xf32>
    %17 = vector.shape_cast %16 : vector<2x4x16x16xf32> to vector<2x4x256xf32>
    %18 = vector.extract_strided_slice %5 {offsets = [0, 0, 2, 0], sizes = [2, 4, 16, 16], strides = [1, 1, 1, 1]} : vector<2x4x18x18xf32> to vector<2x4x16x16xf32>
    %19 = vector.shape_cast %18 : vector<2x4x16x16xf32> to vector<2x4x256xf32>
    %20 = vector.extract_strided_slice %5 {offsets = [0, 0, 2, 1], sizes = [2, 4, 16, 16], strides = [1, 1, 1, 1]} : vector<2x4x18x18xf32> to vector<2x4x16x16xf32>
    %21 = vector.shape_cast %20 : vector<2x4x16x16xf32> to vector<2x4x256xf32>
    %22 = vector.extract_strided_slice %5 {offsets = [0, 0, 2, 2], sizes = [2, 4, 16, 16], strides = [1, 1, 1, 1]} : vector<2x4x18x18xf32> to vector<2x4x16x16xf32>
    %23 = vector.shape_cast %22 : vector<2x4x16x16xf32> to vector<2x4x256xf32>
    %24 = tpu.concatenate %7, %9, %11, %13, %15, %17, %19, %21, %23 in 1 : vector<2x4x256xf32>, vector<2x4x256xf32>, vector<2x4x256xf32>, vector<2x4x256xf32>, vector<2x4x256xf32>, vector<2x4x256xf32>, vector<2x4x256xf32>, vector<2x4x256xf32>, vector<2x4x256xf32> -> vector<2x36x256xf32>
    %c0_13 = arith.constant 0 : index
    %c0_14 = arith.constant 0 : index
    %25 = vector.load %arg2[%c0_13, %c0_14] : memref<8x36xf32, #tpu.memory_space<vmem>>, vector<8x36xf32>
    %26 = vector.extract_strided_slice %24 {offsets = [0, 0, 0], sizes = [1, 36, 256], strides = [1, 1, 1]} : vector<2x36x256xf32> to vector<1x36x256xf32>
    %27 = vector.shape_cast %26 : vector<1x36x256xf32> to vector<36x256xf32>
    %cst_15 = arith.constant dense<0.000000e+00> : vector<8x256xf32>
    %28 = tpu.matmul %25, %27, %cst_15 {dimension_numbers = #tpu.dot_dimension_numbers<[1], [0], [0], [1], [0, 0, 1, 1], [], []>} : vector<8x36xf32>, vector<36x256xf32>, vector<8x256xf32> -> vector<8x256xf32>
    %29 = vector.extract_strided_slice %24 {offsets = [1, 0, 0], sizes = [1, 36, 256], strides = [1, 1, 1]} : vector<2x36x256xf32> to vector<1x36x256xf32>
    %30 = vector.shape_cast %29 : vector<1x36x256xf32> to vector<36x256xf32>
    %cst_16 = arith.constant dense<0.000000e+00> : vector<8x256xf32>
    %31 = tpu.matmul %25, %30, %cst_16 {dimension_numbers = #tpu.dot_dimension_numbers<[1], [0], [0], [1], [0, 0, 1, 1], [], []>} : vector<8x36xf32>, vector<36x256xf32>, vector<8x256xf32> -> vector<8x256xf32>
    %32 = vector.shape_cast %28 : vector<8x256xf32> to vector<1x8x256xf32>
    %33 = vector.shape_cast %31 : vector<8x256xf32> to vector<1x8x256xf32>
    %34 = tpu.concatenate %32, %33 in 0 : vector<1x8x256xf32>, vector<1x8x256xf32> -> vector<2x8x256xf32>
    %cst_17 = arith.constant dense<0.000000e+00> : vector<2x8xf32>
    %35 = vector.multi_reduction <add>, %34, %cst_17 [2] : vector<2x8x256xf32> to vector<2x8xf32>
    %36 = vector.shape_cast %35 : vector<2x8xf32> to vector<2x8x1xf32>
    %cst_18 = arith.constant dense<0.000000e+00> : vector<8x1xf32>
    %37 = vector.multi_reduction <add>, %36, %cst_18 [0] : vector<2x8x1xf32> to vector<8x1xf32>
    %38 = vector.shape_cast %37 : vector<8x1xf32> to vector<1x8x1xf32>
    %39 = arith.mulf %34, %34 : vector<2x8x256xf32>
    %cst_19 = arith.constant dense<0.000000e+00> : vector<2x8xf32>
    %40 = vector.multi_reduction <add>, %39, %cst_19 [2] : vector<2x8x256xf32> to vector<2x8xf32>
    %41 = vector.shape_cast %40 : vector<2x8xf32> to vector<2x8x1xf32>
    %cst_20 = arith.constant dense<0.000000e+00> : vector<8x1xf32>
    %42 = vector.multi_reduction <add>, %41, %cst_20 [0] : vector<2x8x1xf32> to vector<8x1xf32>
    %43 = vector.shape_cast %42 : vector<8x1xf32> to vector<1x8x1xf32>
    %cst_21 = arith.constant 5.120000e+02 : f32
    %44 = vector.broadcast %cst_21 : f32 to vector<1x8x1xf32>
    %45 = arith.divf %38, %44 : vector<1x8x1xf32>
    %cst_22 = arith.constant 5.120000e+02 : f32
    %46 = vector.broadcast %cst_22 : f32 to vector<1x8x1xf32>
    %47 = arith.divf %43, %46 : vector<1x8x1xf32>
    %48 = arith.mulf %45, %45 : vector<1x8x1xf32>
    %49 = arith.subf %47, %48 : vector<1x8x1xf32>
    %cst_23 = arith.constant 9.99999974E-6 : f32
    %50 = vector.broadcast %cst_23 : f32 to vector<1x8x1xf32>
    %51 = arith.addf %49, %50 : vector<1x8x1xf32>
    %52 = math.rsqrt %51 : vector<1x8x1xf32>
    %53 = vector.broadcast %45 : vector<1x8x1xf32> to vector<2x8x256xf32>
    %54 = arith.subf %34, %53 : vector<2x8x256xf32>
    %55 = vector.broadcast %52 : vector<1x8x1xf32> to vector<2x8x256xf32>
    %56 = arith.mulf %54, %55 : vector<2x8x256xf32>
    %c0_24 = arith.constant 0 : index
    %c0_25 = arith.constant 0 : index
    %57 = vector.load %arg3[%c0_24, %c0_25] : memref<8x1xf32, #tpu.memory_space<vmem>>, vector<8x1xf32>
    %58 = vector.shape_cast %57 : vector<8x1xf32> to vector<1x8x1xf32>
    %59 = vector.broadcast %58 : vector<1x8x1xf32> to vector<2x8x256xf32>
    %60 = arith.mulf %56, %59 : vector<2x8x256xf32>
    %c0_26 = arith.constant 0 : index
    %c0_27 = arith.constant 0 : index
    %61 = vector.load %arg4[%c0_26, %c0_27] : memref<8x1xf32, #tpu.memory_space<vmem>>, vector<8x1xf32>
    %62 = vector.shape_cast %61 : vector<8x1xf32> to vector<1x8x1xf32>
    %63 = vector.broadcast %62 : vector<1x8x1xf32> to vector<2x8x256xf32>
    %64 = arith.addf %60, %63 : vector<2x8x256xf32>
    %65 = vector.extract_strided_slice %64 {offsets = [0, 0, 0], sizes = [2, 4, 256], strides = [1, 1, 1]} : vector<2x8x256xf32> to vector<2x4x256xf32>
    %66 = vector.extract_strided_slice %64 {offsets = [0, 4, 0], sizes = [2, 4, 256], strides = [1, 1, 1]} : vector<2x8x256xf32> to vector<2x4x256xf32>
    %67 = arith.negf %66 : vector<2x4x256xf32>
    %68 = math.exp %67 : vector<2x4x256xf32>
    %cst_28 = arith.constant 1.000000e+00 : f32
    %69 = vector.broadcast %cst_28 : f32 to vector<2x4x256xf32>
    %70 = arith.addf %69, %68 : vector<2x4x256xf32>
    %71 = arith.divf %69, %70 : vector<2x4x256xf32>
    %72 = arith.mulf %65, %71 : vector<2x4x256xf32>
    %73 = vector.shape_cast %72 : vector<2x4x256xf32> to vector<2x4x16x16xf32>
    %c0_29 = arith.constant 0 : index
    %c0_30 = arith.constant 0 : index
    %c1_31 = arith.constant 1 : index
    %c1_32 = arith.constant 1 : index
    %74 = vector.load %arg9[%c0_29, %c0_30, %c1_31, %c1_32] : memref<2x4x18x18xf32, #tpu.memory_space<vmem>>, vector<2x4x16x16xf32>
    tpu.vector_store %arg9[%c0_29, %c0_30, %c1_31, %c1_32], %73 {strides = array<i32>} : memref<2x4x18x18xf32, #tpu.memory_space<vmem>>, vector<2x4x16x16xf32>,
    %c0_33 = arith.constant 0 : index
    %c0_34 = arith.constant 0 : index
    %c0_35 = arith.constant 0 : index
    %c0_36 = arith.constant 0 : index
    %75 = vector.load %arg9[%c0_33, %c0_34, %c0_35, %c0_36] : memref<2x4x18x18xf32, #tpu.memory_space<vmem>>, vector<2x4x18x18xf32>
    %76 = vector.extract_strided_slice %75 {offsets = [0, 0, 0, 0], sizes = [2, 4, 16, 16], strides = [1, 1, 1, 1]} : vector<2x4x18x18xf32> to vector<2x4x16x16xf32>
    %77 = vector.shape_cast %76 : vector<2x4x16x16xf32> to vector<2x4x256xf32>
    %78 = vector.extract_strided_slice %75 {offsets = [0, 0, 0, 1], sizes = [2, 4, 16, 16], strides = [1, 1, 1, 1]} : vector<2x4x18x18xf32> to vector<2x4x16x16xf32>
    %79 = vector.shape_cast %78 : vector<2x4x16x16xf32> to vector<2x4x256xf32>
    %80 = vector.extract_strided_slice %75 {offsets = [0, 0, 0, 2], sizes = [2, 4, 16, 16], strides = [1, 1, 1, 1]} : vector<2x4x18x18xf32> to vector<2x4x16x16xf32>
    %81 = vector.shape_cast %80 : vector<2x4x16x16xf32> to vector<2x4x256xf32>
    %82 = vector.extract_strided_slice %75 {offsets = [0, 0, 1, 0], sizes = [2, 4, 16, 16], strides = [1, 1, 1, 1]} : vector<2x4x18x18xf32> to vector<2x4x16x16xf32>
    %83 = vector.shape_cast %82 : vector<2x4x16x16xf32> to vector<2x4x256xf32>
    %84 = vector.extract_strided_slice %75 {offsets = [0, 0, 1, 1], sizes = [2, 4, 16, 16], strides = [1, 1, 1, 1]} : vector<2x4x18x18xf32> to vector<2x4x16x16xf32>
    %85 = vector.shape_cast %84 : vector<2x4x16x16xf32> to vector<2x4x256xf32>
    %86 = vector.extract_strided_slice %75 {offsets = [0, 0, 1, 2], sizes = [2, 4, 16, 16], strides = [1, 1, 1, 1]} : vector<2x4x18x18xf32> to vector<2x4x16x16xf32>
    %87 = vector.shape_cast %86 : vector<2x4x16x16xf32> to vector<2x4x256xf32>
    %88 = vector.extract_strided_slice %75 {offsets = [0, 0, 2, 0], sizes = [2, 4, 16, 16], strides = [1, 1, 1, 1]} : vector<2x4x18x18xf32> to vector<2x4x16x16xf32>
    %89 = vector.shape_cast %88 : vector<2x4x16x16xf32> to vector<2x4x256xf32>
    %90 = vector.extract_strided_slice %75 {offsets = [0, 0, 2, 1], sizes = [2, 4, 16, 16], strides = [1, 1, 1, 1]} : vector<2x4x18x18xf32> to vector<2x4x16x16xf32>
    %91 = vector.shape_cast %90 : vector<2x4x16x16xf32> to vector<2x4x256xf32>
    %92 = vector.extract_strided_slice %75 {offsets = [0, 0, 2, 2], sizes = [2, 4, 16, 16], strides = [1, 1, 1, 1]} : vector<2x4x18x18xf32> to vector<2x4x16x16xf32>
    %93 = vector.shape_cast %92 : vector<2x4x16x16xf32> to vector<2x4x256xf32>
    %94 = tpu.concatenate %77, %79, %81, %83, %85, %87, %89, %91, %93 in 1 : vector<2x4x256xf32>, vector<2x4x256xf32>, vector<2x4x256xf32>, vector<2x4x256xf32>, vector<2x4x256xf32>, vector<2x4x256xf32>, vector<2x4x256xf32>, vector<2x4x256xf32>, vector<2x4x256xf32> -> vector<2x36x256xf32>
    %c0_37 = arith.constant 0 : index
    %c0_38 = arith.constant 0 : index
    %95 = vector.load %arg5[%c0_37, %c0_38] : memref<4x36xf32, #tpu.memory_space<vmem>>, vector<4x36xf32>
    %96 = vector.extract_strided_slice %94 {offsets = [0, 0, 0], sizes = [1, 36, 256], strides = [1, 1, 1]} : vector<2x36x256xf32> to vector<1x36x256xf32>
    %97 = vector.shape_cast %96 : vector<1x36x256xf32> to vector<36x256xf32>
    %cst_39 = arith.constant dense<0.000000e+00> : vector<4x256xf32>
    %98 = tpu.matmul %95, %97, %cst_39 {dimension_numbers = #tpu.dot_dimension_numbers<[1], [0], [0], [1], [0, 0, 1, 1], [], []>} : vector<4x36xf32>, vector<36x256xf32>, vector<4x256xf32> -> vector<4x256xf32>
    %99 = vector.extract_strided_slice %94 {offsets = [1, 0, 0], sizes = [1, 36, 256], strides = [1, 1, 1]} : vector<2x36x256xf32> to vector<1x36x256xf32>
    %100 = vector.shape_cast %99 : vector<1x36x256xf32> to vector<36x256xf32>
    %cst_40 = arith.constant dense<0.000000e+00> : vector<4x256xf32>
    %101 = tpu.matmul %95, %100, %cst_40 {dimension_numbers = #tpu.dot_dimension_numbers<[1], [0], [0], [1], [0, 0, 1, 1], [], []>} : vector<4x36xf32>, vector<36x256xf32>, vector<4x256xf32> -> vector<4x256xf32>
    %102 = vector.shape_cast %98 : vector<4x256xf32> to vector<1x4x256xf32>
    %103 = vector.shape_cast %101 : vector<4x256xf32> to vector<1x4x256xf32>
    %104 = tpu.concatenate %102, %103 in 0 : vector<1x4x256xf32>, vector<1x4x256xf32> -> vector<2x4x256xf32>
    %cst_41 = arith.constant dense<0.000000e+00> : vector<2x4xf32>
    %105 = vector.multi_reduction <add>, %104, %cst_41 [2] : vector<2x4x256xf32> to vector<2x4xf32>
    %106 = vector.shape_cast %105 : vector<2x4xf32> to vector<2x4x1xf32>
    %cst_42 = arith.constant dense<0.000000e+00> : vector<4x1xf32>
    %107 = vector.multi_reduction <add>, %106, %cst_42 [0] : vector<2x4x1xf32> to vector<4x1xf32>
    %108 = vector.shape_cast %107 : vector<4x1xf32> to vector<1x4x1xf32>
    %109 = arith.mulf %104, %104 : vector<2x4x256xf32>
    %cst_43 = arith.constant dense<0.000000e+00> : vector<2x4xf32>
    %110 = vector.multi_reduction <add>, %109, %cst_43 [2] : vector<2x4x256xf32> to vector<2x4xf32>
    %111 = vector.shape_cast %110 : vector<2x4xf32> to vector<2x4x1xf32>
    %cst_44 = arith.constant dense<0.000000e+00> : vector<4x1xf32>
    %112 = vector.multi_reduction <add>, %111, %cst_44 [0] : vector<2x4x1xf32> to vector<4x1xf32>
    %113 = vector.shape_cast %112 : vector<4x1xf32> to vector<1x4x1xf32>
    %cst_45 = arith.constant 5.120000e+02 : f32
    %114 = vector.broadcast %cst_45 : f32 to vector<1x4x1xf32>
    %115 = arith.divf %108, %114 : vector<1x4x1xf32>
    %cst_46 = arith.constant 5.120000e+02 : f32
    %116 = vector.broadcast %cst_46 : f32 to vector<1x4x1xf32>
    %117 = arith.divf %113, %116 : vector<1x4x1xf32>
    %118 = arith.mulf %115, %115 : vector<1x4x1xf32>
    %119 = arith.subf %117, %118 : vector<1x4x1xf32>
    %cst_47 = arith.constant 9.99999974E-6 : f32
    %120 = vector.broadcast %cst_47 : f32 to vector<1x4x1xf32>
    %121 = arith.addf %119, %120 : vector<1x4x1xf32>
    %122 = math.rsqrt %121 : vector<1x4x1xf32>
    %123 = vector.broadcast %115 : vector<1x4x1xf32> to vector<2x4x256xf32>
    %124 = arith.subf %104, %123 : vector<2x4x256xf32>
    %125 = vector.broadcast %122 : vector<1x4x1xf32> to vector<2x4x256xf32>
    %126 = arith.mulf %124, %125 : vector<2x4x256xf32>
    %c0_48 = arith.constant 0 : index
    %c0_49 = arith.constant 0 : index
    %127 = vector.load %arg6[%c0_48, %c0_49] : memref<4x1xf32, #tpu.memory_space<vmem>>, vector<4x1xf32>
    %128 = vector.shape_cast %127 : vector<4x1xf32> to vector<1x4x1xf32>
    %129 = vector.broadcast %128 : vector<1x4x1xf32> to vector<2x4x256xf32>
    %130 = arith.mulf %126, %129 : vector<2x4x256xf32>
    %c0_50 = arith.constant 0 : index
    %c0_51 = arith.constant 0 : index
    %131 = vector.load %arg7[%c0_50, %c0_51] : memref<4x1xf32, #tpu.memory_space<vmem>>, vector<4x1xf32>
    %132 = vector.shape_cast %131 : vector<4x1xf32> to vector<1x4x1xf32>
    %133 = vector.broadcast %132 : vector<1x4x1xf32> to vector<2x4x256xf32>
    %134 = arith.addf %130, %133 : vector<2x4x256xf32>
    %135 = arith.addf %134, %0 : vector<2x4x256xf32>
    %c0_52 = arith.constant 0 : index
    %c0_53 = arith.constant 0 : index
    %c0_54 = arith.constant 0 : index
    %136 = vector.load %arg8[%c0_52, %c0_53, %c0_54] : memref<2x4x256xf32, #tpu.memory_space<vmem>>, vector<2x4x256xf32>
    tpu.vector_store %arg8[%c0_52, %c0_53, %c0_54], %135 {strides = array<i32>} : memref<2x4x256xf32, #tpu.memory_space<vmem>>, vector<2x4x256xf32>,
    return
  }
  func.func @transform_0(%arg0: i32) -> (i32, i32, i32) {
    %c0_i32 = arith.constant 0 : i32
    %c0_i32_0 = arith.constant 0 : i32
    %c0_i32_1 = arith.constant 0 : i32
    %c0_i32_2 = arith.constant 0 : i32
    return %c0_i32, %c0_i32_0, %c0_i32_1 : i32, i32, i32
  }
  func.func @transform_1(%arg0: i32) -> (i32, i32) {
    %c0_i32 = arith.constant 0 : i32
    %c0_i32_0 = arith.constant 0 : i32
    %c0_i32_1 = arith.constant 0 : i32
    return %c0_i32, %c0_i32_0 : i32, i32
  }
  func.func @transform_2(%arg0: i32) -> (i32, i32) {
    %c0_i32 = arith.constant 0 : i32
    %c0_i32_0 = arith.constant 0 : i32
    %c0_i32_1 = arith.constant 0 : i32
    return %c0_i32, %c0_i32_0 : i32, i32
  }
  func.func @transform_3(%arg0: i32) -> (i32, i32) {
    %c0_i32 = arith.constant 0 : i32
    %c0_i32_0 = arith.constant 0 : i32
    %c0_i32_1 = arith.constant 0 : i32
    return %c0_i32, %c0_i32_0 : i32, i32
  }
  func.func @transform_4(%arg0: i32) -> (i32, i32) {
    %c0_i32 = arith.constant 0 : i32
    %c0_i32_0 = arith.constant 0 : i32
    %c0_i32_1 = arith.constant 0 : i32
    return %c0_i32, %c0_i32_0 : i32, i32
  }
  func.func @transform_5(%arg0: i32) -> (i32, i32) {
    %c0_i32 = arith.constant 0 : i32
    %c0_i32_0 = arith.constant 0 : i32
    %c0_i32_1 = arith.constant 0 : i32
    return %c0_i32, %c0_i32_0 : i32, i32
  }
  func.func @transform_6(%arg0: i32) -> (i32, i32) {
    %c0_i32 = arith.constant 0 : i32
    %c0_i32_0 = arith.constant 0 : i32
    %c0_i32_1 = arith.constant 0 : i32
    return %c0_i32, %c0_i32_0 : i32, i32
  }
  func.func @transform_7(%arg0: i32) -> (i32, i32, i32) {
    %c0_i32 = arith.constant 0 : i32
    %c0_i32_0 = arith.constant 0 : i32
    %c0_i32_1 = arith.constant 0 : i32
    %c0_i32_2 = arith.constant 0 : i32
    return %c0_i32, %c0_i32_0, %c0_i32_1 : i32, i32, i32
  }
}

</mosaic_0001>

<llo_original>
// kernel: tpu_custom_call.1
$region0: #{tpu_custom_call.1}
  #allocation0 [shape = 'u32[]', space=smem, size = 0x4, offset = 0x4, fixed_abs, tag = 'smem constant byte address 0x4 - core index']
  #allocation1 [shape = 'u32[144,128]{1,0:T(1,128)}', space=vmem, size = 0x12000, scoped, tag = 'internal scratch']
  #allocation2 [shape = 'f32[2,4,18,18]{3,2,1,0:T(8,128)}', space=vmem, size = 0x18000, scoped, tag = 'scratch operand']
  %s0 = inlined_call_operand.vmem [shape: f32[2,4,256], index: 0, kind: input, shape index: {}]
  %s1 = inlined_call_operand.vmem [shape: f32[8,36], index: 1, kind: input, shape index: {}]
  %s2 = inlined_call_operand.vmem [shape: f32[8,1], index: 2, kind: input, shape index: {}]
  %s3 = inlined_call_operand.vmem [shape: f32[8,1], index: 3, kind: input, shape index: {}]
  %s4 = inlined_call_operand.vmem [shape: f32[4,36], index: 4, kind: input, shape index: {}]
  %s5 = inlined_call_operand.vmem [shape: f32[4,1], index: 5, kind: input, shape index: {}]
  %s6 = inlined_call_operand.vmem [shape: f32[4,1], index: 6, kind: input, shape index: {}]
  %s7 = inlined_call_operand.hbm [shape: f32[2,4,256], index: 7, kind: output, shape index: {}]
  %s8 = sld [smem:[#allocation0]]
  $region38: #{tpu_custom_call.1} parent=0
    _
  %s10 = ssub.s32 1, %s8
  %s11 = scalar_select 0, %s10, %s8
  $region1: #{tpu_custom_call.1} parent=0
    #allocation3 [shape = 'u8[8192]{0}', space=vmem, size = 0x2000, scoped, tag = 'output window, operand 0, single buffered']
    #allocation4 [shape = 's32[1]{0}', space=sflag, size = 0x4, scoped, tag = 'scoped memory for tpu_custom_call.1']
    %12 = vsyncpa [#allocation4], 0
    // Predicated region
    $region2: #{tpu_custom_call.1} parent=1 // pred_check
      _
    $region3: #{tpu_custom_call.1} parent=1 // pred_check_branch
      %14 = sbr.rel (0) target = $region5
    $region4: #{tpu_custom_call.1} parent=1 // pred_region
      _
    $region5: #{tpu_custom_call.1} parent=1 // pred_fallthru
      _
    // Predicated region
    $region6: #{tpu_custom_call.1} parent=1 // pred_check
      _
    $region7: #{tpu_custom_call.1} parent=1 // pred_check_branch
      %16 = sbr.rel (0) target = $region9
    $region8: #{tpu_custom_call.1} parent=1 // pred_region
      _
    $region9: #{tpu_custom_call.1} parent=1 // pred_fallthru
      _
    // Predicated region
    $region10: #{tpu_custom_call.1} parent=1 // pred_check
      _
    $region11: #{tpu_custom_call.1} parent=1 // pred_check_branch
      %18 = sbr.rel (0) target = $region13
    $region12: #{tpu_custom_call.1} parent=1 // pred_region
      _
    $region13: #{tpu_custom_call.1} parent=1 // pred_fallthru
      _
    // Predicated region
    $region14: #{tpu_custom_call.1} parent=1 // pred_check
      _
    $region15: #{tpu_custom_call.1} parent=1 // pred_check_branch
      %20 = sbr.rel (0) target = $region17
    $region16: #{tpu_custom_call.1} parent=1 // pred_region
      _
    $region17: #{tpu_custom_call.1} parent=1 // pred_fallthru
      _
    // Predicated region
    $region18: #{tpu_custom_call.1} parent=1 // pred_check
      _
    $region19: #{tpu_custom_call.1} parent=1 // pred_check_branch
      %22 = sbr.rel (0) target = $region21
    $region20: #{tpu_custom_call.1} parent=1 // pred_region
      _
    $region21: #{tpu_custom_call.1} parent=1 // pred_fallthru
      _
    // Predicated region
    $region22: #{tpu_custom_call.1} parent=1 // pred_check
      _
    $region23: #{tpu_custom_call.1} parent=1 // pred_check_branch
      %24 = sbr.rel (0) target = $region25
    $region24: #{tpu_custom_call.1} parent=1 // pred_region
      _
    $region25: #{tpu_custom_call.1} parent=1 // pred_fallthru
      _
    // Predicated region
    $region26: #{tpu_custom_call.1} parent=1 // pred_check
      _
    $region27: #{tpu_custom_call.1} parent=1 // pred_check_branch
      %26 = sbr.rel (0) target = $region29
    $region28: #{tpu_custom_call.1} parent=1 // pred_region
      _
    $region29: #{tpu_custom_call.1} parent=1 // pred_fallthru
      _
    %v27 = vld [vmem:[%s0] sm:$0xff]
    %v28 = vld [vmem:[%s0 + $0x8] sm:$0xff]
    %vm29 = vcmask 146432
    %30 = vst.msk [vmem:[#allocation2] sm:$0xff] %vm29, 0.0
    %31 = vst.msk [vmem:[#allocation2 + $0x8] sm:$0xff] %vm29, 0.0
    %vm32 = vcmask 140288
    %33 = vst.msk [vmem:[#allocation2 + $0x10] sm:$0x3] %vm32, 0.0
    %34 = vst.msk [vmem:[#allocation2 + $0x18] sm:$0xff] %vm29, 0.0
    %35 = vst.msk [vmem:[#allocation2 + $0x20] sm:$0xff] %vm29, 0.0
    %36 = vst.msk [vmem:[#allocation2 + $0x28] sm:$0x3] %vm32, 0.0
    %37 = vst.msk [vmem:[#allocation2 + $0x30] sm:$0xff] %vm29, 0.0
    %38 = vst.msk [vmem:[#allocation2 + $0x38] sm:$0xff] %vm29, 0.0
    %39 = vst.msk [vmem:[#allocation2 + $0x40] sm:$0x3] %vm32, 0.0
    %40 = vst.msk [vmem:[#allocation2 + $0x48] sm:$0xff] %vm29, 0.0
    %41 = vst.msk [vmem:[#allocation2 + $0x50] sm:$0xff] %vm29, 0.0
    %42 = vst.msk [vmem:[#allocation2 + $0x58] sm:$0x3] %vm32, 0.0
    %43 = vst.msk [vmem:[#allocation2 + $0x60] sm:$0xff] %vm29, 0.0
    %44 = vst.msk [vmem:[#allocation2 + $0x68] sm:$0xff] %vm29, 0.0
    %45 = vst.msk [vmem:[#allocation2 + $0x70] sm:$0x3] %vm32, 0.0
    %46 = vst.msk [vmem:[#allocation2 + $0x78] sm:$0xff] %vm29, 0.0
    %47 = vst.msk [vmem:[#allocation2 + $0x80] sm:$0xff] %vm29, 0.0
    %48 = vst.msk [vmem:[#allocation2 + $0x88] sm:$0x3] %vm32, 0.0
    %49 = vst.msk [vmem:[#allocation2 + $0x90] sm:$0xff] %vm29, 0.0
    %50 = vst.msk [vmem:[#allocation2 + $0x98] sm:$0xff] %vm29, 0.0
    %51 = vst.msk [vmem:[#allocation2 + $0xa0] sm:$0x3] %vm32, 0.0
    %52 = vst.msk [vmem:[#allocation2 + $0xa8] sm:$0xff] %vm29, 0.0
    %53 = vst.msk [vmem:[#allocation2 + $0xb0] sm:$0xff] %vm29, 0.0
    %54 = vst.msk [vmem:[#allocation2 + $0xb8] sm:$0x3] %vm32, 0.0
    %v57 = vrot.slane %v27, 4
    %v58 = vrot.slane %v28, 4
    %61 = vrot.lane.b32.xlu0 %v27, 112
    %v62 = vpop.permute.xlu0 %61
    %63 = vrot.lane.b32.xlu0 %v28, 112
    %v64 = vpop.permute.xlu0 %63
    %v65 = vrot.slane %v62, 4
    %v66 = vrot.slane %v64, 4
    %69 = vrot.lane.b32.xlu0 %v27, 96
    %v70 = vpop.permute.xlu0 %69
    %71 = vrot.lane.b32.xlu0 %v28, 96
    %v72 = vpop.permute.xlu0 %71
    %v73 = vrot.slane %v70, 4
    %v74 = vrot.slane %v72, 4
    %77 = vrot.lane.b32.xlu0 %v27, 80
    %v78 = vpop.permute.xlu0 %77
    %79 = vrot.lane.b32.xlu0 %v28, 80
    %v80 = vpop.permute.xlu0 %79
    %v81 = vrot.slane %v78, 4
    %v82 = vrot.slane %v80, 4
    %85 = vrot.lane.b32.xlu0 %v27, 64
    %v86 = vpop.permute.xlu0 %85
    %87 = vrot.lane.b32.xlu0 %v28, 64
    %v88 = vpop.permute.xlu0 %87
    %v89 = vrot.slane %v86, 4
    %v90 = vrot.slane %v88, 4
    %93 = vrot.lane.b32.xlu0 %v27, 48
    %v94 = vpop.permute.xlu0 %93
    %95 = vrot.lane.b32.xlu0 %v28, 48
    %v96 = vpop.permute.xlu0 %95
    %v97 = vrot.slane %v94, 4
    %v98 = vrot.slane %v96, 4
    %101 = vrot.lane.b32.xlu0 %v27, 32
    %v102 = vpop.permute.xlu0 %101
    %103 = vrot.lane.b32.xlu0 %v28, 32
    %v104 = vpop.permute.xlu0 %103
    %v105 = vrot.slane %v102, 4
    %v106 = vrot.slane %v104, 4
    %109 = vrot.lane.b32.xlu0 %v27, 16
    %v110 = vpop.permute.xlu0 %109
    %111 = vrot.lane.b32.xlu0 %v28, 16
    %v112 = vpop.permute.xlu0 %111
    %v113 = vrot.slane %v110, 4
    %v114 = vrot.slane %v112, 4
    %v131 = vcombine.low %v27, %v70
    %v133 = vunpack.c.l.s4 1983009808
    %v134 = vunpack.c.0.s8 %v133
    %v135 = vlaneseq
    %v136 = vshrl.u32 %v135, 7
    %v137 = vsub.s32 %v134, %v136
    %v138 = vrot.slane %v131, %v137
    %v139 = vcombine.low %v62, %v78
    %v141 = vunpack.c.l.s4 1983009808
    %v142 = vunpack.c.0.s8 %v141
    %v143 = vlaneseq
    %v144 = vshrl.u32 %v143, 7
    %v145 = vsub.s32 %v142, %v144
    %v146 = vrot.slane %v139, %v145
    %v147 = vcombine.low %v138, %v146
    %v148 = vcombine.high %v138, %v146
    %v150 = vunpack.c.l.s4 1934713408
    %v151 = vunpack.c.0.s8 %v150
    %v152 = vlaneseq
    %v153 = vshrl.u32 %v152, 7
    %v154 = vsub.s32 %v151, %v153
    %v155 = vrot.slane %v147, %v154
    %v157 = vunpack.c.l.s4 1934713408
    %v158 = vunpack.c.0.s8 %v157
    %v159 = vlaneseq
    %v160 = vshrl.u32 %v159, 7
    %v161 = vsub.s32 %v158, %v160
    %v162 = vrot.slane %v148, %v161
    %v163 = vcombine.high %v155, 0.0
    %v164 = vcombine.high %v162, 0.0
    %v165 = vcombine.low %v86, %v102
    %v167 = vunpack.c.l.s4 1983009808
    %v168 = vunpack.c.0.s8 %v167
    %v169 = vlaneseq
    %v170 = vshrl.u32 %v169, 7
    %v171 = vsub.s32 %v168, %v170
    %v172 = vrot.slane %v165, %v171
    %v173 = vcombine.low %v94, %v110
    %v175 = vunpack.c.l.s4 1983009808
    %v176 = vunpack.c.0.s8 %v175
    %v177 = vlaneseq
    %v178 = vshrl.u32 %v177, 7
    %v179 = vsub.s32 %v176, %v178
    %v180 = vrot.slane %v173, %v179
    %v181 = vcombine.low %v172, %v180
    %v182 = vcombine.high %v172, %v180
    %v184 = vunpack.c.l.s4 1934713408
    %v185 = vunpack.c.0.s8 %v184
    %v186 = vlaneseq
    %v187 = vshrl.u32 %v186, 7
    %v188 = vsub.s32 %v185, %v187
    %v189 = vrot.slane %v181, %v188
    %v191 = vunpack.c.l.s4 1934713408
    %v192 = vunpack.c.0.s8 %v191
    %v193 = vlaneseq
    %v194 = vshrl.u32 %v193, 7
    %v195 = vsub.s32 %v192, %v194
    %v196 = vrot.slane %v182, %v195
    %v197 = vcombine.high %v189, 0.0
    %v198 = vcombine.high %v196, 0.0
    %v199 = vcombine.low %v57, %v73
    %v201 = vunpack.c.l.s4 1983009808
    %v202 = vunpack.c.0.s8 %v201
    %v203 = vlaneseq
    %v204 = vshrl.u32 %v203, 7
    %v205 = vsub.s32 %v202, %v204
    %v206 = vrot.slane %v199, %v205
    %v207 = vcombine.low %v65, %v81
    %v209 = vunpack.c.l.s4 1983009808
    %v210 = vunpack.c.0.s8 %v209
    %v211 = vlaneseq
    %v212 = vshrl.u32 %v211, 7
    %v213 = vsub.s32 %v210, %v212
    %v214 = vrot.slane %v207, %v213
    %v215 = vcombine.low %v206, %v214
    %v216 = vcombine.high %v206, %v214
    %v218 = vunpack.c.l.s4 1934713408
    %v219 = vunpack.c.0.s8 %v218
    %v220 = vlaneseq
    %v221 = vshrl.u32 %v220, 7
    %v222 = vsub.s32 %v219, %v221
    %v223 = vrot.slane %v215, %v222
    %v225 = vunpack.c.l.s4 1934713408
    %v226 = vunpack.c.0.s8 %v225
    %v227 = vlaneseq
    %v228 = vshrl.u32 %v227, 7
    %v229 = vsub.s32 %v226, %v228
    %v230 = vrot.slane %v216, %v229
    %v231 = vcombine.high %v223, 0.0
    %v232 = vcombine.high %v230, 0.0
    %v233 = vcombine.low %v89, %v105
    %v235 = vunpack.c.l.s4 1983009808
    %v236 = vunpack.c.0.s8 %v235
    %v237 = vlaneseq
    %v238 = vshrl.u32 %v237, 7
    %v239 = vsub.s32 %v236, %v238
    %v240 = vrot.slane %v233, %v239
    %v241 = vcombine.low %v97, %v113
    %v243 = vunpack.c.l.s4 1983009808
    %v244 = vunpack.c.0.s8 %v243
    %v245 = vlaneseq
    %v246 = vshrl.u32 %v245, 7
    %v247 = vsub.s32 %v244, %v246
    %v248 = vrot.slane %v241, %v247
    %v249 = vcombine.low %v240, %v248
    %v250 = vcombine.high %v240, %v248
    %v252 = vunpack.c.l.s4 1934713408
    %v253 = vunpack.c.0.s8 %v252
    %v254 = vlaneseq
    %v255 = vshrl.u32 %v254, 7
    %v256 = vsub.s32 %v253, %v255
    %v257 = vrot.slane %v249, %v256
    %v259 = vunpack.c.l.s4 1934713408
    %v260 = vunpack.c.0.s8 %v259
    %v261 = vlaneseq
    %v262 = vshrl.u32 %v261, 7
    %v263 = vsub.s32 %v260, %v262
    %v264 = vrot.slane %v250, %v263
    %v265 = vcombine.high %v257, 0.0
    %v266 = vcombine.high %v264, 0.0
    %v267 = vcombine.low %v28, %v72
    %v269 = vunpack.c.l.s4 1983009808
    %v270 = vunpack.c.0.s8 %v269
    %v271 = vlaneseq
    %v272 = vshrl.u32 %v271, 7
    %v273 = vsub.s32 %v270, %v272
    %v274 = vrot.slane %v267, %v273
    %v275 = vcombine.low %v64, %v80
    %v277 = vunpack.c.l.s4 1983009808
    %v278 = vunpack.c.0.s8 %v277
    %v279 = vlaneseq
    %v280 = vshrl.u32 %v279, 7
    %v281 = vsub.s32 %v278, %v280
    %v282 = vrot.slane %v275, %v281
    %v283 = vcombine.low %v274, %v282
    %v284 = vcombine.high %v274, %v282
    %v286 = vunpack.c.l.s4 1934713408
    %v287 = vunpack.c.0.s8 %v286
    %v288 = vlaneseq
    %v289 = vshrl.u32 %v288, 7
    %v290 = vsub.s32 %v287, %v289
    %v291 = vrot.slane %v283, %v290
    %v293 = vunpack.c.l.s4 1934713408
    %v294 = vunpack.c.0.s8 %v293
    %v295 = vlaneseq
    %v296 = vshrl.u32 %v295, 7
    %v297 = vsub.s32 %v294, %v296
    %v298 = vrot.slane %v284, %v297
    %v299 = vcombine.high %v291, 0.0
    %v300 = vcombine.high %v298, 0.0
    %v301 = vcombine.low %v88, %v104
    %v303 = vunpack.c.l.s4 1983009808
    %v304 = vunpack.c.0.s8 %v303
    %v305 = vlaneseq
    %v306 = vshrl.u32 %v305, 7
    %v307 = vsub.s32 %v304, %v306
    %v308 = vrot.slane %v301, %v307
    %v309 = vcombine.low %v96, %v112
    %v311 = vunpack.c.l.s4 1983009808
    %v312 = vunpack.c.0.s8 %v311
    %v313 = vlaneseq
    %v314 = vshrl.u32 %v313, 7
    %v315 = vsub.s32 %v312, %v314
    %v316 = vrot.slane %v309, %v315
    %v317 = vcombine.low %v308, %v316
    %v318 = vcombine.high %v308, %v316
    %v320 = vunpack.c.l.s4 1934713408
    %v321 = vunpack.c.0.s8 %v320
    %v322 = vlaneseq
    %v323 = vshrl.u32 %v322, 7
    %v324 = vsub.s32 %v321, %v323
    %v325 = vrot.slane %v317, %v324
    %v327 = vunpack.c.l.s4 1934713408
    %v328 = vunpack.c.0.s8 %v327
    %v329 = vlaneseq
    %v330 = vshrl.u32 %v329, 7
    %v331 = vsub.s32 %v328, %v330
    %v332 = vrot.slane %v318, %v331
    %v333 = vcombine.high %v325, 0.0
    %v334 = vcombine.high %v332, 0.0
    %v335 = vcombine.low %v58, %v74
    %v337 = vunpack.c.l.s4 1983009808
    %v338 = vunpack.c.0.s8 %v337
    %v339 = vlaneseq
    %v340 = vshrl.u32 %v339, 7
    %v341 = vsub.s32 %v338, %v340
    %v342 = vrot.slane %v335, %v341
    %v343 = vcombine.low %v66, %v82
    %v345 = vunpack.c.l.s4 1983009808
    %v346 = vunpack.c.0.s8 %v345
    %v347 = vlaneseq
    %v348 = vshrl.u32 %v347, 7
    %v349 = vsub.s32 %v346, %v348
    %v350 = vrot.slane %v343, %v349
    %v351 = vcombine.low %v342, %v350
    %v352 = vcombine.high %v342, %v350
    %v354 = vunpack.c.l.s4 1934713408
    %v355 = vunpack.c.0.s8 %v354
    %v356 = vlaneseq
    %v357 = vshrl.u32 %v356, 7
    %v358 = vsub.s32 %v355, %v357
    %v359 = vrot.slane %v351, %v358
    %v361 = vunpack.c.l.s4 1934713408
    %v362 = vunpack.c.0.s8 %v361
    %v363 = vlaneseq
    %v364 = vshrl.u32 %v363, 7
    %v365 = vsub.s32 %v362, %v364
    %v366 = vrot.slane %v352, %v365
    %v367 = vcombine.high %v359, 0.0
    %v368 = vcombine.high %v366, 0.0
    %v369 = vcombine.low %v90, %v106
    %v371 = vunpack.c.l.s4 1983009808
    %v372 = vunpack.c.0.s8 %v371
    %v373 = vlaneseq
    %v374 = vshrl.u32 %v373, 7
    %v375 = vsub.s32 %v372, %v374
    %v376 = vrot.slane %v369, %v375
    %v377 = vcombine.low %v98, %v114
    %v379 = vunpack.c.l.s4 1983009808
    %v380 = vunpack.c.0.s8 %v379
    %v381 = vlaneseq
    %v382 = vshrl.u32 %v381, 7
    %v383 = vsub.s32 %v380, %v382
    %v384 = vrot.slane %v377, %v383
    %v385 = vcombine.low %v376, %v384
    %v386 = vcombine.high %v376, %v384
    %v388 = vunpack.c.l.s4 1934713408
    %v389 = vunpack.c.0.s8 %v388
    %v390 = vlaneseq
    %v391 = vshrl.u32 %v390, 7
    %v392 = vsub.s32 %v389, %v391
    %v393 = vrot.slane %v385, %v392
    %v395 = vunpack.c.l.s4 1934713408
    %v396 = vunpack.c.0.s8 %v395
    %v397 = vlaneseq
    %v398 = vshrl.u32 %v397, 7
    %v399 = vsub.s32 %v396, %v398
    %v400 = vrot.slane %v386, %v399
    %v401 = vcombine.high %v393, 0.0
    %v402 = vcombine.high %v400, 0.0
    %v435 = vcombine.low %v155, %v189
    %v436 = vcombine.low %v223, %v257
    %v437 = vcombine.low %v163, %v197
    %v438 = vcombine.low %v231, %v265
    %v439 = vcombine.low %v162, %v196
    %v440 = vcombine.low %v230, %v264
    %v441 = vcombine.low %v164, %v198
    %v442 = vcombine.low %v232, %v266
    %v443 = vcombine.low %v291, %v325
    %v444 = vcombine.low %v359, %v393
    %v445 = vcombine.low %v299, %v333
    %v446 = vcombine.low %v367, %v401
    %v447 = vcombine.low %v298, %v332
    %v448 = vcombine.low %v366, %v400
    %v449 = vcombine.low %v300, %v334
    %v450 = vcombine.low %v368, %v402
    %451 = vrot.lane.b32.xlu0 %v435, 1
    %v452 = vpop.permute.xlu0 %451
    %453 = vrot.lane.b32.xlu0 %v436, 1
    %v454 = vpop.permute.xlu0 %453
    %455 = vrot.lane.b32.xlu0 %v437, 1
    %v456 = vpop.permute.xlu0 %455
    %457 = vrot.lane.b32.xlu0 %v438, 1
    %v458 = vpop.permute.xlu0 %457
    %459 = vrot.lane.b32.xlu0 %v439, 1
    %v460 = vpop.permute.xlu0 %459
    %461 = vrot.lane.b32.xlu0 %v440, 1
    %v462 = vpop.permute.xlu0 %461
    %463 = vrot.lane.b32.xlu0 %v441, 1
    %v464 = vpop.permute.xlu0 %463
    %465 = vrot.lane.b32.xlu0 %v442, 1
    %v466 = vpop.permute.xlu0 %465
    %467 = vrot.lane.b32.xlu0 %v443, 1
    %v468 = vpop.permute.xlu0 %467
    %469 = vrot.lane.b32.xlu0 %v444, 1
    %v470 = vpop.permute.xlu0 %469
    %471 = vrot.lane.b32.xlu0 %v445, 1
    %v472 = vpop.permute.xlu0 %471
    %473 = vrot.lane.b32.xlu0 %v446, 1
    %v474 = vpop.permute.xlu0 %473
    %475 = vrot.lane.b32.xlu0 %v447, 1
    %v476 = vpop.permute.xlu0 %475
    %477 = vrot.lane.b32.xlu0 %v448, 1
    %v478 = vpop.permute.xlu0 %477
    %479 = vrot.lane.b32.xlu0 %v449, 1
    %v480 = vpop.permute.xlu0 %479
    %481 = vrot.lane.b32.xlu0 %v450, 1
    %v482 = vpop.permute.xlu0 %481
    %vm499 = vcmask 138248
    %500 = vst.msk [vmem:[#allocation2 + $0x1] sm:$0xff] %vm499, %v452
    %501 = vst.msk [vmem:[#allocation2 + $0x9] sm:$0xff] %vm499, %v454
    %502 = vst.msk [vmem:[#allocation2 + $0x19] sm:$0xff] %vm499, %v456
    %503 = vst.msk [vmem:[#allocation2 + $0x21] sm:$0xff] %vm499, %v458
    %504 = vst.msk [vmem:[#allocation2 + $0x31] sm:$0xff] %vm499, %v460
    %505 = vst.msk [vmem:[#allocation2 + $0x39] sm:$0xff] %vm499, %v462
    %506 = vst.msk [vmem:[#allocation2 + $0x49] sm:$0xff] %vm499, %v464
    %507 = vst.msk [vmem:[#allocation2 + $0x51] sm:$0xff] %vm499, %v466
    %508 = vst.msk [vmem:[#allocation2 + $0x61] sm:$0xff] %vm499, %v468
    %509 = vst.msk [vmem:[#allocation2 + $0x69] sm:$0xff] %vm499, %v470
    %510 = vst.msk [vmem:[#allocation2 + $0x79] sm:$0xff] %vm499, %v472
    %511 = vst.msk [vmem:[#allocation2 + $0x81] sm:$0xff] %vm499, %v474
    %512 = vst.msk [vmem:[#allocation2 + $0x91] sm:$0xff] %vm499, %v476
    %513 = vst.msk [vmem:[#allocation2 + $0x99] sm:$0xff] %vm499, %v478
    %514 = vst.msk [vmem:[#allocation2 + $0xa9] sm:$0xff] %vm499, %v480
    %515 = vst.msk [vmem:[#allocation2 + $0xb1] sm:$0xff] %vm499, %v482
    %v516 = vld [vmem:[#allocation2] sm:$0xff]
    %v517 = vld [vmem:[#allocation2 + $0x8] sm:$0xff]
    %v518 = vld [vmem:[#allocation2 + $0x10] sm:$0x3]
    %v519 = vld [vmem:[#allocation2 + $0x18] sm:$0xff]
    %v520 = vld [vmem:[#allocation2 + $0x20] sm:$0xff]
    %v521 = vld [vmem:[#allocation2 + $0x28] sm:$0x3]
    %v522 = vld [vmem:[#allocation2 + $0x30] sm:$0xff]
    %v523 = vld [vmem:[#allocation2 + $0x38] sm:$0xff]
    %v524 = vld [vmem:[#allocation2 + $0x40] sm:$0x3]
    %v525 = vld [vmem:[#allocation2 + $0x48] sm:$0xff]
    %v526 = vld [vmem:[#allocation2 + $0x50] sm:$0xff]
    %v527 = vld [vmem:[#allocation2 + $0x58] sm:$0x3]
    %v528 = vld [vmem:[#allocation2 + $0x60] sm:$0xff]
    %v529 = vld [vmem:[#allocation2 + $0x68] sm:$0xff]
    %v530 = vld [vmem:[#allocation2 + $0x70] sm:$0x3]
    %v531 = vld [vmem:[#allocation2 + $0x78] sm:$0xff]
    %v532 = vld [vmem:[#allocation2 + $0x80] sm:$0xff]
    %v533 = vld [vmem:[#allocation2 + $0x88] sm:$0x3]
    %v534 = vld [vmem:[#allocation2 + $0x90] sm:$0xff]
    %v535 = vld [vmem:[#allocation2 + $0x98] sm:$0xff]
    %v536 = vld [vmem:[#allocation2 + $0xa0] sm:$0x3]
    %v537 = vld [vmem:[#allocation2 + $0xa8] sm:$0xff]
    %v538 = vld [vmem:[#allocation2 + $0xb0] sm:$0xff]
    %v539 = vld [vmem:[#allocation2 + $0xb8] sm:$0x3]
    %v540 = vcombine.low %v516, %v522
    %v541 = vcombine.high %v516, %v522
    %v543 = vunpack.c.l.s4 1983009808
    %v544 = vunpack.c.0.s8 %v543
    %v545 = vlaneseq
    %v546 = vshrl.u32 %v545, 7
    %v547 = vsub.s32 %v544, %v546
    %v548 = vrot.slane %v540, %v547
    %v550 = vunpack.c.l.s4 1983009808
    %v551 = vunpack.c.0.s8 %v550
    %v552 = vlaneseq
    %v553 = vshrl.u32 %v552, 7
    %v554 = vsub.s32 %v551, %v553
    %v555 = vrot.slane %v541, %v554
    %v556 = vcombine.low %v519, %v525
    %v557 = vcombine.high %v519, %v525
    %v559 = vunpack.c.l.s4 1983009808
    %v560 = vunpack.c.0.s8 %v559
    %v561 = vlaneseq
    %v562 = vshrl.u32 %v561, 7
    %v563 = vsub.s32 %v560, %v562
    %v564 = vrot.slane %v556, %v563
    %v566 = vunpack.c.l.s4 1983009808
    %v567 = vunpack.c.0.s8 %v566
    %v568 = vlaneseq
    %v569 = vshrl.u32 %v568, 7
    %v570 = vsub.s32 %v567, %v569
    %v571 = vrot.slane %v557, %v570
    %v572 = vcombine.low %v548, %v564
    %v573 = vcombine.high %v548, %v564
    %v575 = vunpack.c.l.s4 1934713408
    %v576 = vunpack.c.0.s8 %v575
    %v577 = vlaneseq
    %v578 = vshrl.u32 %v577, 7
    %v579 = vsub.s32 %v576, %v578
    %v580 = vrot.slane %v572, %v579
    %v582 = vunpack.c.l.s4 1934713408
    %v583 = vunpack.c.0.s8 %v582
    %v584 = vlaneseq
    %v585 = vshrl.u32 %v584, 7
    %v586 = vsub.s32 %v583, %v585
    %v587 = vrot.slane %v573, %v586
    %v588 = vcombine.low %v555, %v571
    %v589 = vcombine.high %v555, %v571
    %v591 = vunpack.c.l.s4 1934713408
    %v592 = vunpack.c.0.s8 %v591
    %v593 = vlaneseq
    %v594 = vshrl.u32 %v593, 7
    %v595 = vsub.s32 %v592, %v594
    %v596 = vrot.slane %v588, %v595
    %v598 = vunpack.c.l.s4 1934713408
    %v599 = vunpack.c.0.s8 %v598
    %v600 = vlaneseq
    %v601 = vshrl.u32 %v600, 7
    %v602 = vsub.s32 %v599, %v601
    %v603 = vrot.slane %v589, %v602
    %v604 = vcombine.high %v580, 0.0
    %v605 = vcombine.high %v587, 0.0
    %v606 = vcombine.high %v596, 0.0
    %v607 = vcombine.high %v603, 0.0
    %v608 = vcombine.low %v517, %v523
    %v609 = vcombine.high %v517, %v523
    %v611 = vunpack.c.l.s4 1983009808
    %v612 = vunpack.c.0.s8 %v611
    %v613 = vlaneseq
    %v614 = vshrl.u32 %v613, 7
    %v615 = vsub.s32 %v612, %v614
    %v616 = vrot.slane %v608, %v615
    %v618 = vunpack.c.l.s4 1983009808
    %v619 = vunpack.c.0.s8 %v618
    %v620 = vlaneseq
    %v621 = vshrl.u32 %v620, 7
    %v622 = vsub.s32 %v619, %v621
    %v623 = vrot.slane %v609, %v622
    %v624 = vcombine.low %v520, %v526
    %v625 = vcombine.high %v520, %v526
    %v627 = vunpack.c.l.s4 1983009808
    %v628 = vunpack.c.0.s8 %v627
    %v629 = vlaneseq
    %v630 = vshrl.u32 %v629, 7
    %v631 = vsub.s32 %v628, %v630
    %v632 = vrot.slane %v624, %v631
    %v634 = vunpack.c.l.s4 1983009808
    %v635 = vunpack.c.0.s8 %v634
    %v636 = vlaneseq
    %v637 = vshrl.u32 %v636, 7
    %v638 = vsub.s32 %v635, %v637
    %v639 = vrot.slane %v625, %v638
    %v640 = vcombine.low %v616, %v632
    %v641 = vcombine.high %v616, %v632
    %v643 = vunpack.c.l.s4 1934713408
    %v644 = vunpack.c.0.s8 %v643
    %v645 = vlaneseq
    %v646 = vshrl.u32 %v645, 7
    %v647 = vsub.s32 %v644, %v646
    %v648 = vrot.slane %v640, %v647
    %v650 = vunpack.c.l.s4 1934713408
    %v651 = vunpack.c.0.s8 %v650
    %v652 = vlaneseq
    %v653 = vshrl.u32 %v652, 7
    %v654 = vsub.s32 %v651, %v653
    %v655 = vrot.slane %v641, %v654
    %v656 = vcombine.low %v623, %v639
    %v657 = vcombine.high %v623, %v639
    %v659 = vunpack.c.l.s4 1934713408
    %v660 = vunpack.c.0.s8 %v659
    %v661 = vlaneseq
    %v662 = vshrl.u32 %v661, 7
    %v663 = vsub.s32 %v660, %v662
    %v664 = vrot.slane %v656, %v663
    %v666 = vunpack.c.l.s4 1934713408
    %v667 = vunpack.c.0.s8 %v666
    %v668 = vlaneseq
    %v669 = vshrl.u32 %v668, 7
    %v670 = vsub.s32 %v667, %v669
    %v671 = vrot.slane %v657, %v670
    %v672 = vcombine.high %v648, 0.0
    %v673 = vcombine.high %v655, 0.0
    %v674 = vcombine.high %v664, 0.0
    %v675 = vcombine.high %v671, 0.0
    %v676 = vcombine.low %v528, %v534
    %v677 = vcombine.high %v528, %v534
    %v679 = vunpack.c.l.s4 1983009808
    %v680 = vunpack.c.0.s8 %v679
    %v681 = vlaneseq
    %v682 = vshrl.u32 %v681, 7
    %v683 = vsub.s32 %v680, %v682
    %v684 = vrot.slane %v676, %v683
    %v686 = vunpack.c.l.s4 1983009808
    %v687 = vunpack.c.0.s8 %v686
    %v688 = vlaneseq
    %v689 = vshrl.u32 %v688, 7
    %v690 = vsub.s32 %v687, %v689
    %v691 = vrot.slane %v677, %v690
    %v692 = vcombine.low %v531, %v537
    %v693 = vcombine.high %v531, %v537
    %v695 = vunpack.c.l.s4 1983009808
    %v696 = vunpack.c.0.s8 %v695
    %v697 = vlaneseq
    %v698 = vshrl.u32 %v697, 7
    %v699 = vsub.s32 %v696, %v698
    %v700 = vrot.slane %v692, %v699
    %v702 = vunpack.c.l.s4 1983009808
    %v703 = vunpack.c.0.s8 %v702
    %v704 = vlaneseq
    %v705 = vshrl.u32 %v704, 7
    %v706 = vsub.s32 %v703, %v705
    %v707 = vrot.slane %v693, %v706
    %v708 = vcombine.low %v684, %v700
    %v709 = vcombine.high %v684, %v700
    %v711 = vunpack.c.l.s4 1934713408
    %v712 = vunpack.c.0.s8 %v711
    %v713 = vlaneseq
    %v714 = vshrl.u32 %v713, 7
    %v715 = vsub.s32 %v712, %v714
    %v716 = vrot.slane %v708, %v715
    %v718 = vunpack.c.l.s4 1934713408
    %v719 = vunpack.c.0.s8 %v718
    %v720 = vlaneseq
    %v721 = vshrl.u32 %v720, 7
    %v722 = vsub.s32 %v719, %v721
    %v723 = vrot.slane %v709, %v722
    %v724 = vcombine.low %v691, %v707
    %v725 = vcombine.high %v691, %v707
    %v727 = vunpack.c.l.s4 1934713408
    %v728 = vunpack.c.0.s8 %v727
    %v729 = vlaneseq
    %v730 = vshrl.u32 %v729, 7
    %v731 = vsub.s32 %v728, %v730
    %v732 = vrot.slane %v724, %v731
    %v734 = vunpack.c.l.s4 1934713408
    %v735 = vunpack.c.0.s8 %v734
    %v736 = vlaneseq
    %v737 = vshrl.u32 %v736, 7
    %v738 = vsub.s32 %v735, %v737
    %v739 = vrot.slane %v725, %v738
    %v740 = vcombine.high %v716, 0.0
    %v741 = vcombine.high %v723, 0.0
    %v742 = vcombine.high %v732, 0.0
    %v743 = vcombine.high %v739, 0.0
    %v744 = vcombine.low %v529, %v535
    %v745 = vcombine.high %v529, %v535
    %v747 = vunpack.c.l.s4 1983009808
    %v748 = vunpack.c.0.s8 %v747
    %v749 = vlaneseq
    %v750 = vshrl.u32 %v749, 7
    %v751 = vsub.s32 %v748, %v750
    %v752 = vrot.slane %v744, %v751
    %v754 = vunpack.c.l.s4 1983009808
    %v755 = vunpack.c.0.s8 %v754
    %v756 = vlaneseq
    %v757 = vshrl.u32 %v756, 7
    %v758 = vsub.s32 %v755, %v757
    %v759 = vrot.slane %v745, %v758
    %v760 = vcombine.low %v532, %v538
    %v761 = vcombine.high %v532, %v538
    %v763 = vunpack.c.l.s4 1983009808
    %v764 = vunpack.c.0.s8 %v763
    %v765 = vlaneseq
    %v766 = vshrl.u32 %v765, 7
    %v767 = vsub.s32 %v764, %v766
    %v768 = vrot.slane %v760, %v767
    %v770 = vunpack.c.l.s4 1983009808
    %v771 = vunpack.c.0.s8 %v770
    %v772 = vlaneseq
    %v773 = vshrl.u32 %v772, 7
    %v774 = vsub.s32 %v771, %v773
    %v775 = vrot.slane %v761, %v774
    %v776 = vcombine.low %v752, %v768
    %v777 = vcombine.high %v752, %v768
    %v779 = vunpack.c.l.s4 1934713408
    %v780 = vunpack.c.0.s8 %v779
    %v781 = vlaneseq
    %v782 = vshrl.u32 %v781, 7
    %v783 = vsub.s32 %v780, %v782
    %v784 = vrot.slane %v776, %v783
    %v786 = vunpack.c.l.s4 1934713408
    %v787 = vunpack.c.0.s8 %v786
    %v788 = vlaneseq
    %v789 = vshrl.u32 %v788, 7
    %v790 = vsub.s32 %v787, %v789
    %v791 = vrot.slane %v777, %v790
    %v792 = vcombine.low %v759, %v775
    %v793 = vcombine.high %v759, %v775
    %v795 = vunpack.c.l.s4 1934713408
    %v796 = vunpack.c.0.s8 %v795
    %v797 = vlaneseq
    %v798 = vshrl.u32 %v797, 7
    %v799 = vsub.s32 %v796, %v798
    %v800 = vrot.slane %v792, %v799
    %v802 = vunpack.c.l.s4 1934713408
    %v803 = vunpack.c.0.s8 %v802
    %v804 = vlaneseq
    %v805 = vshrl.u32 %v804, 7
    %v806 = vsub.s32 %v803, %v805
    %v807 = vrot.slane %v793, %v806
    %v808 = vcombine.high %v784, 0.0
    %v809 = vcombine.high %v791, 0.0
    %v810 = vcombine.high %v800, 0.0
    %v811 = vcombine.high %v807, 0.0
    %814 = vrot.lane.b32.xlu0 %v604, 16
    %v815 = vpop.permute.xlu0 %814
    %816 = vrot.lane.b32.xlu0 %v740, 16
    %v817 = vpop.permute.xlu0 %816
    %822 = vrot.lane.b32.xlu0 %v587, 32
    %v823 = vpop.permute.xlu0 %822
    %824 = vrot.lane.b32.xlu0 %v723, 32
    %v825 = vpop.permute.xlu0 %824
    %830 = vrot.lane.b32.xlu0 %v605, 48
    %v831 = vpop.permute.xlu0 %830
    %832 = vrot.lane.b32.xlu0 %v741, 48
    %v833 = vpop.permute.xlu0 %832
    %838 = vrot.lane.b32.xlu0 %v596, 64
    %v839 = vpop.permute.xlu0 %838
    %840 = vrot.lane.b32.xlu0 %v732, 64
    %v841 = vpop.permute.xlu0 %840
    %846 = vrot.lane.b32.xlu0 %v606, 80
    %v847 = vpop.permute.xlu0 %846
    %848 = vrot.lane.b32.xlu0 %v742, 80
    %v849 = vpop.permute.xlu0 %848
    %854 = vrot.lane.b32.xlu0 %v603, 96
    %v855 = vpop.permute.xlu0 %854
    %856 = vrot.lane.b32.xlu0 %v739, 96
    %v857 = vpop.permute.xlu0 %856
    %862 = vrot.lane.b32.xlu0 %v607, 112
    %v863 = vpop.permute.xlu0 %862
    %864 = vrot.lane.b32.xlu0 %v743, 112
    %v865 = vpop.permute.xlu0 %864
    %870 = vrot.lane.b32.xlu0 %v672, 16
    %v871 = vpop.permute.xlu0 %870
    %872 = vrot.lane.b32.xlu0 %v808, 16
    %v873 = vpop.permute.xlu0 %872
    %878 = vrot.lane.b32.xlu0 %v655, 32
    %v879 = vpop.permute.xlu0 %878
    %880 = vrot.lane.b32.xlu0 %v791, 32
    %v881 = vpop.permute.xlu0 %880
    %886 = vrot.lane.b32.xlu0 %v673, 48
    %v887 = vpop.permute.xlu0 %886
    %888 = vrot.lane.b32.xlu0 %v809, 48
    %v889 = vpop.permute.xlu0 %888
    %894 = vrot.lane.b32.xlu0 %v664, 64
    %v895 = vpop.permute.xlu0 %894
    %896 = vrot.lane.b32.xlu0 %v800, 64
    %v897 = vpop.permute.xlu0 %896
    %902 = vrot.lane.b32.xlu0 %v674, 80
    %v903 = vpop.permute.xlu0 %902
    %904 = vrot.lane.b32.xlu0 %v810, 80
    %v905 = vpop.permute.xlu0 %904
    %910 = vrot.lane.b32.xlu0 %v671, 96
    %v911 = vpop.permute.xlu0 %910
    %912 = vrot.lane.b32.xlu0 %v807, 96
    %v913 = vpop.permute.xlu0 %912
    %918 = vrot.lane.b32.xlu0 %v675, 112
    %v919 = vpop.permute.xlu0 %918
    %920 = vrot.lane.b32.xlu0 %v811, 112
    %v921 = vpop.permute.xlu0 %920
    %vm924 = vcmask 130048
    %v925 = vsel %vm924, %v580, %v815
    %v926 = vsel %vm924, %v716, %v817
    %vm927 = vcmask 261120
    %v928 = vsel %vm927, %v925, %v823
    %v929 = vsel %vm927, %v926, %v825
    %vm930 = vcmask 392192
    %v931 = vsel %vm930, %v928, %v831
    %v932 = vsel %vm930, %v929, %v833
    %vm933 = vcmask 523264
    %v934 = vsel %vm933, %v931, %v839
    %v935 = vsel %vm933, %v932, %v841
    %vm936 = vcmask 654336
    %v937 = vsel %vm936, %v934, %v847
    %v938 = vsel %vm936, %v935, %v849
    %vm939 = vcmask 785408
    %v940 = vsel %vm939, %v937, %v855
    %v941 = vsel %vm939, %v938, %v857
    %vm942 = vcmask 916480
    %v943 = vsel %vm942, %v940, %v863
    %v944 = vsel %vm942, %v941, %v865
    %v945 = vsel %vm924, %v648, %v871
    %v946 = vsel %vm924, %v784, %v873
    %v947 = vsel %vm927, %v945, %v879
    %v948 = vsel %vm927, %v946, %v881
    %v949 = vsel %vm930, %v947, %v887
    %v950 = vsel %vm930, %v948, %v889
    %v951 = vsel %vm933, %v949, %v895
    %v952 = vsel %vm933, %v950, %v897
    %v953 = vsel %vm936, %v951, %v903
    %v954 = vsel %vm936, %v952, %v905
    %v955 = vsel %vm939, %v953, %v911
    %v956 = vsel %vm939, %v954, %v913
    %v957 = vsel %vm942, %v955, %v919
    %v958 = vsel %vm942, %v956, %v921
    %975 = vrot.lane.b32.xlu0 %v516, 127
    %v976 = vpop.permute.xlu0 %975
    %977 = vrot.lane.b32.xlu0 %v517, 127
    %v978 = vpop.permute.xlu0 %977
    %979 = vrot.lane.b32.xlu0 %v519, 127
    %v980 = vpop.permute.xlu0 %979
    %981 = vrot.lane.b32.xlu0 %v520, 127
    %v982 = vpop.permute.xlu0 %981
    %983 = vrot.lane.b32.xlu0 %v522, 127
    %v984 = vpop.permute.xlu0 %983
    %985 = vrot.lane.b32.xlu0 %v523, 127
    %v986 = vpop.permute.xlu0 %985
    %987 = vrot.lane.b32.xlu0 %v525, 127
    %v988 = vpop.permute.xlu0 %987
    %989 = vrot.lane.b32.xlu0 %v526, 127
    %v990 = vpop.permute.xlu0 %989
    %991 = vrot.lane.b32.xlu0 %v528, 127
    %v992 = vpop.permute.xlu0 %991
    %993 = vrot.lane.b32.xlu0 %v529, 127
    %v994 = vpop.permute.xlu0 %993
    %995 = vrot.lane.b32.xlu0 %v531, 127
    %v996 = vpop.permute.xlu0 %995
    %997 = vrot.lane.b32.xlu0 %v532, 127
    %v998 = vpop.permute.xlu0 %997
    %999 = vrot.lane.b32.xlu0 %v534, 127
    %v1000 = vpop.permute.xlu0 %999
    %1001 = vrot.lane.b32.xlu0 %v535, 127
    %v1002 = vpop.permute.xlu0 %1001
    %1003 = vrot.lane.b32.xlu0 %v537, 127
    %v1004 = vpop.permute.xlu0 %1003
    %1005 = vrot.lane.b32.xlu0 %v538, 127
    %v1006 = vpop.permute.xlu0 %1005
    %v1023 = vcombine.low %v976, %v984
    %v1024 = vcombine.high %v976, %v984
    %v1026 = vunpack.c.l.s4 1983009808
    %v1027 = vunpack.c.0.s8 %v1026
    %v1028 = vlaneseq
    %v1029 = vshrl.u32 %v1028, 7
    %v1030 = vsub.s32 %v1027, %v1029
    %v1031 = vrot.slane %v1023, %v1030
    %v1033 = vunpack.c.l.s4 1983009808
    %v1034 = vunpack.c.0.s8 %v1033
    %v1035 = vlaneseq
    %v1036 = vshrl.u32 %v1035, 7
    %v1037 = vsub.s32 %v1034, %v1036
    %v1038 = vrot.slane %v1024, %v1037
    %v1039 = vcombine.low %v980, %v988
    %v1040 = vcombine.high %v980, %v988
    %v1042 = vunpack.c.l.s4 1983009808
    %v1043 = vunpack.c.0.s8 %v1042
    %v1044 = vlaneseq
    %v1045 = vshrl.u32 %v1044, 7
    %v1046 = vsub.s32 %v1043, %v1045
    %v1047 = vrot.slane %v1039, %v1046
    %v1049 = vunpack.c.l.s4 1983009808
    %v1050 = vunpack.c.0.s8 %v1049
    %v1051 = vlaneseq
    %v1052 = vshrl.u32 %v1051, 7
    %v1053 = vsub.s32 %v1050, %v1052
    %v1054 = vrot.slane %v1040, %v1053
    %v1055 = vcombine.low %v1031, %v1047
    %v1056 = vcombine.high %v1031, %v1047
    %v1058 = vunpack.c.l.s4 1934713408
    %v1059 = vunpack.c.0.s8 %v1058
    %v1060 = vlaneseq
    %v1061 = vshrl.u32 %v1060, 7
    %v1062 = vsub.s32 %v1059, %v1061
    %v1063 = vrot.slane %v1055, %v1062
    %v1065 = vunpack.c.l.s4 1934713408
    %v1066 = vunpack.c.0.s8 %v1065
    %v1067 = vlaneseq
    %v1068 = vshrl.u32 %v1067, 7
    %v1069 = vsub.s32 %v1066, %v1068
    %v1070 = vrot.slane %v1056, %v1069
    %v1071 = vcombine.low %v1038, %v1054
    %v1072 = vcombine.high %v1038, %v1054
    %v1074 = vunpack.c.l.s4 1934713408
    %v1075 = vunpack.c.0.s8 %v1074
    %v1076 = vlaneseq
    %v1077 = vshrl.u32 %v1076, 7
    %v1078 = vsub.s32 %v1075, %v1077
    %v1079 = vrot.slane %v1071, %v1078
    %v1081 = vunpack.c.l.s4 1934713408
    %v1082 = vunpack.c.0.s8 %v1081
    %v1083 = vlaneseq
    %v1084 = vshrl.u32 %v1083, 7
    %v1085 = vsub.s32 %v1082, %v1084
    %v1086 = vrot.slane %v1072, %v1085
    %v1087 = vcombine.high %v1063, 0.0
    %v1088 = vcombine.high %v1070, 0.0
    %v1089 = vcombine.high %v1079, 0.0
    %v1090 = vcombine.high %v1086, 0.0
    %v1091 = vcombine.low %v978, %v986
    %v1092 = vcombine.high %v978, %v986
    %v1094 = vunpack.c.l.s4 1983009808
    %v1095 = vunpack.c.0.s8 %v1094
    %v1096 = vlaneseq
    %v1097 = vshrl.u32 %v1096, 7
    %v1098 = vsub.s32 %v1095, %v1097
    %v1099 = vrot.slane %v1091, %v1098
    %v1101 = vunpack.c.l.s4 1983009808
    %v1102 = vunpack.c.0.s8 %v1101
    %v1103 = vlaneseq
    %v1104 = vshrl.u32 %v1103, 7
    %v1105 = vsub.s32 %v1102, %v1104
    %v1106 = vrot.slane %v1092, %v1105
    %v1107 = vcombine.low %v982, %v990
    %v1108 = vcombine.high %v982, %v990
    %v1110 = vunpack.c.l.s4 1983009808
    %v1111 = vunpack.c.0.s8 %v1110
    %v1112 = vlaneseq
    %v1113 = vshrl.u32 %v1112, 7
    %v1114 = vsub.s32 %v1111, %v1113
    %v1115 = vrot.slane %v1107, %v1114
    %v1117 = vunpack.c.l.s4 1983009808
    %v1118 = vunpack.c.0.s8 %v1117
    %v1119 = vlaneseq
    %v1120 = vshrl.u32 %v1119, 7
    %v1121 = vsub.s32 %v1118, %v1120
    %v1122 = vrot.slane %v1108, %v1121
    %v1123 = vcombine.low %v1099, %v1115
    %v1124 = vcombine.high %v1099, %v1115
    %v1126 = vunpack.c.l.s4 1934713408
    %v1127 = vunpack.c.0.s8 %v1126
    %v1128 = vlaneseq
    %v1129 = vshrl.u32 %v1128, 7
    %v1130 = vsub.s32 %v1127, %v1129
    %v1131 = vrot.slane %v1123, %v1130
    %v1133 = vunpack.c.l.s4 1934713408
    %v1134 = vunpack.c.0.s8 %v1133
    %v1135 = vlaneseq
    %v1136 = vshrl.u32 %v1135, 7
    %v1137 = vsub.s32 %v1134, %v1136
    %v1138 = vrot.slane %v1124, %v1137
    %v1139 = vcombine.low %v1106, %v1122
    %v1140 = vcombine.high %v1106, %v1122
    %v1142 = vunpack.c.l.s4 1934713408
    %v1143 = vunpack.c.0.s8 %v1142
    %v1144 = vlaneseq
    %v1145 = vshrl.u32 %v1144, 7
    %v1146 = vsub.s32 %v1143, %v1145
    %v1147 = vrot.slane %v1139, %v1146
    %v1149 = vunpack.c.l.s4 1934713408
    %v1150 = vunpack.c.0.s8 %v1149
    %v1151 = vlaneseq
    %v1152 = vshrl.u32 %v1151, 7
    %v1153 = vsub.s32 %v1150, %v1152
    %v1154 = vrot.slane %v1140, %v1153
    %v1155 = vcombine.high %v1131, 0.0
    %v1156 = vcombine.high %v1138, 0.0
    %v1157 = vcombine.high %v1147, 0.0
    %v1158 = vcombine.high %v1154, 0.0
    %v1159 = vcombine.low %v992, %v1000
    %v1160 = vcombine.high %v992, %v1000
    %v1162 = vunpack.c.l.s4 1983009808
    %v1163 = vunpack.c.0.s8 %v1162
    %v1164 = vlaneseq
    %v1165 = vshrl.u32 %v1164, 7
    %v1166 = vsub.s32 %v1163, %v1165
    %v1167 = vrot.slane %v1159, %v1166
    %v1169 = vunpack.c.l.s4 1983009808
    %v1170 = vunpack.c.0.s8 %v1169
    %v1171 = vlaneseq
    %v1172 = vshrl.u32 %v1171, 7
    %v1173 = vsub.s32 %v1170, %v1172
    %v1174 = vrot.slane %v1160, %v1173
    %v1175 = vcombine.low %v996, %v1004
    %v1176 = vcombine.high %v996, %v1004
    %v1178 = vunpack.c.l.s4 1983009808
    %v1179 = vunpack.c.0.s8 %v1178
    %v1180 = vlaneseq
    %v1181 = vshrl.u32 %v1180, 7
    %v1182 = vsub.s32 %v1179, %v1181
    %v1183 = vrot.slane %v1175, %v1182
    %v1185 = vunpack.c.l.s4 1983009808
    %v1186 = vunpack.c.0.s8 %v1185
    %v1187 = vlaneseq
    %v1188 = vshrl.u32 %v1187, 7
    %v1189 = vsub.s32 %v1186, %v1188
    %v1190 = vrot.slane %v1176, %v1189
    %v1191 = vcombine.low %v1167, %v1183
    %v1192 = vcombine.high %v1167, %v1183
    %v1194 = vunpack.c.l.s4 1934713408
    %v1195 = vunpack.c.0.s8 %v1194
    %v1196 = vlaneseq
    %v1197 = vshrl.u32 %v1196, 7
    %v1198 = vsub.s32 %v1195, %v1197
    %v1199 = vrot.slane %v1191, %v1198
    %v1201 = vunpack.c.l.s4 1934713408
    %v1202 = vunpack.c.0.s8 %v1201
    %v1203 = vlaneseq
    %v1204 = vshrl.u32 %v1203, 7
    %v1205 = vsub.s32 %v1202, %v1204
    %v1206 = vrot.slane %v1192, %v1205
    %v1207 = vcombine.low %v1174, %v1190
    %v1208 = vcombine.high %v1174, %v1190
    %v1210 = vunpack.c.l.s4 1934713408
    %v1211 = vunpack.c.0.s8 %v1210
    %v1212 = vlaneseq
    %v1213 = vshrl.u32 %v1212, 7
    %v1214 = vsub.s32 %v1211, %v1213
    %v1215 = vrot.slane %v1207, %v1214
    %v1217 = vunpack.c.l.s4 1934713408
    %v1218 = vunpack.c.0.s8 %v1217
    %v1219 = vlaneseq
    %v1220 = vshrl.u32 %v1219, 7
    %v1221 = vsub.s32 %v1218, %v1220
    %v1222 = vrot.slane %v1208, %v1221
    %v1223 = vcombine.high %v1199, 0.0
    %v1224 = vcombine.high %v1206, 0.0
    %v1225 = vcombine.high %v1215, 0.0
    %v1226 = vcombine.high %v1222, 0.0
    %v1227 = vcombine.low %v994, %v1002
    %v1228 = vcombine.high %v994, %v1002
    %v1230 = vunpack.c.l.s4 1983009808
    %v1231 = vunpack.c.0.s8 %v1230
    %v1232 = vlaneseq
    %v1233 = vshrl.u32 %v1232, 7
    %v1234 = vsub.s32 %v1231, %v1233
    %v1235 = vrot.slane %v1227, %v1234
    %v1237 = vunpack.c.l.s4 1983009808
    %v1238 = vunpack.c.0.s8 %v1237
    %v1239 = vlaneseq
    %v1240 = vshrl.u32 %v1239, 7
    %v1241 = vsub.s32 %v1238, %v1240
    %v1242 = vrot.slane %v1228, %v1241
    %v1243 = vcombine.low %v998, %v1006
    %v1244 = vcombine.high %v998, %v1006
    %v1246 = vunpack.c.l.s4 1983009808
    %v1247 = vunpack.c.0.s8 %v1246
    %v1248 = vlaneseq
    %v1249 = vshrl.u32 %v1248, 7
    %v1250 = vsub.s32 %v1247, %v1249
    %v1251 = vrot.slane %v1243, %v1250
    %v1253 = vunpack.c.l.s4 1983009808
    %v1254 = vunpack.c.0.s8 %v1253
    %v1255 = vlaneseq
    %v1256 = vshrl.u32 %v1255, 7
    %v1257 = vsub.s32 %v1254, %v1256
    %v1258 = vrot.slane %v1244, %v1257
    %v1259 = vcombine.low %v1235, %v1251
    %v1260 = vcombine.high %v1235, %v1251
    %v1262 = vunpack.c.l.s4 1934713408
    %v1263 = vunpack.c.0.s8 %v1262
    %v1264 = vlaneseq
    %v1265 = vshrl.u32 %v1264, 7
    %v1266 = vsub.s32 %v1263, %v1265
    %v1267 = vrot.slane %v1259, %v1266
    %v1269 = vunpack.c.l.s4 1934713408
    %v1270 = vunpack.c.0.s8 %v1269
    %v1271 = vlaneseq
    %v1272 = vshrl.u32 %v1271, 7
    %v1273 = vsub.s32 %v1270, %v1272
    %v1274 = vrot.slane %v1260, %v1273
    %v1275 = vcombine.low %v1242, %v1258
    %v1276 = vcombine.high %v1242, %v1258
    %v1278 = vunpack.c.l.s4 1934713408
    %v1279 = vunpack.c.0.s8 %v1278
    %v1280 = vlaneseq
    %v1281 = vshrl.u32 %v1280, 7
    %v1282 = vsub.s32 %v1279, %v1281
    %v1283 = vrot.slane %v1275, %v1282
    %v1285 = vunpack.c.l.s4 1934713408
    %v1286 = vunpack.c.0.s8 %v1285
    %v1287 = vlaneseq
    %v1288 = vshrl.u32 %v1287, 7
    %v1289 = vsub.s32 %v1286, %v1288
    %v1290 = vrot.slane %v1276, %v1289
    %v1291 = vcombine.high %v1267, 0.0
    %v1292 = vcombine.high %v1274, 0.0
    %v1293 = vcombine.high %v1283, 0.0
    %v1294 = vcombine.high %v1290, 0.0
    %1297 = vrot.lane.b32.xlu0 %v1087, 16
    %v1298 = vpop.permute.xlu0 %1297
    %1299 = vrot.lane.b32.xlu0 %v1223, 16
    %v1300 = vpop.permute.xlu0 %1299
    %1305 = vrot.lane.b32.xlu0 %v1070, 32
    %v1306 = vpop.permute.xlu0 %1305
    %1307 = vrot.lane.b32.xlu0 %v1206, 32
    %v1308 = vpop.permute.xlu0 %1307
    %1313 = vrot.lane.b32.xlu0 %v1088, 48
    %v1314 = vpop.permute.xlu0 %1313
    %1315 = vrot.lane.b32.xlu0 %v1224, 48
    %v1316 = vpop.permute.xlu0 %1315
    %1321 = vrot.lane.b32.xlu0 %v1079, 64
    %v1322 = vpop.permute.xlu0 %1321
    %1323 = vrot.lane.b32.xlu0 %v1215, 64
    %v1324 = vpop.permute.xlu0 %1323
    %1329 = vrot.lane.b32.xlu0 %v1089, 80
    %v1330 = vpop.permute.xlu0 %1329
    %1331 = vrot.lane.b32.xlu0 %v1225, 80
    %v1332 = vpop.permute.xlu0 %1331
    %1337 = vrot.lane.b32.xlu0 %v1086, 96
    %v1338 = vpop.permute.xlu0 %1337
    %1339 = vrot.lane.b32.xlu0 %v1222, 96
    %v1340 = vpop.permute.xlu0 %1339
    %1345 = vrot.lane.b32.xlu0 %v1090, 112
    %v1346 = vpop.permute.xlu0 %1345
    %1347 = vrot.lane.b32.xlu0 %v1226, 112
    %v1348 = vpop.permute.xlu0 %1347
    %1353 = vrot.lane.b32.xlu0 %v1155, 16
    %v1354 = vpop.permute.xlu0 %1353
    %1355 = vrot.lane.b32.xlu0 %v1291, 16
    %v1356 = vpop.permute.xlu0 %1355
    %1361 = vrot.lane.b32.xlu0 %v1138, 32
    %v1362 = vpop.permute.xlu0 %1361
    %1363 = vrot.lane.b32.xlu0 %v1274, 32
    %v1364 = vpop.permute.xlu0 %1363
    %1369 = vrot.lane.b32.xlu0 %v1156, 48
    %v1370 = vpop.permute.xlu0 %1369
    %1371 = vrot.lane.b32.xlu0 %v1292, 48
    %v1372 = vpop.permute.xlu0 %1371
    %1377 = vrot.lane.b32.xlu0 %v1147, 64
    %v1378 = vpop.permute.xlu0 %1377
    %1379 = vrot.lane.b32.xlu0 %v1283, 64
    %v1380 = vpop.permute.xlu0 %1379
    %1385 = vrot.lane.b32.xlu0 %v1157, 80
    %v1386 = vpop.permute.xlu0 %1385
    %1387 = vrot.lane.b32.xlu0 %v1293, 80
    %v1388 = vpop.permute.xlu0 %1387
    %1393 = vrot.lane.b32.xlu0 %v1154, 96
    %v1394 = vpop.permute.xlu0 %1393
    %1395 = vrot.lane.b32.xlu0 %v1290, 96
    %v1396 = vpop.permute.xlu0 %1395
    %1401 = vrot.lane.b32.xlu0 %v1158, 112
    %v1402 = vpop.permute.xlu0 %1401
    %1403 = vrot.lane.b32.xlu0 %v1294, 112
    %v1404 = vpop.permute.xlu0 %1403
    %v1407 = vsel %vm924, %v1063, %v1298
    %v1408 = vsel %vm924, %v1199, %v1300
    %v1409 = vsel %vm927, %v1407, %v1306
    %v1410 = vsel %vm927, %v1408, %v1308
    %v1411 = vsel %vm930, %v1409, %v1314
    %v1412 = vsel %vm930, %v1410, %v1316
    %v1413 = vsel %vm933, %v1411, %v1322
    %v1414 = vsel %vm933, %v1412, %v1324
    %v1415 = vsel %vm936, %v1413, %v1330
    %v1416 = vsel %vm936, %v1414, %v1332
    %v1417 = vsel %vm939, %v1415, %v1338
    %v1418 = vsel %vm939, %v1416, %v1340
    %v1419 = vsel %vm942, %v1417, %v1346
    %v1420 = vsel %vm942, %v1418, %v1348
    %v1421 = vsel %vm924, %v1131, %v1354
    %v1422 = vsel %vm924, %v1267, %v1356
    %v1423 = vsel %vm927, %v1421, %v1362
    %v1424 = vsel %vm927, %v1422, %v1364
    %v1425 = vsel %vm930, %v1423, %v1370
    %v1426 = vsel %vm930, %v1424, %v1372
    %v1427 = vsel %vm933, %v1425, %v1378
    %v1428 = vsel %vm933, %v1426, %v1380
    %v1429 = vsel %vm936, %v1427, %v1386
    %v1430 = vsel %vm936, %v1428, %v1388
    %v1431 = vsel %vm939, %v1429, %v1394
    %v1432 = vsel %vm939, %v1430, %v1396
    %v1433 = vsel %vm942, %v1431, %v1402
    %v1434 = vsel %vm942, %v1432, %v1404
    %1435 = vrot.lane.b32.xlu0 %v516, 126
    %v1436 = vpop.permute.xlu0 %1435
    %1437 = vrot.lane.b32.xlu0 %v517, 126
    %v1438 = vpop.permute.xlu0 %1437
    %1439 = vrot.lane.b32.xlu0 %v519, 126
    %v1440 = vpop.permute.xlu0 %1439
    %1441 = vrot.lane.b32.xlu0 %v520, 126
    %v1442 = vpop.permute.xlu0 %1441
    %1443 = vrot.lane.b32.xlu0 %v522, 126
    %v1444 = vpop.permute.xlu0 %1443
    %1445 = vrot.lane.b32.xlu0 %v523, 126
    %v1446 = vpop.permute.xlu0 %1445
    %1447 = vrot.lane.b32.xlu0 %v525, 126
    %v1448 = vpop.permute.xlu0 %1447
    %1449 = vrot.lane.b32.xlu0 %v526, 126
    %v1450 = vpop.permute.xlu0 %1449
    %1451 = vrot.lane.b32.xlu0 %v528, 126
    %v1452 = vpop.permute.xlu0 %1451
    %1453 = vrot.lane.b32.xlu0 %v529, 126
    %v1454 = vpop.permute.xlu0 %1453
    %1455 = vrot.lane.b32.xlu0 %v531, 126
    %v1456 = vpop.permute.xlu0 %1455
    %1457 = vrot.lane.b32.xlu0 %v532, 126
    %v1458 = vpop.permute.xlu0 %1457
    %1459 = vrot.lane.b32.xlu0 %v534, 126
    %v1460 = vpop.permute.xlu0 %1459
    %1461 = vrot.lane.b32.xlu0 %v535, 126
    %v1462 = vpop.permute.xlu0 %1461
    %1463 = vrot.lane.b32.xlu0 %v537, 126
    %v1464 = vpop.permute.xlu0 %1463
    %1465 = vrot.lane.b32.xlu0 %v538, 126
    %v1466 = vpop.permute.xlu0 %1465
    %v1483 = vcombine.low %v1436, %v1444
    %v1484 = vcombine.high %v1436, %v1444
    %v1486 = vunpack.c.l.s4 1983009808
    %v1487 = vunpack.c.0.s8 %v1486
    %v1488 = vlaneseq
    %v1489 = vshrl.u32 %v1488, 7
    %v1490 = vsub.s32 %v1487, %v1489
    %v1491 = vrot.slane %v1483, %v1490
    %v1493 = vunpack.c.l.s4 1983009808
    %v1494 = vunpack.c.0.s8 %v1493
    %v1495 = vlaneseq
    %v1496 = vshrl.u32 %v1495, 7
    %v1497 = vsub.s32 %v1494, %v1496
    %v1498 = vrot.slane %v1484, %v1497
    %v1499 = vcombine.low %v1440, %v1448
    %v1500 = vcombine.high %v1440, %v1448
    %v1502 = vunpack.c.l.s4 1983009808
    %v1503 = vunpack.c.0.s8 %v1502
    %v1504 = vlaneseq
    %v1505 = vshrl.u32 %v1504, 7
    %v1506 = vsub.s32 %v1503, %v1505
    %v1507 = vrot.slane %v1499, %v1506
    %v1509 = vunpack.c.l.s4 1983009808
    %v1510 = vunpack.c.0.s8 %v1509
    %v1511 = vlaneseq
    %v1512 = vshrl.u32 %v1511, 7
    %v1513 = vsub.s32 %v1510, %v1512
    %v1514 = vrot.slane %v1500, %v1513
    %v1515 = vcombine.low %v1491, %v1507
    %v1516 = vcombine.high %v1491, %v1507
    %v1518 = vunpack.c.l.s4 1934713408
    %v1519 = vunpack.c.0.s8 %v1518
    %v1520 = vlaneseq
    %v1521 = vshrl.u32 %v1520, 7
    %v1522 = vsub.s32 %v1519, %v1521
    %v1523 = vrot.slane %v1515, %v1522
    %v1525 = vunpack.c.l.s4 1934713408
    %v1526 = vunpack.c.0.s8 %v1525
    %v1527 = vlaneseq
    %v1528 = vshrl.u32 %v1527, 7
    %v1529 = vsub.s32 %v1526, %v1528
    %v1530 = vrot.slane %v1516, %v1529
    %v1531 = vcombine.low %v1498, %v1514
    %v1532 = vcombine.high %v1498, %v1514
    %v1534 = vunpack.c.l.s4 1934713408
    %v1535 = vunpack.c.0.s8 %v1534
    %v1536 = vlaneseq
    %v1537 = vshrl.u32 %v1536, 7
    %v1538 = vsub.s32 %v1535, %v1537
    %v1539 = vrot.slane %v1531, %v1538
    %v1541 = vunpack.c.l.s4 1934713408
    %v1542 = vunpack.c.0.s8 %v1541
    %v1543 = vlaneseq
    %v1544 = vshrl.u32 %v1543, 7
    %v1545 = vsub.s32 %v1542, %v1544
    %v1546 = vrot.slane %v1532, %v1545
    %v1547 = vcombine.high %v1523, 0.0
    %v1548 = vcombine.high %v1530, 0.0
    %v1549 = vcombine.high %v1539, 0.0
    %v1550 = vcombine.high %v1546, 0.0
    %v1551 = vcombine.low %v1438, %v1446
    %v1552 = vcombine.high %v1438, %v1446
    %v1554 = vunpack.c.l.s4 1983009808
    %v1555 = vunpack.c.0.s8 %v1554
    %v1556 = vlaneseq
    %v1557 = vshrl.u32 %v1556, 7
    %v1558 = vsub.s32 %v1555, %v1557
    %v1559 = vrot.slane %v1551, %v1558
    %v1561 = vunpack.c.l.s4 1983009808
    %v1562 = vunpack.c.0.s8 %v1561
    %v1563 = vlaneseq
    %v1564 = vshrl.u32 %v1563, 7
    %v1565 = vsub.s32 %v1562, %v1564
    %v1566 = vrot.slane %v1552, %v1565
    %v1567 = vcombine.low %v1442, %v1450
    %v1568 = vcombine.high %v1442, %v1450
    %v1570 = vunpack.c.l.s4 1983009808
    %v1571 = vunpack.c.0.s8 %v1570
    %v1572 = vlaneseq
    %v1573 = vshrl.u32 %v1572, 7
    %v1574 = vsub.s32 %v1571, %v1573
    %v1575 = vrot.slane %v1567, %v1574
    %v1577 = vunpack.c.l.s4 1983009808
    %v1578 = vunpack.c.0.s8 %v1577
    %v1579 = vlaneseq
    %v1580 = vshrl.u32 %v1579, 7
    %v1581 = vsub.s32 %v1578, %v1580
    %v1582 = vrot.slane %v1568, %v1581
    %v1583 = vcombine.low %v1559, %v1575
    %v1584 = vcombine.high %v1559, %v1575
    %v1586 = vunpack.c.l.s4 1934713408
    %v1587 = vunpack.c.0.s8 %v1586
    %v1588 = vlaneseq
    %v1589 = vshrl.u32 %v1588, 7
    %v1590 = vsub.s32 %v1587, %v1589
    %v1591 = vrot.slane %v1583, %v1590
    %v1593 = vunpack.c.l.s4 1934713408
    %v1594 = vunpack.c.0.s8 %v1593
    %v1595 = vlaneseq
    %v1596 = vshrl.u32 %v1595, 7
    %v1597 = vsub.s32 %v1594, %v1596
    %v1598 = vrot.slane %v1584, %v1597
    %v1599 = vcombine.low %v1566, %v1582
    %v1600 = vcombine.high %v1566, %v1582
    %v1602 = vunpack.c.l.s4 1934713408
    %v1603 = vunpack.c.0.s8 %v1602
    %v1604 = vlaneseq
    %v1605 = vshrl.u32 %v1604, 7
    %v1606 = vsub.s32 %v1603, %v1605
    %v1607 = vrot.slane %v1599, %v1606
    %v1609 = vunpack.c.l.s4 1934713408
    %v1610 = vunpack.c.0.s8 %v1609
    %v1611 = vlaneseq
    %v1612 = vshrl.u32 %v1611, 7
    %v1613 = vsub.s32 %v1610, %v1612
    %v1614 = vrot.slane %v1600, %v1613
    %v1615 = vcombine.high %v1591, 0.0
    %v1616 = vcombine.high %v1598, 0.0
    %v1617 = vcombine.high %v1607, 0.0
    %v1618 = vcombine.high %v1614, 0.0
    %v1619 = vcombine.low %v1452, %v1460
    %v1620 = vcombine.high %v1452, %v1460
    %v1622 = vunpack.c.l.s4 1983009808
    %v1623 = vunpack.c.0.s8 %v1622
    %v1624 = vlaneseq
    %v1625 = vshrl.u32 %v1624, 7
    %v1626 = vsub.s32 %v1623, %v1625
    %v1627 = vrot.slane %v1619, %v1626
    %v1629 = vunpack.c.l.s4 1983009808
    %v1630 = vunpack.c.0.s8 %v1629
    %v1631 = vlaneseq
    %v1632 = vshrl.u32 %v1631, 7
    %v1633 = vsub.s32 %v1630, %v1632
    %v1634 = vrot.slane %v1620, %v1633
    %v1635 = vcombine.low %v1456, %v1464
    %v1636 = vcombine.high %v1456, %v1464
    %v1638 = vunpack.c.l.s4 1983009808
    %v1639 = vunpack.c.0.s8 %v1638
    %v1640 = vlaneseq
    %v1641 = vshrl.u32 %v1640, 7
    %v1642 = vsub.s32 %v1639, %v1641
    %v1643 = vrot.slane %v1635, %v1642
    %v1645 = vunpack.c.l.s4 1983009808
    %v1646 = vunpack.c.0.s8 %v1645
    %v1647 = vlaneseq
    %v1648 = vshrl.u32 %v1647, 7
    %v1649 = vsub.s32 %v1646, %v1648
    %v1650 = vrot.slane %v1636, %v1649
    %v1651 = vcombine.low %v1627, %v1643
    %v1652 = vcombine.high %v1627, %v1643
    %v1654 = vunpack.c.l.s4 1934713408
    %v1655 = vunpack.c.0.s8 %v1654
    %v1656 = vlaneseq
    %v1657 = vshrl.u32 %v1656, 7
    %v1658 = vsub.s32 %v1655, %v1657
    %v1659 = vrot.slane %v1651, %v1658
    %v1661 = vunpack.c.l.s4 1934713408
    %v1662 = vunpack.c.0.s8 %v1661
    %v1663 = vlaneseq
    %v1664 = vshrl.u32 %v1663, 7
    %v1665 = vsub.s32 %v1662, %v1664
    %v1666 = vrot.slane %v1652, %v1665
    %v1667 = vcombine.low %v1634, %v1650
    %v1668 = vcombine.high %v1634, %v1650
    %v1670 = vunpack.c.l.s4 1934713408
    %v1671 = vunpack.c.0.s8 %v1670
    %v1672 = vlaneseq
    %v1673 = vshrl.u32 %v1672, 7
    %v1674 = vsub.s32 %v1671, %v1673
    %v1675 = vrot.slane %v1667, %v1674
    %v1677 = vunpack.c.l.s4 1934713408
    %v1678 = vunpack.c.0.s8 %v1677
    %v1679 = vlaneseq
    %v1680 = vshrl.u32 %v1679, 7
    %v1681 = vsub.s32 %v1678, %v1680
    %v1682 = vrot.slane %v1668, %v1681
    %v1683 = vcombine.high %v1659, 0.0
    %v1684 = vcombine.high %v1666, 0.0
    %v1685 = vcombine.high %v1675, 0.0
    %v1686 = vcombine.high %v1682, 0.0
    %v1687 = vcombine.low %v1454, %v1462
    %v1688 = vcombine.high %v1454, %v1462
    %v1690 = vunpack.c.l.s4 1983009808
    %v1691 = vunpack.c.0.s8 %v1690
    %v1692 = vlaneseq
    %v1693 = vshrl.u32 %v1692, 7
    %v1694 = vsub.s32 %v1691, %v1693
    %v1695 = vrot.slane %v1687, %v1694
    %v1697 = vunpack.c.l.s4 1983009808
    %v1698 = vunpack.c.0.s8 %v1697
    %v1699 = vlaneseq
    %v1700 = vshrl.u32 %v1699, 7
    %v1701 = vsub.s32 %v1698, %v1700
    %v1702 = vrot.slane %v1688, %v1701
    %v1703 = vcombine.low %v1458, %v1466
    %v1704 = vcombine.high %v1458, %v1466
    %v1706 = vunpack.c.l.s4 1983009808
    %v1707 = vunpack.c.0.s8 %v1706
    %v1708 = vlaneseq
    %v1709 = vshrl.u32 %v1708, 7
    %v1710 = vsub.s32 %v1707, %v1709
    %v1711 = vrot.slane %v1703, %v1710
    %v1713 = vunpack.c.l.s4 1983009808
    %v1714 = vunpack.c.0.s8 %v1713
    %v1715 = vlaneseq
    %v1716 = vshrl.u32 %v1715, 7
    %v1717 = vsub.s32 %v1714, %v1716
    %v1718 = vrot.slane %v1704, %v1717
    %v1719 = vcombine.low %v1695, %v1711
    %v1720 = vcombine.high %v1695, %v1711
    %v1722 = vunpack.c.l.s4 1934713408
    %v1723 = vunpack.c.0.s8 %v1722
    %v1724 = vlaneseq
    %v1725 = vshrl.u32 %v1724, 7
    %v1726 = vsub.s32 %v1723, %v1725
    %v1727 = vrot.slane %v1719, %v1726
    %v1729 = vunpack.c.l.s4 1934713408
    %v1730 = vunpack.c.0.s8 %v1729
    %v1731 = vlaneseq
    %v1732 = vshrl.u32 %v1731, 7
    %v1733 = vsub.s32 %v1730, %v1732
    %v1734 = vrot.slane %v1720, %v1733
    %v1735 = vcombine.low %v1702, %v1718
    %v1736 = vcombine.high %v1702, %v1718
    %v1738 = vunpack.c.l.s4 1934713408
    %v1739 = vunpack.c.0.s8 %v1738
    %v1740 = vlaneseq
    %v1741 = vshrl.u32 %v1740, 7
    %v1742 = vsub.s32 %v1739, %v1741
    %v1743 = vrot.slane %v1735, %v1742
    %v1745 = vunpack.c.l.s4 1934713408
    %v1746 = vunpack.c.0.s8 %v1745
    %v1747 = vlaneseq
    %v1748 = vshrl.u32 %v1747, 7
    %v1749 = vsub.s32 %v1746, %v1748
    %v1750 = vrot.slane %v1736, %v1749
    %v1751 = vcombine.high %v1727, 0.0
    %v1752 = vcombine.high %v1734, 0.0
    %v1753 = vcombine.high %v1743, 0.0
    %v1754 = vcombine.high %v1750, 0.0
    %1757 = vrot.lane.b32.xlu0 %v1547, 16
    %v1758 = vpop.permute.xlu0 %1757
    %1759 = vrot.lane.b32.xlu0 %v1683, 16
    %v1760 = vpop.permute.xlu0 %1759
    %1765 = vrot.lane.b32.xlu0 %v1530, 32
    %v1766 = vpop.permute.xlu0 %1765
    %1767 = vrot.lane.b32.xlu0 %v1666, 32
    %v1768 = vpop.permute.xlu0 %1767
    %1773 = vrot.lane.b32.xlu0 %v1548, 48
    %v1774 = vpop.permute.xlu0 %1773
    %1775 = vrot.lane.b32.xlu0 %v1684, 48
    %v1776 = vpop.permute.xlu0 %1775
    %1781 = vrot.lane.b32.xlu0 %v1539, 64
    %v1782 = vpop.permute.xlu0 %1781
    %1783 = vrot.lane.b32.xlu0 %v1675, 64
    %v1784 = vpop.permute.xlu0 %1783
    %1789 = vrot.lane.b32.xlu0 %v1549, 80
    %v1790 = vpop.permute.xlu0 %1789
    %1791 = vrot.lane.b32.xlu0 %v1685, 80
    %v1792 = vpop.permute.xlu0 %1791
    %1797 = vrot.lane.b32.xlu0 %v1546, 96
    %v1798 = vpop.permute.xlu0 %1797
    %1799 = vrot.lane.b32.xlu0 %v1682, 96
    %v1800 = vpop.permute.xlu0 %1799
    %1805 = vrot.lane.b32.xlu0 %v1550, 112
    %v1806 = vpop.permute.xlu0 %1805
    %1807 = vrot.lane.b32.xlu0 %v1686, 112
    %v1808 = vpop.permute.xlu0 %1807
    %1813 = vrot.lane.b32.xlu0 %v1615, 16
    %v1814 = vpop.permute.xlu0 %1813
    %1815 = vrot.lane.b32.xlu0 %v1751, 16
    %v1816 = vpop.permute.xlu0 %1815
    %1821 = vrot.lane.b32.xlu0 %v1598, 32
    %v1822 = vpop.permute.xlu0 %1821
    %1823 = vrot.lane.b32.xlu0 %v1734, 32
    %v1824 = vpop.permute.xlu0 %1823
    %1829 = vrot.lane.b32.xlu0 %v1616, 48
    %v1830 = vpop.permute.xlu0 %1829
    %1831 = vrot.lane.b32.xlu0 %v1752, 48
    %v1832 = vpop.permute.xlu0 %1831
    %1837 = vrot.lane.b32.xlu0 %v1607, 64
    %v1838 = vpop.permute.xlu0 %1837
    %1839 = vrot.lane.b32.xlu0 %v1743, 64
    %v1840 = vpop.permute.xlu0 %1839
    %1845 = vrot.lane.b32.xlu0 %v1617, 80
    %v1846 = vpop.permute.xlu0 %1845
    %1847 = vrot.lane.b32.xlu0 %v1753, 80
    %v1848 = vpop.permute.xlu0 %1847
    %1853 = vrot.lane.b32.xlu0 %v1614, 96
    %v1854 = vpop.permute.xlu0 %1853
    %1855 = vrot.lane.b32.xlu0 %v1750, 96
    %v1856 = vpop.permute.xlu0 %1855
    %1861 = vrot.lane.b32.xlu0 %v1618, 112
    %v1862 = vpop.permute.xlu0 %1861
    %1863 = vrot.lane.b32.xlu0 %v1754, 112
    %v1864 = vpop.permute.xlu0 %1863
    %v1867 = vsel %vm924, %v1523, %v1758
    %v1868 = vsel %vm924, %v1659, %v1760
    %v1869 = vsel %vm927, %v1867, %v1766
    %v1870 = vsel %vm927, %v1868, %v1768
    %v1871 = vsel %vm930, %v1869, %v1774
    %v1872 = vsel %vm930, %v1870, %v1776
    %v1873 = vsel %vm933, %v1871, %v1782
    %v1874 = vsel %vm933, %v1872, %v1784
    %v1875 = vsel %vm936, %v1873, %v1790
    %v1876 = vsel %vm936, %v1874, %v1792
    %v1877 = vsel %vm939, %v1875, %v1798
    %v1878 = vsel %vm939, %v1876, %v1800
    %v1879 = vsel %vm942, %v1877, %v1806
    %v1880 = vsel %vm942, %v1878, %v1808
    %v1881 = vsel %vm924, %v1591, %v1814
    %v1882 = vsel %vm924, %v1727, %v1816
    %v1883 = vsel %vm927, %v1881, %v1822
    %v1884 = vsel %vm927, %v1882, %v1824
    %v1885 = vsel %vm930, %v1883, %v1830
    %v1886 = vsel %vm930, %v1884, %v1832
    %v1887 = vsel %vm933, %v1885, %v1838
    %v1888 = vsel %vm933, %v1886, %v1840
    %v1889 = vsel %vm936, %v1887, %v1846
    %v1890 = vsel %vm936, %v1888, %v1848
    %v1891 = vsel %vm939, %v1889, %v1854
    %v1892 = vsel %vm939, %v1890, %v1856
    %v1893 = vsel %vm942, %v1891, %v1862
    %v1894 = vsel %vm942, %v1892, %v1864
    %vm1903 = vcmask 1046528
    %v1904 = vrot.slane %v516, 1
    %v1905 = vrot.slane %v517, 1
    %v1906 = vsel %vm1903, %v1904, %v1905
    %v1907 = vrot.slane %v518, 1
    %v1908 = vsel %vm1903, %v1905, %v1907
    %v1909 = vrot.slane %v519, 1
    %v1910 = vrot.slane %v520, 1
    %v1911 = vsel %vm1903, %v1909, %v1910
    %v1912 = vrot.slane %v521, 1
    %v1913 = vsel %vm1903, %v1910, %v1912
    %v1914 = vrot.slane %v522, 1
    %v1915 = vrot.slane %v523, 1
    %v1916 = vsel %vm1903, %v1914, %v1915
    %v1917 = vrot.slane %v524, 1
    %v1918 = vsel %vm1903, %v1915, %v1917
    %v1919 = vrot.slane %v525, 1
    %v1920 = vrot.slane %v526, 1
    %v1921 = vsel %vm1903, %v1919, %v1920
    %v1922 = vrot.slane %v527, 1
    %v1923 = vsel %vm1903, %v1920, %v1922
    %v1924 = vrot.slane %v528, 1
    %v1925 = vrot.slane %v529, 1
    %v1926 = vsel %vm1903, %v1924, %v1925
    %v1927 = vrot.slane %v530, 1
    %v1928 = vsel %vm1903, %v1925, %v1927
    %v1929 = vrot.slane %v531, 1
    %v1930 = vrot.slane %v532, 1
    %v1931 = vsel %vm1903, %v1929, %v1930
    %v1932 = vrot.slane %v533, 1
    %v1933 = vsel %vm1903, %v1930, %v1932
    %v1934 = vrot.slane %v534, 1
    %v1935 = vrot.slane %v535, 1
    %v1936 = vsel %vm1903, %v1934, %v1935
    %v1937 = vrot.slane %v536, 1
    %v1938 = vsel %vm1903, %v1935, %v1937
    %v1939 = vrot.slane %v537, 1
    %v1940 = vrot.slane %v538, 1
    %v1941 = vsel %vm1903, %v1939, %v1940
    %v1942 = vrot.slane %v539, 1
    %v1943 = vsel %vm1903, %v1940, %v1942
    %v1960 = vcombine.low %v1906, %v1916
    %v1961 = vcombine.high %v1906, %v1916
    %v1963 = vunpack.c.l.s4 1983009808
    %v1964 = vunpack.c.0.s8 %v1963
    %v1965 = vlaneseq
    %v1966 = vshrl.u32 %v1965, 7
    %v1967 = vsub.s32 %v1964, %v1966
    %v1968 = vrot.slane %v1960, %v1967
    %v1970 = vunpack.c.l.s4 1983009808
    %v1971 = vunpack.c.0.s8 %v1970
    %v1972 = vlaneseq
    %v1973 = vshrl.u32 %v1972, 7
    %v1974 = vsub.s32 %v1971, %v1973
    %v1975 = vrot.slane %v1961, %v1974
    %v1976 = vcombine.low %v1911, %v1921
    %v1977 = vcombine.high %v1911, %v1921
    %v1979 = vunpack.c.l.s4 1983009808
    %v1980 = vunpack.c.0.s8 %v1979
    %v1981 = vlaneseq
    %v1982 = vshrl.u32 %v1981, 7
    %v1983 = vsub.s32 %v1980, %v1982
    %v1984 = vrot.slane %v1976, %v1983
    %v1986 = vunpack.c.l.s4 1983009808
    %v1987 = vunpack.c.0.s8 %v1986
    %v1988 = vlaneseq
    %v1989 = vshrl.u32 %v1988, 7
    %v1990 = vsub.s32 %v1987, %v1989
    %v1991 = vrot.slane %v1977, %v1990
    %v1992 = vcombine.low %v1968, %v1984
    %v1993 = vcombine.high %v1968, %v1984
    %v1995 = vunpack.c.l.s4 1934713408
    %v1996 = vunpack.c.0.s8 %v1995
    %v1997 = vlaneseq
    %v1998 = vshrl.u32 %v1997, 7
    %v1999 = vsub.s32 %v1996, %v1998
    %v2000 = vrot.slane %v1992, %v1999
    %v2002 = vunpack.c.l.s4 1934713408
    %v2003 = vunpack.c.0.s8 %v2002
    %v2004 = vlaneseq
    %v2005 = vshrl.u32 %v2004, 7
    %v2006 = vsub.s32 %v2003, %v2005
    %v2007 = vrot.slane %v1993, %v2006
    %v2008 = vcombine.low %v1975, %v1991
    %v2009 = vcombine.high %v1975, %v1991
    %v2011 = vunpack.c.l.s4 1934713408
    %v2012 = vunpack.c.0.s8 %v2011
    %v2013 = vlaneseq
    %v2014 = vshrl.u32 %v2013, 7
    %v2015 = vsub.s32 %v2012, %v2014
    %v2016 = vrot.slane %v2008, %v2015
    %v2018 = vunpack.c.l.s4 1934713408
    %v2019 = vunpack.c.0.s8 %v2018
    %v2020 = vlaneseq
    %v2021 = vshrl.u32 %v2020, 7
    %v2022 = vsub.s32 %v2019, %v2021
    %v2023 = vrot.slane %v2009, %v2022
    %v2024 = vcombine.high %v2000, 0.0
    %v2025 = vcombine.high %v2007, 0.0
    %v2026 = vcombine.high %v2016, 0.0
    %v2027 = vcombine.high %v2023, 0.0
    %v2028 = vcombine.low %v1908, %v1918
    %v2029 = vcombine.high %v1908, %v1918
    %v2031 = vunpack.c.l.s4 1983009808
    %v2032 = vunpack.c.0.s8 %v2031
    %v2033 = vlaneseq
    %v2034 = vshrl.u32 %v2033, 7
    %v2035 = vsub.s32 %v2032, %v2034
    %v2036 = vrot.slane %v2028, %v2035
    %v2038 = vunpack.c.l.s4 1983009808
    %v2039 = vunpack.c.0.s8 %v2038
    %v2040 = vlaneseq
    %v2041 = vshrl.u32 %v2040, 7
    %v2042 = vsub.s32 %v2039, %v2041
    %v2043 = vrot.slane %v2029, %v2042
    %v2044 = vcombine.low %v1913, %v1923
    %v2045 = vcombine.high %v1913, %v1923
    %v2047 = vunpack.c.l.s4 1983009808
    %v2048 = vunpack.c.0.s8 %v2047
    %v2049 = vlaneseq
    %v2050 = vshrl.u32 %v2049, 7
    %v2051 = vsub.s32 %v2048, %v2050
    %v2052 = vrot.slane %v2044, %v2051
    %v2054 = vunpack.c.l.s4 1983009808
    %v2055 = vunpack.c.0.s8 %v2054
    %v2056 = vlaneseq
    %v2057 = vshrl.u32 %v2056, 7
    %v2058 = vsub.s32 %v2055, %v2057
    %v2059 = vrot.slane %v2045, %v2058
    %v2060 = vcombine.low %v2036, %v2052
    %v2061 = vcombine.high %v2036, %v2052
    %v2063 = vunpack.c.l.s4 1934713408
    %v2064 = vunpack.c.0.s8 %v2063
    %v2065 = vlaneseq
    %v2066 = vshrl.u32 %v2065, 7
    %v2067 = vsub.s32 %v2064, %v2066
    %v2068 = vrot.slane %v2060, %v2067
    %v2070 = vunpack.c.l.s4 1934713408
    %v2071 = vunpack.c.0.s8 %v2070
    %v2072 = vlaneseq
    %v2073 = vshrl.u32 %v2072, 7
    %v2074 = vsub.s32 %v2071, %v2073
    %v2075 = vrot.slane %v2061, %v2074
    %v2076 = vcombine.low %v2043, %v2059
    %v2077 = vcombine.high %v2043, %v2059
    %v2079 = vunpack.c.l.s4 1934713408
    %v2080 = vunpack.c.0.s8 %v2079
    %v2081 = vlaneseq
    %v2082 = vshrl.u32 %v2081, 7
    %v2083 = vsub.s32 %v2080, %v2082
    %v2084 = vrot.slane %v2076, %v2083
    %v2086 = vunpack.c.l.s4 1934713408
    %v2087 = vunpack.c.0.s8 %v2086
    %v2088 = vlaneseq
    %v2089 = vshrl.u32 %v2088, 7
    %v2090 = vsub.s32 %v2087, %v2089
    %v2091 = vrot.slane %v2077, %v2090
    %v2092 = vcombine.high %v2068, 0.0
    %v2093 = vcombine.high %v2075, 0.0
    %v2094 = vcombine.high %v2084, 0.0
    %v2095 = vcombine.high %v2091, 0.0
    %v2096 = vcombine.low %v1926, %v1936
    %v2097 = vcombine.high %v1926, %v1936
    %v2099 = vunpack.c.l.s4 1983009808
    %v2100 = vunpack.c.0.s8 %v2099
    %v2101 = vlaneseq
    %v2102 = vshrl.u32 %v2101, 7
    %v2103 = vsub.s32 %v2100, %v2102
    %v2104 = vrot.slane %v2096, %v2103
    %v2106 = vunpack.c.l.s4 1983009808
    %v2107 = vunpack.c.0.s8 %v2106
    %v2108 = vlaneseq
    %v2109 = vshrl.u32 %v2108, 7
    %v2110 = vsub.s32 %v2107, %v2109
    %v2111 = vrot.slane %v2097, %v2110
    %v2112 = vcombine.low %v1931, %v1941
    %v2113 = vcombine.high %v1931, %v1941
    %v2115 = vunpack.c.l.s4 1983009808
    %v2116 = vunpack.c.0.s8 %v2115
    %v2117 = vlaneseq
    %v2118 = vshrl.u32 %v2117, 7
    %v2119 = vsub.s32 %v2116, %v2118
    %v2120 = vrot.slane %v2112, %v2119
    %v2122 = vunpack.c.l.s4 1983009808
    %v2123 = vunpack.c.0.s8 %v2122
    %v2124 = vlaneseq
    %v2125 = vshrl.u32 %v2124, 7
    %v2126 = vsub.s32 %v2123, %v2125
    %v2127 = vrot.slane %v2113, %v2126
    %v2128 = vcombine.low %v2104, %v2120
    %v2129 = vcombine.high %v2104, %v2120
    %v2131 = vunpack.c.l.s4 1934713408
    %v2132 = vunpack.c.0.s8 %v2131
    %v2133 = vlaneseq
    %v2134 = vshrl.u32 %v2133, 7
    %v2135 = vsub.s32 %v2132, %v2134
    %v2136 = vrot.slane %v2128, %v2135
    %v2138 = vunpack.c.l.s4 1934713408
    %v2139 = vunpack.c.0.s8 %v2138
    %v2140 = vlaneseq
    %v2141 = vshrl.u32 %v2140, 7
    %v2142 = vsub.s32 %v2139, %v2141
    %v2143 = vrot.slane %v2129, %v2142
    %v2144 = vcombine.low %v2111, %v2127
    %v2145 = vcombine.high %v2111, %v2127
    %v2147 = vunpack.c.l.s4 1934713408
    %v2148 = vunpack.c.0.s8 %v2147
    %v2149 = vlaneseq
    %v2150 = vshrl.u32 %v2149, 7
    %v2151 = vsub.s32 %v2148, %v2150
    %v2152 = vrot.slane %v2144, %v2151
    %v2154 = vunpack.c.l.s4 1934713408
    %v2155 = vunpack.c.0.s8 %v2154
    %v2156 = vlaneseq
    %v2157 = vshrl.u32 %v2156, 7
    %v2158 = vsub.s32 %v2155, %v2157
    %v2159 = vrot.slane %v2145, %v2158
    %v2160 = vcombine.high %v2136, 0.0
    %v2161 = vcombine.high %v2143, 0.0
    %v2162 = vcombine.high %v2152, 0.0
    %v2163 = vcombine.high %v2159, 0.0
    %v2164 = vcombine.low %v1928, %v1938
    %v2165 = vcombine.high %v1928, %v1938
    %v2167 = vunpack.c.l.s4 1983009808
    %v2168 = vunpack.c.0.s8 %v2167
    %v2169 = vlaneseq
    %v2170 = vshrl.u32 %v2169, 7
    %v2171 = vsub.s32 %v2168, %v2170
    %v2172 = vrot.slane %v2164, %v2171
    %v2174 = vunpack.c.l.s4 1983009808
    %v2175 = vunpack.c.0.s8 %v2174
    %v2176 = vlaneseq
    %v2177 = vshrl.u32 %v2176, 7
    %v2178 = vsub.s32 %v2175, %v2177
    %v2179 = vrot.slane %v2165, %v2178
    %v2180 = vcombine.low %v1933, %v1943
    %v2181 = vcombine.high %v1933, %v1943
    %v2183 = vunpack.c.l.s4 1983009808
    %v2184 = vunpack.c.0.s8 %v2183
    %v2185 = vlaneseq
    %v2186 = vshrl.u32 %v2185, 7
    %v2187 = vsub.s32 %v2184, %v2186
    %v2188 = vrot.slane %v2180, %v2187
    %v2190 = vunpack.c.l.s4 1983009808
    %v2191 = vunpack.c.0.s8 %v2190
    %v2192 = vlaneseq
    %v2193 = vshrl.u32 %v2192, 7
    %v2194 = vsub.s32 %v2191, %v2193
    %v2195 = vrot.slane %v2181, %v2194
    %v2196 = vcombine.low %v2172, %v2188
    %v2197 = vcombine.high %v2172, %v2188
    %v2199 = vunpack.c.l.s4 1934713408
    %v2200 = vunpack.c.0.s8 %v2199
    %v2201 = vlaneseq
    %v2202 = vshrl.u32 %v2201, 7
    %v2203 = vsub.s32 %v2200, %v2202
    %v2204 = vrot.slane %v2196, %v2203
    %v2206 = vunpack.c.l.s4 1934713408
    %v2207 = vunpack.c.0.s8 %v2206
    %v2208 = vlaneseq
    %v2209 = vshrl.u32 %v2208, 7
    %v2210 = vsub.s32 %v2207, %v2209
    %v2211 = vrot.slane %v2197, %v2210
    %v2212 = vcombine.low %v2179, %v2195
    %v2213 = vcombine.high %v2179, %v2195
    %v2215 = vunpack.c.l.s4 1934713408
    %v2216 = vunpack.c.0.s8 %v2215
    %v2217 = vlaneseq
    %v2218 = vshrl.u32 %v2217, 7
    %v2219 = vsub.s32 %v2216, %v2218
    %v2220 = vrot.slane %v2212, %v2219
    %v2222 = vunpack.c.l.s4 1934713408
    %v2223 = vunpack.c.0.s8 %v2222
    %v2224 = vlaneseq
    %v2225 = vshrl.u32 %v2224, 7
    %v2226 = vsub.s32 %v2223, %v2225
    %v2227 = vrot.slane %v2213, %v2226
    %v2228 = vcombine.high %v2204, 0.0
    %v2229 = vcombine.high %v2211, 0.0
    %v2230 = vcombine.high %v2220, 0.0
    %v2231 = vcombine.high %v2227, 0.0
    %2234 = vrot.lane.b32.xlu0 %v2024, 16
    %v2235 = vpop.permute.xlu0 %2234
    %2236 = vrot.lane.b32.xlu0 %v2160, 16
    %v2237 = vpop.permute.xlu0 %2236
    %2242 = vrot.lane.b32.xlu0 %v2007, 32
    %v2243 = vpop.permute.xlu0 %2242
    %2244 = vrot.lane.b32.xlu0 %v2143, 32
    %v2245 = vpop.permute.xlu0 %2244
    %2250 = vrot.lane.b32.xlu0 %v2025, 48
    %v2251 = vpop.permute.xlu0 %2250
    %2252 = vrot.lane.b32.xlu0 %v2161, 48
    %v2253 = vpop.permute.xlu0 %2252
    %2258 = vrot.lane.b32.xlu0 %v2016, 64
    %v2259 = vpop.permute.xlu0 %2258
    %2260 = vrot.lane.b32.xlu0 %v2152, 64
    %v2261 = vpop.permute.xlu0 %2260
    %2266 = vrot.lane.b32.xlu0 %v2026, 80
    %v2267 = vpop.permute.xlu0 %2266
    %2268 = vrot.lane.b32.xlu0 %v2162, 80
    %v2269 = vpop.permute.xlu0 %2268
    %2274 = vrot.lane.b32.xlu0 %v2023, 96
    %v2275 = vpop.permute.xlu0 %2274
    %2276 = vrot.lane.b32.xlu0 %v2159, 96
    %v2277 = vpop.permute.xlu0 %2276
    %2282 = vrot.lane.b32.xlu0 %v2027, 112
    %v2283 = vpop.permute.xlu0 %2282
    %2284 = vrot.lane.b32.xlu0 %v2163, 112
    %v2285 = vpop.permute.xlu0 %2284
    %2290 = vrot.lane.b32.xlu0 %v2092, 16
    %v2291 = vpop.permute.xlu0 %2290
    %2292 = vrot.lane.b32.xlu0 %v2228, 16
    %v2293 = vpop.permute.xlu0 %2292
    %2298 = vrot.lane.b32.xlu0 %v2075, 32
    %v2299 = vpop.permute.xlu0 %2298
    %2300 = vrot.lane.b32.xlu0 %v2211, 32
    %v2301 = vpop.permute.xlu0 %2300
    %2306 = vrot.lane.b32.xlu0 %v2093, 48
    %v2307 = vpop.permute.xlu0 %2306
    %2308 = vrot.lane.b32.xlu0 %v2229, 48
    %v2309 = vpop.permute.xlu0 %2308
    %2314 = vrot.lane.b32.xlu0 %v2084, 64
    %v2315 = vpop.permute.xlu0 %2314
    %2316 = vrot.lane.b32.xlu0 %v2220, 64
    %v2317 = vpop.permute.xlu0 %2316
    %2322 = vrot.lane.b32.xlu0 %v2094, 80
    %v2323 = vpop.permute.xlu0 %2322
    %2324 = vrot.lane.b32.xlu0 %v2230, 80
    %v2325 = vpop.permute.xlu0 %2324
    %2330 = vrot.lane.b32.xlu0 %v2091, 96
    %v2331 = vpop.permute.xlu0 %2330
    %2332 = vrot.lane.b32.xlu0 %v2227, 96
    %v2333 = vpop.permute.xlu0 %2332
    %2338 = vrot.lane.b32.xlu0 %v2095, 112
    %v2339 = vpop.permute.xlu0 %2338
    %2340 = vrot.lane.b32.xlu0 %v2231, 112
    %v2341 = vpop.permute.xlu0 %2340
    %v2344 = vsel %vm924, %v2000, %v2235
    %v2345 = vsel %vm924, %v2136, %v2237
    %v2346 = vsel %vm927, %v2344, %v2243
    %v2347 = vsel %vm927, %v2345, %v2245
    %v2348 = vsel %vm930, %v2346, %v2251
    %v2349 = vsel %vm930, %v2347, %v2253
    %v2350 = vsel %vm933, %v2348, %v2259
    %v2351 = vsel %vm933, %v2349, %v2261
    %v2352 = vsel %vm936, %v2350, %v2267
    %v2353 = vsel %vm936, %v2351, %v2269
    %v2354 = vsel %vm939, %v2352, %v2275
    %v2355 = vsel %vm939, %v2353, %v2277
    %v2356 = vsel %vm942, %v2354, %v2283
    %v2357 = vsel %vm942, %v2355, %v2285
    %v2358 = vsel %vm924, %v2068, %v2291
    %v2359 = vsel %vm924, %v2204, %v2293
    %v2360 = vsel %vm927, %v2358, %v2299
    %v2361 = vsel %vm927, %v2359, %v2301
    %v2362 = vsel %vm930, %v2360, %v2307
    %v2363 = vsel %vm930, %v2361, %v2309
    %v2364 = vsel %vm933, %v2362, %v2315
    %v2365 = vsel %vm933, %v2363, %v2317
    %v2366 = vsel %vm936, %v2364, %v2323
    %v2367 = vsel %vm936, %v2365, %v2325
    %v2368 = vsel %vm939, %v2366, %v2331
    %v2369 = vsel %vm939, %v2367, %v2333
    %v2370 = vsel %vm942, %v2368, %v2339
    %v2371 = vsel %vm942, %v2369, %v2341
    %2372 = vrot.lane.b32.xlu0 %v1906, 127
    %v2373 = vpop.permute.xlu0 %2372
    %2374 = vrot.lane.b32.xlu0 %v1908, 127
    %v2375 = vpop.permute.xlu0 %2374
    %2376 = vrot.lane.b32.xlu0 %v1911, 127
    %v2377 = vpop.permute.xlu0 %2376
    %2378 = vrot.lane.b32.xlu0 %v1913, 127
    %v2379 = vpop.permute.xlu0 %2378
    %2380 = vrot.lane.b32.xlu0 %v1916, 127
    %v2381 = vpop.permute.xlu0 %2380
    %2382 = vrot.lane.b32.xlu0 %v1918, 127
    %v2383 = vpop.permute.xlu0 %2382
    %2384 = vrot.lane.b32.xlu0 %v1921, 127
    %v2385 = vpop.permute.xlu0 %2384
    %2386 = vrot.lane.b32.xlu0 %v1923, 127
    %v2387 = vpop.permute.xlu0 %2386
    %2388 = vrot.lane.b32.xlu0 %v1926, 127
    %v2389 = vpop.permute.xlu0 %2388
    %2390 = vrot.lane.b32.xlu0 %v1928, 127
    %v2391 = vpop.permute.xlu0 %2390
    %2392 = vrot.lane.b32.xlu0 %v1931, 127
    %v2393 = vpop.permute.xlu0 %2392
    %2394 = vrot.lane.b32.xlu0 %v1933, 127
    %v2395 = vpop.permute.xlu0 %2394
    %2396 = vrot.lane.b32.xlu0 %v1936, 127
    %v2397 = vpop.permute.xlu0 %2396
    %2398 = vrot.lane.b32.xlu0 %v1938, 127
    %v2399 = vpop.permute.xlu0 %2398
    %2400 = vrot.lane.b32.xlu0 %v1941, 127
    %v2401 = vpop.permute.xlu0 %2400
    %2402 = vrot.lane.b32.xlu0 %v1943, 127
    %v2403 = vpop.permute.xlu0 %2402
    %v2420 = vcombine.low %v2373, %v2381
    %v2421 = vcombine.high %v2373, %v2381
    %v2423 = vunpack.c.l.s4 1983009808
    %v2424 = vunpack.c.0.s8 %v2423
    %v2425 = vlaneseq
    %v2426 = vshrl.u32 %v2425, 7
    %v2427 = vsub.s32 %v2424, %v2426
    %v2428 = vrot.slane %v2420, %v2427
    %v2430 = vunpack.c.l.s4 1983009808
    %v2431 = vunpack.c.0.s8 %v2430
    %v2432 = vlaneseq
    %v2433 = vshrl.u32 %v2432, 7
    %v2434 = vsub.s32 %v2431, %v2433
    %v2435 = vrot.slane %v2421, %v2434
    %v2436 = vcombine.low %v2377, %v2385
    %v2437 = vcombine.high %v2377, %v2385
    %v2439 = vunpack.c.l.s4 1983009808
    %v2440 = vunpack.c.0.s8 %v2439
    %v2441 = vlaneseq
    %v2442 = vshrl.u32 %v2441, 7
    %v2443 = vsub.s32 %v2440, %v2442
    %v2444 = vrot.slane %v2436, %v2443
    %v2446 = vunpack.c.l.s4 1983009808
    %v2447 = vunpack.c.0.s8 %v2446
    %v2448 = vlaneseq
    %v2449 = vshrl.u32 %v2448, 7
    %v2450 = vsub.s32 %v2447, %v2449
    %v2451 = vrot.slane %v2437, %v2450
    %v2452 = vcombine.low %v2428, %v2444
    %v2453 = vcombine.high %v2428, %v2444
    %v2455 = vunpack.c.l.s4 1934713408
    %v2456 = vunpack.c.0.s8 %v2455
    %v2457 = vlaneseq
    %v2458 = vshrl.u32 %v2457, 7
    %v2459 = vsub.s32 %v2456, %v2458
    %v2460 = vrot.slane %v2452, %v2459
    %v2462 = vunpack.c.l.s4 1934713408
    %v2463 = vunpack.c.0.s8 %v2462
    %v2464 = vlaneseq
    %v2465 = vshrl.u32 %v2464, 7
    %v2466 = vsub.s32 %v2463, %v2465
    %v2467 = vrot.slane %v2453, %v2466
    %v2468 = vcombine.low %v2435, %v2451
    %v2469 = vcombine.high %v2435, %v2451
    %v2471 = vunpack.c.l.s4 1934713408
    %v2472 = vunpack.c.0.s8 %v2471
    %v2473 = vlaneseq
    %v2474 = vshrl.u32 %v2473, 7
    %v2475 = vsub.s32 %v2472, %v2474
    %v2476 = vrot.slane %v2468, %v2475
    %v2478 = vunpack.c.l.s4 1934713408
    %v2479 = vunpack.c.0.s8 %v2478
    %v2480 = vlaneseq
    %v2481 = vshrl.u32 %v2480, 7
    %v2482 = vsub.s32 %v2479, %v2481
    %v2483 = vrot.slane %v2469, %v2482
    %v2484 = vcombine.high %v2460, 0.0
    %v2485 = vcombine.high %v2467, 0.0
    %v2486 = vcombine.high %v2476, 0.0
    %v2487 = vcombine.high %v2483, 0.0
    %v2488 = vcombine.low %v2375, %v2383
    %v2489 = vcombine.high %v2375, %v2383
    %v2491 = vunpack.c.l.s4 1983009808
    %v2492 = vunpack.c.0.s8 %v2491
    %v2493 = vlaneseq
    %v2494 = vshrl.u32 %v2493, 7
    %v2495 = vsub.s32 %v2492, %v2494
    %v2496 = vrot.slane %v2488, %v2495
    %v2498 = vunpack.c.l.s4 1983009808
    %v2499 = vunpack.c.0.s8 %v2498
    %v2500 = vlaneseq
    %v2501 = vshrl.u32 %v2500, 7
    %v2502 = vsub.s32 %v2499, %v2501
    %v2503 = vrot.slane %v2489, %v2502
    %v2504 = vcombine.low %v2379, %v2387
    %v2505 = vcombine.high %v2379, %v2387
    %v2507 = vunpack.c.l.s4 1983009808
    %v2508 = vunpack.c.0.s8 %v2507
    %v2509 = vlaneseq
    %v2510 = vshrl.u32 %v2509, 7
    %v2511 = vsub.s32 %v2508, %v2510
    %v2512 = vrot.slane %v2504, %v2511
    %v2514 = vunpack.c.l.s4 1983009808
    %v2515 = vunpack.c.0.s8 %v2514
    %v2516 = vlaneseq
    %v2517 = vshrl.u32 %v2516, 7
    %v2518 = vsub.s32 %v2515, %v2517
    %v2519 = vrot.slane %v2505, %v2518
    %v2520 = vcombine.low %v2496, %v2512
    %v2521 = vcombine.high %v2496, %v2512
    %v2523 = vunpack.c.l.s4 1934713408
    %v2524 = vunpack.c.0.s8 %v2523
    %v2525 = vlaneseq
    %v2526 = vshrl.u32 %v2525, 7
    %v2527 = vsub.s32 %v2524, %v2526
    %v2528 = vrot.slane %v2520, %v2527
    %v2530 = vunpack.c.l.s4 1934713408
    %v2531 = vunpack.c.0.s8 %v2530
    %v2532 = vlaneseq
    %v2533 = vshrl.u32 %v2532, 7
    %v2534 = vsub.s32 %v2531, %v2533
    %v2535 = vrot.slane %v2521, %v2534
    %v2536 = vcombine.low %v2503, %v2519
    %v2537 = vcombine.high %v2503, %v2519
    %v2539 = vunpack.c.l.s4 1934713408
    %v2540 = vunpack.c.0.s8 %v2539
    %v2541 = vlaneseq
    %v2542 = vshrl.u32 %v2541, 7
    %v2543 = vsub.s32 %v2540, %v2542
    %v2544 = vrot.slane %v2536, %v2543
    %v2546 = vunpack.c.l.s4 1934713408
    %v2547 = vunpack.c.0.s8 %v2546
    %v2548 = vlaneseq
    %v2549 = vshrl.u32 %v2548, 7
    %v2550 = vsub.s32 %v2547, %v2549
    %v2551 = vrot.slane %v2537, %v2550
    %v2552 = vcombine.high %v2528, 0.0
    %v2553 = vcombine.high %v2535, 0.0
    %v2554 = vcombine.high %v2544, 0.0
    %v2555 = vcombine.high %v2551, 0.0
    %v2556 = vcombine.low %v2389, %v2397
    %v2557 = vcombine.high %v2389, %v2397
    %v2559 = vunpack.c.l.s4 1983009808
    %v2560 = vunpack.c.0.s8 %v2559
    %v2561 = vlaneseq
    %v2562 = vshrl.u32 %v2561, 7
    %v2563 = vsub.s32 %v2560, %v2562
    %v2564 = vrot.slane %v2556, %v2563
    %v2566 = vunpack.c.l.s4 1983009808
    %v2567 = vunpack.c.0.s8 %v2566
    %v2568 = vlaneseq
    %v2569 = vshrl.u32 %v2568, 7
    %v2570 = vsub.s32 %v2567, %v2569
    %v2571 = vrot.slane %v2557, %v2570
    %v2572 = vcombine.low %v2393, %v2401
    %v2573 = vcombine.high %v2393, %v2401
    %v2575 = vunpack.c.l.s4 1983009808
    %v2576 = vunpack.c.0.s8 %v2575
    %v2577 = vlaneseq
    %v2578 = vshrl.u32 %v2577, 7
    %v2579 = vsub.s32 %v2576, %v2578
    %v2580 = vrot.slane %v2572, %v2579
    %v2582 = vunpack.c.l.s4 1983009808
    %v2583 = vunpack.c.0.s8 %v2582
    %v2584 = vlaneseq
    %v2585 = vshrl.u32 %v2584, 7
    %v2586 = vsub.s32 %v2583, %v2585
    %v2587 = vrot.slane %v2573, %v2586
    %v2588 = vcombine.low %v2564, %v2580
    %v2589 = vcombine.high %v2564, %v2580
    %v2591 = vunpack.c.l.s4 1934713408
    %v2592 = vunpack.c.0.s8 %v2591
    %v2593 = vlaneseq
    %v2594 = vshrl.u32 %v2593, 7
    %v2595 = vsub.s32 %v2592, %v2594
    %v2596 = vrot.slane %v2588, %v2595
    %v2598 = vunpack.c.l.s4 1934713408
    %v2599 = vunpack.c.0.s8 %v2598
    %v2600 = vlaneseq
    %v2601 = vshrl.u32 %v2600, 7
    %v2602 = vsub.s32 %v2599, %v2601
    %v2603 = vrot.slane %v2589, %v2602
    %v2604 = vcombine.low %v2571, %v2587
    %v2605 = vcombine.high %v2571, %v2587
    %v2607 = vunpack.c.l.s4 1934713408
    %v2608 = vunpack.c.0.s8 %v2607
    %v2609 = vlaneseq
    %v2610 = vshrl.u32 %v2609, 7
    %v2611 = vsub.s32 %v2608, %v2610
    %v2612 = vrot.slane %v2604, %v2611
    %v2614 = vunpack.c.l.s4 1934713408
    %v2615 = vunpack.c.0.s8 %v2614
    %v2616 = vlaneseq
    %v2617 = vshrl.u32 %v2616, 7
    %v2618 = vsub.s32 %v2615, %v2617
    %v2619 = vrot.slane %v2605, %v2618
    %v2620 = vcombine.high %v2596, 0.0
    %v2621 = vcombine.high %v2603, 0.0
    %v2622 = vcombine.high %v2612, 0.0
    %v2623 = vcombine.high %v2619, 0.0
    %v2624 = vcombine.low %v2391, %v2399
    %v2625 = vcombine.high %v2391, %v2399
    %v2627 = vunpack.c.l.s4 1983009808
    %v2628 = vunpack.c.0.s8 %v2627
    %v2629 = vlaneseq
    %v2630 = vshrl.u32 %v2629, 7
    %v2631 = vsub.s32 %v2628, %v2630
    %v2632 = vrot.slane %v2624, %v2631
    %v2634 = vunpack.c.l.s4 1983009808
    %v2635 = vunpack.c.0.s8 %v2634
    %v2636 = vlaneseq
    %v2637 = vshrl.u32 %v2636, 7
    %v2638 = vsub.s32 %v2635, %v2637
    %v2639 = vrot.slane %v2625, %v2638
    %v2640 = vcombine.low %v2395, %v2403
    %v2641 = vcombine.high %v2395, %v2403
    %v2643 = vunpack.c.l.s4 1983009808
    %v2644 = vunpack.c.0.s8 %v2643
    %v2645 = vlaneseq
    %v2646 = vshrl.u32 %v2645, 7
    %v2647 = vsub.s32 %v2644, %v2646
    %v2648 = vrot.slane %v2640, %v2647
    %v2650 = vunpack.c.l.s4 1983009808
    %v2651 = vunpack.c.0.s8 %v2650
    %v2652 = vlaneseq
    %v2653 = vshrl.u32 %v2652, 7
    %v2654 = vsub.s32 %v2651, %v2653
    %v2655 = vrot.slane %v2641, %v2654
    %v2656 = vcombine.low %v2632, %v2648
    %v2657 = vcombine.high %v2632, %v2648
    %v2659 = vunpack.c.l.s4 1934713408
    %v2660 = vunpack.c.0.s8 %v2659
    %v2661 = vlaneseq
    %v2662 = vshrl.u32 %v2661, 7
    %v2663 = vsub.s32 %v2660, %v2662
    %v2664 = vrot.slane %v2656, %v2663
    %v2666 = vunpack.c.l.s4 1934713408
    %v2667 = vunpack.c.0.s8 %v2666
    %v2668 = vlaneseq
    %v2669 = vshrl.u32 %v2668, 7
    %v2670 = vsub.s32 %v2667, %v2669
    %v2671 = vrot.slane %v2657, %v2670
    %v2672 = vcombine.low %v2639, %v2655
    %v2673 = vcombine.high %v2639, %v2655
    %v2675 = vunpack.c.l.s4 1934713408
    %v2676 = vunpack.c.0.s8 %v2675
    %v2677 = vlaneseq
    %v2678 = vshrl.u32 %v2677, 7
    %v2679 = vsub.s32 %v2676, %v2678
    %v2680 = vrot.slane %v2672, %v2679
    %v2682 = vunpack.c.l.s4 1934713408
    %v2683 = vunpack.c.0.s8 %v2682
    %v2684 = vlaneseq
    %v2685 = vshrl.u32 %v2684, 7
    %v2686 = vsub.s32 %v2683, %v2685
    %v2687 = vrot.slane %v2673, %v2686
    %v2688 = vcombine.high %v2664, 0.0
    %v2689 = vcombine.high %v2671, 0.0
    %v2690 = vcombine.high %v2680, 0.0
    %v2691 = vcombine.high %v2687, 0.0
    %2694 = vrot.lane.b32.xlu0 %v2484, 16
    %v2695 = vpop.permute.xlu0 %2694
    %2696 = vrot.lane.b32.xlu0 %v2620, 16
    %v2697 = vpop.permute.xlu0 %2696
    %2702 = vrot.lane.b32.xlu0 %v2467, 32
    %v2703 = vpop.permute.xlu0 %2702
    %2704 = vrot.lane.b32.xlu0 %v2603, 32
    %v2705 = vpop.permute.xlu0 %2704
    %2710 = vrot.lane.b32.xlu0 %v2485, 48
    %v2711 = vpop.permute.xlu0 %2710
    %2712 = vrot.lane.b32.xlu0 %v2621, 48
    %v2713 = vpop.permute.xlu0 %2712
    %2718 = vrot.lane.b32.xlu0 %v2476, 64
    %v2719 = vpop.permute.xlu0 %2718
    %2720 = vrot.lane.b32.xlu0 %v2612, 64
    %v2721 = vpop.permute.xlu0 %2720
    %2726 = vrot.lane.b32.xlu0 %v2486, 80
    %v2727 = vpop.permute.xlu0 %2726
    %2728 = vrot.lane.b32.xlu0 %v2622, 80
    %v2729 = vpop.permute.xlu0 %2728
    %2734 = vrot.lane.b32.xlu0 %v2483, 96
    %v2735 = vpop.permute.xlu0 %2734
    %2736 = vrot.lane.b32.xlu0 %v2619, 96
    %v2737 = vpop.permute.xlu0 %2736
    %2742 = vrot.lane.b32.xlu0 %v2487, 112
    %v2743 = vpop.permute.xlu0 %2742
    %2744 = vrot.lane.b32.xlu0 %v2623, 112
    %v2745 = vpop.permute.xlu0 %2744
    %2750 = vrot.lane.b32.xlu0 %v2552, 16
    %v2751 = vpop.permute.xlu0 %2750
    %2752 = vrot.lane.b32.xlu0 %v2688, 16
    %v2753 = vpop.permute.xlu0 %2752
    %2758 = vrot.lane.b32.xlu0 %v2535, 32
    %v2759 = vpop.permute.xlu0 %2758
    %2760 = vrot.lane.b32.xlu0 %v2671, 32
    %v2761 = vpop.permute.xlu0 %2760
    %2766 = vrot.lane.b32.xlu0 %v2553, 48
    %v2767 = vpop.permute.xlu0 %2766
    %2768 = vrot.lane.b32.xlu0 %v2689, 48
    %v2769 = vpop.permute.xlu0 %2768
    %2774 = vrot.lane.b32.xlu0 %v2544, 64
    %v2775 = vpop.permute.xlu0 %2774
    %2776 = vrot.lane.b32.xlu0 %v2680, 64
    %v2777 = vpop.permute.xlu0 %2776
    %2782 = vrot.lane.b32.xlu0 %v2554, 80
    %v2783 = vpop.permute.xlu0 %2782
    %2784 = vrot.lane.b32.xlu0 %v2690, 80
    %v2785 = vpop.permute.xlu0 %2784
    %2790 = vrot.lane.b32.xlu0 %v2551, 96
    %v2791 = vpop.permute.xlu0 %2790
    %2792 = vrot.lane.b32.xlu0 %v2687, 96
    %v2793 = vpop.permute.xlu0 %2792
    %2798 = vrot.lane.b32.xlu0 %v2555, 112
    %v2799 = vpop.permute.xlu0 %2798
    %2800 = vrot.lane.b32.xlu0 %v2691, 112
    %v2801 = vpop.permute.xlu0 %2800
    %v2804 = vsel %vm924, %v2460, %v2695
    %v2805 = vsel %vm924, %v2596, %v2697
    %v2806 = vsel %vm927, %v2804, %v2703
    %v2807 = vsel %vm927, %v2805, %v2705
    %v2808 = vsel %vm930, %v2806, %v2711
    %v2809 = vsel %vm930, %v2807, %v2713
    %v2810 = vsel %vm933, %v2808, %v2719
    %v2811 = vsel %vm933, %v2809, %v2721
    %v2812 = vsel %vm936, %v2810, %v2727
    %v2813 = vsel %vm936, %v2811, %v2729
    %v2814 = vsel %vm939, %v2812, %v2735
    %v2815 = vsel %vm939, %v2813, %v2737
    %v2816 = vsel %vm942, %v2814, %v2743
    %v2817 = vsel %vm942, %v2815, %v2745
    %v2818 = vsel %vm924, %v2528, %v2751
    %v2819 = vsel %vm924, %v2664, %v2753
    %v2820 = vsel %vm927, %v2818, %v2759
    %v2821 = vsel %vm927, %v2819, %v2761
    %v2822 = vsel %vm930, %v2820, %v2767
    %v2823 = vsel %vm930, %v2821, %v2769
    %v2824 = vsel %vm933, %v2822, %v2775
    %v2825 = vsel %vm933, %v2823, %v2777
    %v2826 = vsel %vm936, %v2824, %v2783
    %v2827 = vsel %vm936, %v2825, %v2785
    %v2828 = vsel %vm939, %v2826, %v2791
    %v2829 = vsel %vm939, %v2827, %v2793
    %v2830 = vsel %vm942, %v2828, %v2799
    %v2831 = vsel %vm942, %v2829, %v2801
    %2832 = vrot.lane.b32.xlu0 %v1906, 126
    %v2833 = vpop.permute.xlu0 %2832
    %2834 = vrot.lane.b32.xlu0 %v1908, 126
    %v2835 = vpop.permute.xlu0 %2834
    %2836 = vrot.lane.b32.xlu0 %v1911, 126
    %v2837 = vpop.permute.xlu0 %2836
    %2838 = vrot.lane.b32.xlu0 %v1913, 126
    %v2839 = vpop.permute.xlu0 %2838
    %2840 = vrot.lane.b32.xlu0 %v1916, 126
    %v2841 = vpop.permute.xlu0 %2840
    %2842 = vrot.lane.b32.xlu0 %v1918, 126
    %v2843 = vpop.permute.xlu0 %2842
    %2844 = vrot.lane.b32.xlu0 %v1921, 126
    %v2845 = vpop.permute.xlu0 %2844
    %2846 = vrot.lane.b32.xlu0 %v1923, 126
    %v2847 = vpop.permute.xlu0 %2846
    %2848 = vrot.lane.b32.xlu0 %v1926, 126
    %v2849 = vpop.permute.xlu0 %2848
    %2850 = vrot.lane.b32.xlu0 %v1928, 126
    %v2851 = vpop.permute.xlu0 %2850
    %2852 = vrot.lane.b32.xlu0 %v1931, 126
    %v2853 = vpop.permute.xlu0 %2852
    %2854 = vrot.lane.b32.xlu0 %v1933, 126
    %v2855 = vpop.permute.xlu0 %2854
    %2856 = vrot.lane.b32.xlu0 %v1936, 126
    %v2857 = vpop.permute.xlu0 %2856
    %2858 = vrot.lane.b32.xlu0 %v1938, 126
    %v2859 = vpop.permute.xlu0 %2858
    %2860 = vrot.lane.b32.xlu0 %v1941, 126
    %v2861 = vpop.permute.xlu0 %2860
    %2862 = vrot.lane.b32.xlu0 %v1943, 126
    %v2863 = vpop.permute.xlu0 %2862
    %v2880 = vcombine.low %v2833, %v2841
    %v2881 = vcombine.high %v2833, %v2841
    %v2883 = vunpack.c.l.s4 1983009808
    %v2884 = vunpack.c.0.s8 %v2883
    %v2885 = vlaneseq
    %v2886 = vshrl.u32 %v2885, 7
    %v2887 = vsub.s32 %v2884, %v2886
    %v2888 = vrot.slane %v2880, %v2887
    %v2890 = vunpack.c.l.s4 1983009808
    %v2891 = vunpack.c.0.s8 %v2890
    %v2892 = vlaneseq
    %v2893 = vshrl.u32 %v2892, 7
    %v2894 = vsub.s32 %v2891, %v2893
    %v2895 = vrot.slane %v2881, %v2894
    %v2896 = vcombine.low %v2837, %v2845
    %v2897 = vcombine.high %v2837, %v2845
    %v2899 = vunpack.c.l.s4 1983009808
    %v2900 = vunpack.c.0.s8 %v2899
    %v2901 = vlaneseq
    %v2902 = vshrl.u32 %v2901, 7
    %v2903 = vsub.s32 %v2900, %v2902
    %v2904 = vrot.slane %v2896, %v2903
    %v2906 = vunpack.c.l.s4 1983009808
    %v2907 = vunpack.c.0.s8 %v2906
    %v2908 = vlaneseq
    %v2909 = vshrl.u32 %v2908, 7
    %v2910 = vsub.s32 %v2907, %v2909
    %v2911 = vrot.slane %v2897, %v2910
    %v2912 = vcombine.low %v2888, %v2904
    %v2913 = vcombine.high %v2888, %v2904
    %v2915 = vunpack.c.l.s4 1934713408
    %v2916 = vunpack.c.0.s8 %v2915
    %v2917 = vlaneseq
    %v2918 = vshrl.u32 %v2917, 7
    %v2919 = vsub.s32 %v2916, %v2918
    %v2920 = vrot.slane %v2912, %v2919
    %v2922 = vunpack.c.l.s4 1934713408
    %v2923 = vunpack.c.0.s8 %v2922
    %v2924 = vlaneseq
    %v2925 = vshrl.u32 %v2924, 7
    %v2926 = vsub.s32 %v2923, %v2925
    %v2927 = vrot.slane %v2913, %v2926
    %v2928 = vcombine.low %v2895, %v2911
    %v2929 = vcombine.high %v2895, %v2911
    %v2931 = vunpack.c.l.s4 1934713408
    %v2932 = vunpack.c.0.s8 %v2931
    %v2933 = vlaneseq
    %v2934 = vshrl.u32 %v2933, 7
    %v2935 = vsub.s32 %v2932, %v2934
    %v2936 = vrot.slane %v2928, %v2935
    %v2938 = vunpack.c.l.s4 1934713408
    %v2939 = vunpack.c.0.s8 %v2938
    %v2940 = vlaneseq
    %v2941 = vshrl.u32 %v2940, 7
    %v2942 = vsub.s32 %v2939, %v2941
    %v2943 = vrot.slane %v2929, %v2942
    %v2944 = vcombine.high %v2920, 0.0
    %v2945 = vcombine.high %v2927, 0.0
    %v2946 = vcombine.high %v2936, 0.0
    %v2947 = vcombine.high %v2943, 0.0
    %v2948 = vcombine.low %v2835, %v2843
    %v2949 = vcombine.high %v2835, %v2843
    %v2951 = vunpack.c.l.s4 1983009808
    %v2952 = vunpack.c.0.s8 %v2951
    %v2953 = vlaneseq
    %v2954 = vshrl.u32 %v2953, 7
    %v2955 = vsub.s32 %v2952, %v2954
    %v2956 = vrot.slane %v2948, %v2955
    %v2958 = vunpack.c.l.s4 1983009808
    %v2959 = vunpack.c.0.s8 %v2958
    %v2960 = vlaneseq
    %v2961 = vshrl.u32 %v2960, 7
    %v2962 = vsub.s32 %v2959, %v2961
    %v2963 = vrot.slane %v2949, %v2962
    %v2964 = vcombine.low %v2839, %v2847
    %v2965 = vcombine.high %v2839, %v2847
    %v2967 = vunpack.c.l.s4 1983009808
    %v2968 = vunpack.c.0.s8 %v2967
    %v2969 = vlaneseq
    %v2970 = vshrl.u32 %v2969, 7
    %v2971 = vsub.s32 %v2968, %v2970
    %v2972 = vrot.slane %v2964, %v2971
    %v2974 = vunpack.c.l.s4 1983009808
    %v2975 = vunpack.c.0.s8 %v2974
    %v2976 = vlaneseq
    %v2977 = vshrl.u32 %v2976, 7
    %v2978 = vsub.s32 %v2975, %v2977
    %v2979 = vrot.slane %v2965, %v2978
    %v2980 = vcombine.low %v2956, %v2972
    %v2981 = vcombine.high %v2956, %v2972
    %v2983 = vunpack.c.l.s4 1934713408
    %v2984 = vunpack.c.0.s8 %v2983
    %v2985 = vlaneseq
    %v2986 = vshrl.u32 %v2985, 7
    %v2987 = vsub.s32 %v2984, %v2986
    %v2988 = vrot.slane %v2980, %v2987
    %v2990 = vunpack.c.l.s4 1934713408
    %v2991 = vunpack.c.0.s8 %v2990
    %v2992 = vlaneseq
    %v2993 = vshrl.u32 %v2992, 7
    %v2994 = vsub.s32 %v2991, %v2993
    %v2995 = vrot.slane %v2981, %v2994
    %v2996 = vcombine.low %v2963, %v2979
    %v2997 = vcombine.high %v2963, %v2979
    %v2999 = vunpack.c.l.s4 1934713408
    %v3000 = vunpack.c.0.s8 %v2999
    %v3001 = vlaneseq
    %v3002 = vshrl.u32 %v3001, 7
    %v3003 = vsub.s32 %v3000, %v3002
    %v3004 = vrot.slane %v2996, %v3003
    %v3006 = vunpack.c.l.s4 1934713408
    %v3007 = vunpack.c.0.s8 %v3006
    %v3008 = vlaneseq
    %v3009 = vshrl.u32 %v3008, 7
    %v3010 = vsub.s32 %v3007, %v3009
    %v3011 = vrot.slane %v2997, %v3010
    %v3012 = vcombine.high %v2988, 0.0
    %v3013 = vcombine.high %v2995, 0.0
    %v3014 = vcombine.high %v3004, 0.0
    %v3015 = vcombine.high %v3011, 0.0
    %v3016 = vcombine.low %v2849, %v2857
    %v3017 = vcombine.high %v2849, %v2857
    %v3019 = vunpack.c.l.s4 1983009808
    %v3020 = vunpack.c.0.s8 %v3019
    %v3021 = vlaneseq
    %v3022 = vshrl.u32 %v3021, 7
    %v3023 = vsub.s32 %v3020, %v3022
    %v3024 = vrot.slane %v3016, %v3023
    %v3026 = vunpack.c.l.s4 1983009808
    %v3027 = vunpack.c.0.s8 %v3026
    %v3028 = vlaneseq
    %v3029 = vshrl.u32 %v3028, 7
    %v3030 = vsub.s32 %v3027, %v3029
    %v3031 = vrot.slane %v3017, %v3030
    %v3032 = vcombine.low %v2853, %v2861
    %v3033 = vcombine.high %v2853, %v2861
    %v3035 = vunpack.c.l.s4 1983009808
    %v3036 = vunpack.c.0.s8 %v3035
    %v3037 = vlaneseq
    %v3038 = vshrl.u32 %v3037, 7
    %v3039 = vsub.s32 %v3036, %v3038
    %v3040 = vrot.slane %v3032, %v3039
    %v3042 = vunpack.c.l.s4 1983009808
    %v3043 = vunpack.c.0.s8 %v3042
    %v3044 = vlaneseq
    %v3045 = vshrl.u32 %v3044, 7
    %v3046 = vsub.s32 %v3043, %v3045
    %v3047 = vrot.slane %v3033, %v3046
    %v3048 = vcombine.low %v3024, %v3040
    %v3049 = vcombine.high %v3024, %v3040
    %v3051 = vunpack.c.l.s4 1934713408
    %v3052 = vunpack.c.0.s8 %v3051
    %v3053 = vlaneseq
    %v3054 = vshrl.u32 %v3053, 7
    %v3055 = vsub.s32 %v3052, %v3054
    %v3056 = vrot.slane %v3048, %v3055
    %v3058 = vunpack.c.l.s4 1934713408
    %v3059 = vunpack.c.0.s8 %v3058
    %v3060 = vlaneseq
    %v3061 = vshrl.u32 %v3060, 7
    %v3062 = vsub.s32 %v3059, %v3061
    %v3063 = vrot.slane %v3049, %v3062
    %v3064 = vcombine.low %v3031, %v3047
    %v3065 = vcombine.high %v3031, %v3047
    %v3067 = vunpack.c.l.s4 1934713408
    %v3068 = vunpack.c.0.s8 %v3067
    %v3069 = vlaneseq
    %v3070 = vshrl.u32 %v3069, 7
    %v3071 = vsub.s32 %v3068, %v3070
    %v3072 = vrot.slane %v3064, %v3071
    %v3074 = vunpack.c.l.s4 1934713408
    %v3075 = vunpack.c.0.s8 %v3074
    %v3076 = vlaneseq
    %v3077 = vshrl.u32 %v3076, 7
    %v3078 = vsub.s32 %v3075, %v3077
    %v3079 = vrot.slane %v3065, %v3078
    %v3080 = vcombine.high %v3056, 0.0
    %v3081 = vcombine.high %v3063, 0.0
    %v3082 = vcombine.high %v3072, 0.0
    %v3083 = vcombine.high %v3079, 0.0
    %v3084 = vcombine.low %v2851, %v2859
    %v3085 = vcombine.high %v2851, %v2859
    %v3087 = vunpack.c.l.s4 1983009808
    %v3088 = vunpack.c.0.s8 %v3087
    %v3089 = vlaneseq
    %v3090 = vshrl.u32 %v3089, 7
    %v3091 = vsub.s32 %v3088, %v3090
    %v3092 = vrot.slane %v3084, %v3091
    %v3094 = vunpack.c.l.s4 1983009808
    %v3095 = vunpack.c.0.s8 %v3094
    %v3096 = vlaneseq
    %v3097 = vshrl.u32 %v3096, 7
    %v3098 = vsub.s32 %v3095, %v3097
    %v3099 = vrot.slane %v3085, %v3098
    %v3100 = vcombine.low %v2855, %v2863
    %v3101 = vcombine.high %v2855, %v2863
    %v3103 = vunpack.c.l.s4 1983009808
    %v3104 = vunpack.c.0.s8 %v3103
    %v3105 = vlaneseq
    %v3106 = vshrl.u32 %v3105, 7
    %v3107 = vsub.s32 %v3104, %v3106
    %v3108 = vrot.slane %v3100, %v3107
    %v3110 = vunpack.c.l.s4 1983009808
    %v3111 = vunpack.c.0.s8 %v3110
    %v3112 = vlaneseq
    %v3113 = vshrl.u32 %v3112, 7
    %v3114 = vsub.s32 %v3111, %v3113
    %v3115 = vrot.slane %v3101, %v3114
    %v3116 = vcombine.low %v3092, %v3108
    %v3117 = vcombine.high %v3092, %v3108
    %v3119 = vunpack.c.l.s4 1934713408
    %v3120 = vunpack.c.0.s8 %v3119
    %v3121 = vlaneseq
    %v3122 = vshrl.u32 %v3121, 7
    %v3123 = vsub.s32 %v3120, %v3122
    %v3124 = vrot.slane %v3116, %v3123
    %v3126 = vunpack.c.l.s4 1934713408
    %v3127 = vunpack.c.0.s8 %v3126
    %v3128 = vlaneseq
    %v3129 = vshrl.u32 %v3128, 7
    %v3130 = vsub.s32 %v3127, %v3129
    %v3131 = vrot.slane %v3117, %v3130
    %v3132 = vcombine.low %v3099, %v3115
    %v3133 = vcombine.high %v3099, %v3115
    %v3135 = vunpack.c.l.s4 1934713408
    %v3136 = vunpack.c.0.s8 %v3135
    %v3137 = vlaneseq
    %v3138 = vshrl.u32 %v3137, 7
    %v3139 = vsub.s32 %v3136, %v3138
    %v3140 = vrot.slane %v3132, %v3139
    %v3142 = vunpack.c.l.s4 1934713408
    %v3143 = vunpack.c.0.s8 %v3142
    %v3144 = vlaneseq
    %v3145 = vshrl.u32 %v3144, 7
    %v3146 = vsub.s32 %v3143, %v3145
    %v3147 = vrot.slane %v3133, %v3146
    %v3148 = vcombine.high %v3124, 0.0
    %v3149 = vcombine.high %v3131, 0.0
    %v3150 = vcombine.high %v3140, 0.0
    %v3151 = vcombine.high %v3147, 0.0
    %3154 = vrot.lane.b32.xlu0 %v2944, 16
    %v3155 = vpop.permute.xlu0 %3154
    %3156 = vrot.lane.b32.xlu0 %v3080, 16
    %v3157 = vpop.permute.xlu0 %3156
    %3162 = vrot.lane.b32.xlu0 %v2927, 32
    %v3163 = vpop.permute.xlu0 %3162
    %3164 = vrot.lane.b32.xlu0 %v3063, 32
    %v3165 = vpop.permute.xlu0 %3164
    %3170 = vrot.lane.b32.xlu0 %v2945, 48
    %v3171 = vpop.permute.xlu0 %3170
    %3172 = vrot.lane.b32.xlu0 %v3081, 48
    %v3173 = vpop.permute.xlu0 %3172
    %3178 = vrot.lane.b32.xlu0 %v2936, 64
    %v3179 = vpop.permute.xlu0 %3178
    %3180 = vrot.lane.b32.xlu0 %v3072, 64
    %v3181 = vpop.permute.xlu0 %3180
    %3186 = vrot.lane.b32.xlu0 %v2946, 80
    %v3187 = vpop.permute.xlu0 %3186
    %3188 = vrot.lane.b32.xlu0 %v3082, 80
    %v3189 = vpop.permute.xlu0 %3188
    %3194 = vrot.lane.b32.xlu0 %v2943, 96
    %v3195 = vpop.permute.xlu0 %3194
    %3196 = vrot.lane.b32.xlu0 %v3079, 96
    %v3197 = vpop.permute.xlu0 %3196
    %3202 = vrot.lane.b32.xlu0 %v2947, 112
    %v3203 = vpop.permute.xlu0 %3202
    %3204 = vrot.lane.b32.xlu0 %v3083, 112
    %v3205 = vpop.permute.xlu0 %3204
    %3210 = vrot.lane.b32.xlu0 %v3012, 16
    %v3211 = vpop.permute.xlu0 %3210
    %3212 = vrot.lane.b32.xlu0 %v3148, 16
    %v3213 = vpop.permute.xlu0 %3212
    %3218 = vrot.lane.b32.xlu0 %v2995, 32
    %v3219 = vpop.permute.xlu0 %3218
    %3220 = vrot.lane.b32.xlu0 %v3131, 32
    %v3221 = vpop.permute.xlu0 %3220
    %3226 = vrot.lane.b32.xlu0 %v3013, 48
    %v3227 = vpop.permute.xlu0 %3226
    %3228 = vrot.lane.b32.xlu0 %v3149, 48
    %v3229 = vpop.permute.xlu0 %3228
    %3234 = vrot.lane.b32.xlu0 %v3004, 64
    %v3235 = vpop.permute.xlu0 %3234
    %3236 = vrot.lane.b32.xlu0 %v3140, 64
    %v3237 = vpop.permute.xlu0 %3236
    %3242 = vrot.lane.b32.xlu0 %v3014, 80
    %v3243 = vpop.permute.xlu0 %3242
    %3244 = vrot.lane.b32.xlu0 %v3150, 80
    %v3245 = vpop.permute.xlu0 %3244
    %3250 = vrot.lane.b32.xlu0 %v3011, 96
    %v3251 = vpop.permute.xlu0 %3250
    %3252 = vrot.lane.b32.xlu0 %v3147, 96
    %v3253 = vpop.permute.xlu0 %3252
    %3258 = vrot.lane.b32.xlu0 %v3015, 112
    %v3259 = vpop.permute.xlu0 %3258
    %3260 = vrot.lane.b32.xlu0 %v3151, 112
    %v3261 = vpop.permute.xlu0 %3260
    %v3264 = vsel %vm924, %v2920, %v3155
    %v3265 = vsel %vm924, %v3056, %v3157
    %v3266 = vsel %vm927, %v3264, %v3163
    %v3267 = vsel %vm927, %v3265, %v3165
    %v3268 = vsel %vm930, %v3266, %v3171
    %v3269 = vsel %vm930, %v3267, %v3173
    %v3270 = vsel %vm933, %v3268, %v3179
    %v3271 = vsel %vm933, %v3269, %v3181
    %v3272 = vsel %vm936, %v3270, %v3187
    %v3273 = vsel %vm936, %v3271, %v3189
    %v3274 = vsel %vm939, %v3272, %v3195
    %v3275 = vsel %vm939, %v3273, %v3197
    %v3276 = vsel %vm942, %v3274, %v3203
    %v3277 = vsel %vm942, %v3275, %v3205
    %v3278 = vsel %vm924, %v2988, %v3211
    %v3279 = vsel %vm924, %v3124, %v3213
    %v3280 = vsel %vm927, %v3278, %v3219
    %v3281 = vsel %vm927, %v3279, %v3221
    %v3282 = vsel %vm930, %v3280, %v3227
    %v3283 = vsel %vm930, %v3281, %v3229
    %v3284 = vsel %vm933, %v3282, %v3235
    %v3285 = vsel %vm933, %v3283, %v3237
    %v3286 = vsel %vm936, %v3284, %v3243
    %v3287 = vsel %vm936, %v3285, %v3245
    %v3288 = vsel %vm939, %v3286, %v3251
    %v3289 = vsel %vm939, %v3287, %v3253
    %v3290 = vsel %vm942, %v3288, %v3259
    %v3291 = vsel %vm942, %v3289, %v3261
    %vm3292 = vcmask 1045504
    %v3293 = vrot.slane %v516, 2
    %v3294 = vrot.slane %v517, 2
    %v3295 = vsel %vm3292, %v3293, %v3294
    %v3296 = vrot.slane %v518, 2
    %v3297 = vsel %vm3292, %v3294, %v3296
    %v3298 = vrot.slane %v519, 2
    %v3299 = vrot.slane %v520, 2
    %v3300 = vsel %vm3292, %v3298, %v3299
    %v3301 = vrot.slane %v521, 2
    %v3302 = vsel %vm3292, %v3299, %v3301
    %v3303 = vrot.slane %v522, 2
    %v3304 = vrot.slane %v523, 2
    %v3305 = vsel %vm3292, %v3303, %v3304
    %v3306 = vrot.slane %v524, 2
    %v3307 = vsel %vm3292, %v3304, %v3306
    %v3308 = vrot.slane %v525, 2
    %v3309 = vrot.slane %v526, 2
    %v3310 = vsel %vm3292, %v3308, %v3309
    %v3311 = vrot.slane %v527, 2
    %v3312 = vsel %vm3292, %v3309, %v3311
    %v3313 = vrot.slane %v528, 2
    %v3314 = vrot.slane %v529, 2
    %v3315 = vsel %vm3292, %v3313, %v3314
    %v3316 = vrot.slane %v530, 2
    %v3317 = vsel %vm3292, %v3314, %v3316
    %v3318 = vrot.slane %v531, 2
    %v3319 = vrot.slane %v532, 2
    %v3320 = vsel %vm3292, %v3318, %v3319
    %v3321 = vrot.slane %v533, 2
    %v3322 = vsel %vm3292, %v3319, %v3321
    %v3323 = vrot.slane %v534, 2
    %v3324 = vrot.slane %v535, 2
    %v3325 = vsel %vm3292, %v3323, %v3324
    %v3326 = vrot.slane %v536, 2
    %v3327 = vsel %vm3292, %v3324, %v3326
    %v3328 = vrot.slane %v537, 2
    %v3329 = vrot.slane %v538, 2
    %v3330 = vsel %vm3292, %v3328, %v3329
    %v3331 = vrot.slane %v539, 2
    %v3332 = vsel %vm3292, %v3329, %v3331
    %v3349 = vcombine.low %v3295, %v3305
    %v3350 = vcombine.high %v3295, %v3305
    %v3352 = vunpack.c.l.s4 1983009808
    %v3353 = vunpack.c.0.s8 %v3352
    %v3354 = vlaneseq
    %v3355 = vshrl.u32 %v3354, 7
    %v3356 = vsub.s32 %v3353, %v3355
    %v3357 = vrot.slane %v3349, %v3356
    %v3359 = vunpack.c.l.s4 1983009808
    %v3360 = vunpack.c.0.s8 %v3359
    %v3361 = vlaneseq
    %v3362 = vshrl.u32 %v3361, 7
    %v3363 = vsub.s32 %v3360, %v3362
    %v3364 = vrot.slane %v3350, %v3363
    %v3365 = vcombine.low %v3300, %v3310
    %v3366 = vcombine.high %v3300, %v3310
    %v3368 = vunpack.c.l.s4 1983009808
    %v3369 = vunpack.c.0.s8 %v3368
    %v3370 = vlaneseq
    %v3371 = vshrl.u32 %v3370, 7
    %v3372 = vsub.s32 %v3369, %v3371
    %v3373 = vrot.slane %v3365, %v3372
    %v3375 = vunpack.c.l.s4 1983009808
    %v3376 = vunpack.c.0.s8 %v3375
    %v3377 = vlaneseq
    %v3378 = vshrl.u32 %v3377, 7
    %v3379 = vsub.s32 %v3376, %v3378
    %v3380 = vrot.slane %v3366, %v3379
    %v3381 = vcombine.low %v3357, %v3373
    %v3382 = vcombine.high %v3357, %v3373
    %v3384 = vunpack.c.l.s4 1934713408
    %v3385 = vunpack.c.0.s8 %v3384
    %v3386 = vlaneseq
    %v3387 = vshrl.u32 %v3386, 7
    %v3388 = vsub.s32 %v3385, %v3387
    %v3389 = vrot.slane %v3381, %v3388
    %v3391 = vunpack.c.l.s4 1934713408
    %v3392 = vunpack.c.0.s8 %v3391
    %v3393 = vlaneseq
    %v3394 = vshrl.u32 %v3393, 7
    %v3395 = vsub.s32 %v3392, %v3394
    %v3396 = vrot.slane %v3382, %v3395
    %v3397 = vcombine.low %v3364, %v3380
    %v3398 = vcombine.high %v3364, %v3380
    %v3400 = vunpack.c.l.s4 1934713408
    %v3401 = vunpack.c.0.s8 %v3400
    %v3402 = vlaneseq
    %v3403 = vshrl.u32 %v3402, 7
    %v3404 = vsub.s32 %v3401, %v3403
    %v3405 = vrot.slane %v3397, %v3404
    %v3407 = vunpack.c.l.s4 1934713408
    %v3408 = vunpack.c.0.s8 %v3407
    %v3409 = vlaneseq
    %v3410 = vshrl.u32 %v3409, 7
    %v3411 = vsub.s32 %v3408, %v3410
    %v3412 = vrot.slane %v3398, %v3411
    %v3413 = vcombine.high %v3389, 0.0
    %v3414 = vcombine.high %v3396, 0.0
    %v3415 = vcombine.high %v3405, 0.0
    %v3416 = vcombine.high %v3412, 0.0
    %v3417 = vcombine.low %v3297, %v3307
    %v3418 = vcombine.high %v3297, %v3307
    %v3420 = vunpack.c.l.s4 1983009808
    %v3421 = vunpack.c.0.s8 %v3420
    %v3422 = vlaneseq
    %v3423 = vshrl.u32 %v3422, 7
    %v3424 = vsub.s32 %v3421, %v3423
    %v3425 = vrot.slane %v3417, %v3424
    %v3427 = vunpack.c.l.s4 1983009808
    %v3428 = vunpack.c.0.s8 %v3427
    %v3429 = vlaneseq
    %v3430 = vshrl.u32 %v3429, 7
    %v3431 = vsub.s32 %v3428, %v3430
    %v3432 = vrot.slane %v3418, %v3431
    %v3433 = vcombine.low %v3302, %v3312
    %v3434 = vcombine.high %v3302, %v3312
    %v3436 = vunpack.c.l.s4 1983009808
    %v3437 = vunpack.c.0.s8 %v3436
    %v3438 = vlaneseq
    %v3439 = vshrl.u32 %v3438, 7
    %v3440 = vsub.s32 %v3437, %v3439
    %v3441 = vrot.slane %v3433, %v3440
    %v3443 = vunpack.c.l.s4 1983009808
    %v3444 = vunpack.c.0.s8 %v3443
    %v3445 = vlaneseq
    %v3446 = vshrl.u32 %v3445, 7
    %v3447 = vsub.s32 %v3444, %v3446
    %v3448 = vrot.slane %v3434, %v3447
    %v3449 = vcombine.low %v3425, %v3441
    %v3450 = vcombine.high %v3425, %v3441
    %v3452 = vunpack.c.l.s4 1934713408
    %v3453 = vunpack.c.0.s8 %v3452
    %v3454 = vlaneseq
    %v3455 = vshrl.u32 %v3454, 7
    %v3456 = vsub.s32 %v3453, %v3455
    %v3457 = vrot.slane %v3449, %v3456
    %v3459 = vunpack.c.l.s4 1934713408
    %v3460 = vunpack.c.0.s8 %v3459
    %v3461 = vlaneseq
    %v3462 = vshrl.u32 %v3461, 7
    %v3463 = vsub.s32 %v3460, %v3462
    %v3464 = vrot.slane %v3450, %v3463
    %v3465 = vcombine.low %v3432, %v3448
    %v3466 = vcombine.high %v3432, %v3448
    %v3468 = vunpack.c.l.s4 1934713408
    %v3469 = vunpack.c.0.s8 %v3468
    %v3470 = vlaneseq
    %v3471 = vshrl.u32 %v3470, 7
    %v3472 = vsub.s32 %v3469, %v3471
    %v3473 = vrot.slane %v3465, %v3472
    %v3475 = vunpack.c.l.s4 1934713408
    %v3476 = vunpack.c.0.s8 %v3475
    %v3477 = vlaneseq
    %v3478 = vshrl.u32 %v3477, 7
    %v3479 = vsub.s32 %v3476, %v3478
    %v3480 = vrot.slane %v3466, %v3479
    %v3481 = vcombine.high %v3457, 0.0
    %v3482 = vcombine.high %v3464, 0.0
    %v3483 = vcombine.high %v3473, 0.0
    %v3484 = vcombine.high %v3480, 0.0
    %v3485 = vcombine.low %v3315, %v3325
    %v3486 = vcombine.high %v3315, %v3325
    %v3488 = vunpack.c.l.s4 1983009808
    %v3489 = vunpack.c.0.s8 %v3488
    %v3490 = vlaneseq
    %v3491 = vshrl.u32 %v3490, 7
    %v3492 = vsub.s32 %v3489, %v3491
    %v3493 = vrot.slane %v3485, %v3492
    %v3495 = vunpack.c.l.s4 1983009808
    %v3496 = vunpack.c.0.s8 %v3495
    %v3497 = vlaneseq
    %v3498 = vshrl.u32 %v3497, 7
    %v3499 = vsub.s32 %v3496, %v3498
    %v3500 = vrot.slane %v3486, %v3499
    %v3501 = vcombine.low %v3320, %v3330
    %v3502 = vcombine.high %v3320, %v3330
    %v3504 = vunpack.c.l.s4 1983009808
    %v3505 = vunpack.c.0.s8 %v3504
    %v3506 = vlaneseq
    %v3507 = vshrl.u32 %v3506, 7
    %v3508 = vsub.s32 %v3505, %v3507
    %v3509 = vrot.slane %v3501, %v3508
    %v3511 = vunpack.c.l.s4 1983009808
    %v3512 = vunpack.c.0.s8 %v3511
    %v3513 = vlaneseq
    %v3514 = vshrl.u32 %v3513, 7
    %v3515 = vsub.s32 %v3512, %v3514
    %v3516 = vrot.slane %v3502, %v3515
    %v3517 = vcombine.low %v3493, %v3509
    %v3518 = vcombine.high %v3493, %v3509
    %v3520 = vunpack.c.l.s4 1934713408
    %v3521 = vunpack.c.0.s8 %v3520
    %v3522 = vlaneseq
    %v3523 = vshrl.u32 %v3522, 7
    %v3524 = vsub.s32 %v3521, %v3523
    %v3525 = vrot.slane %v3517, %v3524
    %v3527 = vunpack.c.l.s4 1934713408
    %v3528 = vunpack.c.0.s8 %v3527
    %v3529 = vlaneseq
    %v3530 = vshrl.u32 %v3529, 7
    %v3531 = vsub.s32 %v3528, %v3530
    %v3532 = vrot.slane %v3518, %v3531
    %v3533 = vcombine.low %v3500, %v3516
    %v3534 = vcombine.high %v3500, %v3516
    %v3536 = vunpack.c.l.s4 1934713408
    %v3537 = vunpack.c.0.s8 %v3536
    %v3538 = vlaneseq
    %v3539 = vshrl.u32 %v3538, 7
    %v3540 = vsub.s32 %v3537, %v3539
    %v3541 = vrot.slane %v3533, %v3540
    %v3543 = vunpack.c.l.s4 1934713408
    %v3544 = vunpack.c.0.s8 %v3543
    %v3545 = vlaneseq
    %v3546 = vshrl.u32 %v3545, 7
    %v3547 = vsub.s32 %v3544, %v3546
    %v3548 = vrot.slane %v3534, %v3547
    %v3549 = vcombine.high %v3525, 0.0
    %v3550 = vcombine.high %v3532, 0.0
    %v3551 = vcombine.high %v3541, 0.0
    %v3552 = vcombine.high %v3548, 0.0
    %v3553 = vcombine.low %v3317, %v3327
    %v3554 = vcombine.high %v3317, %v3327
    %v3556 = vunpack.c.l.s4 1983009808
    %v3557 = vunpack.c.0.s8 %v3556
    %v3558 = vlaneseq
    %v3559 = vshrl.u32 %v3558, 7
    %v3560 = vsub.s32 %v3557, %v3559
    %v3561 = vrot.slane %v3553, %v3560
    %v3563 = vunpack.c.l.s4 1983009808
    %v3564 = vunpack.c.0.s8 %v3563
    %v3565 = vlaneseq
    %v3566 = vshrl.u32 %v3565, 7
    %v3567 = vsub.s32 %v3564, %v3566
    %v3568 = vrot.slane %v3554, %v3567
    %v3569 = vcombine.low %v3322, %v3332
    %v3570 = vcombine.high %v3322, %v3332
    %v3572 = vunpack.c.l.s4 1983009808
    %v3573 = vunpack.c.0.s8 %v3572
    %v3574 = vlaneseq
    %v3575 = vshrl.u32 %v3574, 7
    %v3576 = vsub.s32 %v3573, %v3575
    %v3577 = vrot.slane %v3569, %v3576
    %v3579 = vunpack.c.l.s4 1983009808
    %v3580 = vunpack.c.0.s8 %v3579
    %v3581 = vlaneseq
    %v3582 = vshrl.u32 %v3581, 7
    %v3583 = vsub.s32 %v3580, %v3582
    %v3584 = vrot.slane %v3570, %v3583
    %v3585 = vcombine.low %v3561, %v3577
    %v3586 = vcombine.high %v3561, %v3577
    %v3588 = vunpack.c.l.s4 1934713408
    %v3589 = vunpack.c.0.s8 %v3588
    %v3590 = vlaneseq
    %v3591 = vshrl.u32 %v3590, 7
    %v3592 = vsub.s32 %v3589, %v3591
    %v3593 = vrot.slane %v3585, %v3592
    %v3595 = vunpack.c.l.s4 1934713408
    %v3596 = vunpack.c.0.s8 %v3595
    %v3597 = vlaneseq
    %v3598 = vshrl.u32 %v3597, 7
    %v3599 = vsub.s32 %v3596, %v3598
    %v3600 = vrot.slane %v3586, %v3599
    %v3601 = vcombine.low %v3568, %v3584
    %v3602 = vcombine.high %v3568, %v3584
    %v3604 = vunpack.c.l.s4 1934713408
    %v3605 = vunpack.c.0.s8 %v3604
    %v3606 = vlaneseq
    %v3607 = vshrl.u32 %v3606, 7
    %v3608 = vsub.s32 %v3605, %v3607
    %v3609 = vrot.slane %v3601, %v3608
    %v3611 = vunpack.c.l.s4 1934713408
    %v3612 = vunpack.c.0.s8 %v3611
    %v3613 = vlaneseq
    %v3614 = vshrl.u32 %v3613, 7
    %v3615 = vsub.s32 %v3612, %v3614
    %v3616 = vrot.slane %v3602, %v3615
    %v3617 = vcombine.high %v3593, 0.0
    %v3618 = vcombine.high %v3600, 0.0
    %v3619 = vcombine.high %v3609, 0.0
    %v3620 = vcombine.high %v3616, 0.0
    %3623 = vrot.lane.b32.xlu0 %v3413, 16
    %v3624 = vpop.permute.xlu0 %3623
    %3625 = vrot.lane.b32.xlu0 %v3549, 16
    %v3626 = vpop.permute.xlu0 %3625
    %3631 = vrot.lane.b32.xlu0 %v3396, 32
    %v3632 = vpop.permute.xlu0 %3631
    %3633 = vrot.lane.b32.xlu0 %v3532, 32
    %v3634 = vpop.permute.xlu0 %3633
    %3639 = vrot.lane.b32.xlu0 %v3414, 48
    %v3640 = vpop.permute.xlu0 %3639
    %3641 = vrot.lane.b32.xlu0 %v3550, 48
    %v3642 = vpop.permute.xlu0 %3641
    %3647 = vrot.lane.b32.xlu0 %v3405, 64
    %v3648 = vpop.permute.xlu0 %3647
    %3649 = vrot.lane.b32.xlu0 %v3541, 64
    %v3650 = vpop.permute.xlu0 %3649
    %3655 = vrot.lane.b32.xlu0 %v3415, 80
    %v3656 = vpop.permute.xlu0 %3655
    %3657 = vrot.lane.b32.xlu0 %v3551, 80
    %v3658 = vpop.permute.xlu0 %3657
    %3663 = vrot.lane.b32.xlu0 %v3412, 96
    %v3664 = vpop.permute.xlu0 %3663
    %3665 = vrot.lane.b32.xlu0 %v3548, 96
    %v3666 = vpop.permute.xlu0 %3665
    %3671 = vrot.lane.b32.xlu0 %v3416, 112
    %v3672 = vpop.permute.xlu0 %3671
    %3673 = vrot.lane.b32.xlu0 %v3552, 112
    %v3674 = vpop.permute.xlu0 %3673
    %3679 = vrot.lane.b32.xlu0 %v3481, 16
    %v3680 = vpop.permute.xlu0 %3679
    %3681 = vrot.lane.b32.xlu0 %v3617, 16
    %v3682 = vpop.permute.xlu0 %3681
    %3687 = vrot.lane.b32.xlu0 %v3464, 32
    %v3688 = vpop.permute.xlu0 %3687
    %3689 = vrot.lane.b32.xlu0 %v3600, 32
    %v3690 = vpop.permute.xlu0 %3689
    %3695 = vrot.lane.b32.xlu0 %v3482, 48
    %v3696 = vpop.permute.xlu0 %3695
    %3697 = vrot.lane.b32.xlu0 %v3618, 48
    %v3698 = vpop.permute.xlu0 %3697
    %3703 = vrot.lane.b32.xlu0 %v3473, 64
    %v3704 = vpop.permute.xlu0 %3703
    %3705 = vrot.lane.b32.xlu0 %v3609, 64
    %v3706 = vpop.permute.xlu0 %3705
    %3711 = vrot.lane.b32.xlu0 %v3483, 80
    %v3712 = vpop.permute.xlu0 %3711
    %3713 = vrot.lane.b32.xlu0 %v3619, 80
    %v3714 = vpop.permute.xlu0 %3713
    %3719 = vrot.lane.b32.xlu0 %v3480, 96
    %v3720 = vpop.permute.xlu0 %3719
    %3721 = vrot.lane.b32.xlu0 %v3616, 96
    %v3722 = vpop.permute.xlu0 %3721
    %3727 = vrot.lane.b32.xlu0 %v3484, 112
    %v3728 = vpop.permute.xlu0 %3727
    %3729 = vrot.lane.b32.xlu0 %v3620, 112
    %v3730 = vpop.permute.xlu0 %3729
    %v3733 = vsel %vm924, %v3389, %v3624
    %v3734 = vsel %vm924, %v3525, %v3626
    %v3735 = vsel %vm927, %v3733, %v3632
    %v3736 = vsel %vm927, %v3734, %v3634
    %v3737 = vsel %vm930, %v3735, %v3640
    %v3738 = vsel %vm930, %v3736, %v3642
    %v3739 = vsel %vm933, %v3737, %v3648
    %v3740 = vsel %vm933, %v3738, %v3650
    %v3741 = vsel %vm936, %v3739, %v3656
    %v3742 = vsel %vm936, %v3740, %v3658
    %v3743 = vsel %vm939, %v3741, %v3664
    %v3744 = vsel %vm939, %v3742, %v3666
    %v3745 = vsel %vm942, %v3743, %v3672
    %v3746 = vsel %vm942, %v3744, %v3674
    %v3747 = vsel %vm924, %v3457, %v3680
    %v3748 = vsel %vm924, %v3593, %v3682
    %v3749 = vsel %vm927, %v3747, %v3688
    %v3750 = vsel %vm927, %v3748, %v3690
    %v3751 = vsel %vm930, %v3749, %v3696
    %v3752 = vsel %vm930, %v3750, %v3698
    %v3753 = vsel %vm933, %v3751, %v3704
    %v3754 = vsel %vm933, %v3752, %v3706
    %v3755 = vsel %vm936, %v3753, %v3712
    %v3756 = vsel %vm936, %v3754, %v3714
    %v3757 = vsel %vm939, %v3755, %v3720
    %v3758 = vsel %vm939, %v3756, %v3722
    %v3759 = vsel %vm942, %v3757, %v3728
    %v3760 = vsel %vm942, %v3758, %v3730
    %3761 = vrot.lane.b32.xlu0 %v3295, 127
    %v3762 = vpop.permute.xlu0 %3761
    %3763 = vrot.lane.b32.xlu0 %v3297, 127
    %v3764 = vpop.permute.xlu0 %3763
    %3765 = vrot.lane.b32.xlu0 %v3300, 127
    %v3766 = vpop.permute.xlu0 %3765
    %3767 = vrot.lane.b32.xlu0 %v3302, 127
    %v3768 = vpop.permute.xlu0 %3767
    %3769 = vrot.lane.b32.xlu0 %v3305, 127
    %v3770 = vpop.permute.xlu0 %3769
    %3771 = vrot.lane.b32.xlu0 %v3307, 127
    %v3772 = vpop.permute.xlu0 %3771
    %3773 = vrot.lane.b32.xlu0 %v3310, 127
    %v3774 = vpop.permute.xlu0 %3773
    %3775 = vrot.lane.b32.xlu0 %v3312, 127
    %v3776 = vpop.permute.xlu0 %3775
    %3777 = vrot.lane.b32.xlu0 %v3315, 127
    %v3778 = vpop.permute.xlu0 %3777
    %3779 = vrot.lane.b32.xlu0 %v3317, 127
    %v3780 = vpop.permute.xlu0 %3779
    %3781 = vrot.lane.b32.xlu0 %v3320, 127
    %v3782 = vpop.permute.xlu0 %3781
    %3783 = vrot.lane.b32.xlu0 %v3322, 127
    %v3784 = vpop.permute.xlu0 %3783
    %3785 = vrot.lane.b32.xlu0 %v3325, 127
    %v3786 = vpop.permute.xlu0 %3785
    %3787 = vrot.lane.b32.xlu0 %v3327, 127
    %v3788 = vpop.permute.xlu0 %3787
    %3789 = vrot.lane.b32.xlu0 %v3330, 127
    %v3790 = vpop.permute.xlu0 %3789
    %3791 = vrot.lane.b32.xlu0 %v3332, 127
    %v3792 = vpop.permute.xlu0 %3791
    %v3809 = vcombine.low %v3762, %v3770
    %v3810 = vcombine.high %v3762, %v3770
    %v3812 = vunpack.c.l.s4 1983009808
    %v3813 = vunpack.c.0.s8 %v3812
    %v3814 = vlaneseq
    %v3815 = vshrl.u32 %v3814, 7
    %v3816 = vsub.s32 %v3813, %v3815
    %v3817 = vrot.slane %v3809, %v3816
    %v3819 = vunpack.c.l.s4 1983009808
    %v3820 = vunpack.c.0.s8 %v3819
    %v3821 = vlaneseq
    %v3822 = vshrl.u32 %v3821, 7
    %v3823 = vsub.s32 %v3820, %v3822
    %v3824 = vrot.slane %v3810, %v3823
    %v3825 = vcombine.low %v3766, %v3774
    %v3826 = vcombine.high %v3766, %v3774
    %v3828 = vunpack.c.l.s4 1983009808
    %v3829 = vunpack.c.0.s8 %v3828
    %v3830 = vlaneseq
    %v3831 = vshrl.u32 %v3830, 7
    %v3832 = vsub.s32 %v3829, %v3831
    %v3833 = vrot.slane %v3825, %v3832
    %v3835 = vunpack.c.l.s4 1983009808
    %v3836 = vunpack.c.0.s8 %v3835
    %v3837 = vlaneseq
    %v3838 = vshrl.u32 %v3837, 7
    %v3839 = vsub.s32 %v3836, %v3838
    %v3840 = vrot.slane %v3826, %v3839
    %v3841 = vcombine.low %v3817, %v3833
    %v3842 = vcombine.high %v3817, %v3833
    %v3844 = vunpack.c.l.s4 1934713408
    %v3845 = vunpack.c.0.s8 %v3844
    %v3846 = vlaneseq
    %v3847 = vshrl.u32 %v3846, 7
    %v3848 = vsub.s32 %v3845, %v3847
    %v3849 = vrot.slane %v3841, %v3848
    %v3851 = vunpack.c.l.s4 1934713408
    %v3852 = vunpack.c.0.s8 %v3851
    %v3853 = vlaneseq
    %v3854 = vshrl.u32 %v3853, 7
    %v3855 = vsub.s32 %v3852, %v3854
    %v3856 = vrot.slane %v3842, %v3855
    %v3857 = vcombine.low %v3824, %v3840
    %v3858 = vcombine.high %v3824, %v3840
    %v3860 = vunpack.c.l.s4 1934713408
    %v3861 = vunpack.c.0.s8 %v3860
    %v3862 = vlaneseq
    %v3863 = vshrl.u32 %v3862, 7
    %v3864 = vsub.s32 %v3861, %v3863
    %v3865 = vrot.slane %v3857, %v3864
    %v3867 = vunpack.c.l.s4 1934713408
    %v3868 = vunpack.c.0.s8 %v3867
    %v3869 = vlaneseq
    %v3870 = vshrl.u32 %v3869, 7
    %v3871 = vsub.s32 %v3868, %v3870
    %v3872 = vrot.slane %v3858, %v3871
    %v3873 = vcombine.high %v3849, 0.0
    %v3874 = vcombine.high %v3856, 0.0
    %v3875 = vcombine.high %v3865, 0.0
    %v3876 = vcombine.high %v3872, 0.0
    %v3877 = vcombine.low %v3764, %v3772
    %v3878 = vcombine.high %v3764, %v3772
    %v3880 = vunpack.c.l.s4 1983009808
    %v3881 = vunpack.c.0.s8 %v3880
    %v3882 = vlaneseq
    %v3883 = vshrl.u32 %v3882, 7
    %v3884 = vsub.s32 %v3881, %v3883
    %v3885 = vrot.slane %v3877, %v3884
    %v3887 = vunpack.c.l.s4 1983009808
    %v3888 = vunpack.c.0.s8 %v3887
    %v3889 = vlaneseq
    %v3890 = vshrl.u32 %v3889, 7
    %v3891 = vsub.s32 %v3888, %v3890
    %v3892 = vrot.slane %v3878, %v3891
    %v3893 = vcombine.low %v3768, %v3776
    %v3894 = vcombine.high %v3768, %v3776
    %v3896 = vunpack.c.l.s4 1983009808
    %v3897 = vunpack.c.0.s8 %v3896
    %v3898 = vlaneseq
    %v3899 = vshrl.u32 %v3898, 7
    %v3900 = vsub.s32 %v3897, %v3899
    %v3901 = vrot.slane %v3893, %v3900
    %v3903 = vunpack.c.l.s4 1983009808
    %v3904 = vunpack.c.0.s8 %v3903
    %v3905 = vlaneseq
    %v3906 = vshrl.u32 %v3905, 7
    %v3907 = vsub.s32 %v3904, %v3906
    %v3908 = vrot.slane %v3894, %v3907
    %v3909 = vcombine.low %v3885, %v3901
    %v3910 = vcombine.high %v3885, %v3901
    %v3912 = vunpack.c.l.s4 1934713408
    %v3913 = vunpack.c.0.s8 %v3912
    %v3914 = vlaneseq
    %v3915 = vshrl.u32 %v3914, 7
    %v3916 = vsub.s32 %v3913, %v3915
    %v3917 = vrot.slane %v3909, %v3916
    %v3919 = vunpack.c.l.s4 1934713408
    %v3920 = vunpack.c.0.s8 %v3919
    %v3921 = vlaneseq
    %v3922 = vshrl.u32 %v3921, 7
    %v3923 = vsub.s32 %v3920, %v3922
    %v3924 = vrot.slane %v3910, %v3923
    %v3925 = vcombine.low %v3892, %v3908
    %v3926 = vcombine.high %v3892, %v3908
    %v3928 = vunpack.c.l.s4 1934713408
    %v3929 = vunpack.c.0.s8 %v3928
    %v3930 = vlaneseq
    %v3931 = vshrl.u32 %v3930, 7
    %v3932 = vsub.s32 %v3929, %v3931
    %v3933 = vrot.slane %v3925, %v3932
    %v3935 = vunpack.c.l.s4 1934713408
    %v3936 = vunpack.c.0.s8 %v3935
    %v3937 = vlaneseq
    %v3938 = vshrl.u32 %v3937, 7
    %v3939 = vsub.s32 %v3936, %v3938
    %v3940 = vrot.slane %v3926, %v3939
    %v3941 = vcombine.high %v3917, 0.0
    %v3942 = vcombine.high %v3924, 0.0
    %v3943 = vcombine.high %v3933, 0.0
    %v3944 = vcombine.high %v3940, 0.0
    %v3945 = vcombine.low %v3778, %v3786
    %v3946 = vcombine.high %v3778, %v3786
    %v3948 = vunpack.c.l.s4 1983009808
    %v3949 = vunpack.c.0.s8 %v3948
    %v3950 = vlaneseq
    %v3951 = vshrl.u32 %v3950, 7
    %v3952 = vsub.s32 %v3949, %v3951
    %v3953 = vrot.slane %v3945, %v3952
    %v3955 = vunpack.c.l.s4 1983009808
    %v3956 = vunpack.c.0.s8 %v3955
    %v3957 = vlaneseq
    %v3958 = vshrl.u32 %v3957, 7
    %v3959 = vsub.s32 %v3956, %v3958
    %v3960 = vrot.slane %v3946, %v3959
    %v3961 = vcombine.low %v3782, %v3790
    %v3962 = vcombine.high %v3782, %v3790
    %v3964 = vunpack.c.l.s4 1983009808
    %v3965 = vunpack.c.0.s8 %v3964
    %v3966 = vlaneseq
    %v3967 = vshrl.u32 %v3966, 7
    %v3968 = vsub.s32 %v3965, %v3967
    %v3969 = vrot.slane %v3961, %v3968
    %v3971 = vunpack.c.l.s4 1983009808
    %v3972 = vunpack.c.0.s8 %v3971
    %v3973 = vlaneseq
    %v3974 = vshrl.u32 %v3973, 7
    %v3975 = vsub.s32 %v3972, %v3974
    %v3976 = vrot.slane %v3962, %v3975
    %v3977 = vcombine.low %v3953, %v3969
    %v3978 = vcombine.high %v3953, %v3969
    %v3980 = vunpack.c.l.s4 1934713408
    %v3981 = vunpack.c.0.s8 %v3980
    %v3982 = vlaneseq
    %v3983 = vshrl.u32 %v3982, 7
    %v3984 = vsub.s32 %v3981, %v3983
    %v3985 = vrot.slane %v3977, %v3984
    %v3987 = vunpack.c.l.s4 1934713408
    %v3988 = vunpack.c.0.s8 %v3987
    %v3989 = vlaneseq
    %v3990 = vshrl.u32 %v3989, 7
    %v3991 = vsub.s32 %v3988, %v3990
    %v3992 = vrot.slane %v3978, %v3991
    %v3993 = vcombine.low %v3960, %v3976
    %v3994 = vcombine.high %v3960, %v3976
    %v3996 = vunpack.c.l.s4 1934713408
    %v3997 = vunpack.c.0.s8 %v3996
    %v3998 = vlaneseq
    %v3999 = vshrl.u32 %v3998, 7
    %v4000 = vsub.s32 %v3997, %v3999
    %v4001 = vrot.slane %v3993, %v4000
    %v4003 = vunpack.c.l.s4 1934713408
    %v4004 = vunpack.c.0.s8 %v4003
    %v4005 = vlaneseq
    %v4006 = vshrl.u32 %v4005, 7
    %v4007 = vsub.s32 %v4004, %v4006
    %v4008 = vrot.slane %v3994, %v4007
    %v4009 = vcombine.high %v3985, 0.0
    %v4010 = vcombine.high %v3992, 0.0
    %v4011 = vcombine.high %v4001, 0.0
    %v4012 = vcombine.high %v4008, 0.0
    %v4013 = vcombine.low %v3780, %v3788
    %v4014 = vcombine.high %v3780, %v3788
    %v4016 = vunpack.c.l.s4 1983009808
    %v4017 = vunpack.c.0.s8 %v4016
    %v4018 = vlaneseq
    %v4019 = vshrl.u32 %v4018, 7
    %v4020 = vsub.s32 %v4017, %v4019
    %v4021 = vrot.slane %v4013, %v4020
    %v4023 = vunpack.c.l.s4 1983009808
    %v4024 = vunpack.c.0.s8 %v4023
    %v4025 = vlaneseq
    %v4026 = vshrl.u32 %v4025, 7
    %v4027 = vsub.s32 %v4024, %v4026
    %v4028 = vrot.slane %v4014, %v4027
    %v4029 = vcombine.low %v3784, %v3792
    %v4030 = vcombine.high %v3784, %v3792
    %v4032 = vunpack.c.l.s4 1983009808
    %v4033 = vunpack.c.0.s8 %v4032
    %v4034 = vlaneseq
    %v4035 = vshrl.u32 %v4034, 7
    %v4036 = vsub.s32 %v4033, %v4035
    %v4037 = vrot.slane %v4029, %v4036
    %v4039 = vunpack.c.l.s4 1983009808
    %v4040 = vunpack.c.0.s8 %v4039
    %v4041 = vlaneseq
    %v4042 = vshrl.u32 %v4041, 7
    %v4043 = vsub.s32 %v4040, %v4042
    %v4044 = vrot.slane %v4030, %v4043
    %v4045 = vcombine.low %v4021, %v4037
    %v4046 = vcombine.high %v4021, %v4037
    %v4048 = vunpack.c.l.s4 1934713408
    %v4049 = vunpack.c.0.s8 %v4048
    %v4050 = vlaneseq
    %v4051 = vshrl.u32 %v4050, 7
    %v4052 = vsub.s32 %v4049, %v4051
    %v4053 = vrot.slane %v4045, %v4052
    %v4055 = vunpack.c.l.s4 1934713408
    %v4056 = vunpack.c.0.s8 %v4055
    %v4057 = vlaneseq
    %v4058 = vshrl.u32 %v4057, 7
    %v4059 = vsub.s32 %v4056, %v4058
    %v4060 = vrot.slane %v4046, %v4059
    %v4061 = vcombine.low %v4028, %v4044
    %v4062 = vcombine.high %v4028, %v4044
    %v4064 = vunpack.c.l.s4 1934713408
    %v4065 = vunpack.c.0.s8 %v4064
    %v4066 = vlaneseq
    %v4067 = vshrl.u32 %v4066, 7
    %v4068 = vsub.s32 %v4065, %v4067
    %v4069 = vrot.slane %v4061, %v4068
    %v4071 = vunpack.c.l.s4 1934713408
    %v4072 = vunpack.c.0.s8 %v4071
    %v4073 = vlaneseq
    %v4074 = vshrl.u32 %v4073, 7
    %v4075 = vsub.s32 %v4072, %v4074
    %v4076 = vrot.slane %v4062, %v4075
    %v4077 = vcombine.high %v4053, 0.0
    %v4078 = vcombine.high %v4060, 0.0
    %v4079 = vcombine.high %v4069, 0.0
    %v4080 = vcombine.high %v4076, 0.0
    %4083 = vrot.lane.b32.xlu0 %v3873, 16
    %v4084 = vpop.permute.xlu0 %4083
    %4085 = vrot.lane.b32.xlu0 %v4009, 16
    %v4086 = vpop.permute.xlu0 %4085
    %4091 = vrot.lane.b32.xlu0 %v3856, 32
    %v4092 = vpop.permute.xlu0 %4091
    %4093 = vrot.lane.b32.xlu0 %v3992, 32
    %v4094 = vpop.permute.xlu0 %4093
    %4099 = vrot.lane.b32.xlu0 %v3874, 48
    %v4100 = vpop.permute.xlu0 %4099
    %4101 = vrot.lane.b32.xlu0 %v4010, 48
    %v4102 = vpop.permute.xlu0 %4101
    %4107 = vrot.lane.b32.xlu0 %v3865, 64
    %v4108 = vpop.permute.xlu0 %4107
    %4109 = vrot.lane.b32.xlu0 %v4001, 64
    %v4110 = vpop.permute.xlu0 %4109
    %4115 = vrot.lane.b32.xlu0 %v3875, 80
    %v4116 = vpop.permute.xlu0 %4115
    %4117 = vrot.lane.b32.xlu0 %v4011, 80
    %v4118 = vpop.permute.xlu0 %4117
    %4123 = vrot.lane.b32.xlu0 %v3872, 96
    %v4124 = vpop.permute.xlu0 %4123
    %4125 = vrot.lane.b32.xlu0 %v4008, 96
    %v4126 = vpop.permute.xlu0 %4125
    %4131 = vrot.lane.b32.xlu0 %v3876, 112
    %v4132 = vpop.permute.xlu0 %4131
    %4133 = vrot.lane.b32.xlu0 %v4012, 112
    %v4134 = vpop.permute.xlu0 %4133
    %4139 = vrot.lane.b32.xlu0 %v3941, 16
    %v4140 = vpop.permute.xlu0 %4139
    %4141 = vrot.lane.b32.xlu0 %v4077, 16
    %v4142 = vpop.permute.xlu0 %4141
    %4147 = vrot.lane.b32.xlu0 %v3924, 32
    %v4148 = vpop.permute.xlu0 %4147
    %4149 = vrot.lane.b32.xlu0 %v4060, 32
    %v4150 = vpop.permute.xlu0 %4149
    %4155 = vrot.lane.b32.xlu0 %v3942, 48
    %v4156 = vpop.permute.xlu0 %4155
    %4157 = vrot.lane.b32.xlu0 %v4078, 48
    %v4158 = vpop.permute.xlu0 %4157
    %4163 = vrot.lane.b32.xlu0 %v3933, 64
    %v4164 = vpop.permute.xlu0 %4163
    %4165 = vrot.lane.b32.xlu0 %v4069, 64
    %v4166 = vpop.permute.xlu0 %4165
    %4171 = vrot.lane.b32.xlu0 %v3943, 80
    %v4172 = vpop.permute.xlu0 %4171
    %4173 = vrot.lane.b32.xlu0 %v4079, 80
    %v4174 = vpop.permute.xlu0 %4173
    %4179 = vrot.lane.b32.xlu0 %v3940, 96
    %v4180 = vpop.permute.xlu0 %4179
    %4181 = vrot.lane.b32.xlu0 %v4076, 96
    %v4182 = vpop.permute.xlu0 %4181
    %4187 = vrot.lane.b32.xlu0 %v3944, 112
    %v4188 = vpop.permute.xlu0 %4187
    %4189 = vrot.lane.b32.xlu0 %v4080, 112
    %v4190 = vpop.permute.xlu0 %4189
    %v4193 = vsel %vm924, %v3849, %v4084
    %v4194 = vsel %vm924, %v3985, %v4086
    %v4195 = vsel %vm927, %v4193, %v4092
    %v4196 = vsel %vm927, %v4194, %v4094
    %v4197 = vsel %vm930, %v4195, %v4100
    %v4198 = vsel %vm930, %v4196, %v4102
    %v4199 = vsel %vm933, %v4197, %v4108
    %v4200 = vsel %vm933, %v4198, %v4110
    %v4201 = vsel %vm936, %v4199, %v4116
    %v4202 = vsel %vm936, %v4200, %v4118
    %v4203 = vsel %vm939, %v4201, %v4124
    %v4204 = vsel %vm939, %v4202, %v4126
    %v4205 = vsel %vm942, %v4203, %v4132
    %v4206 = vsel %vm942, %v4204, %v4134
    %v4207 = vsel %vm924, %v3917, %v4140
    %v4208 = vsel %vm924, %v4053, %v4142
    %v4209 = vsel %vm927, %v4207, %v4148
    %v4210 = vsel %vm927, %v4208, %v4150
    %v4211 = vsel %vm930, %v4209, %v4156
    %v4212 = vsel %vm930, %v4210, %v4158
    %v4213 = vsel %vm933, %v4211, %v4164
    %v4214 = vsel %vm933, %v4212, %v4166
    %v4215 = vsel %vm936, %v4213, %v4172
    %v4216 = vsel %vm936, %v4214, %v4174
    %v4217 = vsel %vm939, %v4215, %v4180
    %v4218 = vsel %vm939, %v4216, %v4182
    %v4219 = vsel %vm942, %v4217, %v4188
    %v4220 = vsel %vm942, %v4218, %v4190
    %4221 = vrot.lane.b32.xlu0 %v3295, 126
    %v4222 = vpop.permute.xlu0 %4221
    %4223 = vrot.lane.b32.xlu0 %v3297, 126
    %v4224 = vpop.permute.xlu0 %4223
    %4225 = vrot.lane.b32.xlu0 %v3300, 126
    %v4226 = vpop.permute.xlu0 %4225
    %4227 = vrot.lane.b32.xlu0 %v3302, 126
    %v4228 = vpop.permute.xlu0 %4227
    %4229 = vrot.lane.b32.xlu0 %v3305, 126
    %v4230 = vpop.permute.xlu0 %4229
    %4231 = vrot.lane.b32.xlu0 %v3307, 126
    %v4232 = vpop.permute.xlu0 %4231
    %4233 = vrot.lane.b32.xlu0 %v3310, 126
    %v4234 = vpop.permute.xlu0 %4233
    %4235 = vrot.lane.b32.xlu0 %v3312, 126
    %v4236 = vpop.permute.xlu0 %4235
    %4237 = vrot.lane.b32.xlu0 %v3315, 126
    %v4238 = vpop.permute.xlu0 %4237
    %4239 = vrot.lane.b32.xlu0 %v3317, 126
    %v4240 = vpop.permute.xlu0 %4239
    %4241 = vrot.lane.b32.xlu0 %v3320, 126
    %v4242 = vpop.permute.xlu0 %4241
    %4243 = vrot.lane.b32.xlu0 %v3322, 126
    %v4244 = vpop.permute.xlu0 %4243
    %4245 = vrot.lane.b32.xlu0 %v3325, 126
    %v4246 = vpop.permute.xlu0 %4245
    %4247 = vrot.lane.b32.xlu0 %v3327, 126
    %v4248 = vpop.permute.xlu0 %4247
    %4249 = vrot.lane.b32.xlu0 %v3330, 126
    %v4250 = vpop.permute.xlu0 %4249
    %4251 = vrot.lane.b32.xlu0 %v3332, 126
    %v4252 = vpop.permute.xlu0 %4251
    %v4269 = vcombine.low %v4222, %v4230
    %v4270 = vcombine.high %v4222, %v4230
    %v4272 = vunpack.c.l.s4 1983009808
    %v4273 = vunpack.c.0.s8 %v4272
    %v4274 = vlaneseq
    %v4275 = vshrl.u32 %v4274, 7
    %v4276 = vsub.s32 %v4273, %v4275
    %v4277 = vrot.slane %v4269, %v4276
    %v4279 = vunpack.c.l.s4 1983009808
    %v4280 = vunpack.c.0.s8 %v4279
    %v4281 = vlaneseq
    %v4282 = vshrl.u32 %v4281, 7
    %v4283 = vsub.s32 %v4280, %v4282
    %v4284 = vrot.slane %v4270, %v4283
    %v4285 = vcombine.low %v4226, %v4234
    %v4286 = vcombine.high %v4226, %v4234
    %v4288 = vunpack.c.l.s4 1983009808
    %v4289 = vunpack.c.0.s8 %v4288
    %v4290 = vlaneseq
    %v4291 = vshrl.u32 %v4290, 7
    %v4292 = vsub.s32 %v4289, %v4291
    %v4293 = vrot.slane %v4285, %v4292
    %v4295 = vunpack.c.l.s4 1983009808
    %v4296 = vunpack.c.0.s8 %v4295
    %v4297 = vlaneseq
    %v4298 = vshrl.u32 %v4297, 7
    %v4299 = vsub.s32 %v4296, %v4298
    %v4300 = vrot.slane %v4286, %v4299
    %v4301 = vcombine.low %v4277, %v4293
    %v4302 = vcombine.high %v4277, %v4293
    %v4304 = vunpack.c.l.s4 1934713408
    %v4305 = vunpack.c.0.s8 %v4304
    %v4306 = vlaneseq
    %v4307 = vshrl.u32 %v4306, 7
    %v4308 = vsub.s32 %v4305, %v4307
    %v4309 = vrot.slane %v4301, %v4308
    %v4311 = vunpack.c.l.s4 1934713408
    %v4312 = vunpack.c.0.s8 %v4311
    %v4313 = vlaneseq
    %v4314 = vshrl.u32 %v4313, 7
    %v4315 = vsub.s32 %v4312, %v4314
    %v4316 = vrot.slane %v4302, %v4315
    %v4317 = vcombine.low %v4284, %v4300
    %v4318 = vcombine.high %v4284, %v4300
    %v4320 = vunpack.c.l.s4 1934713408
    %v4321 = vunpack.c.0.s8 %v4320
    %v4322 = vlaneseq
    %v4323 = vshrl.u32 %v4322, 7
    %v4324 = vsub.s32 %v4321, %v4323
    %v4325 = vrot.slane %v4317, %v4324
    %v4327 = vunpack.c.l.s4 1934713408
    %v4328 = vunpack.c.0.s8 %v4327
    %v4329 = vlaneseq
    %v4330 = vshrl.u32 %v4329, 7
    %v4331 = vsub.s32 %v4328, %v4330
    %v4332 = vrot.slane %v4318, %v4331
    %v4333 = vcombine.high %v4309, 0.0
    %v4334 = vcombine.high %v4316, 0.0
    %v4335 = vcombine.high %v4325, 0.0
    %v4336 = vcombine.high %v4332, 0.0
    %v4337 = vcombine.low %v4224, %v4232
    %v4338 = vcombine.high %v4224, %v4232
    %v4340 = vunpack.c.l.s4 1983009808
    %v4341 = vunpack.c.0.s8 %v4340
    %v4342 = vlaneseq
    %v4343 = vshrl.u32 %v4342, 7
    %v4344 = vsub.s32 %v4341, %v4343
    %v4345 = vrot.slane %v4337, %v4344
    %v4347 = vunpack.c.l.s4 1983009808
    %v4348 = vunpack.c.0.s8 %v4347
    %v4349 = vlaneseq
    %v4350 = vshrl.u32 %v4349, 7
    %v4351 = vsub.s32 %v4348, %v4350
    %v4352 = vrot.slane %v4338, %v4351
    %v4353 = vcombine.low %v4228, %v4236
    %v4354 = vcombine.high %v4228, %v4236
    %v4356 = vunpack.c.l.s4 1983009808
    %v4357 = vunpack.c.0.s8 %v4356
    %v4358 = vlaneseq
    %v4359 = vshrl.u32 %v4358, 7
    %v4360 = vsub.s32 %v4357, %v4359
    %v4361 = vrot.slane %v4353, %v4360
    %v4363 = vunpack.c.l.s4 1983009808
    %v4364 = vunpack.c.0.s8 %v4363
    %v4365 = vlaneseq
    %v4366 = vshrl.u32 %v4365, 7
    %v4367 = vsub.s32 %v4364, %v4366
    %v4368 = vrot.slane %v4354, %v4367
    %v4369 = vcombine.low %v4345, %v4361
    %v4370 = vcombine.high %v4345, %v4361
    %v4372 = vunpack.c.l.s4 1934713408
    %v4373 = vunpack.c.0.s8 %v4372
    %v4374 = vlaneseq
    %v4375 = vshrl.u32 %v4374, 7
    %v4376 = vsub.s32 %v4373, %v4375
    %v4377 = vrot.slane %v4369, %v4376
    %v4379 = vunpack.c.l.s4 1934713408
    %v4380 = vunpack.c.0.s8 %v4379
    %v4381 = vlaneseq
    %v4382 = vshrl.u32 %v4381, 7
    %v4383 = vsub.s32 %v4380, %v4382
    %v4384 = vrot.slane %v4370, %v4383
    %v4385 = vcombine.low %v4352, %v4368
    %v4386 = vcombine.high %v4352, %v4368
    %v4388 = vunpack.c.l.s4 1934713408
    %v4389 = vunpack.c.0.s8 %v4388
    %v4390 = vlaneseq
    %v4391 = vshrl.u32 %v4390, 7
    %v4392 = vsub.s32 %v4389, %v4391
    %v4393 = vrot.slane %v4385, %v4392
    %v4395 = vunpack.c.l.s4 1934713408
    %v4396 = vunpack.c.0.s8 %v4395
    %v4397 = vlaneseq
    %v4398 = vshrl.u32 %v4397, 7
    %v4399 = vsub.s32 %v4396, %v4398
    %v4400 = vrot.slane %v4386, %v4399
    %v4401 = vcombine.high %v4377, 0.0
    %v4402 = vcombine.high %v4384, 0.0
    %v4403 = vcombine.high %v4393, 0.0
    %v4404 = vcombine.high %v4400, 0.0
    %v4405 = vcombine.low %v4238, %v4246
    %v4406 = vcombine.high %v4238, %v4246
    %v4408 = vunpack.c.l.s4 1983009808
    %v4409 = vunpack.c.0.s8 %v4408
    %v4410 = vlaneseq
    %v4411 = vshrl.u32 %v4410, 7
    %v4412 = vsub.s32 %v4409, %v4411
    %v4413 = vrot.slane %v4405, %v4412
    %v4415 = vunpack.c.l.s4 1983009808
    %v4416 = vunpack.c.0.s8 %v4415
    %v4417 = vlaneseq
    %v4418 = vshrl.u32 %v4417, 7
    %v4419 = vsub.s32 %v4416, %v4418
    %v4420 = vrot.slane %v4406, %v4419
    %v4421 = vcombine.low %v4242, %v4250
    %v4422 = vcombine.high %v4242, %v4250
    %v4424 = vunpack.c.l.s4 1983009808
    %v4425 = vunpack.c.0.s8 %v4424
    %v4426 = vlaneseq
    %v4427 = vshrl.u32 %v4426, 7
    %v4428 = vsub.s32 %v4425, %v4427
    %v4429 = vrot.slane %v4421, %v4428
    %v4431 = vunpack.c.l.s4 1983009808
    %v4432 = vunpack.c.0.s8 %v4431
    %v4433 = vlaneseq
    %v4434 = vshrl.u32 %v4433, 7
    %v4435 = vsub.s32 %v4432, %v4434
    %v4436 = vrot.slane %v4422, %v4435
    %v4437 = vcombine.low %v4413, %v4429
    %v4438 = vcombine.high %v4413, %v4429
    %v4440 = vunpack.c.l.s4 1934713408
    %v4441 = vunpack.c.0.s8 %v4440
    %v4442 = vlaneseq
    %v4443 = vshrl.u32 %v4442, 7
    %v4444 = vsub.s32 %v4441, %v4443
    %v4445 = vrot.slane %v4437, %v4444
    %v4447 = vunpack.c.l.s4 1934713408
    %v4448 = vunpack.c.0.s8 %v4447
    %v4449 = vlaneseq
    %v4450 = vshrl.u32 %v4449, 7
    %v4451 = vsub.s32 %v4448, %v4450
    %v4452 = vrot.slane %v4438, %v4451
    %v4453 = vcombine.low %v4420, %v4436
    %v4454 = vcombine.high %v4420, %v4436
    %v4456 = vunpack.c.l.s4 1934713408
    %v4457 = vunpack.c.0.s8 %v4456
    %v4458 = vlaneseq
    %v4459 = vshrl.u32 %v4458, 7
    %v4460 = vsub.s32 %v4457, %v4459
    %v4461 = vrot.slane %v4453, %v4460
    %v4463 = vunpack.c.l.s4 1934713408
    %v4464 = vunpack.c.0.s8 %v4463
    %v4465 = vlaneseq
    %v4466 = vshrl.u32 %v4465, 7
    %v4467 = vsub.s32 %v4464, %v4466
    %v4468 = vrot.slane %v4454, %v4467
    %v4469 = vcombine.high %v4445, 0.0
    %v4470 = vcombine.high %v4452, 0.0
    %v4471 = vcombine.high %v4461, 0.0
    %v4472 = vcombine.high %v4468, 0.0
    %v4473 = vcombine.low %v4240, %v4248
    %v4474 = vcombine.high %v4240, %v4248
    %v4476 = vunpack.c.l.s4 1983009808
    %v4477 = vunpack.c.0.s8 %v4476
    %v4478 = vlaneseq
    %v4479 = vshrl.u32 %v4478, 7
    %v4480 = vsub.s32 %v4477, %v4479
    %v4481 = vrot.slane %v4473, %v4480
    %v4483 = vunpack.c.l.s4 1983009808
    %v4484 = vunpack.c.0.s8 %v4483
    %v4485 = vlaneseq
    %v4486 = vshrl.u32 %v4485, 7
    %v4487 = vsub.s32 %v4484, %v4486
    %v4488 = vrot.slane %v4474, %v4487
    %v4489 = vcombine.low %v4244, %v4252
    %v4490 = vcombine.high %v4244, %v4252
    %v4492 = vunpack.c.l.s4 1983009808
    %v4493 = vunpack.c.0.s8 %v4492
    %v4494 = vlaneseq
    %v4495 = vshrl.u32 %v4494, 7
    %v4496 = vsub.s32 %v4493, %v4495
    %v4497 = vrot.slane %v4489, %v4496
    %v4499 = vunpack.c.l.s4 1983009808
    %v4500 = vunpack.c.0.s8 %v4499
    %v4501 = vlaneseq
    %v4502 = vshrl.u32 %v4501, 7
    %v4503 = vsub.s32 %v4500, %v4502
    %v4504 = vrot.slane %v4490, %v4503
    %v4505 = vcombine.low %v4481, %v4497
    %v4506 = vcombine.high %v4481, %v4497
    %v4508 = vunpack.c.l.s4 1934713408
    %v4509 = vunpack.c.0.s8 %v4508
    %v4510 = vlaneseq
    %v4511 = vshrl.u32 %v4510, 7
    %v4512 = vsub.s32 %v4509, %v4511
    %v4513 = vrot.slane %v4505, %v4512
    %v4515 = vunpack.c.l.s4 1934713408
    %v4516 = vunpack.c.0.s8 %v4515
    %v4517 = vlaneseq
    %v4518 = vshrl.u32 %v4517, 7
    %v4519 = vsub.s32 %v4516, %v4518
    %v4520 = vrot.slane %v4506, %v4519
    %v4521 = vcombine.low %v4488, %v4504
    %v4522 = vcombine.high %v4488, %v4504
    %v4524 = vunpack.c.l.s4 1934713408
    %v4525 = vunpack.c.0.s8 %v4524
    %v4526 = vlaneseq
    %v4527 = vshrl.u32 %v4526, 7
    %v4528 = vsub.s32 %v4525, %v4527
    %v4529 = vrot.slane %v4521, %v4528
    %v4531 = vunpack.c.l.s4 1934713408
    %v4532 = vunpack.c.0.s8 %v4531
    %v4533 = vlaneseq
    %v4534 = vshrl.u32 %v4533, 7
    %v4535 = vsub.s32 %v4532, %v4534
    %v4536 = vrot.slane %v4522, %v4535
    %v4537 = vcombine.high %v4513, 0.0
    %v4538 = vcombine.high %v4520, 0.0
    %v4539 = vcombine.high %v4529, 0.0
    %v4540 = vcombine.high %v4536, 0.0
    %4543 = vrot.lane.b32.xlu0 %v4333, 16
    %v4544 = vpop.permute.xlu0 %4543
    %4545 = vrot.lane.b32.xlu0 %v4469, 16
    %v4546 = vpop.permute.xlu0 %4545
    %4551 = vrot.lane.b32.xlu0 %v4316, 32
    %v4552 = vpop.permute.xlu0 %4551
    %4553 = vrot.lane.b32.xlu0 %v4452, 32
    %v4554 = vpop.permute.xlu0 %4553
    %4559 = vrot.lane.b32.xlu0 %v4334, 48
    %v4560 = vpop.permute.xlu0 %4559
    %4561 = vrot.lane.b32.xlu0 %v4470, 48
    %v4562 = vpop.permute.xlu0 %4561
    %4567 = vrot.lane.b32.xlu0 %v4325, 64
    %v4568 = vpop.permute.xlu0 %4567
    %4569 = vrot.lane.b32.xlu0 %v4461, 64
    %v4570 = vpop.permute.xlu0 %4569
    %4575 = vrot.lane.b32.xlu0 %v4335, 80
    %v4576 = vpop.permute.xlu0 %4575
    %4577 = vrot.lane.b32.xlu0 %v4471, 80
    %v4578 = vpop.permute.xlu0 %4577
    %4583 = vrot.lane.b32.xlu0 %v4332, 96
    %v4584 = vpop.permute.xlu0 %4583
    %4585 = vrot.lane.b32.xlu0 %v4468, 96
    %v4586 = vpop.permute.xlu0 %4585
    %4591 = vrot.lane.b32.xlu0 %v4336, 112
    %v4592 = vpop.permute.xlu0 %4591
    %4593 = vrot.lane.b32.xlu0 %v4472, 112
    %v4594 = vpop.permute.xlu0 %4593
    %4599 = vrot.lane.b32.xlu0 %v4401, 16
    %v4600 = vpop.permute.xlu0 %4599
    %4601 = vrot.lane.b32.xlu0 %v4537, 16
    %v4602 = vpop.permute.xlu0 %4601
    %4607 = vrot.lane.b32.xlu0 %v4384, 32
    %v4608 = vpop.permute.xlu0 %4607
    %4609 = vrot.lane.b32.xlu0 %v4520, 32
    %v4610 = vpop.permute.xlu0 %4609
    %4615 = vrot.lane.b32.xlu0 %v4402, 48
    %v4616 = vpop.permute.xlu0 %4615
    %4617 = vrot.lane.b32.xlu0 %v4538, 48
    %v4618 = vpop.permute.xlu0 %4617
    %4623 = vrot.lane.b32.xlu0 %v4393, 64
    %v4624 = vpop.permute.xlu0 %4623
    %4625 = vrot.lane.b32.xlu0 %v4529, 64
    %v4626 = vpop.permute.xlu0 %4625
    %4631 = vrot.lane.b32.xlu0 %v4403, 80
    %v4632 = vpop.permute.xlu0 %4631
    %4633 = vrot.lane.b32.xlu0 %v4539, 80
    %v4634 = vpop.permute.xlu0 %4633
    %4639 = vrot.lane.b32.xlu0 %v4400, 96
    %v4640 = vpop.permute.xlu0 %4639
    %4641 = vrot.lane.b32.xlu0 %v4536, 96
    %v4642 = vpop.permute.xlu0 %4641
    %4647 = vrot.lane.b32.xlu0 %v4404, 112
    %v4648 = vpop.permute.xlu0 %4647
    %4649 = vrot.lane.b32.xlu0 %v4540, 112
    %v4650 = vpop.permute.xlu0 %4649
    %v4653 = vsel %vm924, %v4309, %v4544
    %v4654 = vsel %vm924, %v4445, %v4546
    %v4655 = vsel %vm927, %v4653, %v4552
    %v4656 = vsel %vm927, %v4654, %v4554
    %v4657 = vsel %vm930, %v4655, %v4560
    %v4658 = vsel %vm930, %v4656, %v4562
    %v4659 = vsel %vm933, %v4657, %v4568
    %v4660 = vsel %vm933, %v4658, %v4570
    %v4661 = vsel %vm936, %v4659, %v4576
    %v4662 = vsel %vm936, %v4660, %v4578
    %v4663 = vsel %vm939, %v4661, %v4584
    %v4664 = vsel %vm939, %v4662, %v4586
    %v4665 = vsel %vm942, %v4663, %v4592
    %v4666 = vsel %vm942, %v4664, %v4594
    %v4667 = vsel %vm924, %v4377, %v4600
    %v4668 = vsel %vm924, %v4513, %v4602
    %v4669 = vsel %vm927, %v4667, %v4608
    %v4670 = vsel %vm927, %v4668, %v4610
    %v4671 = vsel %vm930, %v4669, %v4616
    %v4672 = vsel %vm930, %v4670, %v4618
    %v4673 = vsel %vm933, %v4671, %v4624
    %v4674 = vsel %vm933, %v4672, %v4626
    %v4675 = vsel %vm936, %v4673, %v4632
    %v4676 = vsel %vm936, %v4674, %v4634
    %v4677 = vsel %vm939, %v4675, %v4640
    %v4678 = vsel %vm939, %v4676, %v4642
    %v4679 = vsel %vm942, %v4677, %v4648
    %v4680 = vsel %vm942, %v4678, %v4650
    %v4685 = vrot.slane %v1419, 4
    %v4686 = vrot.slane %v1433, 4
    %v4687 = vrot.slane %v1420, 4
    %v4688 = vrot.slane %v1434, 4
    %v4697 = vrot.slane %v2356, 4
    %v4698 = vrot.slane %v2370, 4
    %v4699 = vrot.slane %v2357, 4
    %v4700 = vrot.slane %v2371, 4
    %v4709 = vrot.slane %v3276, 4
    %v4710 = vrot.slane %v3290, 4
    %v4711 = vrot.slane %v3277, 4
    %v4712 = vrot.slane %v3291, 4
    %v4721 = vrot.slane %v4205, 4
    %v4722 = vrot.slane %v4219, 4
    %v4723 = vrot.slane %v4206, 4
    %v4724 = vrot.slane %v4220, 4
    %vm4729 = vcmask 1043456
    %v4730 = vsel %vm4729, %v943, %v4685
    %v4731 = vsel %vm4729, %v957, %v4686
    %v4732 = vsel %vm4729, %v944, %v4687
    %v4733 = vsel %vm4729, %v958, %v4688
    %v4734 = vsel %vm4729, %v1879, %v4697
    %v4735 = vsel %vm4729, %v1893, %v4698
    %v4736 = vsel %vm4729, %v1880, %v4699
    %v4737 = vsel %vm4729, %v1894, %v4700
    %v4738 = vsel %vm4729, %v2816, %v4709
    %v4739 = vsel %vm4729, %v2830, %v4710
    %v4740 = vsel %vm4729, %v2817, %v4711
    %v4741 = vsel %vm4729, %v2831, %v4712
    %v4742 = vsel %vm4729, %v3745, %v4721
    %v4743 = vsel %vm4729, %v3759, %v4722
    %v4744 = vsel %vm4729, %v3746, %v4723
    %v4745 = vsel %vm4729, %v3760, %v4724
    %v4746 = vld [vmem:[%s1] sm:$0xff]
    %vm4747 = vcmask 293888
    %v4749 = vsel %vm4747, %v4746, 0
    %v4752 = vsel %vm4729, %v4665, 0
    %v4755 = vsel %vm4729, %v4679, 0
    %4757 = vmatprep.subr.mxu0 %v4731
    %4758 = vmatpush1.msra.mxu0 %v4730
    %4759 = vmatprep.subr.mxu0 %v4735
    %4760 = vmatpush1.msra.mxu0 %v4734
    %4761 = vmatprep.subr.mxu0 %v4739
    %4762 = vmatpush1.msra.mxu0 %v4738
    %4763 = vmatprep.subr.mxu0 %v4743
    %4764 = vmatpush1.msra.mxu0 %v4742
    %4765 = vmatprep.subr.mxu0 %v4755
    %4766 = vmatpush1.msra.mxu0 %v4752
    %4767 = vmatprep.subr.mxu0 0.0
    %4768 = vmatpush1.msra.mxu0 0.0
    %4769 = vmatprep.subr.mxu0 0.0
    %4770 = vmatpush1.msra.mxu0 0.0
    %4771 = vmatprep.subr.mxu0 0.0
    %4772 = vmatpush1.msra.mxu0 0.0
    %4773 = vmatprep.subr.mxu0 0.0
    %4774 = vmatpush1.msra.mxu0 0.0
    %4775 = vmatprep.subr.mxu0 0.0
    %4776 = vmatpush1.msra.mxu0 0.0
    %4777 = vmatprep.subr.mxu0 0.0
    %4778 = vmatpush1.msra.mxu0 0.0
    %4779 = vmatprep.subr.mxu0 0.0
    %4780 = vmatpush1.msra.mxu0 0.0
    %4781 = vmatprep.subr.mxu0 0.0
    %4782 = vmatpush1.msra.mxu0 0.0
    %4783 = vmatprep.subr.mxu0 0.0
    %4784 = vmatpush1.msra.mxu0 0.0
    %4785 = vmatprep.subr.mxu0 0.0
    %4786 = vmatpush1.msra.mxu0 0.0
    %4787 = vmatprep.subr.mxu0 0.0
    %4788 = vmatpush1.msra.mxu0 0.0
    %4789 = vmatprep.subr.mxu0 0.0
    %4790 = vmatpush1.msra.mxu0 0.0
    %4791 = vmatprep.subr.mxu0 0.0
    %4792 = vmatpush1.msra.mxu0 0.0
    %4793 = vmatprep.subr.mxu0 0.0
    %4794 = vmatpush1.msra.mxu0 0.0
    %4795 = vmatprep.subr.mxu0 0.0
    %4796 = vmatpush1.msra.mxu0 0.0
    %4797 = vmatprep.subr.mxu0 0.0
    %4798 = vmatpush1.msra.mxu0 0.0
    %4799 = vmatprep.subr.mxu0 0.0
    %4800 = vmatpush1.msra.mxu0 0.0
    %4801 = vmatprep.subr.mxu0 0.0
    %4802 = vmatpush1.msra.mxu0 0.0
    %4803 = vmatprep.subr.mxu0 0.0
    %4804 = vmatpush1.msra.mxu0 0.0
    %4805 = vmatprep.subr.mxu0 0.0
    %4806 = vmatpush1.msra.mxu0 0.0
    %4807 = vmatprep.subr.mxu0 0.0
    %4808 = vmatpush1.msra.mxu0 0.0
    %4809 = vmatprep.subr.mxu0 0.0
    %4810 = vmatpush1.msra.mxu0 0.0
    %4811 = vmatprep.subr.mxu0 0.0
    %4812 = vmatpush1.msra.mxu0 0.0
    %4813 = vmatprep.subr.mxu0 0.0
    %4814 = vmatpush1.msra.mxu0 0.0
    %4815 = vmatprep.subr.mxu0 0.0
    %4816 = vmatpush1.msra.mxu0 0.0
    %4817 = vmatprep.subr.mxu0 0.0
    %4818 = vmatpush1.msra.mxu0 0.0
    %4819 = vmatprep.subr.mxu0 0.0
    %4820 = vmatpush1.msra.mxu0 0.0
    %4821 = vmatprep.mubr.f32.mxu0 0.0
    %4822 = vmatmul.mubr.f32.gmra.mrb[0].mxu0 %v4749
    %v4823 = vpop.f32.mrb[0].mxu0
    %v4824 = vadd.f32 0.0, %v4823
    %v4825 = vpop.f32.mrb[0].mxu0
    %v4826 = vadd.f32 0.0, %v4825
    %4827 = vdwg.mxu0
    %v4829 = vsel %vm4729, %v4666, 0
    %v4832 = vsel %vm4729, %v4680, 0
    %4834 = vmatprep.subr.mxu0 %v4733
    %4835 = vmatpush1.msra.mxu0 %v4732
    %4836 = vmatprep.subr.mxu0 %v4737
    %4837 = vmatpush1.msra.mxu0 %v4736
    %4838 = vmatprep.subr.mxu0 %v4741
    %4839 = vmatpush1.msra.mxu0 %v4740
    %4840 = vmatprep.subr.mxu0 %v4745
    %4841 = vmatpush1.msra.mxu0 %v4744
    %4842 = vmatprep.subr.mxu0 %v4832
    %4843 = vmatpush1.msra.mxu0 %v4829
    %4844 = vmatprep.subr.mxu0 0.0
    %4845 = vmatpush1.msra.mxu0 0.0
    %4846 = vmatprep.subr.mxu0 0.0
    %4847 = vmatpush1.msra.mxu0 0.0
    %4848 = vmatprep.subr.mxu0 0.0
    %4849 = vmatpush1.msra.mxu0 0.0
    %4850 = vmatprep.subr.mxu0 0.0
    %4851 = vmatpush1.msra.mxu0 0.0
    %4852 = vmatprep.subr.mxu0 0.0
    %4853 = vmatpush1.msra.mxu0 0.0
    %4854 = vmatprep.subr.mxu0 0.0
    %4855 = vmatpush1.msra.mxu0 0.0
    %4856 = vmatprep.subr.mxu0 0.0
    %4857 = vmatpush1.msra.mxu0 0.0
    %4858 = vmatprep.subr.mxu0 0.0
    %4859 = vmatpush1.msra.mxu0 0.0
    %4860 = vmatprep.subr.mxu0 0.0
    %4861 = vmatpush1.msra.mxu0 0.0
    %4862 = vmatprep.subr.mxu0 0.0
    %4863 = vmatpush1.msra.mxu0 0.0
    %4864 = vmatprep.subr.mxu0 0.0
    %4865 = vmatpush1.msra.mxu0 0.0
    %4866 = vmatprep.subr.mxu0 0.0
    %4867 = vmatpush1.msra.mxu0 0.0
    %4868 = vmatprep.subr.mxu0 0.0
    %4869 = vmatpush1.msra.mxu0 0.0
    %4870 = vmatprep.subr.mxu0 0.0
    %4871 = vmatpush1.msra.mxu0 0.0
    %4872 = vmatprep.subr.mxu0 0.0
    %4873 = vmatpush1.msra.mxu0 0.0
    %4874 = vmatprep.subr.mxu0 0.0
    %4875 = vmatpush1.msra.mxu0 0.0
    %4876 = vmatprep.subr.mxu0 0.0
    %4877 = vmatpush1.msra.mxu0 0.0
    %4878 = vmatprep.subr.mxu0 0.0
    %4879 = vmatpush1.msra.mxu0 0.0
    %4880 = vmatprep.subr.mxu0 0.0
    %4881 = vmatpush1.msra.mxu0 0.0
    %4882 = vmatprep.subr.mxu0 0.0
    %4883 = vmatpush1.msra.mxu0 0.0
    %4884 = vmatprep.subr.mxu0 0.0
    %4885 = vmatpush1.msra.mxu0 0.0
    %4886 = vmatprep.subr.mxu0 0.0
    %4887 = vmatpush1.msra.mxu0 0.0
    %4888 = vmatprep.subr.mxu0 0.0
    %4889 = vmatpush1.msra.mxu0 0.0
    %4890 = vmatprep.subr.mxu0 0.0
    %4891 = vmatpush1.msra.mxu0 0.0
    %4892 = vmatprep.subr.mxu0 0.0
    %4893 = vmatpush1.msra.mxu0 0.0
    %4894 = vmatprep.subr.mxu0 0.0
    %4895 = vmatpush1.msra.mxu0 0.0
    %4896 = vmatprep.subr.mxu0 0.0
    %4897 = vmatpush1.msra.mxu0 0.0
    %4898 = vmatprep.mubr.f32.mxu0 0.0
    %4899 = vmatmul.mubr.f32.gmra.mrb[0].mxu0 %v4749
    %v4900 = vpop.f32.mrb[0].mxu0
    %v4901 = vadd.f32 0.0, %v4900
    %v4902 = vpop.f32.mrb[0].mxu0
    %v4903 = vadd.f32 0.0, %v4902
    %4904 = vdwg.mxu0
    %v4905 = vadd.f32 %v4824, %v4826
    %4906 = vadd.xlane.f32.xlu0 %v4905
    %v4907 = vpop.xlane.xlu0 %4906
    %v4908 = vadd.f32 %v4901, %v4903
    %4909 = vadd.xlane.f32.xlu0 %v4908
    %v4910 = vpop.xlane.xlu0 %4909
    %v4911 = vadd.f32 %v4907, %v4910
    %v4912 = vmul.f32 %v4824, %v4824
    %v4913 = vmul.f32 %v4826, %v4826
    %v4914 = vmul.f32 %v4901, %v4901
    %v4915 = vmul.f32 %v4903, %v4903
    %v4916 = vadd.f32 %v4912, %v4913
    %4917 = vadd.xlane.f32.xlu0 %v4916
    %v4918 = vpop.xlane.xlu0 %4917
    %v4919 = vadd.f32 %v4914, %v4915
    %4920 = vadd.xlane.f32.xlu0 %v4919
    %v4921 = vpop.xlane.xlu0 %4920
    %v4922 = vadd.f32 %v4918, %v4921
    %v4923 = vrcp.pop 512.0
    %v4924 = vmul.f32 %v4911, %v4923
    %v4925 = vmul.f32 %v4922, %v4923
    %v4926 = vmul.f32 %v4924, %v4924
    %v4927 = vsub.f32 %v4925, %v4926
    %v4928 = vadd.f32 %v4927, 1e-05
    %v4929 = vrsqrt.pop %v4928
    %v4930 = vsub.f32 %v4824, %v4924
    %v4931 = vsub.f32 %v4826, %v4924
    %v4932 = vsub.f32 %v4901, %v4924
    %v4933 = vsub.f32 %v4903, %v4924
    %v4934 = vmul.f32 %v4930, %v4929
    %v4935 = vmul.f32 %v4931, %v4929
    %v4936 = vmul.f32 %v4932, %v4929
    %v4937 = vmul.f32 %v4933, %v4929
    %v4938 = vld [vmem:[%s2] sm:$0xff]
    %4940 = vset.pattern.permute.xlu0 0
    %4941 = vperm.xlu0 %4940, %v4938
    %v4942 = vpop.permute.xlu0 %4941
    %v4944 = vmul.f32 %v4934, %v4942
    %v4945 = vmul.f32 %v4935, %v4942
    %v4946 = vmul.f32 %v4936, %v4942
    %v4947 = vmul.f32 %v4937, %v4942
    %v4948 = vld [vmem:[%s3] sm:$0xff]
    %4950 = vset.pattern.permute.xlu0 0
    %4951 = vperm.xlu0 %4950, %v4948
    %v4952 = vpop.permute.xlu0 %4951
    %v4954 = vadd.f32 %v4944, %v4952
    %v4955 = vadd.f32 %v4945, %v4952
    %v4956 = vadd.f32 %v4946, %v4952
    %v4957 = vadd.f32 %v4947, %v4952
    %v4958 = vxor.u32 %v4954, 2147483648
    %v4959 = vxor.u32 %v4955, 2147483648
    %v4960 = vxor.u32 %v4956, 2147483648
    %v4961 = vxor.u32 %v4957, 2147483648
    %v4962 = vmul.f32 %v4958, 1.442695
    %v4963 = vpow.pop %v4962
    %v4964 = vmul.f32 %v4959, 1.442695
    %v4965 = vpow.pop %v4964
    %v4966 = vmul.f32 %v4960, 1.442695
    %v4967 = vpow.pop %v4966
    %v4968 = vmul.f32 %v4961, 1.442695
    %v4969 = vpow.pop %v4968
    %v4970 = vadd.f32 %v4963, 1.0
    %v4971 = vadd.f32 %v4965, 1.0
    %v4972 = vadd.f32 %v4967, 1.0
    %v4973 = vadd.f32 %v4969, 1.0
    %v4974 = vrcp.pop %v4970
    %v4975 = vmul.f32 1.0, %v4974
    %v4976 = vrcp.pop %v4971
    %v4977 = vmul.f32 1.0, %v4976
    %v4978 = vrcp.pop %v4972
    %v4979 = vmul.f32 1.0, %v4978
    %v4980 = vrcp.pop %v4973
    %v4981 = vmul.f32 1.0, %v4980
    %v4986 = vrot.slane %v4975, 4
    %v4987 = vrot.slane %v4977, 4
    %v4988 = vrot.slane %v4979, 4
    %v4989 = vrot.slane %v4981, 4
    %v4994 = vmul.f32 %v4954, %v4986
    %v4995 = vmul.f32 %v4955, %v4987
    %v4996 = vmul.f32 %v4956, %v4988
    %v4997 = vmul.f32 %v4957, %v4989
    %5000 = vrot.lane.b32.xlu0 %v4994, 112
    %v5001 = vpop.permute.xlu0 %5000
    %5002 = vrot.lane.b32.xlu0 %v4996, 112
    %v5003 = vpop.permute.xlu0 %5002
    %5006 = vrot.lane.b32.xlu0 %v4994, 96
    %v5007 = vpop.permute.xlu0 %5006
    %5008 = vrot.lane.b32.xlu0 %v4996, 96
    %v5009 = vpop.permute.xlu0 %5008
    %5012 = vrot.lane.b32.xlu0 %v4994, 80
    %v5013 = vpop.permute.xlu0 %5012
    %5014 = vrot.lane.b32.xlu0 %v4996, 80
    %v5015 = vpop.permute.xlu0 %5014
    %5018 = vrot.lane.b32.xlu0 %v4994, 64
    %v5019 = vpop.permute.xlu0 %5018
    %5020 = vrot.lane.b32.xlu0 %v4996, 64
    %v5021 = vpop.permute.xlu0 %5020
    %5024 = vrot.lane.b32.xlu0 %v4994, 48
    %v5025 = vpop.permute.xlu0 %5024
    %5026 = vrot.lane.b32.xlu0 %v4996, 48
    %v5027 = vpop.permute.xlu0 %5026
    %5030 = vrot.lane.b32.xlu0 %v4994, 32
    %v5031 = vpop.permute.xlu0 %5030
    %5032 = vrot.lane.b32.xlu0 %v4996, 32
    %v5033 = vpop.permute.xlu0 %5032
    %5036 = vrot.lane.b32.xlu0 %v4994, 16
    %v5037 = vpop.permute.xlu0 %5036
    %5038 = vrot.lane.b32.xlu0 %v4996, 16
    %v5039 = vpop.permute.xlu0 %5038
    %5044 = vrot.lane.b32.xlu0 %v4995, 112
    %v5045 = vpop.permute.xlu0 %5044
    %5046 = vrot.lane.b32.xlu0 %v4997, 112
    %v5047 = vpop.permute.xlu0 %5046
    %5050 = vrot.lane.b32.xlu0 %v4995, 96
    %v5051 = vpop.permute.xlu0 %5050
    %5052 = vrot.lane.b32.xlu0 %v4997, 96
    %v5053 = vpop.permute.xlu0 %5052
    %5056 = vrot.lane.b32.xlu0 %v4995, 80
    %v5057 = vpop.permute.xlu0 %5056
    %5058 = vrot.lane.b32.xlu0 %v4997, 80
    %v5059 = vpop.permute.xlu0 %5058
    %5062 = vrot.lane.b32.xlu0 %v4995, 64
    %v5063 = vpop.permute.xlu0 %5062
    %5064 = vrot.lane.b32.xlu0 %v4997, 64
    %v5065 = vpop.permute.xlu0 %5064
    %5068 = vrot.lane.b32.xlu0 %v4995, 48
    %v5069 = vpop.permute.xlu0 %5068
    %5070 = vrot.lane.b32.xlu0 %v4997, 48
    %v5071 = vpop.permute.xlu0 %5070
    %5074 = vrot.lane.b32.xlu0 %v4995, 32
    %v5075 = vpop.permute.xlu0 %5074
    %5076 = vrot.lane.b32.xlu0 %v4997, 32
    %v5077 = vpop.permute.xlu0 %5076
    %5080 = vrot.lane.b32.xlu0 %v4995, 16
    %v5081 = vpop.permute.xlu0 %5080
    %5082 = vrot.lane.b32.xlu0 %v4997, 16
    %v5083 = vpop.permute.xlu0 %5082
    %v5086 = vcombine.low %v4994, %v5007
    %v5088 = vunpack.c.l.s4 1983009808
    %v5089 = vunpack.c.0.s8 %v5088
    %v5090 = vlaneseq
    %v5091 = vshrl.u32 %v5090, 7
    %v5092 = vsub.s32 %v5089, %v5091
    %v5093 = vrot.slane %v5086, %v5092
    %v5094 = vcombine.low %v5001, %v5013
    %v5096 = vunpack.c.l.s4 1983009808
    %v5097 = vunpack.c.0.s8 %v5096
    %v5098 = vlaneseq
    %v5099 = vshrl.u32 %v5098, 7
    %v5100 = vsub.s32 %v5097, %v5099
    %v5101 = vrot.slane %v5094, %v5100
    %v5102 = vcombine.low %v5019, %v5031
    %v5104 = vunpack.c.l.s4 1983009808
    %v5105 = vunpack.c.0.s8 %v5104
    %v5106 = vlaneseq
    %v5107 = vshrl.u32 %v5106, 7
    %v5108 = vsub.s32 %v5105, %v5107
    %v5109 = vrot.slane %v5102, %v5108
    %v5110 = vcombine.low %v5025, %v5037
    %v5112 = vunpack.c.l.s4 1983009808
    %v5113 = vunpack.c.0.s8 %v5112
    %v5114 = vlaneseq
    %v5115 = vshrl.u32 %v5114, 7
    %v5116 = vsub.s32 %v5113, %v5115
    %v5117 = vrot.slane %v5110, %v5116
    %v5118 = vcombine.low %v5093, %v5101
    %v5119 = vcombine.high %v5093, %v5101
    %v5121 = vunpack.c.l.s4 1934713408
    %v5122 = vunpack.c.0.s8 %v5121
    %v5123 = vlaneseq
    %v5124 = vshrl.u32 %v5123, 7
    %v5125 = vsub.s32 %v5122, %v5124
    %v5126 = vrot.slane %v5118, %v5125
    %v5128 = vunpack.c.l.s4 1934713408
    %v5129 = vunpack.c.0.s8 %v5128
    %v5130 = vlaneseq
    %v5131 = vshrl.u32 %v5130, 7
    %v5132 = vsub.s32 %v5129, %v5131
    %v5133 = vrot.slane %v5119, %v5132
    %v5134 = vcombine.low %v5109, %v5117
    %v5135 = vcombine.high %v5109, %v5117
    %v5137 = vunpack.c.l.s4 1934713408
    %v5138 = vunpack.c.0.s8 %v5137
    %v5139 = vlaneseq
    %v5140 = vshrl.u32 %v5139, 7
    %v5141 = vsub.s32 %v5138, %v5140
    %v5142 = vrot.slane %v5134, %v5141
    %v5144 = vunpack.c.l.s4 1934713408
    %v5145 = vunpack.c.0.s8 %v5144
    %v5146 = vlaneseq
    %v5147 = vshrl.u32 %v5146, 7
    %v5148 = vsub.s32 %v5145, %v5147
    %v5149 = vrot.slane %v5135, %v5148
    %v5150 = vcombine.low %v5126, %v5142
    %v5151 = vcombine.high %v5126, %v5142
    %v5152 = vcombine.low %v5133, %v5149
    %v5153 = vcombine.high %v5133, %v5149
    %v5154 = vcombine.low %v4995, %v5051
    %v5156 = vunpack.c.l.s4 1983009808
    %v5157 = vunpack.c.0.s8 %v5156
    %v5158 = vlaneseq
    %v5159 = vshrl.u32 %v5158, 7
    %v5160 = vsub.s32 %v5157, %v5159
    %v5161 = vrot.slane %v5154, %v5160
    %v5162 = vcombine.low %v5045, %v5057
    %v5164 = vunpack.c.l.s4 1983009808
    %v5165 = vunpack.c.0.s8 %v5164
    %v5166 = vlaneseq
    %v5167 = vshrl.u32 %v5166, 7
    %v5168 = vsub.s32 %v5165, %v5167
    %v5169 = vrot.slane %v5162, %v5168
    %v5170 = vcombine.low %v5063, %v5075
    %v5172 = vunpack.c.l.s4 1983009808
    %v5173 = vunpack.c.0.s8 %v5172
    %v5174 = vlaneseq
    %v5175 = vshrl.u32 %v5174, 7
    %v5176 = vsub.s32 %v5173, %v5175
    %v5177 = vrot.slane %v5170, %v5176
    %v5178 = vcombine.low %v5069, %v5081
    %v5180 = vunpack.c.l.s4 1983009808
    %v5181 = vunpack.c.0.s8 %v5180
    %v5182 = vlaneseq
    %v5183 = vshrl.u32 %v5182, 7
    %v5184 = vsub.s32 %v5181, %v5183
    %v5185 = vrot.slane %v5178, %v5184
    %v5186 = vcombine.low %v5161, %v5169
    %v5187 = vcombine.high %v5161, %v5169
    %v5189 = vunpack.c.l.s4 1934713408
    %v5190 = vunpack.c.0.s8 %v5189
    %v5191 = vlaneseq
    %v5192 = vshrl.u32 %v5191, 7
    %v5193 = vsub.s32 %v5190, %v5192
    %v5194 = vrot.slane %v5186, %v5193
    %v5196 = vunpack.c.l.s4 1934713408
    %v5197 = vunpack.c.0.s8 %v5196
    %v5198 = vlaneseq
    %v5199 = vshrl.u32 %v5198, 7
    %v5200 = vsub.s32 %v5197, %v5199
    %v5201 = vrot.slane %v5187, %v5200
    %v5202 = vcombine.low %v5177, %v5185
    %v5203 = vcombine.high %v5177, %v5185
    %v5205 = vunpack.c.l.s4 1934713408
    %v5206 = vunpack.c.0.s8 %v5205
    %v5207 = vlaneseq
    %v5208 = vshrl.u32 %v5207, 7
    %v5209 = vsub.s32 %v5206, %v5208
    %v5210 = vrot.slane %v5202, %v5209
    %v5212 = vunpack.c.l.s4 1934713408
    %v5213 = vunpack.c.0.s8 %v5212
    %v5214 = vlaneseq
    %v5215 = vshrl.u32 %v5214, 7
    %v5216 = vsub.s32 %v5213, %v5215
    %v5217 = vrot.slane %v5203, %v5216
    %v5218 = vcombine.low %v5194, %v5210
    %v5219 = vcombine.high %v5194, %v5210
    %v5220 = vcombine.low %v5201, %v5217
    %v5221 = vcombine.high %v5201, %v5217
    %v5222 = vcombine.low %v4996, %v5009
    %v5224 = vunpack.c.l.s4 1983009808
    %v5225 = vunpack.c.0.s8 %v5224
    %v5226 = vlaneseq
    %v5227 = vshrl.u32 %v5226, 7
    %v5228 = vsub.s32 %v5225, %v5227
    %v5229 = vrot.slane %v5222, %v5228
    %v5230 = vcombine.low %v5003, %v5015
    %v5232 = vunpack.c.l.s4 1983009808
    %v5233 = vunpack.c.0.s8 %v5232
    %v5234 = vlaneseq
    %v5235 = vshrl.u32 %v5234, 7
    %v5236 = vsub.s32 %v5233, %v5235
    %v5237 = vrot.slane %v5230, %v5236
    %v5238 = vcombine.low %v5021, %v5033
    %v5240 = vunpack.c.l.s4 1983009808
    %v5241 = vunpack.c.0.s8 %v5240
    %v5242 = vlaneseq
    %v5243 = vshrl.u32 %v5242, 7
    %v5244 = vsub.s32 %v5241, %v5243
    %v5245 = vrot.slane %v5238, %v5244
    %v5246 = vcombine.low %v5027, %v5039
    %v5248 = vunpack.c.l.s4 1983009808
    %v5249 = vunpack.c.0.s8 %v5248
    %v5250 = vlaneseq
    %v5251 = vshrl.u32 %v5250, 7
    %v5252 = vsub.s32 %v5249, %v5251
    %v5253 = vrot.slane %v5246, %v5252
    %v5254 = vcombine.low %v5229, %v5237
    %v5255 = vcombine.high %v5229, %v5237
    %v5257 = vunpack.c.l.s4 1934713408
    %v5258 = vunpack.c.0.s8 %v5257
    %v5259 = vlaneseq
    %v5260 = vshrl.u32 %v5259, 7
    %v5261 = vsub.s32 %v5258, %v5260
    %v5262 = vrot.slane %v5254, %v5261
    %v5264 = vunpack.c.l.s4 1934713408
    %v5265 = vunpack.c.0.s8 %v5264
    %v5266 = vlaneseq
    %v5267 = vshrl.u32 %v5266, 7
    %v5268 = vsub.s32 %v5265, %v5267
    %v5269 = vrot.slane %v5255, %v5268
    %v5270 = vcombine.low %v5245, %v5253
    %v5271 = vcombine.high %v5245, %v5253
    %v5273 = vunpack.c.l.s4 1934713408
    %v5274 = vunpack.c.0.s8 %v5273
    %v5275 = vlaneseq
    %v5276 = vshrl.u32 %v5275, 7
    %v5277 = vsub.s32 %v5274, %v5276
    %v5278 = vrot.slane %v5270, %v5277
    %v5280 = vunpack.c.l.s4 1934713408
    %v5281 = vunpack.c.0.s8 %v5280
    %v5282 = vlaneseq
    %v5283 = vshrl.u32 %v5282, 7
    %v5284 = vsub.s32 %v5281, %v5283
    %v5285 = vrot.slane %v5271, %v5284
    %v5286 = vcombine.low %v5262, %v5278
    %v5287 = vcombine.high %v5262, %v5278
    %v5288 = vcombine.low %v5269, %v5285
    %v5289 = vcombine.high %v5269, %v5285
    %v5290 = vcombine.low %v4997, %v5053
    %v5292 = vunpack.c.l.s4 1983009808
    %v5293 = vunpack.c.0.s8 %v5292
    %v5294 = vlaneseq
    %v5295 = vshrl.u32 %v5294, 7
    %v5296 = vsub.s32 %v5293, %v5295
    %v5297 = vrot.slane %v5290, %v5296
    %v5298 = vcombine.low %v5047, %v5059
    %v5300 = vunpack.c.l.s4 1983009808
    %v5301 = vunpack.c.0.s8 %v5300
    %v5302 = vlaneseq
    %v5303 = vshrl.u32 %v5302, 7
    %v5304 = vsub.s32 %v5301, %v5303
    %v5305 = vrot.slane %v5298, %v5304
    %v5306 = vcombine.low %v5065, %v5077
    %v5308 = vunpack.c.l.s4 1983009808
    %v5309 = vunpack.c.0.s8 %v5308
    %v5310 = vlaneseq
    %v5311 = vshrl.u32 %v5310, 7
    %v5312 = vsub.s32 %v5309, %v5311
    %v5313 = vrot.slane %v5306, %v5312
    %v5314 = vcombine.low %v5071, %v5083
    %v5316 = vunpack.c.l.s4 1983009808
    %v5317 = vunpack.c.0.s8 %v5316
    %v5318 = vlaneseq
    %v5319 = vshrl.u32 %v5318, 7
    %v5320 = vsub.s32 %v5317, %v5319
    %v5321 = vrot.slane %v5314, %v5320
    %v5322 = vcombine.low %v5297, %v5305
    %v5323 = vcombine.high %v5297, %v5305
    %v5325 = vunpack.c.l.s4 1934713408
    %v5326 = vunpack.c.0.s8 %v5325
    %v5327 = vlaneseq
    %v5328 = vshrl.u32 %v5327, 7
    %v5329 = vsub.s32 %v5326, %v5328
    %v5330 = vrot.slane %v5322, %v5329
    %v5332 = vunpack.c.l.s4 1934713408
    %v5333 = vunpack.c.0.s8 %v5332
    %v5334 = vlaneseq
    %v5335 = vshrl.u32 %v5334, 7
    %v5336 = vsub.s32 %v5333, %v5335
    %v5337 = vrot.slane %v5323, %v5336
    %v5338 = vcombine.low %v5313, %v5321
    %v5339 = vcombine.high %v5313, %v5321
    %v5341 = vunpack.c.l.s4 1934713408
    %v5342 = vunpack.c.0.s8 %v5341
    %v5343 = vlaneseq
    %v5344 = vshrl.u32 %v5343, 7
    %v5345 = vsub.s32 %v5342, %v5344
    %v5346 = vrot.slane %v5338, %v5345
    %v5348 = vunpack.c.l.s4 1934713408
    %v5349 = vunpack.c.0.s8 %v5348
    %v5350 = vlaneseq
    %v5351 = vshrl.u32 %v5350, 7
    %v5352 = vsub.s32 %v5349, %v5351
    %v5353 = vrot.slane %v5339, %v5352
    %v5354 = vcombine.low %v5330, %v5346
    %v5355 = vcombine.high %v5330, %v5346
    %v5356 = vcombine.low %v5337, %v5353
    %v5357 = vcombine.high %v5337, %v5353
    %5374 = vrot.lane.b32.xlu0 %v5150, 1
    %v5375 = vpop.permute.xlu0 %5374
    %5376 = vrot.lane.b32.xlu0 %v5218, 1
    %v5377 = vpop.permute.xlu0 %5376
    %5378 = vrot.lane.b32.xlu0 %v5151, 1
    %v5379 = vpop.permute.xlu0 %5378
    %5380 = vrot.lane.b32.xlu0 %v5219, 1
    %v5381 = vpop.permute.xlu0 %5380
    %5382 = vrot.lane.b32.xlu0 %v5152, 1
    %v5383 = vpop.permute.xlu0 %5382
    %5384 = vrot.lane.b32.xlu0 %v5220, 1
    %v5385 = vpop.permute.xlu0 %5384
    %5386 = vrot.lane.b32.xlu0 %v5153, 1
    %v5387 = vpop.permute.xlu0 %5386
    %5388 = vrot.lane.b32.xlu0 %v5221, 1
    %v5389 = vpop.permute.xlu0 %5388
    %5390 = vrot.lane.b32.xlu0 %v5286, 1
    %v5391 = vpop.permute.xlu0 %5390
    %5392 = vrot.lane.b32.xlu0 %v5354, 1
    %v5393 = vpop.permute.xlu0 %5392
    %5394 = vrot.lane.b32.xlu0 %v5287, 1
    %v5395 = vpop.permute.xlu0 %5394
    %5396 = vrot.lane.b32.xlu0 %v5355, 1
    %v5397 = vpop.permute.xlu0 %5396
    %5398 = vrot.lane.b32.xlu0 %v5288, 1
    %v5399 = vpop.permute.xlu0 %5398
    %5400 = vrot.lane.b32.xlu0 %v5356, 1
    %v5401 = vpop.permute.xlu0 %5400
    %5402 = vrot.lane.b32.xlu0 %v5289, 1
    %v5403 = vpop.permute.xlu0 %5402
    %5404 = vrot.lane.b32.xlu0 %v5357, 1
    %v5405 = vpop.permute.xlu0 %5404
    %5422 = vst.msk [vmem:[#allocation2 + $0x1] sm:$0xff] %vm499, %v5375
    %5423 = vst.msk [vmem:[#allocation2 + $0x9] sm:$0xff] %vm499, %v5377
    %5424 = vst.msk [vmem:[#allocation2 + $0x19] sm:$0xff] %vm499, %v5379
    %5425 = vst.msk [vmem:[#allocation2 + $0x21] sm:$0xff] %vm499, %v5381
    %5426 = vst.msk [vmem:[#allocation2 + $0x31] sm:$0xff] %vm499, %v5383
    %5427 = vst.msk [vmem:[#allocation2 + $0x39] sm:$0xff] %vm499, %v5385
    %5428 = vst.msk [vmem:[#allocation2 + $0x49] sm:$0xff] %vm499, %v5387
    %5429 = vst.msk [vmem:[#allocation2 + $0x51] sm:$0xff] %vm499, %v5389
    %5430 = vst.msk [vmem:[#allocation2 + $0x61] sm:$0xff] %vm499, %v5391
    %5431 = vst.msk [vmem:[#allocation2 + $0x69] sm:$0xff] %vm499, %v5393
    %5432 = vst.msk [vmem:[#allocation2 + $0x79] sm:$0xff] %vm499, %v5395
    %5433 = vst.msk [vmem:[#allocation2 + $0x81] sm:$0xff] %vm499, %v5397
    %5434 = vst.msk [vmem:[#allocation2 + $0x91] sm:$0xff] %vm499, %v5399
    %5435 = vst.msk [vmem:[#allocation2 + $0x99] sm:$0xff] %vm499, %v5401
    %5436 = vst.msk [vmem:[#allocation2 + $0xa9] sm:$0xff] %vm499, %v5403
    %5437 = vst.msk [vmem:[#allocation2 + $0xb1] sm:$0xff] %vm499, %v5405
    %v5438 = vld [vmem:[#allocation2] sm:$0xff]
    %v5439 = vld [vmem:[#allocation2 + $0x8] sm:$0xff]
    %v5440 = vld [vmem:[#allocation2 + $0x10] sm:$0x3]
    %v5441 = vld [vmem:[#allocation2 + $0x18] sm:$0xff]
    %v5442 = vld [vmem:[#allocation2 + $0x20] sm:$0xff]
    %v5443 = vld [vmem:[#allocation2 + $0x28] sm:$0x3]
    %v5444 = vld [vmem:[#allocation2 + $0x30] sm:$0xff]
    %v5445 = vld [vmem:[#allocation2 + $0x38] sm:$0xff]
    %v5446 = vld [vmem:[#allocation2 + $0x40] sm:$0x3]
    %v5447 = vld [vmem:[#allocation2 + $0x48] sm:$0xff]
    %v5448 = vld [vmem:[#allocation2 + $0x50] sm:$0xff]
    %v5449 = vld [vmem:[#allocation2 + $0x58] sm:$0x3]
    %v5450 = vld [vmem:[#allocation2 + $0x60] sm:$0xff]
    %v5451 = vld [vmem:[#allocation2 + $0x68] sm:$0xff]
    %v5452 = vld [vmem:[#allocation2 + $0x70] sm:$0x3]
    %v5453 = vld [vmem:[#allocation2 + $0x78] sm:$0xff]
    %v5454 = vld [vmem:[#allocation2 + $0x80] sm:$0xff]
    %v5455 = vld [vmem:[#allocation2 + $0x88] sm:$0x3]
    %v5456 = vld [vmem:[#allocation2 + $0x90] sm:$0xff]
    %v5457 = vld [vmem:[#allocation2 + $0x98] sm:$0xff]
    %v5458 = vld [vmem:[#allocation2 + $0xa0] sm:$0x3]
    %v5459 = vld [vmem:[#allocation2 + $0xa8] sm:$0xff]
    %v5460 = vld [vmem:[#allocation2 + $0xb0] sm:$0xff]
    %v5461 = vld [vmem:[#allocation2 + $0xb8] sm:$0x3]
    %v5462 = vcombine.low %v5438, %v5444
    %v5463 = vcombine.high %v5438, %v5444
    %v5465 = vunpack.c.l.s4 1983009808
    %v5466 = vunpack.c.0.s8 %v5465
    %v5467 = vlaneseq
    %v5468 = vshrl.u32 %v5467, 7
    %v5469 = vsub.s32 %v5466, %v5468
    %v5470 = vrot.slane %v5462, %v5469
    %v5472 = vunpack.c.l.s4 1983009808
    %v5473 = vunpack.c.0.s8 %v5472
    %v5474 = vlaneseq
    %v5475 = vshrl.u32 %v5474, 7
    %v5476 = vsub.s32 %v5473, %v5475
    %v5477 = vrot.slane %v5463, %v5476
    %v5478 = vcombine.low %v5441, %v5447
    %v5479 = vcombine.high %v5441, %v5447
    %v5481 = vunpack.c.l.s4 1983009808
    %v5482 = vunpack.c.0.s8 %v5481
    %v5483 = vlaneseq
    %v5484 = vshrl.u32 %v5483, 7
    %v5485 = vsub.s32 %v5482, %v5484
    %v5486 = vrot.slane %v5478, %v5485
    %v5488 = vunpack.c.l.s4 1983009808
    %v5489 = vunpack.c.0.s8 %v5488
    %v5490 = vlaneseq
    %v5491 = vshrl.u32 %v5490, 7
    %v5492 = vsub.s32 %v5489, %v5491
    %v5493 = vrot.slane %v5479, %v5492
    %v5494 = vcombine.low %v5470, %v5486
    %v5495 = vcombine.high %v5470, %v5486
    %v5497 = vunpack.c.l.s4 1934713408
    %v5498 = vunpack.c.0.s8 %v5497
    %v5499 = vlaneseq
    %v5500 = vshrl.u32 %v5499, 7
    %v5501 = vsub.s32 %v5498, %v5500
    %v5502 = vrot.slane %v5494, %v5501
    %v5504 = vunpack.c.l.s4 1934713408
    %v5505 = vunpack.c.0.s8 %v5504
    %v5506 = vlaneseq
    %v5507 = vshrl.u32 %v5506, 7
    %v5508 = vsub.s32 %v5505, %v5507
    %v5509 = vrot.slane %v5495, %v5508
    %v5510 = vcombine.low %v5477, %v5493
    %v5511 = vcombine.high %v5477, %v5493
    %v5513 = vunpack.c.l.s4 1934713408
    %v5514 = vunpack.c.0.s8 %v5513
    %v5515 = vlaneseq
    %v5516 = vshrl.u32 %v5515, 7
    %v5517 = vsub.s32 %v5514, %v5516
    %v5518 = vrot.slane %v5510, %v5517
    %v5520 = vunpack.c.l.s4 1934713408
    %v5521 = vunpack.c.0.s8 %v5520
    %v5522 = vlaneseq
    %v5523 = vshrl.u32 %v5522, 7
    %v5524 = vsub.s32 %v5521, %v5523
    %v5525 = vrot.slane %v5511, %v5524
    %v5526 = vcombine.high %v5502, 0.0
    %v5527 = vcombine.high %v5509, 0.0
    %v5528 = vcombine.high %v5518, 0.0
    %v5529 = vcombine.high %v5525, 0.0
    %v5530 = vcombine.low %v5439, %v5445
    %v5531 = vcombine.high %v5439, %v5445
    %v5533 = vunpack.c.l.s4 1983009808
    %v5534 = vunpack.c.0.s8 %v5533
    %v5535 = vlaneseq
    %v5536 = vshrl.u32 %v5535, 7
    %v5537 = vsub.s32 %v5534, %v5536
    %v5538 = vrot.slane %v5530, %v5537
    %v5540 = vunpack.c.l.s4 1983009808
    %v5541 = vunpack.c.0.s8 %v5540
    %v5542 = vlaneseq
    %v5543 = vshrl.u32 %v5542, 7
    %v5544 = vsub.s32 %v5541, %v5543
    %v5545 = vrot.slane %v5531, %v5544
    %v5546 = vcombine.low %v5442, %v5448
    %v5547 = vcombine.high %v5442, %v5448
    %v5549 = vunpack.c.l.s4 1983009808
    %v5550 = vunpack.c.0.s8 %v5549
    %v5551 = vlaneseq
    %v5552 = vshrl.u32 %v5551, 7
    %v5553 = vsub.s32 %v5550, %v5552
    %v5554 = vrot.slane %v5546, %v5553
    %v5556 = vunpack.c.l.s4 1983009808
    %v5557 = vunpack.c.0.s8 %v5556
    %v5558 = vlaneseq
    %v5559 = vshrl.u32 %v5558, 7
    %v5560 = vsub.s32 %v5557, %v5559
    %v5561 = vrot.slane %v5547, %v5560
    %v5562 = vcombine.low %v5538, %v5554
    %v5563 = vcombine.high %v5538, %v5554
    %v5565 = vunpack.c.l.s4 1934713408
    %v5566 = vunpack.c.0.s8 %v5565
    %v5567 = vlaneseq
    %v5568 = vshrl.u32 %v5567, 7
    %v5569 = vsub.s32 %v5566, %v5568
    %v5570 = vrot.slane %v5562, %v5569
    %v5572 = vunpack.c.l.s4 1934713408
    %v5573 = vunpack.c.0.s8 %v5572
    %v5574 = vlaneseq
    %v5575 = vshrl.u32 %v5574, 7
    %v5576 = vsub.s32 %v5573, %v5575
    %v5577 = vrot.slane %v5563, %v5576
    %v5578 = vcombine.low %v5545, %v5561
    %v5579 = vcombine.high %v5545, %v5561
    %v5581 = vunpack.c.l.s4 1934713408
    %v5582 = vunpack.c.0.s8 %v5581
    %v5583 = vlaneseq
    %v5584 = vshrl.u32 %v5583, 7
    %v5585 = vsub.s32 %v5582, %v5584
    %v5586 = vrot.slane %v5578, %v5585
    %v5588 = vunpack.c.l.s4 1934713408
    %v5589 = vunpack.c.0.s8 %v5588
    %v5590 = vlaneseq
    %v5591 = vshrl.u32 %v5590, 7
    %v5592 = vsub.s32 %v5589, %v5591
    %v5593 = vrot.slane %v5579, %v5592
    %v5594 = vcombine.high %v5570, 0.0
    %v5595 = vcombine.high %v5577, 0.0
    %v5596 = vcombine.high %v5586, 0.0
    %v5597 = vcombine.high %v5593, 0.0
    %v5598 = vcombine.low %v5450, %v5456
    %v5599 = vcombine.high %v5450, %v5456
    %v5601 = vunpack.c.l.s4 1983009808
    %v5602 = vunpack.c.0.s8 %v5601
    %v5603 = vlaneseq
    %v5604 = vshrl.u32 %v5603, 7
    %v5605 = vsub.s32 %v5602, %v5604
    %v5606 = vrot.slane %v5598, %v5605
    %v5608 = vunpack.c.l.s4 1983009808
    %v5609 = vunpack.c.0.s8 %v5608
    %v5610 = vlaneseq
    %v5611 = vshrl.u32 %v5610, 7
    %v5612 = vsub.s32 %v5609, %v5611
    %v5613 = vrot.slane %v5599, %v5612
    %v5614 = vcombine.low %v5453, %v5459
    %v5615 = vcombine.high %v5453, %v5459
    %v5617 = vunpack.c.l.s4 1983009808
    %v5618 = vunpack.c.0.s8 %v5617
    %v5619 = vlaneseq
    %v5620 = vshrl.u32 %v5619, 7
    %v5621 = vsub.s32 %v5618, %v5620
    %v5622 = vrot.slane %v5614, %v5621
    %v5624 = vunpack.c.l.s4 1983009808
    %v5625 = vunpack.c.0.s8 %v5624
    %v5626 = vlaneseq
    %v5627 = vshrl.u32 %v5626, 7
    %v5628 = vsub.s32 %v5625, %v5627
    %v5629 = vrot.slane %v5615, %v5628
    %v5630 = vcombine.low %v5606, %v5622
    %v5631 = vcombine.high %v5606, %v5622
    %v5633 = vunpack.c.l.s4 1934713408
    %v5634 = vunpack.c.0.s8 %v5633
    %v5635 = vlaneseq
    %v5636 = vshrl.u32 %v5635, 7
    %v5637 = vsub.s32 %v5634, %v5636
    %v5638 = vrot.slane %v5630, %v5637
    %v5640 = vunpack.c.l.s4 1934713408
    %v5641 = vunpack.c.0.s8 %v5640
    %v5642 = vlaneseq
    %v5643 = vshrl.u32 %v5642, 7
    %v5644 = vsub.s32 %v5641, %v5643
    %v5645 = vrot.slane %v5631, %v5644
    %v5646 = vcombine.low %v5613, %v5629
    %v5647 = vcombine.high %v5613, %v5629
    %v5649 = vunpack.c.l.s4 1934713408
    %v5650 = vunpack.c.0.s8 %v5649
    %v5651 = vlaneseq
    %v5652 = vshrl.u32 %v5651, 7
    %v5653 = vsub.s32 %v5650, %v5652
    %v5654 = vrot.slane %v5646, %v5653
    %v5656 = vunpack.c.l.s4 1934713408
    %v5657 = vunpack.c.0.s8 %v5656
    %v5658 = vlaneseq
    %v5659 = vshrl.u32 %v5658, 7
    %v5660 = vsub.s32 %v5657, %v5659
    %v5661 = vrot.slane %v5647, %v5660
    %v5662 = vcombine.high %v5638, 0.0
    %v5663 = vcombine.high %v5645, 0.0
    %v5664 = vcombine.high %v5654, 0.0
    %v5665 = vcombine.high %v5661, 0.0
    %v5666 = vcombine.low %v5451, %v5457
    %v5667 = vcombine.high %v5451, %v5457
    %v5669 = vunpack.c.l.s4 1983009808
    %v5670 = vunpack.c.0.s8 %v5669
    %v5671 = vlaneseq
    %v5672 = vshrl.u32 %v5671, 7
    %v5673 = vsub.s32 %v5670, %v5672
    %v5674 = vrot.slane %v5666, %v5673
    %v5676 = vunpack.c.l.s4 1983009808
    %v5677 = vunpack.c.0.s8 %v5676
    %v5678 = vlaneseq
    %v5679 = vshrl.u32 %v5678, 7
    %v5680 = vsub.s32 %v5677, %v5679
    %v5681 = vrot.slane %v5667, %v5680
    %v5682 = vcombine.low %v5454, %v5460
    %v5683 = vcombine.high %v5454, %v5460
    %v5685 = vunpack.c.l.s4 1983009808
    %v5686 = vunpack.c.0.s8 %v5685
    %v5687 = vlaneseq
    %v5688 = vshrl.u32 %v5687, 7
    %v5689 = vsub.s32 %v5686, %v5688
    %v5690 = vrot.slane %v5682, %v5689
    %v5692 = vunpack.c.l.s4 1983009808
    %v5693 = vunpack.c.0.s8 %v5692
    %v5694 = vlaneseq
    %v5695 = vshrl.u32 %v5694, 7
    %v5696 = vsub.s32 %v5693, %v5695
    %v5697 = vrot.slane %v5683, %v5696
    %v5698 = vcombine.low %v5674, %v5690
    %v5699 = vcombine.high %v5674, %v5690
    %v5701 = vunpack.c.l.s4 1934713408
    %v5702 = vunpack.c.0.s8 %v5701
    %v5703 = vlaneseq
    %v5704 = vshrl.u32 %v5703, 7
    %v5705 = vsub.s32 %v5702, %v5704
    %v5706 = vrot.slane %v5698, %v5705
    %v5708 = vunpack.c.l.s4 1934713408
    %v5709 = vunpack.c.0.s8 %v5708
    %v5710 = vlaneseq
    %v5711 = vshrl.u32 %v5710, 7
    %v5712 = vsub.s32 %v5709, %v5711
    %v5713 = vrot.slane %v5699, %v5712
    %v5714 = vcombine.low %v5681, %v5697
    %v5715 = vcombine.high %v5681, %v5697
    %v5717 = vunpack.c.l.s4 1934713408
    %v5718 = vunpack.c.0.s8 %v5717
    %v5719 = vlaneseq
    %v5720 = vshrl.u32 %v5719, 7
    %v5721 = vsub.s32 %v5718, %v5720
    %v5722 = vrot.slane %v5714, %v5721
    %v5724 = vunpack.c.l.s4 1934713408
    %v5725 = vunpack.c.0.s8 %v5724
    %v5726 = vlaneseq
    %v5727 = vshrl.u32 %v5726, 7
    %v5728 = vsub.s32 %v5725, %v5727
    %v5729 = vrot.slane %v5715, %v5728
    %v5730 = vcombine.high %v5706, 0.0
    %v5731 = vcombine.high %v5713, 0.0
    %v5732 = vcombine.high %v5722, 0.0
    %v5733 = vcombine.high %v5729, 0.0
    %5736 = vrot.lane.b32.xlu0 %v5526, 16
    %v5737 = vpop.permute.xlu0 %5736
    %5738 = vrot.lane.b32.xlu0 %v5662, 16
    %v5739 = vpop.permute.xlu0 %5738
    %5744 = vrot.lane.b32.xlu0 %v5509, 32
    %v5745 = vpop.permute.xlu0 %5744
    %5746 = vrot.lane.b32.xlu0 %v5645, 32
    %v5747 = vpop.permute.xlu0 %5746
    %5752 = vrot.lane.b32.xlu0 %v5527, 48
    %v5753 = vpop.permute.xlu0 %5752
    %5754 = vrot.lane.b32.xlu0 %v5663, 48
    %v5755 = vpop.permute.xlu0 %5754
    %5760 = vrot.lane.b32.xlu0 %v5518, 64
    %v5761 = vpop.permute.xlu0 %5760
    %5762 = vrot.lane.b32.xlu0 %v5654, 64
    %v5763 = vpop.permute.xlu0 %5762
    %5768 = vrot.lane.b32.xlu0 %v5528, 80
    %v5769 = vpop.permute.xlu0 %5768
    %5770 = vrot.lane.b32.xlu0 %v5664, 80
    %v5771 = vpop.permute.xlu0 %5770
    %5776 = vrot.lane.b32.xlu0 %v5525, 96
    %v5777 = vpop.permute.xlu0 %5776
    %5778 = vrot.lane.b32.xlu0 %v5661, 96
    %v5779 = vpop.permute.xlu0 %5778
    %5784 = vrot.lane.b32.xlu0 %v5529, 112
    %v5785 = vpop.permute.xlu0 %5784
    %5786 = vrot.lane.b32.xlu0 %v5665, 112
    %v5787 = vpop.permute.xlu0 %5786
    %5792 = vrot.lane.b32.xlu0 %v5594, 16
    %v5793 = vpop.permute.xlu0 %5792
    %5794 = vrot.lane.b32.xlu0 %v5730, 16
    %v5795 = vpop.permute.xlu0 %5794
    %5800 = vrot.lane.b32.xlu0 %v5577, 32
    %v5801 = vpop.permute.xlu0 %5800
    %5802 = vrot.lane.b32.xlu0 %v5713, 32
    %v5803 = vpop.permute.xlu0 %5802
    %5808 = vrot.lane.b32.xlu0 %v5595, 48
    %v5809 = vpop.permute.xlu0 %5808
    %5810 = vrot.lane.b32.xlu0 %v5731, 48
    %v5811 = vpop.permute.xlu0 %5810
    %5816 = vrot.lane.b32.xlu0 %v5586, 64
    %v5817 = vpop.permute.xlu0 %5816
    %5818 = vrot.lane.b32.xlu0 %v5722, 64
    %v5819 = vpop.permute.xlu0 %5818
    %5824 = vrot.lane.b32.xlu0 %v5596, 80
    %v5825 = vpop.permute.xlu0 %5824
    %5826 = vrot.lane.b32.xlu0 %v5732, 80
    %v5827 = vpop.permute.xlu0 %5826
    %5832 = vrot.lane.b32.xlu0 %v5593, 96
    %v5833 = vpop.permute.xlu0 %5832
    %5834 = vrot.lane.b32.xlu0 %v5729, 96
    %v5835 = vpop.permute.xlu0 %5834
    %5840 = vrot.lane.b32.xlu0 %v5597, 112
    %v5841 = vpop.permute.xlu0 %5840
    %5842 = vrot.lane.b32.xlu0 %v5733, 112
    %v5843 = vpop.permute.xlu0 %5842
    %v5846 = vsel %vm924, %v5502, %v5737
    %v5847 = vsel %vm924, %v5638, %v5739
    %v5848 = vsel %vm927, %v5846, %v5745
    %v5849 = vsel %vm927, %v5847, %v5747
    %v5850 = vsel %vm930, %v5848, %v5753
    %v5851 = vsel %vm930, %v5849, %v5755
    %v5852 = vsel %vm933, %v5850, %v5761
    %v5853 = vsel %vm933, %v5851, %v5763
    %v5854 = vsel %vm936, %v5852, %v5769
    %v5855 = vsel %vm936, %v5853, %v5771
    %v5856 = vsel %vm939, %v5854, %v5777
    %v5857 = vsel %vm939, %v5855, %v5779
    %v5858 = vsel %vm942, %v5856, %v5785
    %v5859 = vsel %vm942, %v5857, %v5787
    %v5860 = vsel %vm924, %v5570, %v5793
    %v5861 = vsel %vm924, %v5706, %v5795
    %v5862 = vsel %vm927, %v5860, %v5801
    %v5863 = vsel %vm927, %v5861, %v5803
    %v5864 = vsel %vm930, %v5862, %v5809
    %v5865 = vsel %vm930, %v5863, %v5811
    %v5866 = vsel %vm933, %v5864, %v5817
    %v5867 = vsel %vm933, %v5865, %v5819
    %v5868 = vsel %vm936, %v5866, %v5825
    %v5869 = vsel %vm936, %v5867, %v5827
    %v5870 = vsel %vm939, %v5868, %v5833
    %v5871 = vsel %vm939, %v5869, %v5835
    %v5872 = vsel %vm942, %v5870, %v5841
    %v5873 = vsel %vm942, %v5871, %v5843
    %5890 = vrot.lane.b32.xlu0 %v5438, 127
    %v5891 = vpop.permute.xlu0 %5890
    %5892 = vrot.lane.b32.xlu0 %v5439, 127
    %v5893 = vpop.permute.xlu0 %5892
    %5894 = vrot.lane.b32.xlu0 %v5441, 127
    %v5895 = vpop.permute.xlu0 %5894
    %5896 = vrot.lane.b32.xlu0 %v5442, 127
    %v5897 = vpop.permute.xlu0 %5896
    %5898 = vrot.lane.b32.xlu0 %v5444, 127
    %v5899 = vpop.permute.xlu0 %5898
    %5900 = vrot.lane.b32.xlu0 %v5445, 127
    %v5901 = vpop.permute.xlu0 %5900
    %5902 = vrot.lane.b32.xlu0 %v5447, 127
    %v5903 = vpop.permute.xlu0 %5902
    %5904 = vrot.lane.b32.xlu0 %v5448, 127
    %v5905 = vpop.permute.xlu0 %5904
    %5906 = vrot.lane.b32.xlu0 %v5450, 127
    %v5907 = vpop.permute.xlu0 %5906
    %5908 = vrot.lane.b32.xlu0 %v5451, 127
    %v5909 = vpop.permute.xlu0 %5908
    %5910 = vrot.lane.b32.xlu0 %v5453, 127
    %v5911 = vpop.permute.xlu0 %5910
    %5912 = vrot.lane.b32.xlu0 %v5454, 127
    %v5913 = vpop.permute.xlu0 %5912
    %5914 = vrot.lane.b32.xlu0 %v5456, 127
    %v5915 = vpop.permute.xlu0 %5914
    %5916 = vrot.lane.b32.xlu0 %v5457, 127
    %v5917 = vpop.permute.xlu0 %5916
    %5918 = vrot.lane.b32.xlu0 %v5459, 127
    %v5919 = vpop.permute.xlu0 %5918
    %5920 = vrot.lane.b32.xlu0 %v5460, 127
    %v5921 = vpop.permute.xlu0 %5920
    %v5938 = vcombine.low %v5891, %v5899
    %v5939 = vcombine.high %v5891, %v5899
    %v5941 = vunpack.c.l.s4 1983009808
    %v5942 = vunpack.c.0.s8 %v5941
    %v5943 = vlaneseq
    %v5944 = vshrl.u32 %v5943, 7
    %v5945 = vsub.s32 %v5942, %v5944
    %v5946 = vrot.slane %v5938, %v5945
    %v5948 = vunpack.c.l.s4 1983009808
    %v5949 = vunpack.c.0.s8 %v5948
    %v5950 = vlaneseq
    %v5951 = vshrl.u32 %v5950, 7
    %v5952 = vsub.s32 %v5949, %v5951
    %v5953 = vrot.slane %v5939, %v5952
    %v5954 = vcombine.low %v5895, %v5903
    %v5955 = vcombine.high %v5895, %v5903
    %v5957 = vunpack.c.l.s4 1983009808
    %v5958 = vunpack.c.0.s8 %v5957
    %v5959 = vlaneseq
    %v5960 = vshrl.u32 %v5959, 7
    %v5961 = vsub.s32 %v5958, %v5960
    %v5962 = vrot.slane %v5954, %v5961
    %v5964 = vunpack.c.l.s4 1983009808
    %v5965 = vunpack.c.0.s8 %v5964
    %v5966 = vlaneseq
    %v5967 = vshrl.u32 %v5966, 7
    %v5968 = vsub.s32 %v5965, %v5967
    %v5969 = vrot.slane %v5955, %v5968
    %v5970 = vcombine.low %v5946, %v5962
    %v5971 = vcombine.high %v5946, %v5962
    %v5973 = vunpack.c.l.s4 1934713408
    %v5974 = vunpack.c.0.s8 %v5973
    %v5975 = vlaneseq
    %v5976 = vshrl.u32 %v5975, 7
    %v5977 = vsub.s32 %v5974, %v5976
    %v5978 = vrot.slane %v5970, %v5977
    %v5980 = vunpack.c.l.s4 1934713408
    %v5981 = vunpack.c.0.s8 %v5980
    %v5982 = vlaneseq
    %v5983 = vshrl.u32 %v5982, 7
    %v5984 = vsub.s32 %v5981, %v5983
    %v5985 = vrot.slane %v5971, %v5984
    %v5986 = vcombine.low %v5953, %v5969
    %v5987 = vcombine.high %v5953, %v5969
    %v5989 = vunpack.c.l.s4 1934713408
    %v5990 = vunpack.c.0.s8 %v5989
    %v5991 = vlaneseq
    %v5992 = vshrl.u32 %v5991, 7
    %v5993 = vsub.s32 %v5990, %v5992
    %v5994 = vrot.slane %v5986, %v5993
    %v5996 = vunpack.c.l.s4 1934713408
    %v5997 = vunpack.c.0.s8 %v5996
    %v5998 = vlaneseq
    %v5999 = vshrl.u32 %v5998, 7
    %v6000 = vsub.s32 %v5997, %v5999
    %v6001 = vrot.slane %v5987, %v6000
    %v6002 = vcombine.high %v5978, 0.0
    %v6003 = vcombine.high %v5985, 0.0
    %v6004 = vcombine.high %v5994, 0.0
    %v6005 = vcombine.high %v6001, 0.0
    %v6006 = vcombine.low %v5893, %v5901
    %v6007 = vcombine.high %v5893, %v5901
    %v6009 = vunpack.c.l.s4 1983009808
    %v6010 = vunpack.c.0.s8 %v6009
    %v6011 = vlaneseq
    %v6012 = vshrl.u32 %v6011, 7
    %v6013 = vsub.s32 %v6010, %v6012
    %v6014 = vrot.slane %v6006, %v6013
    %v6016 = vunpack.c.l.s4 1983009808
    %v6017 = vunpack.c.0.s8 %v6016
    %v6018 = vlaneseq
    %v6019 = vshrl.u32 %v6018, 7
    %v6020 = vsub.s32 %v6017, %v6019
    %v6021 = vrot.slane %v6007, %v6020
    %v6022 = vcombine.low %v5897, %v5905
    %v6023 = vcombine.high %v5897, %v5905
    %v6025 = vunpack.c.l.s4 1983009808
    %v6026 = vunpack.c.0.s8 %v6025
    %v6027 = vlaneseq
    %v6028 = vshrl.u32 %v6027, 7
    %v6029 = vsub.s32 %v6026, %v6028
    %v6030 = vrot.slane %v6022, %v6029
    %v6032 = vunpack.c.l.s4 1983009808
    %v6033 = vunpack.c.0.s8 %v6032
    %v6034 = vlaneseq
    %v6035 = vshrl.u32 %v6034, 7
    %v6036 = vsub.s32 %v6033, %v6035
    %v6037 = vrot.slane %v6023, %v6036
    %v6038 = vcombine.low %v6014, %v6030
    %v6039 = vcombine.high %v6014, %v6030
    %v6041 = vunpack.c.l.s4 1934713408
    %v6042 = vunpack.c.0.s8 %v6041
    %v6043 = vlaneseq
    %v6044 = vshrl.u32 %v6043, 7
    %v6045 = vsub.s32 %v6042, %v6044
    %v6046 = vrot.slane %v6038, %v6045
    %v6048 = vunpack.c.l.s4 1934713408
    %v6049 = vunpack.c.0.s8 %v6048
    %v6050 = vlaneseq
    %v6051 = vshrl.u32 %v6050, 7
    %v6052 = vsub.s32 %v6049, %v6051
    %v6053 = vrot.slane %v6039, %v6052
    %v6054 = vcombine.low %v6021, %v6037
    %v6055 = vcombine.high %v6021, %v6037
    %v6057 = vunpack.c.l.s4 1934713408
    %v6058 = vunpack.c.0.s8 %v6057
    %v6059 = vlaneseq
    %v6060 = vshrl.u32 %v6059, 7
    %v6061 = vsub.s32 %v6058, %v6060
    %v6062 = vrot.slane %v6054, %v6061
    %v6064 = vunpack.c.l.s4 1934713408
    %v6065 = vunpack.c.0.s8 %v6064
    %v6066 = vlaneseq
    %v6067 = vshrl.u32 %v6066, 7
    %v6068 = vsub.s32 %v6065, %v6067
    %v6069 = vrot.slane %v6055, %v6068
    %v6070 = vcombine.high %v6046, 0.0
    %v6071 = vcombine.high %v6053, 0.0
    %v6072 = vcombine.high %v6062, 0.0
    %v6073 = vcombine.high %v6069, 0.0
    %v6074 = vcombine.low %v5907, %v5915
    %v6075 = vcombine.high %v5907, %v5915
    %v6077 = vunpack.c.l.s4 1983009808
    %v6078 = vunpack.c.0.s8 %v6077
    %v6079 = vlaneseq
    %v6080 = vshrl.u32 %v6079, 7
    %v6081 = vsub.s32 %v6078, %v6080
    %v6082 = vrot.slane %v6074, %v6081
    %v6084 = vunpack.c.l.s4 1983009808
    %v6085 = vunpack.c.0.s8 %v6084
    %v6086 = vlaneseq
    %v6087 = vshrl.u32 %v6086, 7
    %v6088 = vsub.s32 %v6085, %v6087
    %v6089 = vrot.slane %v6075, %v6088
    %v6090 = vcombine.low %v5911, %v5919
    %v6091 = vcombine.high %v5911, %v5919
    %v6093 = vunpack.c.l.s4 1983009808
    %v6094 = vunpack.c.0.s8 %v6093
    %v6095 = vlaneseq
    %v6096 = vshrl.u32 %v6095, 7
    %v6097 = vsub.s32 %v6094, %v6096
    %v6098 = vrot.slane %v6090, %v6097
    %v6100 = vunpack.c.l.s4 1983009808
    %v6101 = vunpack.c.0.s8 %v6100
    %v6102 = vlaneseq
    %v6103 = vshrl.u32 %v6102, 7
    %v6104 = vsub.s32 %v6101, %v6103
    %v6105 = vrot.slane %v6091, %v6104
    %v6106 = vcombine.low %v6082, %v6098
    %v6107 = vcombine.high %v6082, %v6098
    %v6109 = vunpack.c.l.s4 1934713408
    %v6110 = vunpack.c.0.s8 %v6109
    %v6111 = vlaneseq
    %v6112 = vshrl.u32 %v6111, 7
    %v6113 = vsub.s32 %v6110, %v6112
    %v6114 = vrot.slane %v6106, %v6113
    %v6116 = vunpack.c.l.s4 1934713408
    %v6117 = vunpack.c.0.s8 %v6116
    %v6118 = vlaneseq
    %v6119 = vshrl.u32 %v6118, 7
    %v6120 = vsub.s32 %v6117, %v6119
    %v6121 = vrot.slane %v6107, %v6120
    %v6122 = vcombine.low %v6089, %v6105
    %v6123 = vcombine.high %v6089, %v6105
    %v6125 = vunpack.c.l.s4 1934713408
    %v6126 = vunpack.c.0.s8 %v6125
    %v6127 = vlaneseq
    %v6128 = vshrl.u32 %v6127, 7
    %v6129 = vsub.s32 %v6126, %v6128
    %v6130 = vrot.slane %v6122, %v6129
    %v6132 = vunpack.c.l.s4 1934713408
    %v6133 = vunpack.c.0.s8 %v6132
    %v6134 = vlaneseq
    %v6135 = vshrl.u32 %v6134, 7
    %v6136 = vsub.s32 %v6133, %v6135
    %v6137 = vrot.slane %v6123, %v6136
    %v6138 = vcombine.high %v6114, 0.0
    %v6139 = vcombine.high %v6121, 0.0
    %v6140 = vcombine.high %v6130, 0.0
    %v6141 = vcombine.high %v6137, 0.0
    %v6142 = vcombine.low %v5909, %v5917
    %v6143 = vcombine.high %v5909, %v5917
    %v6145 = vunpack.c.l.s4 1983009808
    %v6146 = vunpack.c.0.s8 %v6145
    %v6147 = vlaneseq
    %v6148 = vshrl.u32 %v6147, 7
    %v6149 = vsub.s32 %v6146, %v6148
    %v6150 = vrot.slane %v6142, %v6149
    %v6152 = vunpack.c.l.s4 1983009808
    %v6153 = vunpack.c.0.s8 %v6152
    %v6154 = vlaneseq
    %v6155 = vshrl.u32 %v6154, 7
    %v6156 = vsub.s32 %v6153, %v6155
    %v6157 = vrot.slane %v6143, %v6156
    %v6158 = vcombine.low %v5913, %v5921
    %v6159 = vcombine.high %v5913, %v5921
    %v6161 = vunpack.c.l.s4 1983009808
    %v6162 = vunpack.c.0.s8 %v6161
    %v6163 = vlaneseq
    %v6164 = vshrl.u32 %v6163, 7
    %v6165 = vsub.s32 %v6162, %v6164
    %v6166 = vrot.slane %v6158, %v6165
    %v6168 = vunpack.c.l.s4 1983009808
    %v6169 = vunpack.c.0.s8 %v6168
    %v6170 = vlaneseq
    %v6171 = vshrl.u32 %v6170, 7
    %v6172 = vsub.s32 %v6169, %v6171
    %v6173 = vrot.slane %v6159, %v6172
    %v6174 = vcombine.low %v6150, %v6166
    %v6175 = vcombine.high %v6150, %v6166
    %v6177 = vunpack.c.l.s4 1934713408
    %v6178 = vunpack.c.0.s8 %v6177
    %v6179 = vlaneseq
    %v6180 = vshrl.u32 %v6179, 7
    %v6181 = vsub.s32 %v6178, %v6180
    %v6182 = vrot.slane %v6174, %v6181
    %v6184 = vunpack.c.l.s4 1934713408
    %v6185 = vunpack.c.0.s8 %v6184
    %v6186 = vlaneseq
    %v6187 = vshrl.u32 %v6186, 7
    %v6188 = vsub.s32 %v6185, %v6187
    %v6189 = vrot.slane %v6175, %v6188
    %v6190 = vcombine.low %v6157, %v6173
    %v6191 = vcombine.high %v6157, %v6173
    %v6193 = vunpack.c.l.s4 1934713408
    %v6194 = vunpack.c.0.s8 %v6193
    %v6195 = vlaneseq
    %v6196 = vshrl.u32 %v6195, 7
    %v6197 = vsub.s32 %v6194, %v6196
    %v6198 = vrot.slane %v6190, %v6197
    %v6200 = vunpack.c.l.s4 1934713408
    %v6201 = vunpack.c.0.s8 %v6200
    %v6202 = vlaneseq
    %v6203 = vshrl.u32 %v6202, 7
    %v6204 = vsub.s32 %v6201, %v6203
    %v6205 = vrot.slane %v6191, %v6204
    %v6206 = vcombine.high %v6182, 0.0
    %v6207 = vcombine.high %v6189, 0.0
    %v6208 = vcombine.high %v6198, 0.0
    %v6209 = vcombine.high %v6205, 0.0
    %6212 = vrot.lane.b32.xlu0 %v6002, 16
    %v6213 = vpop.permute.xlu0 %6212
    %6214 = vrot.lane.b32.xlu0 %v6138, 16
    %v6215 = vpop.permute.xlu0 %6214
    %6220 = vrot.lane.b32.xlu0 %v5985, 32
    %v6221 = vpop.permute.xlu0 %6220
    %6222 = vrot.lane.b32.xlu0 %v6121, 32
    %v6223 = vpop.permute.xlu0 %6222
    %6228 = vrot.lane.b32.xlu0 %v6003, 48
    %v6229 = vpop.permute.xlu0 %6228
    %6230 = vrot.lane.b32.xlu0 %v6139, 48
    %v6231 = vpop.permute.xlu0 %6230
    %6236 = vrot.lane.b32.xlu0 %v5994, 64
    %v6237 = vpop.permute.xlu0 %6236
    %6238 = vrot.lane.b32.xlu0 %v6130, 64
    %v6239 = vpop.permute.xlu0 %6238
    %6244 = vrot.lane.b32.xlu0 %v6004, 80
    %v6245 = vpop.permute.xlu0 %6244
    %6246 = vrot.lane.b32.xlu0 %v6140, 80
    %v6247 = vpop.permute.xlu0 %6246
    %6252 = vrot.lane.b32.xlu0 %v6001, 96
    %v6253 = vpop.permute.xlu0 %6252
    %6254 = vrot.lane.b32.xlu0 %v6137, 96
    %v6255 = vpop.permute.xlu0 %6254
    %6260 = vrot.lane.b32.xlu0 %v6005, 112
    %v6261 = vpop.permute.xlu0 %6260
    %6262 = vrot.lane.b32.xlu0 %v6141, 112
    %v6263 = vpop.permute.xlu0 %6262
    %6268 = vrot.lane.b32.xlu0 %v6070, 16
    %v6269 = vpop.permute.xlu0 %6268
    %6270 = vrot.lane.b32.xlu0 %v6206, 16
    %v6271 = vpop.permute.xlu0 %6270
    %6276 = vrot.lane.b32.xlu0 %v6053, 32
    %v6277 = vpop.permute.xlu0 %6276
    %6278 = vrot.lane.b32.xlu0 %v6189, 32
    %v6279 = vpop.permute.xlu0 %6278
    %6284 = vrot.lane.b32.xlu0 %v6071, 48
    %v6285 = vpop.permute.xlu0 %6284
    %6286 = vrot.lane.b32.xlu0 %v6207, 48
    %v6287 = vpop.permute.xlu0 %6286
    %6292 = vrot.lane.b32.xlu0 %v6062, 64
    %v6293 = vpop.permute.xlu0 %6292
    %6294 = vrot.lane.b32.xlu0 %v6198, 64
    %v6295 = vpop.permute.xlu0 %6294
    %6300 = vrot.lane.b32.xlu0 %v6072, 80
    %v6301 = vpop.permute.xlu0 %6300
    %6302 = vrot.lane.b32.xlu0 %v6208, 80
    %v6303 = vpop.permute.xlu0 %6302
    %6308 = vrot.lane.b32.xlu0 %v6069, 96
    %v6309 = vpop.permute.xlu0 %6308
    %6310 = vrot.lane.b32.xlu0 %v6205, 96
    %v6311 = vpop.permute.xlu0 %6310
    %6316 = vrot.lane.b32.xlu0 %v6073, 112
    %v6317 = vpop.permute.xlu0 %6316
    %6318 = vrot.lane.b32.xlu0 %v6209, 112
    %v6319 = vpop.permute.xlu0 %6318
    %v6322 = vsel %vm924, %v5978, %v6213
    %v6323 = vsel %vm924, %v6114, %v6215
    %v6324 = vsel %vm927, %v6322, %v6221
    %v6325 = vsel %vm927, %v6323, %v6223
    %v6326 = vsel %vm930, %v6324, %v6229
    %v6327 = vsel %vm930, %v6325, %v6231
    %v6328 = vsel %vm933, %v6326, %v6237
    %v6329 = vsel %vm933, %v6327, %v6239
    %v6330 = vsel %vm936, %v6328, %v6245
    %v6331 = vsel %vm936, %v6329, %v6247
    %v6332 = vsel %vm939, %v6330, %v6253
    %v6333 = vsel %vm939, %v6331, %v6255
    %v6334 = vsel %vm942, %v6332, %v6261
    %v6335 = vsel %vm942, %v6333, %v6263
    %v6336 = vsel %vm924, %v6046, %v6269
    %v6337 = vsel %vm924, %v6182, %v6271
    %v6338 = vsel %vm927, %v6336, %v6277
    %v6339 = vsel %vm927, %v6337, %v6279
    %v6340 = vsel %vm930, %v6338, %v6285
    %v6341 = vsel %vm930, %v6339, %v6287
    %v6342 = vsel %vm933, %v6340, %v6293
    %v6343 = vsel %vm933, %v6341, %v6295
    %v6344 = vsel %vm936, %v6342, %v6301
    %v6345 = vsel %vm936, %v6343, %v6303
    %v6346 = vsel %vm939, %v6344, %v6309
    %v6347 = vsel %vm939, %v6345, %v6311
    %v6348 = vsel %vm942, %v6346, %v6317
    %v6349 = vsel %vm942, %v6347, %v6319
    %6350 = vrot.lane.b32.xlu0 %v5438, 126
    %v6351 = vpop.permute.xlu0 %6350
    %6352 = vrot.lane.b32.xlu0 %v5439, 126
    %v6353 = vpop.permute.xlu0 %6352
    %6354 = vrot.lane.b32.xlu0 %v5441, 126
    %v6355 = vpop.permute.xlu0 %6354
    %6356 = vrot.lane.b32.xlu0 %v5442, 126
    %v6357 = vpop.permute.xlu0 %6356
    %6358 = vrot.lane.b32.xlu0 %v5444, 126
    %v6359 = vpop.permute.xlu0 %6358
    %6360 = vrot.lane.b32.xlu0 %v5445, 126
    %v6361 = vpop.permute.xlu0 %6360
    %6362 = vrot.lane.b32.xlu0 %v5447, 126
    %v6363 = vpop.permute.xlu0 %6362
    %6364 = vrot.lane.b32.xlu0 %v5448, 126
    %v6365 = vpop.permute.xlu0 %6364
    %6366 = vrot.lane.b32.xlu0 %v5450, 126
    %v6367 = vpop.permute.xlu0 %6366
    %6368 = vrot.lane.b32.xlu0 %v5451, 126
    %v6369 = vpop.permute.xlu0 %6368
    %6370 = vrot.lane.b32.xlu0 %v5453, 126
    %v6371 = vpop.permute.xlu0 %6370
    %6372 = vrot.lane.b32.xlu0 %v5454, 126
    %v6373 = vpop.permute.xlu0 %6372
    %6374 = vrot.lane.b32.xlu0 %v5456, 126
    %v6375 = vpop.permute.xlu0 %6374
    %6376 = vrot.lane.b32.xlu0 %v5457, 126
    %v6377 = vpop.permute.xlu0 %6376
    %6378 = vrot.lane.b32.xlu0 %v5459, 126
    %v6379 = vpop.permute.xlu0 %6378
    %6380 = vrot.lane.b32.xlu0 %v5460, 126
    %v6381 = vpop.permute.xlu0 %6380
    %v6398 = vcombine.low %v6351, %v6359
    %v6399 = vcombine.high %v6351, %v6359
    %v6401 = vunpack.c.l.s4 1983009808
    %v6402 = vunpack.c.0.s8 %v6401
    %v6403 = vlaneseq
    %v6404 = vshrl.u32 %v6403, 7
    %v6405 = vsub.s32 %v6402, %v6404
    %v6406 = vrot.slane %v6398, %v6405
    %v6408 = vunpack.c.l.s4 1983009808
    %v6409 = vunpack.c.0.s8 %v6408
    %v6410 = vlaneseq
    %v6411 = vshrl.u32 %v6410, 7
    %v6412 = vsub.s32 %v6409, %v6411
    %v6413 = vrot.slane %v6399, %v6412
    %v6414 = vcombine.low %v6355, %v6363
    %v6415 = vcombine.high %v6355, %v6363
    %v6417 = vunpack.c.l.s4 1983009808
    %v6418 = vunpack.c.0.s8 %v6417
    %v6419 = vlaneseq
    %v6420 = vshrl.u32 %v6419, 7
    %v6421 = vsub.s32 %v6418, %v6420
    %v6422 = vrot.slane %v6414, %v6421
    %v6424 = vunpack.c.l.s4 1983009808
    %v6425 = vunpack.c.0.s8 %v6424
    %v6426 = vlaneseq
    %v6427 = vshrl.u32 %v6426, 7
    %v6428 = vsub.s32 %v6425, %v6427
    %v6429 = vrot.slane %v6415, %v6428
    %v6430 = vcombine.low %v6406, %v6422
    %v6431 = vcombine.high %v6406, %v6422
    %v6433 = vunpack.c.l.s4 1934713408
    %v6434 = vunpack.c.0.s8 %v6433
    %v6435 = vlaneseq
    %v6436 = vshrl.u32 %v6435, 7
    %v6437 = vsub.s32 %v6434, %v6436
    %v6438 = vrot.slane %v6430, %v6437
    %v6440 = vunpack.c.l.s4 1934713408
    %v6441 = vunpack.c.0.s8 %v6440
    %v6442 = vlaneseq
    %v6443 = vshrl.u32 %v6442, 7
    %v6444 = vsub.s32 %v6441, %v6443
    %v6445 = vrot.slane %v6431, %v6444
    %v6446 = vcombine.low %v6413, %v6429
    %v6447 = vcombine.high %v6413, %v6429
    %v6449 = vunpack.c.l.s4 1934713408
    %v6450 = vunpack.c.0.s8 %v6449
    %v6451 = vlaneseq
    %v6452 = vshrl.u32 %v6451, 7
    %v6453 = vsub.s32 %v6450, %v6452
    %v6454 = vrot.slane %v6446, %v6453
    %v6456 = vunpack.c.l.s4 1934713408
    %v6457 = vunpack.c.0.s8 %v6456
    %v6458 = vlaneseq
    %v6459 = vshrl.u32 %v6458, 7
    %v6460 = vsub.s32 %v6457, %v6459
    %v6461 = vrot.slane %v6447, %v6460
    %v6462 = vcombine.high %v6438, 0.0
    %v6463 = vcombine.high %v6445, 0.0
    %v6464 = vcombine.high %v6454, 0.0
    %v6465 = vcombine.high %v6461, 0.0
    %v6466 = vcombine.low %v6353, %v6361
    %v6467 = vcombine.high %v6353, %v6361
    %v6469 = vunpack.c.l.s4 1983009808
    %v6470 = vunpack.c.0.s8 %v6469
    %v6471 = vlaneseq
    %v6472 = vshrl.u32 %v6471, 7
    %v6473 = vsub.s32 %v6470, %v6472
    %v6474 = vrot.slane %v6466, %v6473
    %v6476 = vunpack.c.l.s4 1983009808
    %v6477 = vunpack.c.0.s8 %v6476
    %v6478 = vlaneseq
    %v6479 = vshrl.u32 %v6478, 7
    %v6480 = vsub.s32 %v6477, %v6479
    %v6481 = vrot.slane %v6467, %v6480
    %v6482 = vcombine.low %v6357, %v6365
    %v6483 = vcombine.high %v6357, %v6365
    %v6485 = vunpack.c.l.s4 1983009808
    %v6486 = vunpack.c.0.s8 %v6485
    %v6487 = vlaneseq
    %v6488 = vshrl.u32 %v6487, 7
    %v6489 = vsub.s32 %v6486, %v6488
    %v6490 = vrot.slane %v6482, %v6489
    %v6492 = vunpack.c.l.s4 1983009808
    %v6493 = vunpack.c.0.s8 %v6492
    %v6494 = vlaneseq
    %v6495 = vshrl.u32 %v6494, 7
    %v6496 = vsub.s32 %v6493, %v6495
    %v6497 = vrot.slane %v6483, %v6496
    %v6498 = vcombine.low %v6474, %v6490
    %v6499 = vcombine.high %v6474, %v6490
    %v6501 = vunpack.c.l.s4 1934713408
    %v6502 = vunpack.c.0.s8 %v6501
    %v6503 = vlaneseq
    %v6504 = vshrl.u32 %v6503, 7
    %v6505 = vsub.s32 %v6502, %v6504
    %v6506 = vrot.slane %v6498, %v6505
    %v6508 = vunpack.c.l.s4 1934713408
    %v6509 = vunpack.c.0.s8 %v6508
    %v6510 = vlaneseq
    %v6511 = vshrl.u32 %v6510, 7
    %v6512 = vsub.s32 %v6509, %v6511
    %v6513 = vrot.slane %v6499, %v6512
    %v6514 = vcombine.low %v6481, %v6497
    %v6515 = vcombine.high %v6481, %v6497
    %v6517 = vunpack.c.l.s4 1934713408
    %v6518 = vunpack.c.0.s8 %v6517
    %v6519 = vlaneseq
    %v6520 = vshrl.u32 %v6519, 7
    %v6521 = vsub.s32 %v6518, %v6520
    %v6522 = vrot.slane %v6514, %v6521
    %v6524 = vunpack.c.l.s4 1934713408
    %v6525 = vunpack.c.0.s8 %v6524
    %v6526 = vlaneseq
    %v6527 = vshrl.u32 %v6526, 7
    %v6528 = vsub.s32 %v6525, %v6527
    %v6529 = vrot.slane %v6515, %v6528
    %v6530 = vcombine.high %v6506, 0.0
    %v6531 = vcombine.high %v6513, 0.0
    %v6532 = vcombine.high %v6522, 0.0
    %v6533 = vcombine.high %v6529, 0.0
    %v6534 = vcombine.low %v6367, %v6375
    %v6535 = vcombine.high %v6367, %v6375
    %v6537 = vunpack.c.l.s4 1983009808
    %v6538 = vunpack.c.0.s8 %v6537
    %v6539 = vlaneseq
    %v6540 = vshrl.u32 %v6539, 7
    %v6541 = vsub.s32 %v6538, %v6540
    %v6542 = vrot.slane %v6534, %v6541
    %v6544 = vunpack.c.l.s4 1983009808
    %v6545 = vunpack.c.0.s8 %v6544
    %v6546 = vlaneseq
    %v6547 = vshrl.u32 %v6546, 7
    %v6548 = vsub.s32 %v6545, %v6547
    %v6549 = vrot.slane %v6535, %v6548
    %v6550 = vcombine.low %v6371, %v6379
    %v6551 = vcombine.high %v6371, %v6379
    %v6553 = vunpack.c.l.s4 1983009808
    %v6554 = vunpack.c.0.s8 %v6553
    %v6555 = vlaneseq
    %v6556 = vshrl.u32 %v6555, 7
    %v6557 = vsub.s32 %v6554, %v6556
    %v6558 = vrot.slane %v6550, %v6557
    %v6560 = vunpack.c.l.s4 1983009808
    %v6561 = vunpack.c.0.s8 %v6560
    %v6562 = vlaneseq
    %v6563 = vshrl.u32 %v6562, 7
    %v6564 = vsub.s32 %v6561, %v6563
    %v6565 = vrot.slane %v6551, %v6564
    %v6566 = vcombine.low %v6542, %v6558
    %v6567 = vcombine.high %v6542, %v6558
    %v6569 = vunpack.c.l.s4 1934713408
    %v6570 = vunpack.c.0.s8 %v6569
    %v6571 = vlaneseq
    %v6572 = vshrl.u32 %v6571, 7
    %v6573 = vsub.s32 %v6570, %v6572
    %v6574 = vrot.slane %v6566, %v6573
    %v6576 = vunpack.c.l.s4 1934713408
    %v6577 = vunpack.c.0.s8 %v6576
    %v6578 = vlaneseq
    %v6579 = vshrl.u32 %v6578, 7
    %v6580 = vsub.s32 %v6577, %v6579
    %v6581 = vrot.slane %v6567, %v6580
    %v6582 = vcombine.low %v6549, %v6565
    %v6583 = vcombine.high %v6549, %v6565
    %v6585 = vunpack.c.l.s4 1934713408
    %v6586 = vunpack.c.0.s8 %v6585
    %v6587 = vlaneseq
    %v6588 = vshrl.u32 %v6587, 7
    %v6589 = vsub.s32 %v6586, %v6588
    %v6590 = vrot.slane %v6582, %v6589
    %v6592 = vunpack.c.l.s4 1934713408
    %v6593 = vunpack.c.0.s8 %v6592
    %v6594 = vlaneseq
    %v6595 = vshrl.u32 %v6594, 7
    %v6596 = vsub.s32 %v6593, %v6595
    %v6597 = vrot.slane %v6583, %v6596
    %v6598 = vcombine.high %v6574, 0.0
    %v6599 = vcombine.high %v6581, 0.0
    %v6600 = vcombine.high %v6590, 0.0
    %v6601 = vcombine.high %v6597, 0.0
    %v6602 = vcombine.low %v6369, %v6377
    %v6603 = vcombine.high %v6369, %v6377
    %v6605 = vunpack.c.l.s4 1983009808
    %v6606 = vunpack.c.0.s8 %v6605
    %v6607 = vlaneseq
    %v6608 = vshrl.u32 %v6607, 7
    %v6609 = vsub.s32 %v6606, %v6608
    %v6610 = vrot.slane %v6602, %v6609
    %v6612 = vunpack.c.l.s4 1983009808
    %v6613 = vunpack.c.0.s8 %v6612
    %v6614 = vlaneseq
    %v6615 = vshrl.u32 %v6614, 7
    %v6616 = vsub.s32 %v6613, %v6615
    %v6617 = vrot.slane %v6603, %v6616
    %v6618 = vcombine.low %v6373, %v6381
    %v6619 = vcombine.high %v6373, %v6381
    %v6621 = vunpack.c.l.s4 1983009808
    %v6622 = vunpack.c.0.s8 %v6621
    %v6623 = vlaneseq
    %v6624 = vshrl.u32 %v6623, 7
    %v6625 = vsub.s32 %v6622, %v6624
    %v6626 = vrot.slane %v6618, %v6625
    %v6628 = vunpack.c.l.s4 1983009808
    %v6629 = vunpack.c.0.s8 %v6628
    %v6630 = vlaneseq
    %v6631 = vshrl.u32 %v6630, 7
    %v6632 = vsub.s32 %v6629, %v6631
    %v6633 = vrot.slane %v6619, %v6632
    %v6634 = vcombine.low %v6610, %v6626
    %v6635 = vcombine.high %v6610, %v6626
    %v6637 = vunpack.c.l.s4 1934713408
    %v6638 = vunpack.c.0.s8 %v6637
    %v6639 = vlaneseq
    %v6640 = vshrl.u32 %v6639, 7
    %v6641 = vsub.s32 %v6638, %v6640
    %v6642 = vrot.slane %v6634, %v6641
    %v6644 = vunpack.c.l.s4 1934713408
    %v6645 = vunpack.c.0.s8 %v6644
    %v6646 = vlaneseq
    %v6647 = vshrl.u32 %v6646, 7
    %v6648 = vsub.s32 %v6645, %v6647
    %v6649 = vrot.slane %v6635, %v6648
    %v6650 = vcombine.low %v6617, %v6633
    %v6651 = vcombine.high %v6617, %v6633
    %v6653 = vunpack.c.l.s4 1934713408
    %v6654 = vunpack.c.0.s8 %v6653
    %v6655 = vlaneseq
    %v6656 = vshrl.u32 %v6655, 7
    %v6657 = vsub.s32 %v6654, %v6656
    %v6658 = vrot.slane %v6650, %v6657
    %v6660 = vunpack.c.l.s4 1934713408
    %v6661 = vunpack.c.0.s8 %v6660
    %v6662 = vlaneseq
    %v6663 = vshrl.u32 %v6662, 7
    %v6664 = vsub.s32 %v6661, %v6663
    %v6665 = vrot.slane %v6651, %v6664
    %v6666 = vcombine.high %v6642, 0.0
    %v6667 = vcombine.high %v6649, 0.0
    %v6668 = vcombine.high %v6658, 0.0
    %v6669 = vcombine.high %v6665, 0.0
    %6672 = vrot.lane.b32.xlu0 %v6462, 16
    %v6673 = vpop.permute.xlu0 %6672
    %6674 = vrot.lane.b32.xlu0 %v6598, 16
    %v6675 = vpop.permute.xlu0 %6674
    %6680 = vrot.lane.b32.xlu0 %v6445, 32
    %v6681 = vpop.permute.xlu0 %6680
    %6682 = vrot.lane.b32.xlu0 %v6581, 32
    %v6683 = vpop.permute.xlu0 %6682
    %6688 = vrot.lane.b32.xlu0 %v6463, 48
    %v6689 = vpop.permute.xlu0 %6688
    %6690 = vrot.lane.b32.xlu0 %v6599, 48
    %v6691 = vpop.permute.xlu0 %6690
    %6696 = vrot.lane.b32.xlu0 %v6454, 64
    %v6697 = vpop.permute.xlu0 %6696
    %6698 = vrot.lane.b32.xlu0 %v6590, 64
    %v6699 = vpop.permute.xlu0 %6698
    %6704 = vrot.lane.b32.xlu0 %v6464, 80
    %v6705 = vpop.permute.xlu0 %6704
    %6706 = vrot.lane.b32.xlu0 %v6600, 80
    %v6707 = vpop.permute.xlu0 %6706
    %6712 = vrot.lane.b32.xlu0 %v6461, 96
    %v6713 = vpop.permute.xlu0 %6712
    %6714 = vrot.lane.b32.xlu0 %v6597, 96
    %v6715 = vpop.permute.xlu0 %6714
    %6720 = vrot.lane.b32.xlu0 %v6465, 112
    %v6721 = vpop.permute.xlu0 %6720
    %6722 = vrot.lane.b32.xlu0 %v6601, 112
    %v6723 = vpop.permute.xlu0 %6722
    %6728 = vrot.lane.b32.xlu0 %v6530, 16
    %v6729 = vpop.permute.xlu0 %6728
    %6730 = vrot.lane.b32.xlu0 %v6666, 16
    %v6731 = vpop.permute.xlu0 %6730
    %6736 = vrot.lane.b32.xlu0 %v6513, 32
    %v6737 = vpop.permute.xlu0 %6736
    %6738 = vrot.lane.b32.xlu0 %v6649, 32
    %v6739 = vpop.permute.xlu0 %6738
    %6744 = vrot.lane.b32.xlu0 %v6531, 48
    %v6745 = vpop.permute.xlu0 %6744
    %6746 = vrot.lane.b32.xlu0 %v6667, 48
    %v6747 = vpop.permute.xlu0 %6746
    %6752 = vrot.lane.b32.xlu0 %v6522, 64
    %v6753 = vpop.permute.xlu0 %6752
    %6754 = vrot.lane.b32.xlu0 %v6658, 64
    %v6755 = vpop.permute.xlu0 %6754
    %6760 = vrot.lane.b32.xlu0 %v6532, 80
    %v6761 = vpop.permute.xlu0 %6760
    %6762 = vrot.lane.b32.xlu0 %v6668, 80
    %v6763 = vpop.permute.xlu0 %6762
    %6768 = vrot.lane.b32.xlu0 %v6529, 96
    %v6769 = vpop.permute.xlu0 %6768
    %6770 = vrot.lane.b32.xlu0 %v6665, 96
    %v6771 = vpop.permute.xlu0 %6770
    %6776 = vrot.lane.b32.xlu0 %v6533, 112
    %v6777 = vpop.permute.xlu0 %6776
    %6778 = vrot.lane.b32.xlu0 %v6669, 112
    %v6779 = vpop.permute.xlu0 %6778
    %v6782 = vsel %vm924, %v6438, %v6673
    %v6783 = vsel %vm924, %v6574, %v6675
    %v6784 = vsel %vm927, %v6782, %v6681
    %v6785 = vsel %vm927, %v6783, %v6683
    %v6786 = vsel %vm930, %v6784, %v6689
    %v6787 = vsel %vm930, %v6785, %v6691
    %v6788 = vsel %vm933, %v6786, %v6697
    %v6789 = vsel %vm933, %v6787, %v6699
    %v6790 = vsel %vm936, %v6788, %v6705
    %v6791 = vsel %vm936, %v6789, %v6707
    %v6792 = vsel %vm939, %v6790, %v6713
    %v6793 = vsel %vm939, %v6791, %v6715
    %v6794 = vsel %vm942, %v6792, %v6721
    %v6795 = vsel %vm942, %v6793, %v6723
    %v6796 = vsel %vm924, %v6506, %v6729
    %v6797 = vsel %vm924, %v6642, %v6731
    %v6798 = vsel %vm927, %v6796, %v6737
    %v6799 = vsel %vm927, %v6797, %v6739
    %v6800 = vsel %vm930, %v6798, %v6745
    %v6801 = vsel %vm930, %v6799, %v6747
    %v6802 = vsel %vm933, %v6800, %v6753
    %v6803 = vsel %vm933, %v6801, %v6755
    %v6804 = vsel %vm936, %v6802, %v6761
    %v6805 = vsel %vm936, %v6803, %v6763
    %v6806 = vsel %vm939, %v6804, %v6769
    %v6807 = vsel %vm939, %v6805, %v6771
    %v6808 = vsel %vm942, %v6806, %v6777
    %v6809 = vsel %vm942, %v6807, %v6779
    %v6818 = vrot.slane %v5438, 1
    %v6819 = vrot.slane %v5439, 1
    %v6820 = vsel %vm1903, %v6818, %v6819
    %v6821 = vrot.slane %v5440, 1
    %v6822 = vsel %vm1903, %v6819, %v6821
    %v6823 = vrot.slane %v5441, 1
    %v6824 = vrot.slane %v5442, 1
    %v6825 = vsel %vm1903, %v6823, %v6824
    %v6826 = vrot.slane %v5443, 1
    %v6827 = vsel %vm1903, %v6824, %v6826
    %v6828 = vrot.slane %v5444, 1
    %v6829 = vrot.slane %v5445, 1
    %v6830 = vsel %vm1903, %v6828, %v6829
    %v6831 = vrot.slane %v5446, 1
    %v6832 = vsel %vm1903, %v6829, %v6831
    %v6833 = vrot.slane %v5447, 1
    %v6834 = vrot.slane %v5448, 1
    %v6835 = vsel %vm1903, %v6833, %v6834
    %v6836 = vrot.slane %v5449, 1
    %v6837 = vsel %vm1903, %v6834, %v6836
    %v6838 = vrot.slane %v5450, 1
    %v6839 = vrot.slane %v5451, 1
    %v6840 = vsel %vm1903, %v6838, %v6839
    %v6841 = vrot.slane %v5452, 1
    %v6842 = vsel %vm1903, %v6839, %v6841
    %v6843 = vrot.slane %v5453, 1
    %v6844 = vrot.slane %v5454, 1
    %v6845 = vsel %vm1903, %v6843, %v6844
    %v6846 = vrot.slane %v5455, 1
    %v6847 = vsel %vm1903, %v6844, %v6846
    %v6848 = vrot.slane %v5456, 1
    %v6849 = vrot.slane %v5457, 1
    %v6850 = vsel %vm1903, %v6848, %v6849
    %v6851 = vrot.slane %v5458, 1
    %v6852 = vsel %vm1903, %v6849, %v6851
    %v6853 = vrot.slane %v5459, 1
    %v6854 = vrot.slane %v5460, 1
    %v6855 = vsel %vm1903, %v6853, %v6854
    %v6856 = vrot.slane %v5461, 1
    %v6857 = vsel %vm1903, %v6854, %v6856
    %v6874 = vcombine.low %v6820, %v6830
    %v6875 = vcombine.high %v6820, %v6830
    %v6877 = vunpack.c.l.s4 1983009808
    %v6878 = vunpack.c.0.s8 %v6877
    %v6879 = vlaneseq
    %v6880 = vshrl.u32 %v6879, 7
    %v6881 = vsub.s32 %v6878, %v6880
    %v6882 = vrot.slane %v6874, %v6881
    %v6884 = vunpack.c.l.s4 1983009808
    %v6885 = vunpack.c.0.s8 %v6884
    %v6886 = vlaneseq
    %v6887 = vshrl.u32 %v6886, 7
    %v6888 = vsub.s32 %v6885, %v6887
    %v6889 = vrot.slane %v6875, %v6888
    %v6890 = vcombine.low %v6825, %v6835
    %v6891 = vcombine.high %v6825, %v6835
    %v6893 = vunpack.c.l.s4 1983009808
    %v6894 = vunpack.c.0.s8 %v6893
    %v6895 = vlaneseq
    %v6896 = vshrl.u32 %v6895, 7
    %v6897 = vsub.s32 %v6894, %v6896
    %v6898 = vrot.slane %v6890, %v6897
    %v6900 = vunpack.c.l.s4 1983009808
    %v6901 = vunpack.c.0.s8 %v6900
    %v6902 = vlaneseq
    %v6903 = vshrl.u32 %v6902, 7
    %v6904 = vsub.s32 %v6901, %v6903
    %v6905 = vrot.slane %v6891, %v6904
    %v6906 = vcombine.low %v6882, %v6898
    %v6907 = vcombine.high %v6882, %v6898
    %v6909 = vunpack.c.l.s4 1934713408
    %v6910 = vunpack.c.0.s8 %v6909
    %v6911 = vlaneseq
    %v6912 = vshrl.u32 %v6911, 7
    %v6913 = vsub.s32 %v6910, %v6912
    %v6914 = vrot.slane %v6906, %v6913
    %v6916 = vunpack.c.l.s4 1934713408
    %v6917 = vunpack.c.0.s8 %v6916
    %v6918 = vlaneseq
    %v6919 = vshrl.u32 %v6918, 7
    %v6920 = vsub.s32 %v6917, %v6919
    %v6921 = vrot.slane %v6907, %v6920
    %v6922 = vcombine.low %v6889, %v6905
    %v6923 = vcombine.high %v6889, %v6905
    %v6925 = vunpack.c.l.s4 1934713408
    %v6926 = vunpack.c.0.s8 %v6925
    %v6927 = vlaneseq
    %v6928 = vshrl.u32 %v6927, 7
    %v6929 = vsub.s32 %v6926, %v6928
    %v6930 = vrot.slane %v6922, %v6929
    %v6932 = vunpack.c.l.s4 1934713408
    %v6933 = vunpack.c.0.s8 %v6932
    %v6934 = vlaneseq
    %v6935 = vshrl.u32 %v6934, 7
    %v6936 = vsub.s32 %v6933, %v6935
    %v6937 = vrot.slane %v6923, %v6936
    %v6938 = vcombine.high %v6914, 0.0
    %v6939 = vcombine.high %v6921, 0.0
    %v6940 = vcombine.high %v6930, 0.0
    %v6941 = vcombine.high %v6937, 0.0
    %v6942 = vcombine.low %v6822, %v6832
    %v6943 = vcombine.high %v6822, %v6832
    %v6945 = vunpack.c.l.s4 1983009808
    %v6946 = vunpack.c.0.s8 %v6945
    %v6947 = vlaneseq
    %v6948 = vshrl.u32 %v6947, 7
    %v6949 = vsub.s32 %v6946, %v6948
    %v6950 = vrot.slane %v6942, %v6949
    %v6952 = vunpack.c.l.s4 1983009808
    %v6953 = vunpack.c.0.s8 %v6952
    %v6954 = vlaneseq
    %v6955 = vshrl.u32 %v6954, 7
    %v6956 = vsub.s32 %v6953, %v6955
    %v6957 = vrot.slane %v6943, %v6956
    %v6958 = vcombine.low %v6827, %v6837
    %v6959 = vcombine.high %v6827, %v6837
    %v6961 = vunpack.c.l.s4 1983009808
    %v6962 = vunpack.c.0.s8 %v6961
    %v6963 = vlaneseq
    %v6964 = vshrl.u32 %v6963, 7
    %v6965 = vsub.s32 %v6962, %v6964
    %v6966 = vrot.slane %v6958, %v6965
    %v6968 = vunpack.c.l.s4 1983009808
    %v6969 = vunpack.c.0.s8 %v6968
    %v6970 = vlaneseq
    %v6971 = vshrl.u32 %v6970, 7
    %v6972 = vsub.s32 %v6969, %v6971
    %v6973 = vrot.slane %v6959, %v6972
    %v6974 = vcombine.low %v6950, %v6966
    %v6975 = vcombine.high %v6950, %v6966
    %v6977 = vunpack.c.l.s4 1934713408
    %v6978 = vunpack.c.0.s8 %v6977
    %v6979 = vlaneseq
    %v6980 = vshrl.u32 %v6979, 7
    %v6981 = vsub.s32 %v6978, %v6980
    %v6982 = vrot.slane %v6974, %v6981
    %v6984 = vunpack.c.l.s4 1934713408
    %v6985 = vunpack.c.0.s8 %v6984
    %v6986 = vlaneseq
    %v6987 = vshrl.u32 %v6986, 7
    %v6988 = vsub.s32 %v6985, %v6987
    %v6989 = vrot.slane %v6975, %v6988
    %v6990 = vcombine.low %v6957, %v6973
    %v6991 = vcombine.high %v6957, %v6973
    %v6993 = vunpack.c.l.s4 1934713408
    %v6994 = vunpack.c.0.s8 %v6993
    %v6995 = vlaneseq
    %v6996 = vshrl.u32 %v6995, 7
    %v6997 = vsub.s32 %v6994, %v6996
    %v6998 = vrot.slane %v6990, %v6997
    %v7000 = vunpack.c.l.s4 1934713408
    %v7001 = vunpack.c.0.s8 %v7000
    %v7002 = vlaneseq
    %v7003 = vshrl.u32 %v7002, 7
    %v7004 = vsub.s32 %v7001, %v7003
    %v7005 = vrot.slane %v6991, %v7004
    %v7006 = vcombine.high %v6982, 0.0
    %v7007 = vcombine.high %v6989, 0.0
    %v7008 = vcombine.high %v6998, 0.0
    %v7009 = vcombine.high %v7005, 0.0
    %v7010 = vcombine.low %v6840, %v6850
    %v7011 = vcombine.high %v6840, %v6850
    %v7013 = vunpack.c.l.s4 1983009808
    %v7014 = vunpack.c.0.s8 %v7013
    %v7015 = vlaneseq
    %v7016 = vshrl.u32 %v7015, 7
    %v7017 = vsub.s32 %v7014, %v7016
    %v7018 = vrot.slane %v7010, %v7017
    %v7020 = vunpack.c.l.s4 1983009808
    %v7021 = vunpack.c.0.s8 %v7020
    %v7022 = vlaneseq
    %v7023 = vshrl.u32 %v7022, 7
    %v7024 = vsub.s32 %v7021, %v7023
    %v7025 = vrot.slane %v7011, %v7024
    %v7026 = vcombine.low %v6845, %v6855
    %v7027 = vcombine.high %v6845, %v6855
    %v7029 = vunpack.c.l.s4 1983009808
    %v7030 = vunpack.c.0.s8 %v7029
    %v7031 = vlaneseq
    %v7032 = vshrl.u32 %v7031, 7
    %v7033 = vsub.s32 %v7030, %v7032
    %v7034 = vrot.slane %v7026, %v7033
    %v7036 = vunpack.c.l.s4 1983009808
    %v7037 = vunpack.c.0.s8 %v7036
    %v7038 = vlaneseq
    %v7039 = vshrl.u32 %v7038, 7
    %v7040 = vsub.s32 %v7037, %v7039
    %v7041 = vrot.slane %v7027, %v7040
    %v7042 = vcombine.low %v7018, %v7034
    %v7043 = vcombine.high %v7018, %v7034
    %v7045 = vunpack.c.l.s4 1934713408
    %v7046 = vunpack.c.0.s8 %v7045
    %v7047 = vlaneseq
    %v7048 = vshrl.u32 %v7047, 7
    %v7049 = vsub.s32 %v7046, %v7048
    %v7050 = vrot.slane %v7042, %v7049
    %v7052 = vunpack.c.l.s4 1934713408
    %v7053 = vunpack.c.0.s8 %v7052
    %v7054 = vlaneseq
    %v7055 = vshrl.u32 %v7054, 7
    %v7056 = vsub.s32 %v7053, %v7055
    %v7057 = vrot.slane %v7043, %v7056
    %v7058 = vcombine.low %v7025, %v7041
    %v7059 = vcombine.high %v7025, %v7041
    %v7061 = vunpack.c.l.s4 1934713408
    %v7062 = vunpack.c.0.s8 %v7061
    %v7063 = vlaneseq
    %v7064 = vshrl.u32 %v7063, 7
    %v7065 = vsub.s32 %v7062, %v7064
    %v7066 = vrot.slane %v7058, %v7065
    %v7068 = vunpack.c.l.s4 1934713408
    %v7069 = vunpack.c.0.s8 %v7068
    %v7070 = vlaneseq
    %v7071 = vshrl.u32 %v7070, 7
    %v7072 = vsub.s32 %v7069, %v7071
    %v7073 = vrot.slane %v7059, %v7072
    %v7074 = vcombine.high %v7050, 0.0
    %v7075 = vcombine.high %v7057, 0.0
    %v7076 = vcombine.high %v7066, 0.0
    %v7077 = vcombine.high %v7073, 0.0
    %v7078 = vcombine.low %v6842, %v6852
    %v7079 = vcombine.high %v6842, %v6852
    %v7081 = vunpack.c.l.s4 1983009808
    %v7082 = vunpack.c.0.s8 %v7081
    %v7083 = vlaneseq
    %v7084 = vshrl.u32 %v7083, 7
    %v7085 = vsub.s32 %v7082, %v7084
    %v7086 = vrot.slane %v7078, %v7085
    %v7088 = vunpack.c.l.s4 1983009808
    %v7089 = vunpack.c.0.s8 %v7088
    %v7090 = vlaneseq
    %v7091 = vshrl.u32 %v7090, 7
    %v7092 = vsub.s32 %v7089, %v7091
    %v7093 = vrot.slane %v7079, %v7092
    %v7094 = vcombine.low %v6847, %v6857
    %v7095 = vcombine.high %v6847, %v6857
    %v7097 = vunpack.c.l.s4 1983009808
    %v7098 = vunpack.c.0.s8 %v7097
    %v7099 = vlaneseq
    %v7100 = vshrl.u32 %v7099, 7
    %v7101 = vsub.s32 %v7098, %v7100
    %v7102 = vrot.slane %v7094, %v7101
    %v7104 = vunpack.c.l.s4 1983009808
    %v7105 = vunpack.c.0.s8 %v7104
    %v7106 = vlaneseq
    %v7107 = vshrl.u32 %v7106, 7
    %v7108 = vsub.s32 %v7105, %v7107
    %v7109 = vrot.slane %v7095, %v7108
    %v7110 = vcombine.low %v7086, %v7102
    %v7111 = vcombine.high %v7086, %v7102
    %v7113 = vunpack.c.l.s4 1934713408
    %v7114 = vunpack.c.0.s8 %v7113
    %v7115 = vlaneseq
    %v7116 = vshrl.u32 %v7115, 7
    %v7117 = vsub.s32 %v7114, %v7116
    %v7118 = vrot.slane %v7110, %v7117
    %v7120 = vunpack.c.l.s4 1934713408
    %v7121 = vunpack.c.0.s8 %v7120
    %v7122 = vlaneseq
    %v7123 = vshrl.u32 %v7122, 7
    %v7124 = vsub.s32 %v7121, %v7123
    %v7125 = vrot.slane %v7111, %v7124
    %v7126 = vcombine.low %v7093, %v7109
    %v7127 = vcombine.high %v7093, %v7109
    %v7129 = vunpack.c.l.s4 1934713408
    %v7130 = vunpack.c.0.s8 %v7129
    %v7131 = vlaneseq
    %v7132 = vshrl.u32 %v7131, 7
    %v7133 = vsub.s32 %v7130, %v7132
    %v7134 = vrot.slane %v7126, %v7133
    %v7136 = vunpack.c.l.s4 1934713408
    %v7137 = vunpack.c.0.s8 %v7136
    %v7138 = vlaneseq
    %v7139 = vshrl.u32 %v7138, 7
    %v7140 = vsub.s32 %v7137, %v7139
    %v7141 = vrot.slane %v7127, %v7140
    %v7142 = vcombine.high %v7118, 0.0
    %v7143 = vcombine.high %v7125, 0.0
    %v7144 = vcombine.high %v7134, 0.0
    %v7145 = vcombine.high %v7141, 0.0
    %7148 = vrot.lane.b32.xlu0 %v6938, 16
    %v7149 = vpop.permute.xlu0 %7148
    %7150 = vrot.lane.b32.xlu0 %v7074, 16
    %v7151 = vpop.permute.xlu0 %7150
    %7156 = vrot.lane.b32.xlu0 %v6921, 32
    %v7157 = vpop.permute.xlu0 %7156
    %7158 = vrot.lane.b32.xlu0 %v7057, 32
    %v7159 = vpop.permute.xlu0 %7158
    %7164 = vrot.lane.b32.xlu0 %v6939, 48
    %v7165 = vpop.permute.xlu0 %7164
    %7166 = vrot.lane.b32.xlu0 %v7075, 48
    %v7167 = vpop.permute.xlu0 %7166
    %7172 = vrot.lane.b32.xlu0 %v6930, 64
    %v7173 = vpop.permute.xlu0 %7172
    %7174 = vrot.lane.b32.xlu0 %v7066, 64
    %v7175 = vpop.permute.xlu0 %7174
    %7180 = vrot.lane.b32.xlu0 %v6940, 80
    %v7181 = vpop.permute.xlu0 %7180
    %7182 = vrot.lane.b32.xlu0 %v7076, 80
    %v7183 = vpop.permute.xlu0 %7182
    %7188 = vrot.lane.b32.xlu0 %v6937, 96
    %v7189 = vpop.permute.xlu0 %7188
    %7190 = vrot.lane.b32.xlu0 %v7073, 96
    %v7191 = vpop.permute.xlu0 %7190
    %7196 = vrot.lane.b32.xlu0 %v6941, 112
    %v7197 = vpop.permute.xlu0 %7196
    %7198 = vrot.lane.b32.xlu0 %v7077, 112
    %v7199 = vpop.permute.xlu0 %7198
    %7204 = vrot.lane.b32.xlu0 %v7006, 16
    %v7205 = vpop.permute.xlu0 %7204
    %7206 = vrot.lane.b32.xlu0 %v7142, 16
    %v7207 = vpop.permute.xlu0 %7206
    %7212 = vrot.lane.b32.xlu0 %v6989, 32
    %v7213 = vpop.permute.xlu0 %7212
    %7214 = vrot.lane.b32.xlu0 %v7125, 32
    %v7215 = vpop.permute.xlu0 %7214
    %7220 = vrot.lane.b32.xlu0 %v7007, 48
    %v7221 = vpop.permute.xlu0 %7220
    %7222 = vrot.lane.b32.xlu0 %v7143, 48
    %v7223 = vpop.permute.xlu0 %7222
    %7228 = vrot.lane.b32.xlu0 %v6998, 64
    %v7229 = vpop.permute.xlu0 %7228
    %7230 = vrot.lane.b32.xlu0 %v7134, 64
    %v7231 = vpop.permute.xlu0 %7230
    %7236 = vrot.lane.b32.xlu0 %v7008, 80
    %v7237 = vpop.permute.xlu0 %7236
    %7238 = vrot.lane.b32.xlu0 %v7144, 80
    %v7239 = vpop.permute.xlu0 %7238
    %7244 = vrot.lane.b32.xlu0 %v7005, 96
    %v7245 = vpop.permute.xlu0 %7244
    %7246 = vrot.lane.b32.xlu0 %v7141, 96
    %v7247 = vpop.permute.xlu0 %7246
    %7252 = vrot.lane.b32.xlu0 %v7009, 112
    %v7253 = vpop.permute.xlu0 %7252
    %7254 = vrot.lane.b32.xlu0 %v7145, 112
    %v7255 = vpop.permute.xlu0 %7254
    %v7258 = vsel %vm924, %v6914, %v7149
    %v7259 = vsel %vm924, %v7050, %v7151
    %v7260 = vsel %vm927, %v7258, %v7157
    %v7261 = vsel %vm927, %v7259, %v7159
    %v7262 = vsel %vm930, %v7260, %v7165
    %v7263 = vsel %vm930, %v7261, %v7167
    %v7264 = vsel %vm933, %v7262, %v7173
    %v7265 = vsel %vm933, %v7263, %v7175
    %v7266 = vsel %vm936, %v7264, %v7181
    %v7267 = vsel %vm936, %v7265, %v7183
    %v7268 = vsel %vm939, %v7266, %v7189
    %v7269 = vsel %vm939, %v7267, %v7191
    %v7270 = vsel %vm942, %v7268, %v7197
    %v7271 = vsel %vm942, %v7269, %v7199
    %v7272 = vsel %vm924, %v6982, %v7205
    %v7273 = vsel %vm924, %v7118, %v7207
    %v7274 = vsel %vm927, %v7272, %v7213
    %v7275 = vsel %vm927, %v7273, %v7215
    %v7276 = vsel %vm930, %v7274, %v7221
    %v7277 = vsel %vm930, %v7275, %v7223
    %v7278 = vsel %vm933, %v7276, %v7229
    %v7279 = vsel %vm933, %v7277, %v7231
    %v7280 = vsel %vm936, %v7278, %v7237
    %v7281 = vsel %vm936, %v7279, %v7239
    %v7282 = vsel %vm939, %v7280, %v7245
    %v7283 = vsel %vm939, %v7281, %v7247
    %v7284 = vsel %vm942, %v7282, %v7253
    %v7285 = vsel %vm942, %v7283, %v7255
    %7286 = vrot.lane.b32.xlu0 %v6820, 127
    %v7287 = vpop.permute.xlu0 %7286
    %7288 = vrot.lane.b32.xlu0 %v6822, 127
    %v7289 = vpop.permute.xlu0 %7288
    %7290 = vrot.lane.b32.xlu0 %v6825, 127
    %v7291 = vpop.permute.xlu0 %7290
    %7292 = vrot.lane.b32.xlu0 %v6827, 127
    %v7293 = vpop.permute.xlu0 %7292
    %7294 = vrot.lane.b32.xlu0 %v6830, 127
    %v7295 = vpop.permute.xlu0 %7294
    %7296 = vrot.lane.b32.xlu0 %v6832, 127
    %v7297 = vpop.permute.xlu0 %7296
    %7298 = vrot.lane.b32.xlu0 %v6835, 127
    %v7299 = vpop.permute.xlu0 %7298
    %7300 = vrot.lane.b32.xlu0 %v6837, 127
    %v7301 = vpop.permute.xlu0 %7300
    %7302 = vrot.lane.b32.xlu0 %v6840, 127
    %v7303 = vpop.permute.xlu0 %7302
    %7304 = vrot.lane.b32.xlu0 %v6842, 127
    %v7305 = vpop.permute.xlu0 %7304
    %7306 = vrot.lane.b32.xlu0 %v6845, 127
    %v7307 = vpop.permute.xlu0 %7306
    %7308 = vrot.lane.b32.xlu0 %v6847, 127
    %v7309 = vpop.permute.xlu0 %7308
    %7310 = vrot.lane.b32.xlu0 %v6850, 127
    %v7311 = vpop.permute.xlu0 %7310
    %7312 = vrot.lane.b32.xlu0 %v6852, 127
    %v7313 = vpop.permute.xlu0 %7312
    %7314 = vrot.lane.b32.xlu0 %v6855, 127
    %v7315 = vpop.permute.xlu0 %7314
    %7316 = vrot.lane.b32.xlu0 %v6857, 127
    %v7317 = vpop.permute.xlu0 %7316
    %v7334 = vcombine.low %v7287, %v7295
    %v7335 = vcombine.high %v7287, %v7295
    %v7337 = vunpack.c.l.s4 1983009808
    %v7338 = vunpack.c.0.s8 %v7337
    %v7339 = vlaneseq
    %v7340 = vshrl.u32 %v7339, 7
    %v7341 = vsub.s32 %v7338, %v7340
    %v7342 = vrot.slane %v7334, %v7341
    %v7344 = vunpack.c.l.s4 1983009808
    %v7345 = vunpack.c.0.s8 %v7344
    %v7346 = vlaneseq
    %v7347 = vshrl.u32 %v7346, 7
    %v7348 = vsub.s32 %v7345, %v7347
    %v7349 = vrot.slane %v7335, %v7348
    %v7350 = vcombine.low %v7291, %v7299
    %v7351 = vcombine.high %v7291, %v7299
    %v7353 = vunpack.c.l.s4 1983009808
    %v7354 = vunpack.c.0.s8 %v7353
    %v7355 = vlaneseq
    %v7356 = vshrl.u32 %v7355, 7
    %v7357 = vsub.s32 %v7354, %v7356
    %v7358 = vrot.slane %v7350, %v7357
    %v7360 = vunpack.c.l.s4 1983009808
    %v7361 = vunpack.c.0.s8 %v7360
    %v7362 = vlaneseq
    %v7363 = vshrl.u32 %v7362, 7
    %v7364 = vsub.s32 %v7361, %v7363
    %v7365 = vrot.slane %v7351, %v7364
    %v7366 = vcombine.low %v7342, %v7358
    %v7367 = vcombine.high %v7342, %v7358
    %v7369 = vunpack.c.l.s4 1934713408
    %v7370 = vunpack.c.0.s8 %v7369
    %v7371 = vlaneseq
    %v7372 = vshrl.u32 %v7371, 7
    %v7373 = vsub.s32 %v7370, %v7372
    %v7374 = vrot.slane %v7366, %v7373
    %v7376 = vunpack.c.l.s4 1934713408
    %v7377 = vunpack.c.0.s8 %v7376
    %v7378 = vlaneseq
    %v7379 = vshrl.u32 %v7378, 7
    %v7380 = vsub.s32 %v7377, %v7379
    %v7381 = vrot.slane %v7367, %v7380
    %v7382 = vcombine.low %v7349, %v7365
    %v7383 = vcombine.high %v7349, %v7365
    %v7385 = vunpack.c.l.s4 1934713408
    %v7386 = vunpack.c.0.s8 %v7385
    %v7387 = vlaneseq
    %v7388 = vshrl.u32 %v7387, 7
    %v7389 = vsub.s32 %v7386, %v7388
    %v7390 = vrot.slane %v7382, %v7389
    %v7392 = vunpack.c.l.s4 1934713408
    %v7393 = vunpack.c.0.s8 %v7392
    %v7394 = vlaneseq
    %v7395 = vshrl.u32 %v7394, 7
    %v7396 = vsub.s32 %v7393, %v7395
    %v7397 = vrot.slane %v7383, %v7396
    %v7398 = vcombine.high %v7374, 0.0
    %v7399 = vcombine.high %v7381, 0.0
    %v7400 = vcombine.high %v7390, 0.0
    %v7401 = vcombine.high %v7397, 0.0
    %v7402 = vcombine.low %v7289, %v7297
    %v7403 = vcombine.high %v7289, %v7297
    %v7405 = vunpack.c.l.s4 1983009808
    %v7406 = vunpack.c.0.s8 %v7405
    %v7407 = vlaneseq
    %v7408 = vshrl.u32 %v7407, 7
    %v7409 = vsub.s32 %v7406, %v7408
    %v7410 = vrot.slane %v7402, %v7409
    %v7412 = vunpack.c.l.s4 1983009808
    %v7413 = vunpack.c.0.s8 %v7412
    %v7414 = vlaneseq
    %v7415 = vshrl.u32 %v7414, 7
    %v7416 = vsub.s32 %v7413, %v7415
    %v7417 = vrot.slane %v7403, %v7416
    %v7418 = vcombine.low %v7293, %v7301
    %v7419 = vcombine.high %v7293, %v7301
    %v7421 = vunpack.c.l.s4 1983009808
    %v7422 = vunpack.c.0.s8 %v7421
    %v7423 = vlaneseq
    %v7424 = vshrl.u32 %v7423, 7
    %v7425 = vsub.s32 %v7422, %v7424
    %v7426 = vrot.slane %v7418, %v7425
    %v7428 = vunpack.c.l.s4 1983009808
    %v7429 = vunpack.c.0.s8 %v7428
    %v7430 = vlaneseq
    %v7431 = vshrl.u32 %v7430, 7
    %v7432 = vsub.s32 %v7429, %v7431
    %v7433 = vrot.slane %v7419, %v7432
    %v7434 = vcombine.low %v7410, %v7426
    %v7435 = vcombine.high %v7410, %v7426
    %v7437 = vunpack.c.l.s4 1934713408
    %v7438 = vunpack.c.0.s8 %v7437
    %v7439 = vlaneseq
    %v7440 = vshrl.u32 %v7439, 7
    %v7441 = vsub.s32 %v7438, %v7440
    %v7442 = vrot.slane %v7434, %v7441
    %v7444 = vunpack.c.l.s4 1934713408
    %v7445 = vunpack.c.0.s8 %v7444
    %v7446 = vlaneseq
    %v7447 = vshrl.u32 %v7446, 7
    %v7448 = vsub.s32 %v7445, %v7447
    %v7449 = vrot.slane %v7435, %v7448
    %v7450 = vcombine.low %v7417, %v7433
    %v7451 = vcombine.high %v7417, %v7433
    %v7453 = vunpack.c.l.s4 1934713408
    %v7454 = vunpack.c.0.s8 %v7453
    %v7455 = vlaneseq
    %v7456 = vshrl.u32 %v7455, 7
    %v7457 = vsub.s32 %v7454, %v7456
    %v7458 = vrot.slane %v7450, %v7457
    %v7460 = vunpack.c.l.s4 1934713408
    %v7461 = vunpack.c.0.s8 %v7460
    %v7462 = vlaneseq
    %v7463 = vshrl.u32 %v7462, 7
    %v7464 = vsub.s32 %v7461, %v7463
    %v7465 = vrot.slane %v7451, %v7464
    %v7466 = vcombine.high %v7442, 0.0
    %v7467 = vcombine.high %v7449, 0.0
    %v7468 = vcombine.high %v7458, 0.0
    %v7469 = vcombine.high %v7465, 0.0
    %v7470 = vcombine.low %v7303, %v7311
    %v7471 = vcombine.high %v7303, %v7311
    %v7473 = vunpack.c.l.s4 1983009808
    %v7474 = vunpack.c.0.s8 %v7473
    %v7475 = vlaneseq
    %v7476 = vshrl.u32 %v7475, 7
    %v7477 = vsub.s32 %v7474, %v7476
    %v7478 = vrot.slane %v7470, %v7477
    %v7480 = vunpack.c.l.s4 1983009808
    %v7481 = vunpack.c.0.s8 %v7480
    %v7482 = vlaneseq
    %v7483 = vshrl.u32 %v7482, 7
    %v7484 = vsub.s32 %v7481, %v7483
    %v7485 = vrot.slane %v7471, %v7484
    %v7486 = vcombine.low %v7307, %v7315
    %v7487 = vcombine.high %v7307, %v7315
    %v7489 = vunpack.c.l.s4 1983009808
    %v7490 = vunpack.c.0.s8 %v7489
    %v7491 = vlaneseq
    %v7492 = vshrl.u32 %v7491, 7
    %v7493 = vsub.s32 %v7490, %v7492
    %v7494 = vrot.slane %v7486, %v7493
    %v7496 = vunpack.c.l.s4 1983009808
    %v7497 = vunpack.c.0.s8 %v7496
    %v7498 = vlaneseq
    %v7499 = vshrl.u32 %v7498, 7
    %v7500 = vsub.s32 %v7497, %v7499
    %v7501 = vrot.slane %v7487, %v7500
    %v7502 = vcombine.low %v7478, %v7494
    %v7503 = vcombine.high %v7478, %v7494
    %v7505 = vunpack.c.l.s4 1934713408
    %v7506 = vunpack.c.0.s8 %v7505
    %v7507 = vlaneseq
    %v7508 = vshrl.u32 %v7507, 7
    %v7509 = vsub.s32 %v7506, %v7508
    %v7510 = vrot.slane %v7502, %v7509
    %v7512 = vunpack.c.l.s4 1934713408
    %v7513 = vunpack.c.0.s8 %v7512
    %v7514 = vlaneseq
    %v7515 = vshrl.u32 %v7514, 7
    %v7516 = vsub.s32 %v7513, %v7515
    %v7517 = vrot.slane %v7503, %v7516
    %v7518 = vcombine.low %v7485, %v7501
    %v7519 = vcombine.high %v7485, %v7501
    %v7521 = vunpack.c.l.s4 1934713408
    %v7522 = vunpack.c.0.s8 %v7521
    %v7523 = vlaneseq
    %v7524 = vshrl.u32 %v7523, 7
    %v7525 = vsub.s32 %v7522, %v7524
    %v7526 = vrot.slane %v7518, %v7525
    %v7528 = vunpack.c.l.s4 1934713408
    %v7529 = vunpack.c.0.s8 %v7528
    %v7530 = vlaneseq
    %v7531 = vshrl.u32 %v7530, 7
    %v7532 = vsub.s32 %v7529, %v7531
    %v7533 = vrot.slane %v7519, %v7532
    %v7534 = vcombine.high %v7510, 0.0
    %v7535 = vcombine.high %v7517, 0.0
    %v7536 = vcombine.high %v7526, 0.0
    %v7537 = vcombine.high %v7533, 0.0
    %v7538 = vcombine.low %v7305, %v7313
    %v7539 = vcombine.high %v7305, %v7313
    %v7541 = vunpack.c.l.s4 1983009808
    %v7542 = vunpack.c.0.s8 %v7541
    %v7543 = vlaneseq
    %v7544 = vshrl.u32 %v7543, 7
    %v7545 = vsub.s32 %v7542, %v7544
    %v7546 = vrot.slane %v7538, %v7545
    %v7548 = vunpack.c.l.s4 1983009808
    %v7549 = vunpack.c.0.s8 %v7548
    %v7550 = vlaneseq
    %v7551 = vshrl.u32 %v7550, 7
    %v7552 = vsub.s32 %v7549, %v7551
    %v7553 = vrot.slane %v7539, %v7552
    %v7554 = vcombine.low %v7309, %v7317
    %v7555 = vcombine.high %v7309, %v7317
    %v7557 = vunpack.c.l.s4 1983009808
    %v7558 = vunpack.c.0.s8 %v7557
    %v7559 = vlaneseq
    %v7560 = vshrl.u32 %v7559, 7
    %v7561 = vsub.s32 %v7558, %v7560
    %v7562 = vrot.slane %v7554, %v7561
    %v7564 = vunpack.c.l.s4 1983009808
    %v7565 = vunpack.c.0.s8 %v7564
    %v7566 = vlaneseq
    %v7567 = vshrl.u32 %v7566, 7
    %v7568 = vsub.s32 %v7565, %v7567
    %v7569 = vrot.slane %v7555, %v7568
    %v7570 = vcombine.low %v7546, %v7562
    %v7571 = vcombine.high %v7546, %v7562
    %v7573 = vunpack.c.l.s4 1934713408
    %v7574 = vunpack.c.0.s8 %v7573
    %v7575 = vlaneseq
    %v7576 = vshrl.u32 %v7575, 7
    %v7577 = vsub.s32 %v7574, %v7576
    %v7578 = vrot.slane %v7570, %v7577
    %v7580 = vunpack.c.l.s4 1934713408
    %v7581 = vunpack.c.0.s8 %v7580
    %v7582 = vlaneseq
    %v7583 = vshrl.u32 %v7582, 7
    %v7584 = vsub.s32 %v7581, %v7583
    %v7585 = vrot.slane %v7571, %v7584
    %v7586 = vcombine.low %v7553, %v7569
    %v7587 = vcombine.high %v7553, %v7569
    %v7589 = vunpack.c.l.s4 1934713408
    %v7590 = vunpack.c.0.s8 %v7589
    %v7591 = vlaneseq
    %v7592 = vshrl.u32 %v7591, 7
    %v7593 = vsub.s32 %v7590, %v7592
    %v7594 = vrot.slane %v7586, %v7593
    %v7596 = vunpack.c.l.s4 1934713408
    %v7597 = vunpack.c.0.s8 %v7596
    %v7598 = vlaneseq
    %v7599 = vshrl.u32 %v7598, 7
    %v7600 = vsub.s32 %v7597, %v7599
    %v7601 = vrot.slane %v7587, %v7600
    %v7602 = vcombine.high %v7578, 0.0
    %v7603 = vcombine.high %v7585, 0.0
    %v7604 = vcombine.high %v7594, 0.0
    %v7605 = vcombine.high %v7601, 0.0
    %7608 = vrot.lane.b32.xlu0 %v7398, 16
    %v7609 = vpop.permute.xlu0 %7608
    %7610 = vrot.lane.b32.xlu0 %v7534, 16
    %v7611 = vpop.permute.xlu0 %7610
    %7616 = vrot.lane.b32.xlu0 %v7381, 32
    %v7617 = vpop.permute.xlu0 %7616
    %7618 = vrot.lane.b32.xlu0 %v7517, 32
    %v7619 = vpop.permute.xlu0 %7618
    %7624 = vrot.lane.b32.xlu0 %v7399, 48
    %v7625 = vpop.permute.xlu0 %7624
    %7626 = vrot.lane.b32.xlu0 %v7535, 48
    %v7627 = vpop.permute.xlu0 %7626
    %7632 = vrot.lane.b32.xlu0 %v7390, 64
    %v7633 = vpop.permute.xlu0 %7632
    %7634 = vrot.lane.b32.xlu0 %v7526, 64
    %v7635 = vpop.permute.xlu0 %7634
    %7640 = vrot.lane.b32.xlu0 %v7400, 80
    %v7641 = vpop.permute.xlu0 %7640
    %7642 = vrot.lane.b32.xlu0 %v7536, 80
    %v7643 = vpop.permute.xlu0 %7642
    %7648 = vrot.lane.b32.xlu0 %v7397, 96
    %v7649 = vpop.permute.xlu0 %7648
    %7650 = vrot.lane.b32.xlu0 %v7533, 96
    %v7651 = vpop.permute.xlu0 %7650
    %7656 = vrot.lane.b32.xlu0 %v7401, 112
    %v7657 = vpop.permute.xlu0 %7656
    %7658 = vrot.lane.b32.xlu0 %v7537, 112
    %v7659 = vpop.permute.xlu0 %7658
    %7664 = vrot.lane.b32.xlu0 %v7466, 16
    %v7665 = vpop.permute.xlu0 %7664
    %7666 = vrot.lane.b32.xlu0 %v7602, 16
    %v7667 = vpop.permute.xlu0 %7666
    %7672 = vrot.lane.b32.xlu0 %v7449, 32
    %v7673 = vpop.permute.xlu0 %7672
    %7674 = vrot.lane.b32.xlu0 %v7585, 32
    %v7675 = vpop.permute.xlu0 %7674
    %7680 = vrot.lane.b32.xlu0 %v7467, 48
    %v7681 = vpop.permute.xlu0 %7680
    %7682 = vrot.lane.b32.xlu0 %v7603, 48
    %v7683 = vpop.permute.xlu0 %7682
    %7688 = vrot.lane.b32.xlu0 %v7458, 64
    %v7689 = vpop.permute.xlu0 %7688
    %7690 = vrot.lane.b32.xlu0 %v7594, 64
    %v7691 = vpop.permute.xlu0 %7690
    %7696 = vrot.lane.b32.xlu0 %v7468, 80
    %v7697 = vpop.permute.xlu0 %7696
    %7698 = vrot.lane.b32.xlu0 %v7604, 80
    %v7699 = vpop.permute.xlu0 %7698
    %7704 = vrot.lane.b32.xlu0 %v7465, 96
    %v7705 = vpop.permute.xlu0 %7704
    %7706 = vrot.lane.b32.xlu0 %v7601, 96
    %v7707 = vpop.permute.xlu0 %7706
    %7712 = vrot.lane.b32.xlu0 %v7469, 112
    %v7713 = vpop.permute.xlu0 %7712
    %7714 = vrot.lane.b32.xlu0 %v7605, 112
    %v7715 = vpop.permute.xlu0 %7714
    %v7718 = vsel %vm924, %v7374, %v7609
    %v7719 = vsel %vm924, %v7510, %v7611
    %v7720 = vsel %vm927, %v7718, %v7617
    %v7721 = vsel %vm927, %v7719, %v7619
    %v7722 = vsel %vm930, %v7720, %v7625
    %v7723 = vsel %vm930, %v7721, %v7627
    %v7724 = vsel %vm933, %v7722, %v7633
    %v7725 = vsel %vm933, %v7723, %v7635
    %v7726 = vsel %vm936, %v7724, %v7641
    %v7727 = vsel %vm936, %v7725, %v7643
    %v7728 = vsel %vm939, %v7726, %v7649
    %v7729 = vsel %vm939, %v7727, %v7651
    %v7730 = vsel %vm942, %v7728, %v7657
    %v7731 = vsel %vm942, %v7729, %v7659
    %v7732 = vsel %vm924, %v7442, %v7665
    %v7733 = vsel %vm924, %v7578, %v7667
    %v7734 = vsel %vm927, %v7732, %v7673
    %v7735 = vsel %vm927, %v7733, %v7675
    %v7736 = vsel %vm930, %v7734, %v7681
    %v7737 = vsel %vm930, %v7735, %v7683
    %v7738 = vsel %vm933, %v7736, %v7689
    %v7739 = vsel %vm933, %v7737, %v7691
    %v7740 = vsel %vm936, %v7738, %v7697
    %v7741 = vsel %vm936, %v7739, %v7699
    %v7742 = vsel %vm939, %v7740, %v7705
    %v7743 = vsel %vm939, %v7741, %v7707
    %v7744 = vsel %vm942, %v7742, %v7713
    %v7745 = vsel %vm942, %v7743, %v7715
    %7746 = vrot.lane.b32.xlu0 %v6820, 126
    %v7747 = vpop.permute.xlu0 %7746
    %7748 = vrot.lane.b32.xlu0 %v6822, 126
    %v7749 = vpop.permute.xlu0 %7748
    %7750 = vrot.lane.b32.xlu0 %v6825, 126
    %v7751 = vpop.permute.xlu0 %7750
    %7752 = vrot.lane.b32.xlu0 %v6827, 126
    %v7753 = vpop.permute.xlu0 %7752
    %7754 = vrot.lane.b32.xlu0 %v6830, 126
    %v7755 = vpop.permute.xlu0 %7754
    %7756 = vrot.lane.b32.xlu0 %v6832, 126
    %v7757 = vpop.permute.xlu0 %7756
    %7758 = vrot.lane.b32.xlu0 %v6835, 126
    %v7759 = vpop.permute.xlu0 %7758
    %7760 = vrot.lane.b32.xlu0 %v6837, 126
    %v7761 = vpop.permute.xlu0 %7760
    %7762 = vrot.lane.b32.xlu0 %v6840, 126
    %v7763 = vpop.permute.xlu0 %7762
    %7764 = vrot.lane.b32.xlu0 %v6842, 126
    %v7765 = vpop.permute.xlu0 %7764
    %7766 = vrot.lane.b32.xlu0 %v6845, 126
    %v7767 = vpop.permute.xlu0 %7766
    %7768 = vrot.lane.b32.xlu0 %v6847, 126
    %v7769 = vpop.permute.xlu0 %7768
    %7770 = vrot.lane.b32.xlu0 %v6850, 126
    %v7771 = vpop.permute.xlu0 %7770
    %7772 = vrot.lane.b32.xlu0 %v6852, 126
    %v7773 = vpop.permute.xlu0 %7772
    %7774 = vrot.lane.b32.xlu0 %v6855, 126
    %v7775 = vpop.permute.xlu0 %7774
    %7776 = vrot.lane.b32.xlu0 %v6857, 126
    %v7777 = vpop.permute.xlu0 %7776
    %v7794 = vcombine.low %v7747, %v7755
    %v7795 = vcombine.high %v7747, %v7755
    %v7797 = vunpack.c.l.s4 1983009808
    %v7798 = vunpack.c.0.s8 %v7797
    %v7799 = vlaneseq
    %v7800 = vshrl.u32 %v7799, 7
    %v7801 = vsub.s32 %v7798, %v7800
    %v7802 = vrot.slane %v7794, %v7801
    %v7804 = vunpack.c.l.s4 1983009808
    %v7805 = vunpack.c.0.s8 %v7804
    %v7806 = vlaneseq
    %v7807 = vshrl.u32 %v7806, 7
    %v7808 = vsub.s32 %v7805, %v7807
    %v7809 = vrot.slane %v7795, %v7808
    %v7810 = vcombine.low %v7751, %v7759
    %v7811 = vcombine.high %v7751, %v7759
    %v7813 = vunpack.c.l.s4 1983009808
    %v7814 = vunpack.c.0.s8 %v7813
    %v7815 = vlaneseq
    %v7816 = vshrl.u32 %v7815, 7
    %v7817 = vsub.s32 %v7814, %v7816
    %v7818 = vrot.slane %v7810, %v7817
    %v7820 = vunpack.c.l.s4 1983009808
    %v7821 = vunpack.c.0.s8 %v7820
    %v7822 = vlaneseq
    %v7823 = vshrl.u32 %v7822, 7
    %v7824 = vsub.s32 %v7821, %v7823
    %v7825 = vrot.slane %v7811, %v7824
    %v7826 = vcombine.low %v7802, %v7818
    %v7827 = vcombine.high %v7802, %v7818
    %v7829 = vunpack.c.l.s4 1934713408
    %v7830 = vunpack.c.0.s8 %v7829
    %v7831 = vlaneseq
    %v7832 = vshrl.u32 %v7831, 7
    %v7833 = vsub.s32 %v7830, %v7832
    %v7834 = vrot.slane %v7826, %v7833
    %v7836 = vunpack.c.l.s4 1934713408
    %v7837 = vunpack.c.0.s8 %v7836
    %v7838 = vlaneseq
    %v7839 = vshrl.u32 %v7838, 7
    %v7840 = vsub.s32 %v7837, %v7839
    %v7841 = vrot.slane %v7827, %v7840
    %v7842 = vcombine.low %v7809, %v7825
    %v7843 = vcombine.high %v7809, %v7825
    %v7845 = vunpack.c.l.s4 1934713408
    %v7846 = vunpack.c.0.s8 %v7845
    %v7847 = vlaneseq
    %v7848 = vshrl.u32 %v7847, 7
    %v7849 = vsub.s32 %v7846, %v7848
    %v7850 = vrot.slane %v7842, %v7849
    %v7852 = vunpack.c.l.s4 1934713408
    %v7853 = vunpack.c.0.s8 %v7852
    %v7854 = vlaneseq
    %v7855 = vshrl.u32 %v7854, 7
    %v7856 = vsub.s32 %v7853, %v7855
    %v7857 = vrot.slane %v7843, %v7856
    %v7858 = vcombine.high %v7834, 0.0
    %v7859 = vcombine.high %v7841, 0.0
    %v7860 = vcombine.high %v7850, 0.0
    %v7861 = vcombine.high %v7857, 0.0
    %v7862 = vcombine.low %v7749, %v7757
    %v7863 = vcombine.high %v7749, %v7757
    %v7865 = vunpack.c.l.s4 1983009808
    %v7866 = vunpack.c.0.s8 %v7865
    %v7867 = vlaneseq
    %v7868 = vshrl.u32 %v7867, 7
    %v7869 = vsub.s32 %v7866, %v7868
    %v7870 = vrot.slane %v7862, %v7869
    %v7872 = vunpack.c.l.s4 1983009808
    %v7873 = vunpack.c.0.s8 %v7872
    %v7874 = vlaneseq
    %v7875 = vshrl.u32 %v7874, 7
    %v7876 = vsub.s32 %v7873, %v7875
    %v7877 = vrot.slane %v7863, %v7876
    %v7878 = vcombine.low %v7753, %v7761
    %v7879 = vcombine.high %v7753, %v7761
    %v7881 = vunpack.c.l.s4 1983009808
    %v7882 = vunpack.c.0.s8 %v7881
    %v7883 = vlaneseq
    %v7884 = vshrl.u32 %v7883, 7
    %v7885 = vsub.s32 %v7882, %v7884
    %v7886 = vrot.slane %v7878, %v7885
    %v7888 = vunpack.c.l.s4 1983009808
    %v7889 = vunpack.c.0.s8 %v7888
    %v7890 = vlaneseq
    %v7891 = vshrl.u32 %v7890, 7
    %v7892 = vsub.s32 %v7889, %v7891
    %v7893 = vrot.slane %v7879, %v7892
    %v7894 = vcombine.low %v7870, %v7886
    %v7895 = vcombine.high %v7870, %v7886
    %v7897 = vunpack.c.l.s4 1934713408
    %v7898 = vunpack.c.0.s8 %v7897
    %v7899 = vlaneseq
    %v7900 = vshrl.u32 %v7899, 7
    %v7901 = vsub.s32 %v7898, %v7900
    %v7902 = vrot.slane %v7894, %v7901
    %v7904 = vunpack.c.l.s4 1934713408
    %v7905 = vunpack.c.0.s8 %v7904
    %v7906 = vlaneseq
    %v7907 = vshrl.u32 %v7906, 7
    %v7908 = vsub.s32 %v7905, %v7907
    %v7909 = vrot.slane %v7895, %v7908
    %v7910 = vcombine.low %v7877, %v7893
    %v7911 = vcombine.high %v7877, %v7893
    %v7913 = vunpack.c.l.s4 1934713408
    %v7914 = vunpack.c.0.s8 %v7913
    %v7915 = vlaneseq
    %v7916 = vshrl.u32 %v7915, 7
    %v7917 = vsub.s32 %v7914, %v7916
    %v7918 = vrot.slane %v7910, %v7917
    %v7920 = vunpack.c.l.s4 1934713408
    %v7921 = vunpack.c.0.s8 %v7920
    %v7922 = vlaneseq
    %v7923 = vshrl.u32 %v7922, 7
    %v7924 = vsub.s32 %v7921, %v7923
    %v7925 = vrot.slane %v7911, %v7924
    %v7926 = vcombine.high %v7902, 0.0
    %v7927 = vcombine.high %v7909, 0.0
    %v7928 = vcombine.high %v7918, 0.0
    %v7929 = vcombine.high %v7925, 0.0
    %v7930 = vcombine.low %v7763, %v7771
    %v7931 = vcombine.high %v7763, %v7771
    %v7933 = vunpack.c.l.s4 1983009808
    %v7934 = vunpack.c.0.s8 %v7933
    %v7935 = vlaneseq
    %v7936 = vshrl.u32 %v7935, 7
    %v7937 = vsub.s32 %v7934, %v7936
    %v7938 = vrot.slane %v7930, %v7937
    %v7940 = vunpack.c.l.s4 1983009808
    %v7941 = vunpack.c.0.s8 %v7940
    %v7942 = vlaneseq
    %v7943 = vshrl.u32 %v7942, 7
    %v7944 = vsub.s32 %v7941, %v7943
    %v7945 = vrot.slane %v7931, %v7944
    %v7946 = vcombine.low %v7767, %v7775
    %v7947 = vcombine.high %v7767, %v7775
    %v7949 = vunpack.c.l.s4 1983009808
    %v7950 = vunpack.c.0.s8 %v7949
    %v7951 = vlaneseq
    %v7952 = vshrl.u32 %v7951, 7
    %v7953 = vsub.s32 %v7950, %v7952
    %v7954 = vrot.slane %v7946, %v7953
    %v7956 = vunpack.c.l.s4 1983009808
    %v7957 = vunpack.c.0.s8 %v7956
    %v7958 = vlaneseq
    %v7959 = vshrl.u32 %v7958, 7
    %v7960 = vsub.s32 %v7957, %v7959
    %v7961 = vrot.slane %v7947, %v7960
    %v7962 = vcombine.low %v7938, %v7954
    %v7963 = vcombine.high %v7938, %v7954
    %v7965 = vunpack.c.l.s4 1934713408
    %v7966 = vunpack.c.0.s8 %v7965
    %v7967 = vlaneseq
    %v7968 = vshrl.u32 %v7967, 7
    %v7969 = vsub.s32 %v7966, %v7968
    %v7970 = vrot.slane %v7962, %v7969
    %v7972 = vunpack.c.l.s4 1934713408
    %v7973 = vunpack.c.0.s8 %v7972
    %v7974 = vlaneseq
    %v7975 = vshrl.u32 %v7974, 7
    %v7976 = vsub.s32 %v7973, %v7975
    %v7977 = vrot.slane %v7963, %v7976
    %v7978 = vcombine.low %v7945, %v7961
    %v7979 = vcombine.high %v7945, %v7961
    %v7981 = vunpack.c.l.s4 1934713408
    %v7982 = vunpack.c.0.s8 %v7981
    %v7983 = vlaneseq
    %v7984 = vshrl.u32 %v7983, 7
    %v7985 = vsub.s32 %v7982, %v7984
    %v7986 = vrot.slane %v7978, %v7985
    %v7988 = vunpack.c.l.s4 1934713408
    %v7989 = vunpack.c.0.s8 %v7988
    %v7990 = vlaneseq
    %v7991 = vshrl.u32 %v7990, 7
    %v7992 = vsub.s32 %v7989, %v7991
    %v7993 = vrot.slane %v7979, %v7992
    %v7994 = vcombine.high %v7970, 0.0
    %v7995 = vcombine.high %v7977, 0.0
    %v7996 = vcombine.high %v7986, 0.0
    %v7997 = vcombine.high %v7993, 0.0
    %v7998 = vcombine.low %v7765, %v7773
    %v7999 = vcombine.high %v7765, %v7773
    %v8001 = vunpack.c.l.s4 1983009808
    %v8002 = vunpack.c.0.s8 %v8001
    %v8003 = vlaneseq
    %v8004 = vshrl.u32 %v8003, 7
    %v8005 = vsub.s32 %v8002, %v8004
    %v8006 = vrot.slane %v7998, %v8005
    %v8008 = vunpack.c.l.s4 1983009808
    %v8009 = vunpack.c.0.s8 %v8008
    %v8010 = vlaneseq
    %v8011 = vshrl.u32 %v8010, 7
    %v8012 = vsub.s32 %v8009, %v8011
    %v8013 = vrot.slane %v7999, %v8012
    %v8014 = vcombine.low %v7769, %v7777
    %v8015 = vcombine.high %v7769, %v7777
    %v8017 = vunpack.c.l.s4 1983009808
    %v8018 = vunpack.c.0.s8 %v8017
    %v8019 = vlaneseq
    %v8020 = vshrl.u32 %v8019, 7
    %v8021 = vsub.s32 %v8018, %v8020
    %v8022 = vrot.slane %v8014, %v8021
    %v8024 = vunpack.c.l.s4 1983009808
    %v8025 = vunpack.c.0.s8 %v8024
    %v8026 = vlaneseq
    %v8027 = vshrl.u32 %v8026, 7
    %v8028 = vsub.s32 %v8025, %v8027
    %v8029 = vrot.slane %v8015, %v8028
    %v8030 = vcombine.low %v8006, %v8022
    %v8031 = vcombine.high %v8006, %v8022
    %v8033 = vunpack.c.l.s4 1934713408
    %v8034 = vunpack.c.0.s8 %v8033
    %v8035 = vlaneseq
    %v8036 = vshrl.u32 %v8035, 7
    %v8037 = vsub.s32 %v8034, %v8036
    %v8038 = vrot.slane %v8030, %v8037
    %v8040 = vunpack.c.l.s4 1934713408
    %v8041 = vunpack.c.0.s8 %v8040
    %v8042 = vlaneseq
    %v8043 = vshrl.u32 %v8042, 7
    %v8044 = vsub.s32 %v8041, %v8043
    %v8045 = vrot.slane %v8031, %v8044
    %v8046 = vcombine.low %v8013, %v8029
    %v8047 = vcombine.high %v8013, %v8029
    %v8049 = vunpack.c.l.s4 1934713408
    %v8050 = vunpack.c.0.s8 %v8049
    %v8051 = vlaneseq
    %v8052 = vshrl.u32 %v8051, 7
    %v8053 = vsub.s32 %v8050, %v8052
    %v8054 = vrot.slane %v8046, %v8053
    %v8056 = vunpack.c.l.s4 1934713408
    %v8057 = vunpack.c.0.s8 %v8056
    %v8058 = vlaneseq
    %v8059 = vshrl.u32 %v8058, 7
    %v8060 = vsub.s32 %v8057, %v8059
    %v8061 = vrot.slane %v8047, %v8060
    %v8062 = vcombine.high %v8038, 0.0
    %v8063 = vcombine.high %v8045, 0.0
    %v8064 = vcombine.high %v8054, 0.0
    %v8065 = vcombine.high %v8061, 0.0
    %8068 = vrot.lane.b32.xlu0 %v7858, 16
    %v8069 = vpop.permute.xlu0 %8068
    %8070 = vrot.lane.b32.xlu0 %v7994, 16
    %v8071 = vpop.permute.xlu0 %8070
    %8076 = vrot.lane.b32.xlu0 %v7841, 32
    %v8077 = vpop.permute.xlu0 %8076
    %8078 = vrot.lane.b32.xlu0 %v7977, 32
    %v8079 = vpop.permute.xlu0 %8078
    %8084 = vrot.lane.b32.xlu0 %v7859, 48
    %v8085 = vpop.permute.xlu0 %8084
    %8086 = vrot.lane.b32.xlu0 %v7995, 48
    %v8087 = vpop.permute.xlu0 %8086
    %8092 = vrot.lane.b32.xlu0 %v7850, 64
    %v8093 = vpop.permute.xlu0 %8092
    %8094 = vrot.lane.b32.xlu0 %v7986, 64
    %v8095 = vpop.permute.xlu0 %8094
    %8100 = vrot.lane.b32.xlu0 %v7860, 80
    %v8101 = vpop.permute.xlu0 %8100
    %8102 = vrot.lane.b32.xlu0 %v7996, 80
    %v8103 = vpop.permute.xlu0 %8102
    %8108 = vrot.lane.b32.xlu0 %v7857, 96
    %v8109 = vpop.permute.xlu0 %8108
    %8110 = vrot.lane.b32.xlu0 %v7993, 96
    %v8111 = vpop.permute.xlu0 %8110
    %8116 = vrot.lane.b32.xlu0 %v7861, 112
    %v8117 = vpop.permute.xlu0 %8116
    %8118 = vrot.lane.b32.xlu0 %v7997, 112
    %v8119 = vpop.permute.xlu0 %8118
    %8124 = vrot.lane.b32.xlu0 %v7926, 16
    %v8125 = vpop.permute.xlu0 %8124
    %8126 = vrot.lane.b32.xlu0 %v8062, 16
    %v8127 = vpop.permute.xlu0 %8126
    %8132 = vrot.lane.b32.xlu0 %v7909, 32
    %v8133 = vpop.permute.xlu0 %8132
    %8134 = vrot.lane.b32.xlu0 %v8045, 32
    %v8135 = vpop.permute.xlu0 %8134
    %8140 = vrot.lane.b32.xlu0 %v7927, 48
    %v8141 = vpop.permute.xlu0 %8140
    %8142 = vrot.lane.b32.xlu0 %v8063, 48
    %v8143 = vpop.permute.xlu0 %8142
    %8148 = vrot.lane.b32.xlu0 %v7918, 64
    %v8149 = vpop.permute.xlu0 %8148
    %8150 = vrot.lane.b32.xlu0 %v8054, 64
    %v8151 = vpop.permute.xlu0 %8150
    %8156 = vrot.lane.b32.xlu0 %v7928, 80
    %v8157 = vpop.permute.xlu0 %8156
    %8158 = vrot.lane.b32.xlu0 %v8064, 80
    %v8159 = vpop.permute.xlu0 %8158
    %8164 = vrot.lane.b32.xlu0 %v7925, 96
    %v8165 = vpop.permute.xlu0 %8164
    %8166 = vrot.lane.b32.xlu0 %v8061, 96
    %v8167 = vpop.permute.xlu0 %8166
    %8172 = vrot.lane.b32.xlu0 %v7929, 112
    %v8173 = vpop.permute.xlu0 %8172
    %8174 = vrot.lane.b32.xlu0 %v8065, 112
    %v8175 = vpop.permute.xlu0 %8174
    %v8178 = vsel %vm924, %v7834, %v8069
    %v8179 = vsel %vm924, %v7970, %v8071
    %v8180 = vsel %vm927, %v8178, %v8077
    %v8181 = vsel %vm927, %v8179, %v8079
    %v8182 = vsel %vm930, %v8180, %v8085
    %v8183 = vsel %vm930, %v8181, %v8087
    %v8184 = vsel %vm933, %v8182, %v8093
    %v8185 = vsel %vm933, %v8183, %v8095
    %v8186 = vsel %vm936, %v8184, %v8101
    %v8187 = vsel %vm936, %v8185, %v8103
    %v8188 = vsel %vm939, %v8186, %v8109
    %v8189 = vsel %vm939, %v8187, %v8111
    %v8190 = vsel %vm942, %v8188, %v8117
    %v8191 = vsel %vm942, %v8189, %v8119
    %v8192 = vsel %vm924, %v7902, %v8125
    %v8193 = vsel %vm924, %v8038, %v8127
    %v8194 = vsel %vm927, %v8192, %v8133
    %v8195 = vsel %vm927, %v8193, %v8135
    %v8196 = vsel %vm930, %v8194, %v8141
    %v8197 = vsel %vm930, %v8195, %v8143
    %v8198 = vsel %vm933, %v8196, %v8149
    %v8199 = vsel %vm933, %v8197, %v8151
    %v8200 = vsel %vm936, %v8198, %v8157
    %v8201 = vsel %vm936, %v8199, %v8159
    %v8202 = vsel %vm939, %v8200, %v8165
    %v8203 = vsel %vm939, %v8201, %v8167
    %v8204 = vsel %vm942, %v8202, %v8173
    %v8205 = vsel %vm942, %v8203, %v8175
    %v8206 = vrot.slane %v5438, 2
    %v8207 = vrot.slane %v5439, 2
    %v8208 = vsel %vm3292, %v8206, %v8207
    %v8209 = vrot.slane %v5440, 2
    %v8210 = vsel %vm3292, %v8207, %v8209
    %v8211 = vrot.slane %v5441, 2
    %v8212 = vrot.slane %v5442, 2
    %v8213 = vsel %vm3292, %v8211, %v8212
    %v8214 = vrot.slane %v5443, 2
    %v8215 = vsel %vm3292, %v8212, %v8214
    %v8216 = vrot.slane %v5444, 2
    %v8217 = vrot.slane %v5445, 2
    %v8218 = vsel %vm3292, %v8216, %v8217
    %v8219 = vrot.slane %v5446, 2
    %v8220 = vsel %vm3292, %v8217, %v8219
    %v8221 = vrot.slane %v5447, 2
    %v8222 = vrot.slane %v5448, 2
    %v8223 = vsel %vm3292, %v8221, %v8222
    %v8224 = vrot.slane %v5449, 2
    %v8225 = vsel %vm3292, %v8222, %v8224
    %v8226 = vrot.slane %v5450, 2
    %v8227 = vrot.slane %v5451, 2
    %v8228 = vsel %vm3292, %v8226, %v8227
    %v8229 = vrot.slane %v5452, 2
    %v8230 = vsel %vm3292, %v8227, %v8229
    %v8231 = vrot.slane %v5453, 2
    %v8232 = vrot.slane %v5454, 2
    %v8233 = vsel %vm3292, %v8231, %v8232
    %v8234 = vrot.slane %v5455, 2
    %v8235 = vsel %vm3292, %v8232, %v8234
    %v8236 = vrot.slane %v5456, 2
    %v8237 = vrot.slane %v5457, 2
    %v8238 = vsel %vm3292, %v8236, %v8237
    %v8239 = vrot.slane %v5458, 2
    %v8240 = vsel %vm3292, %v8237, %v8239
    %v8241 = vrot.slane %v5459, 2
    %v8242 = vrot.slane %v5460, 2
    %v8243 = vsel %vm3292, %v8241, %v8242
    %v8244 = vrot.slane %v5461, 2
    %v8245 = vsel %vm3292, %v8242, %v8244
    %v8262 = vcombine.low %v8208, %v8218
    %v8263 = vcombine.high %v8208, %v8218
    %v8265 = vunpack.c.l.s4 1983009808
    %v8266 = vunpack.c.0.s8 %v8265
    %v8267 = vlaneseq
    %v8268 = vshrl.u32 %v8267, 7
    %v8269 = vsub.s32 %v8266, %v8268
    %v8270 = vrot.slane %v8262, %v8269
    %v8272 = vunpack.c.l.s4 1983009808
    %v8273 = vunpack.c.0.s8 %v8272
    %v8274 = vlaneseq
    %v8275 = vshrl.u32 %v8274, 7
    %v8276 = vsub.s32 %v8273, %v8275
    %v8277 = vrot.slane %v8263, %v8276
    %v8278 = vcombine.low %v8213, %v8223
    %v8279 = vcombine.high %v8213, %v8223
    %v8281 = vunpack.c.l.s4 1983009808
    %v8282 = vunpack.c.0.s8 %v8281
    %v8283 = vlaneseq
    %v8284 = vshrl.u32 %v8283, 7
    %v8285 = vsub.s32 %v8282, %v8284
    %v8286 = vrot.slane %v8278, %v8285
    %v8288 = vunpack.c.l.s4 1983009808
    %v8289 = vunpack.c.0.s8 %v8288
    %v8290 = vlaneseq
    %v8291 = vshrl.u32 %v8290, 7
    %v8292 = vsub.s32 %v8289, %v8291
    %v8293 = vrot.slane %v8279, %v8292
    %v8294 = vcombine.low %v8270, %v8286
    %v8295 = vcombine.high %v8270, %v8286
    %v8297 = vunpack.c.l.s4 1934713408
    %v8298 = vunpack.c.0.s8 %v8297
    %v8299 = vlaneseq
    %v8300 = vshrl.u32 %v8299, 7
    %v8301 = vsub.s32 %v8298, %v8300
    %v8302 = vrot.slane %v8294, %v8301
    %v8304 = vunpack.c.l.s4 1934713408
    %v8305 = vunpack.c.0.s8 %v8304
    %v8306 = vlaneseq
    %v8307 = vshrl.u32 %v8306, 7
    %v8308 = vsub.s32 %v8305, %v8307
    %v8309 = vrot.slane %v8295, %v8308
    %v8310 = vcombine.low %v8277, %v8293
    %v8311 = vcombine.high %v8277, %v8293
    %v8313 = vunpack.c.l.s4 1934713408
    %v8314 = vunpack.c.0.s8 %v8313
    %v8315 = vlaneseq
    %v8316 = vshrl.u32 %v8315, 7
    %v8317 = vsub.s32 %v8314, %v8316
    %v8318 = vrot.slane %v8310, %v8317
    %v8320 = vunpack.c.l.s4 1934713408
    %v8321 = vunpack.c.0.s8 %v8320
    %v8322 = vlaneseq
    %v8323 = vshrl.u32 %v8322, 7
    %v8324 = vsub.s32 %v8321, %v8323
    %v8325 = vrot.slane %v8311, %v8324
    %v8326 = vcombine.high %v8302, 0.0
    %v8327 = vcombine.high %v8309, 0.0
    %v8328 = vcombine.high %v8318, 0.0
    %v8329 = vcombine.high %v8325, 0.0
    %v8330 = vcombine.low %v8210, %v8220
    %v8331 = vcombine.high %v8210, %v8220
    %v8333 = vunpack.c.l.s4 1983009808
    %v8334 = vunpack.c.0.s8 %v8333
    %v8335 = vlaneseq
    %v8336 = vshrl.u32 %v8335, 7
    %v8337 = vsub.s32 %v8334, %v8336
    %v8338 = vrot.slane %v8330, %v8337
    %v8340 = vunpack.c.l.s4 1983009808
    %v8341 = vunpack.c.0.s8 %v8340
    %v8342 = vlaneseq
    %v8343 = vshrl.u32 %v8342, 7
    %v8344 = vsub.s32 %v8341, %v8343
    %v8345 = vrot.slane %v8331, %v8344
    %v8346 = vcombine.low %v8215, %v8225
    %v8347 = vcombine.high %v8215, %v8225
    %v8349 = vunpack.c.l.s4 1983009808
    %v8350 = vunpack.c.0.s8 %v8349
    %v8351 = vlaneseq
    %v8352 = vshrl.u32 %v8351, 7
    %v8353 = vsub.s32 %v8350, %v8352
    %v8354 = vrot.slane %v8346, %v8353
    %v8356 = vunpack.c.l.s4 1983009808
    %v8357 = vunpack.c.0.s8 %v8356
    %v8358 = vlaneseq
    %v8359 = vshrl.u32 %v8358, 7
    %v8360 = vsub.s32 %v8357, %v8359
    %v8361 = vrot.slane %v8347, %v8360
    %v8362 = vcombine.low %v8338, %v8354
    %v8363 = vcombine.high %v8338, %v8354
    %v8365 = vunpack.c.l.s4 1934713408
    %v8366 = vunpack.c.0.s8 %v8365
    %v8367 = vlaneseq
    %v8368 = vshrl.u32 %v8367, 7
    %v8369 = vsub.s32 %v8366, %v8368
    %v8370 = vrot.slane %v8362, %v8369
    %v8372 = vunpack.c.l.s4 1934713408
    %v8373 = vunpack.c.0.s8 %v8372
    %v8374 = vlaneseq
    %v8375 = vshrl.u32 %v8374, 7
    %v8376 = vsub.s32 %v8373, %v8375
    %v8377 = vrot.slane %v8363, %v8376
    %v8378 = vcombine.low %v8345, %v8361
    %v8379 = vcombine.high %v8345, %v8361
    %v8381 = vunpack.c.l.s4 1934713408
    %v8382 = vunpack.c.0.s8 %v8381
    %v8383 = vlaneseq
    %v8384 = vshrl.u32 %v8383, 7
    %v8385 = vsub.s32 %v8382, %v8384
    %v8386 = vrot.slane %v8378, %v8385
    %v8388 = vunpack.c.l.s4 1934713408
    %v8389 = vunpack.c.0.s8 %v8388
    %v8390 = vlaneseq
    %v8391 = vshrl.u32 %v8390, 7
    %v8392 = vsub.s32 %v8389, %v8391
    %v8393 = vrot.slane %v8379, %v8392
    %v8394 = vcombine.high %v8370, 0.0
    %v8395 = vcombine.high %v8377, 0.0
    %v8396 = vcombine.high %v8386, 0.0
    %v8397 = vcombine.high %v8393, 0.0
    %v8398 = vcombine.low %v8228, %v8238
    %v8399 = vcombine.high %v8228, %v8238
    %v8401 = vunpack.c.l.s4 1983009808
    %v8402 = vunpack.c.0.s8 %v8401
    %v8403 = vlaneseq
    %v8404 = vshrl.u32 %v8403, 7
    %v8405 = vsub.s32 %v8402, %v8404
    %v8406 = vrot.slane %v8398, %v8405
    %v8408 = vunpack.c.l.s4 1983009808
    %v8409 = vunpack.c.0.s8 %v8408
    %v8410 = vlaneseq
    %v8411 = vshrl.u32 %v8410, 7
    %v8412 = vsub.s32 %v8409, %v8411
    %v8413 = vrot.slane %v8399, %v8412
    %v8414 = vcombine.low %v8233, %v8243
    %v8415 = vcombine.high %v8233, %v8243
    %v8417 = vunpack.c.l.s4 1983009808
    %v8418 = vunpack.c.0.s8 %v8417
    %v8419 = vlaneseq
    %v8420 = vshrl.u32 %v8419, 7
    %v8421 = vsub.s32 %v8418, %v8420
    %v8422 = vrot.slane %v8414, %v8421
    %v8424 = vunpack.c.l.s4 1983009808
    %v8425 = vunpack.c.0.s8 %v8424
    %v8426 = vlaneseq
    %v8427 = vshrl.u32 %v8426, 7
    %v8428 = vsub.s32 %v8425, %v8427
    %v8429 = vrot.slane %v8415, %v8428
    %v8430 = vcombine.low %v8406, %v8422
    %v8431 = vcombine.high %v8406, %v8422
    %v8433 = vunpack.c.l.s4 1934713408
    %v8434 = vunpack.c.0.s8 %v8433
    %v8435 = vlaneseq
    %v8436 = vshrl.u32 %v8435, 7
    %v8437 = vsub.s32 %v8434, %v8436
    %v8438 = vrot.slane %v8430, %v8437
    %v8440 = vunpack.c.l.s4 1934713408
    %v8441 = vunpack.c.0.s8 %v8440
    %v8442 = vlaneseq
    %v8443 = vshrl.u32 %v8442, 7
    %v8444 = vsub.s32 %v8441, %v8443
    %v8445 = vrot.slane %v8431, %v8444
    %v8446 = vcombine.low %v8413, %v8429
    %v8447 = vcombine.high %v8413, %v8429
    %v8449 = vunpack.c.l.s4 1934713408
    %v8450 = vunpack.c.0.s8 %v8449
    %v8451 = vlaneseq
    %v8452 = vshrl.u32 %v8451, 7
    %v8453 = vsub.s32 %v8450, %v8452
    %v8454 = vrot.slane %v8446, %v8453
    %v8456 = vunpack.c.l.s4 1934713408
    %v8457 = vunpack.c.0.s8 %v8456
    %v8458 = vlaneseq
    %v8459 = vshrl.u32 %v8458, 7
    %v8460 = vsub.s32 %v8457, %v8459
    %v8461 = vrot.slane %v8447, %v8460
    %v8462 = vcombine.high %v8438, 0.0
    %v8463 = vcombine.high %v8445, 0.0
    %v8464 = vcombine.high %v8454, 0.0
    %v8465 = vcombine.high %v8461, 0.0
    %v8466 = vcombine.low %v8230, %v8240
    %v8467 = vcombine.high %v8230, %v8240
    %v8469 = vunpack.c.l.s4 1983009808
    %v8470 = vunpack.c.0.s8 %v8469
    %v8471 = vlaneseq
    %v8472 = vshrl.u32 %v8471, 7
    %v8473 = vsub.s32 %v8470, %v8472
    %v8474 = vrot.slane %v8466, %v8473
    %v8476 = vunpack.c.l.s4 1983009808
    %v8477 = vunpack.c.0.s8 %v8476
    %v8478 = vlaneseq
    %v8479 = vshrl.u32 %v8478, 7
    %v8480 = vsub.s32 %v8477, %v8479
    %v8481 = vrot.slane %v8467, %v8480
    %v8482 = vcombine.low %v8235, %v8245
    %v8483 = vcombine.high %v8235, %v8245
    %v8485 = vunpack.c.l.s4 1983009808
    %v8486 = vunpack.c.0.s8 %v8485
    %v8487 = vlaneseq
    %v8488 = vshrl.u32 %v8487, 7
    %v8489 = vsub.s32 %v8486, %v8488
    %v8490 = vrot.slane %v8482, %v8489
    %v8492 = vunpack.c.l.s4 1983009808
    %v8493 = vunpack.c.0.s8 %v8492
    %v8494 = vlaneseq
    %v8495 = vshrl.u32 %v8494, 7
    %v8496 = vsub.s32 %v8493, %v8495
    %v8497 = vrot.slane %v8483, %v8496
    %v8498 = vcombine.low %v8474, %v8490
    %v8499 = vcombine.high %v8474, %v8490
    %v8501 = vunpack.c.l.s4 1934713408
    %v8502 = vunpack.c.0.s8 %v8501
    %v8503 = vlaneseq
    %v8504 = vshrl.u32 %v8503, 7
    %v8505 = vsub.s32 %v8502, %v8504
    %v8506 = vrot.slane %v8498, %v8505
    %v8508 = vunpack.c.l.s4 1934713408
    %v8509 = vunpack.c.0.s8 %v8508
    %v8510 = vlaneseq
    %v8511 = vshrl.u32 %v8510, 7
    %v8512 = vsub.s32 %v8509, %v8511
    %v8513 = vrot.slane %v8499, %v8512
    %v8514 = vcombine.low %v8481, %v8497
    %v8515 = vcombine.high %v8481, %v8497
    %v8517 = vunpack.c.l.s4 1934713408
    %v8518 = vunpack.c.0.s8 %v8517
    %v8519 = vlaneseq
    %v8520 = vshrl.u32 %v8519, 7
    %v8521 = vsub.s32 %v8518, %v8520
    %v8522 = vrot.slane %v8514, %v8521
    %v8524 = vunpack.c.l.s4 1934713408
    %v8525 = vunpack.c.0.s8 %v8524
    %v8526 = vlaneseq
    %v8527 = vshrl.u32 %v8526, 7
    %v8528 = vsub.s32 %v8525, %v8527
    %v8529 = vrot.slane %v8515, %v8528
    %v8530 = vcombine.high %v8506, 0.0
    %v8531 = vcombine.high %v8513, 0.0
    %v8532 = vcombine.high %v8522, 0.0
    %v8533 = vcombine.high %v8529, 0.0
    %8536 = vrot.lane.b32.xlu0 %v8326, 16
    %v8537 = vpop.permute.xlu0 %8536
    %8538 = vrot.lane.b32.xlu0 %v8462, 16
    %v8539 = vpop.permute.xlu0 %8538
    %8544 = vrot.lane.b32.xlu0 %v8309, 32
    %v8545 = vpop.permute.xlu0 %8544
    %8546 = vrot.lane.b32.xlu0 %v8445, 32
    %v8547 = vpop.permute.xlu0 %8546
    %8552 = vrot.lane.b32.xlu0 %v8327, 48
    %v8553 = vpop.permute.xlu0 %8552
    %8554 = vrot.lane.b32.xlu0 %v8463, 48
    %v8555 = vpop.permute.xlu0 %8554
    %8560 = vrot.lane.b32.xlu0 %v8318, 64
    %v8561 = vpop.permute.xlu0 %8560
    %8562 = vrot.lane.b32.xlu0 %v8454, 64
    %v8563 = vpop.permute.xlu0 %8562
    %8568 = vrot.lane.b32.xlu0 %v8328, 80
    %v8569 = vpop.permute.xlu0 %8568
    %8570 = vrot.lane.b32.xlu0 %v8464, 80
    %v8571 = vpop.permute.xlu0 %8570
    %8576 = vrot.lane.b32.xlu0 %v8325, 96
    %v8577 = vpop.permute.xlu0 %8576
    %8578 = vrot.lane.b32.xlu0 %v8461, 96
    %v8579 = vpop.permute.xlu0 %8578
    %8584 = vrot.lane.b32.xlu0 %v8329, 112
    %v8585 = vpop.permute.xlu0 %8584
    %8586 = vrot.lane.b32.xlu0 %v8465, 112
    %v8587 = vpop.permute.xlu0 %8586
    %8592 = vrot.lane.b32.xlu0 %v8394, 16
    %v8593 = vpop.permute.xlu0 %8592
    %8594 = vrot.lane.b32.xlu0 %v8530, 16
    %v8595 = vpop.permute.xlu0 %8594
    %8600 = vrot.lane.b32.xlu0 %v8377, 32
    %v8601 = vpop.permute.xlu0 %8600
    %8602 = vrot.lane.b32.xlu0 %v8513, 32
    %v8603 = vpop.permute.xlu0 %8602
    %8608 = vrot.lane.b32.xlu0 %v8395, 48
    %v8609 = vpop.permute.xlu0 %8608
    %8610 = vrot.lane.b32.xlu0 %v8531, 48
    %v8611 = vpop.permute.xlu0 %8610
    %8616 = vrot.lane.b32.xlu0 %v8386, 64
    %v8617 = vpop.permute.xlu0 %8616
    %8618 = vrot.lane.b32.xlu0 %v8522, 64
    %v8619 = vpop.permute.xlu0 %8618
    %8624 = vrot.lane.b32.xlu0 %v8396, 80
    %v8625 = vpop.permute.xlu0 %8624
    %8626 = vrot.lane.b32.xlu0 %v8532, 80
    %v8627 = vpop.permute.xlu0 %8626
    %8632 = vrot.lane.b32.xlu0 %v8393, 96
    %v8633 = vpop.permute.xlu0 %8632
    %8634 = vrot.lane.b32.xlu0 %v8529, 96
    %v8635 = vpop.permute.xlu0 %8634
    %8640 = vrot.lane.b32.xlu0 %v8397, 112
    %v8641 = vpop.permute.xlu0 %8640
    %8642 = vrot.lane.b32.xlu0 %v8533, 112
    %v8643 = vpop.permute.xlu0 %8642
    %v8646 = vsel %vm924, %v8302, %v8537
    %v8647 = vsel %vm924, %v8438, %v8539
    %v8648 = vsel %vm927, %v8646, %v8545
    %v8649 = vsel %vm927, %v8647, %v8547
    %v8650 = vsel %vm930, %v8648, %v8553
    %v8651 = vsel %vm930, %v8649, %v8555
    %v8652 = vsel %vm933, %v8650, %v8561
    %v8653 = vsel %vm933, %v8651, %v8563
    %v8654 = vsel %vm936, %v8652, %v8569
    %v8655 = vsel %vm936, %v8653, %v8571
    %v8656 = vsel %vm939, %v8654, %v8577
    %v8657 = vsel %vm939, %v8655, %v8579
    %v8658 = vsel %vm942, %v8656, %v8585
    %v8659 = vsel %vm942, %v8657, %v8587
    %v8660 = vsel %vm924, %v8370, %v8593
    %v8661 = vsel %vm924, %v8506, %v8595
    %v8662 = vsel %vm927, %v8660, %v8601
    %v8663 = vsel %vm927, %v8661, %v8603
    %v8664 = vsel %vm930, %v8662, %v8609
    %v8665 = vsel %vm930, %v8663, %v8611
    %v8666 = vsel %vm933, %v8664, %v8617
    %v8667 = vsel %vm933, %v8665, %v8619
    %v8668 = vsel %vm936, %v8666, %v8625
    %v8669 = vsel %vm936, %v8667, %v8627
    %v8670 = vsel %vm939, %v8668, %v8633
    %v8671 = vsel %vm939, %v8669, %v8635
    %v8672 = vsel %vm942, %v8670, %v8641
    %v8673 = vsel %vm942, %v8671, %v8643
    %8674 = vrot.lane.b32.xlu0 %v8208, 127
    %v8675 = vpop.permute.xlu0 %8674
    %8676 = vrot.lane.b32.xlu0 %v8210, 127
    %v8677 = vpop.permute.xlu0 %8676
    %8678 = vrot.lane.b32.xlu0 %v8213, 127
    %v8679 = vpop.permute.xlu0 %8678
    %8680 = vrot.lane.b32.xlu0 %v8215, 127
    %v8681 = vpop.permute.xlu0 %8680
    %8682 = vrot.lane.b32.xlu0 %v8218, 127
    %v8683 = vpop.permute.xlu0 %8682
    %8684 = vrot.lane.b32.xlu0 %v8220, 127
    %v8685 = vpop.permute.xlu0 %8684
    %8686 = vrot.lane.b32.xlu0 %v8223, 127
    %v8687 = vpop.permute.xlu0 %8686
    %8688 = vrot.lane.b32.xlu0 %v8225, 127
    %v8689 = vpop.permute.xlu0 %8688
    %8690 = vrot.lane.b32.xlu0 %v8228, 127
    %v8691 = vpop.permute.xlu0 %8690
    %8692 = vrot.lane.b32.xlu0 %v8230, 127
    %v8693 = vpop.permute.xlu0 %8692
    %8694 = vrot.lane.b32.xlu0 %v8233, 127
    %v8695 = vpop.permute.xlu0 %8694
    %8696 = vrot.lane.b32.xlu0 %v8235, 127
    %v8697 = vpop.permute.xlu0 %8696
    %8698 = vrot.lane.b32.xlu0 %v8238, 127
    %v8699 = vpop.permute.xlu0 %8698
    %8700 = vrot.lane.b32.xlu0 %v8240, 127
    %v8701 = vpop.permute.xlu0 %8700
    %8702 = vrot.lane.b32.xlu0 %v8243, 127
    %v8703 = vpop.permute.xlu0 %8702
    %8704 = vrot.lane.b32.xlu0 %v8245, 127
    %v8705 = vpop.permute.xlu0 %8704
    %v8722 = vcombine.low %v8675, %v8683
    %v8723 = vcombine.high %v8675, %v8683
    %v8725 = vunpack.c.l.s4 1983009808
    %v8726 = vunpack.c.0.s8 %v8725
    %v8727 = vlaneseq
    %v8728 = vshrl.u32 %v8727, 7
    %v8729 = vsub.s32 %v8726, %v8728
    %v8730 = vrot.slane %v8722, %v8729
    %v8732 = vunpack.c.l.s4 1983009808
    %v8733 = vunpack.c.0.s8 %v8732
    %v8734 = vlaneseq
    %v8735 = vshrl.u32 %v8734, 7
    %v8736 = vsub.s32 %v8733, %v8735
    %v8737 = vrot.slane %v8723, %v8736
    %v8738 = vcombine.low %v8679, %v8687
    %v8739 = vcombine.high %v8679, %v8687
    %v8741 = vunpack.c.l.s4 1983009808
    %v8742 = vunpack.c.0.s8 %v8741
    %v8743 = vlaneseq
    %v8744 = vshrl.u32 %v8743, 7
    %v8745 = vsub.s32 %v8742, %v8744
    %v8746 = vrot.slane %v8738, %v8745
    %v8748 = vunpack.c.l.s4 1983009808
    %v8749 = vunpack.c.0.s8 %v8748
    %v8750 = vlaneseq
    %v8751 = vshrl.u32 %v8750, 7
    %v8752 = vsub.s32 %v8749, %v8751
    %v8753 = vrot.slane %v8739, %v8752
    %v8754 = vcombine.low %v8730, %v8746
    %v8755 = vcombine.high %v8730, %v8746
    %v8757 = vunpack.c.l.s4 1934713408
    %v8758 = vunpack.c.0.s8 %v8757
    %v8759 = vlaneseq
    %v8760 = vshrl.u32 %v8759, 7
    %v8761 = vsub.s32 %v8758, %v8760
    %v8762 = vrot.slane %v8754, %v8761
    %v8764 = vunpack.c.l.s4 1934713408
    %v8765 = vunpack.c.0.s8 %v8764
    %v8766 = vlaneseq
    %v8767 = vshrl.u32 %v8766, 7
    %v8768 = vsub.s32 %v8765, %v8767
    %v8769 = vrot.slane %v8755, %v8768
    %v8770 = vcombine.low %v8737, %v8753
    %v8771 = vcombine.high %v8737, %v8753
    %v8773 = vunpack.c.l.s4 1934713408
    %v8774 = vunpack.c.0.s8 %v8773
    %v8775 = vlaneseq
    %v8776 = vshrl.u32 %v8775, 7
    %v8777 = vsub.s32 %v8774, %v8776
    %v8778 = vrot.slane %v8770, %v8777
    %v8780 = vunpack.c.l.s4 1934713408
    %v8781 = vunpack.c.0.s8 %v8780
    %v8782 = vlaneseq
    %v8783 = vshrl.u32 %v8782, 7
    %v8784 = vsub.s32 %v8781, %v8783
    %v8785 = vrot.slane %v8771, %v8784
    %v8786 = vcombine.high %v8762, 0.0
    %v8787 = vcombine.high %v8769, 0.0
    %v8788 = vcombine.high %v8778, 0.0
    %v8789 = vcombine.high %v8785, 0.0
    %v8790 = vcombine.low %v8677, %v8685
    %v8791 = vcombine.high %v8677, %v8685
    %v8793 = vunpack.c.l.s4 1983009808
    %v8794 = vunpack.c.0.s8 %v8793
    %v8795 = vlaneseq
    %v8796 = vshrl.u32 %v8795, 7
    %v8797 = vsub.s32 %v8794, %v8796
    %v8798 = vrot.slane %v8790, %v8797
    %v8800 = vunpack.c.l.s4 1983009808
    %v8801 = vunpack.c.0.s8 %v8800
    %v8802 = vlaneseq
    %v8803 = vshrl.u32 %v8802, 7
    %v8804 = vsub.s32 %v8801, %v8803
    %v8805 = vrot.slane %v8791, %v8804
    %v8806 = vcombine.low %v8681, %v8689
    %v8807 = vcombine.high %v8681, %v8689
    %v8809 = vunpack.c.l.s4 1983009808
    %v8810 = vunpack.c.0.s8 %v8809
    %v8811 = vlaneseq
    %v8812 = vshrl.u32 %v8811, 7
    %v8813 = vsub.s32 %v8810, %v8812
    %v8814 = vrot.slane %v8806, %v8813
    %v8816 = vunpack.c.l.s4 1983009808
    %v8817 = vunpack.c.0.s8 %v8816
    %v8818 = vlaneseq
    %v8819 = vshrl.u32 %v8818, 7
    %v8820 = vsub.s32 %v8817, %v8819
    %v8821 = vrot.slane %v8807, %v8820
    %v8822 = vcombine.low %v8798, %v8814
    %v8823 = vcombine.high %v8798, %v8814
    %v8825 = vunpack.c.l.s4 1934713408
    %v8826 = vunpack.c.0.s8 %v8825
    %v8827 = vlaneseq
    %v8828 = vshrl.u32 %v8827, 7
    %v8829 = vsub.s32 %v8826, %v8828
    %v8830 = vrot.slane %v8822, %v8829
    %v8832 = vunpack.c.l.s4 1934713408
    %v8833 = vunpack.c.0.s8 %v8832
    %v8834 = vlaneseq
    %v8835 = vshrl.u32 %v8834, 7
    %v8836 = vsub.s32 %v8833, %v8835
    %v8837 = vrot.slane %v8823, %v8836
    %v8838 = vcombine.low %v8805, %v8821
    %v8839 = vcombine.high %v8805, %v8821
    %v8841 = vunpack.c.l.s4 1934713408
    %v8842 = vunpack.c.0.s8 %v8841
    %v8843 = vlaneseq
    %v8844 = vshrl.u32 %v8843, 7
    %v8845 = vsub.s32 %v8842, %v8844
    %v8846 = vrot.slane %v8838, %v8845
    %v8848 = vunpack.c.l.s4 1934713408
    %v8849 = vunpack.c.0.s8 %v8848
    %v8850 = vlaneseq
    %v8851 = vshrl.u32 %v8850, 7
    %v8852 = vsub.s32 %v8849, %v8851
    %v8853 = vrot.slane %v8839, %v8852
    %v8854 = vcombine.high %v8830, 0.0
    %v8855 = vcombine.high %v8837, 0.0
    %v8856 = vcombine.high %v8846, 0.0
    %v8857 = vcombine.high %v8853, 0.0
    %v8858 = vcombine.low %v8691, %v8699
    %v8859 = vcombine.high %v8691, %v8699
    %v8861 = vunpack.c.l.s4 1983009808
    %v8862 = vunpack.c.0.s8 %v8861
    %v8863 = vlaneseq
    %v8864 = vshrl.u32 %v8863, 7
    %v8865 = vsub.s32 %v8862, %v8864
    %v8866 = vrot.slane %v8858, %v8865
    %v8868 = vunpack.c.l.s4 1983009808
    %v8869 = vunpack.c.0.s8 %v8868
    %v8870 = vlaneseq
    %v8871 = vshrl.u32 %v8870, 7
    %v8872 = vsub.s32 %v8869, %v8871
    %v8873 = vrot.slane %v8859, %v8872
    %v8874 = vcombine.low %v8695, %v8703
    %v8875 = vcombine.high %v8695, %v8703
    %v8877 = vunpack.c.l.s4 1983009808
    %v8878 = vunpack.c.0.s8 %v8877
    %v8879 = vlaneseq
    %v8880 = vshrl.u32 %v8879, 7
    %v8881 = vsub.s32 %v8878, %v8880
    %v8882 = vrot.slane %v8874, %v8881
    %v8884 = vunpack.c.l.s4 1983009808
    %v8885 = vunpack.c.0.s8 %v8884
    %v8886 = vlaneseq
    %v8887 = vshrl.u32 %v8886, 7
    %v8888 = vsub.s32 %v8885, %v8887
    %v8889 = vrot.slane %v8875, %v8888
    %v8890 = vcombine.low %v8866, %v8882
    %v8891 = vcombine.high %v8866, %v8882
    %v8893 = vunpack.c.l.s4 1934713408
    %v8894 = vunpack.c.0.s8 %v8893
    %v8895 = vlaneseq
    %v8896 = vshrl.u32 %v8895, 7
    %v8897 = vsub.s32 %v8894, %v8896
    %v8898 = vrot.slane %v8890, %v8897
    %v8900 = vunpack.c.l.s4 1934713408
    %v8901 = vunpack.c.0.s8 %v8900
    %v8902 = vlaneseq
    %v8903 = vshrl.u32 %v8902, 7
    %v8904 = vsub.s32 %v8901, %v8903
    %v8905 = vrot.slane %v8891, %v8904
    %v8906 = vcombine.low %v8873, %v8889
    %v8907 = vcombine.high %v8873, %v8889
    %v8909 = vunpack.c.l.s4 1934713408
    %v8910 = vunpack.c.0.s8 %v8909
    %v8911 = vlaneseq
    %v8912 = vshrl.u32 %v8911, 7
    %v8913 = vsub.s32 %v8910, %v8912
    %v8914 = vrot.slane %v8906, %v8913
    %v8916 = vunpack.c.l.s4 1934713408
    %v8917 = vunpack.c.0.s8 %v8916
    %v8918 = vlaneseq
    %v8919 = vshrl.u32 %v8918, 7
    %v8920 = vsub.s32 %v8917, %v8919
    %v8921 = vrot.slane %v8907, %v8920
    %v8922 = vcombine.high %v8898, 0.0
    %v8923 = vcombine.high %v8905, 0.0
    %v8924 = vcombine.high %v8914, 0.0
    %v8925 = vcombine.high %v8921, 0.0
    %v8926 = vcombine.low %v8693, %v8701
    %v8927 = vcombine.high %v8693, %v8701
    %v8929 = vunpack.c.l.s4 1983009808
    %v8930 = vunpack.c.0.s8 %v8929
    %v8931 = vlaneseq
    %v8932 = vshrl.u32 %v8931, 7
    %v8933 = vsub.s32 %v8930, %v8932
    %v8934 = vrot.slane %v8926, %v8933
    %v8936 = vunpack.c.l.s4 1983009808
    %v8937 = vunpack.c.0.s8 %v8936
    %v8938 = vlaneseq
    %v8939 = vshrl.u32 %v8938, 7
    %v8940 = vsub.s32 %v8937, %v8939
    %v8941 = vrot.slane %v8927, %v8940
    %v8942 = vcombine.low %v8697, %v8705
    %v8943 = vcombine.high %v8697, %v8705
    %v8945 = vunpack.c.l.s4 1983009808
    %v8946 = vunpack.c.0.s8 %v8945
    %v8947 = vlaneseq
    %v8948 = vshrl.u32 %v8947, 7
    %v8949 = vsub.s32 %v8946, %v8948
    %v8950 = vrot.slane %v8942, %v8949
    %v8952 = vunpack.c.l.s4 1983009808
    %v8953 = vunpack.c.0.s8 %v8952
    %v8954 = vlaneseq
    %v8955 = vshrl.u32 %v8954, 7
    %v8956 = vsub.s32 %v8953, %v8955
    %v8957 = vrot.slane %v8943, %v8956
    %v8958 = vcombine.low %v8934, %v8950
    %v8959 = vcombine.high %v8934, %v8950
    %v8961 = vunpack.c.l.s4 1934713408
    %v8962 = vunpack.c.0.s8 %v8961
    %v8963 = vlaneseq
    %v8964 = vshrl.u32 %v8963, 7
    %v8965 = vsub.s32 %v8962, %v8964
    %v8966 = vrot.slane %v8958, %v8965
    %v8968 = vunpack.c.l.s4 1934713408
    %v8969 = vunpack.c.0.s8 %v8968
    %v8970 = vlaneseq
    %v8971 = vshrl.u32 %v8970, 7
    %v8972 = vsub.s32 %v8969, %v8971
    %v8973 = vrot.slane %v8959, %v8972
    %v8974 = vcombine.low %v8941, %v8957
    %v8975 = vcombine.high %v8941, %v8957
    %v8977 = vunpack.c.l.s4 1934713408
    %v8978 = vunpack.c.0.s8 %v8977
    %v8979 = vlaneseq
    %v8980 = vshrl.u32 %v8979, 7
    %v8981 = vsub.s32 %v8978, %v8980
    %v8982 = vrot.slane %v8974, %v8981
    %v8984 = vunpack.c.l.s4 1934713408
    %v8985 = vunpack.c.0.s8 %v8984
    %v8986 = vlaneseq
    %v8987 = vshrl.u32 %v8986, 7
    %v8988 = vsub.s32 %v8985, %v8987
    %v8989 = vrot.slane %v8975, %v8988
    %v8990 = vcombine.high %v8966, 0.0
    %v8991 = vcombine.high %v8973, 0.0
    %v8992 = vcombine.high %v8982, 0.0
    %v8993 = vcombine.high %v8989, 0.0
    %8996 = vrot.lane.b32.xlu0 %v8786, 16
    %v8997 = vpop.permute.xlu0 %8996
    %8998 = vrot.lane.b32.xlu0 %v8922, 16
    %v8999 = vpop.permute.xlu0 %8998
    %9004 = vrot.lane.b32.xlu0 %v8769, 32
    %v9005 = vpop.permute.xlu0 %9004
    %9006 = vrot.lane.b32.xlu0 %v8905, 32
    %v9007 = vpop.permute.xlu0 %9006
    %9012 = vrot.lane.b32.xlu0 %v8787, 48
    %v9013 = vpop.permute.xlu0 %9012
    %9014 = vrot.lane.b32.xlu0 %v8923, 48
    %v9015 = vpop.permute.xlu0 %9014
    %9020 = vrot.lane.b32.xlu0 %v8778, 64
    %v9021 = vpop.permute.xlu0 %9020
    %9022 = vrot.lane.b32.xlu0 %v8914, 64
    %v9023 = vpop.permute.xlu0 %9022
    %9028 = vrot.lane.b32.xlu0 %v8788, 80
    %v9029 = vpop.permute.xlu0 %9028
    %9030 = vrot.lane.b32.xlu0 %v8924, 80
    %v9031 = vpop.permute.xlu0 %9030
    %9036 = vrot.lane.b32.xlu0 %v8785, 96
    %v9037 = vpop.permute.xlu0 %9036
    %9038 = vrot.lane.b32.xlu0 %v8921, 96
    %v9039 = vpop.permute.xlu0 %9038
    %9044 = vrot.lane.b32.xlu0 %v8789, 112
    %v9045 = vpop.permute.xlu0 %9044
    %9046 = vrot.lane.b32.xlu0 %v8925, 112
    %v9047 = vpop.permute.xlu0 %9046
    %9052 = vrot.lane.b32.xlu0 %v8854, 16
    %v9053 = vpop.permute.xlu0 %9052
    %9054 = vrot.lane.b32.xlu0 %v8990, 16
    %v9055 = vpop.permute.xlu0 %9054
    %9060 = vrot.lane.b32.xlu0 %v8837, 32
    %v9061 = vpop.permute.xlu0 %9060
    %9062 = vrot.lane.b32.xlu0 %v8973, 32
    %v9063 = vpop.permute.xlu0 %9062
    %9068 = vrot.lane.b32.xlu0 %v8855, 48
    %v9069 = vpop.permute.xlu0 %9068
    %9070 = vrot.lane.b32.xlu0 %v8991, 48
    %v9071 = vpop.permute.xlu0 %9070
    %9076 = vrot.lane.b32.xlu0 %v8846, 64
    %v9077 = vpop.permute.xlu0 %9076
    %9078 = vrot.lane.b32.xlu0 %v8982, 64
    %v9079 = vpop.permute.xlu0 %9078
    %9084 = vrot.lane.b32.xlu0 %v8856, 80
    %v9085 = vpop.permute.xlu0 %9084
    %9086 = vrot.lane.b32.xlu0 %v8992, 80
    %v9087 = vpop.permute.xlu0 %9086
    %9092 = vrot.lane.b32.xlu0 %v8853, 96
    %v9093 = vpop.permute.xlu0 %9092
    %9094 = vrot.lane.b32.xlu0 %v8989, 96
    %v9095 = vpop.permute.xlu0 %9094
    %9100 = vrot.lane.b32.xlu0 %v8857, 112
    %v9101 = vpop.permute.xlu0 %9100
    %9102 = vrot.lane.b32.xlu0 %v8993, 112
    %v9103 = vpop.permute.xlu0 %9102
    %v9106 = vsel %vm924, %v8762, %v8997
    %v9107 = vsel %vm924, %v8898, %v8999
    %v9108 = vsel %vm927, %v9106, %v9005
    %v9109 = vsel %vm927, %v9107, %v9007
    %v9110 = vsel %vm930, %v9108, %v9013
    %v9111 = vsel %vm930, %v9109, %v9015
    %v9112 = vsel %vm933, %v9110, %v9021
    %v9113 = vsel %vm933, %v9111, %v9023
    %v9114 = vsel %vm936, %v9112, %v9029
    %v9115 = vsel %vm936, %v9113, %v9031
    %v9116 = vsel %vm939, %v9114, %v9037
    %v9117 = vsel %vm939, %v9115, %v9039
    %v9118 = vsel %vm942, %v9116, %v9045
    %v9119 = vsel %vm942, %v9117, %v9047
    %v9120 = vsel %vm924, %v8830, %v9053
    %v9121 = vsel %vm924, %v8966, %v9055
    %v9122 = vsel %vm927, %v9120, %v9061
    %v9123 = vsel %vm927, %v9121, %v9063
    %v9124 = vsel %vm930, %v9122, %v9069
    %v9125 = vsel %vm930, %v9123, %v9071
    %v9126 = vsel %vm933, %v9124, %v9077
    %v9127 = vsel %vm933, %v9125, %v9079
    %v9128 = vsel %vm936, %v9126, %v9085
    %v9129 = vsel %vm936, %v9127, %v9087
    %v9130 = vsel %vm939, %v9128, %v9093
    %v9131 = vsel %vm939, %v9129, %v9095
    %v9132 = vsel %vm942, %v9130, %v9101
    %v9133 = vsel %vm942, %v9131, %v9103
    %9134 = vrot.lane.b32.xlu0 %v8208, 126
    %v9135 = vpop.permute.xlu0 %9134
    %9136 = vrot.lane.b32.xlu0 %v8210, 126
    %v9137 = vpop.permute.xlu0 %9136
    %9138 = vrot.lane.b32.xlu0 %v8213, 126
    %v9139 = vpop.permute.xlu0 %9138
    %9140 = vrot.lane.b32.xlu0 %v8215, 126
    %v9141 = vpop.permute.xlu0 %9140
    %9142 = vrot.lane.b32.xlu0 %v8218, 126
    %v9143 = vpop.permute.xlu0 %9142
    %9144 = vrot.lane.b32.xlu0 %v8220, 126
    %v9145 = vpop.permute.xlu0 %9144
    %9146 = vrot.lane.b32.xlu0 %v8223, 126
    %v9147 = vpop.permute.xlu0 %9146
    %9148 = vrot.lane.b32.xlu0 %v8225, 126
    %v9149 = vpop.permute.xlu0 %9148
    %9150 = vrot.lane.b32.xlu0 %v8228, 126
    %v9151 = vpop.permute.xlu0 %9150
    %9152 = vrot.lane.b32.xlu0 %v8230, 126
    %v9153 = vpop.permute.xlu0 %9152
    %9154 = vrot.lane.b32.xlu0 %v8233, 126
    %v9155 = vpop.permute.xlu0 %9154
    %9156 = vrot.lane.b32.xlu0 %v8235, 126
    %v9157 = vpop.permute.xlu0 %9156
    %9158 = vrot.lane.b32.xlu0 %v8238, 126
    %v9159 = vpop.permute.xlu0 %9158
    %9160 = vrot.lane.b32.xlu0 %v8240, 126
    %v9161 = vpop.permute.xlu0 %9160
    %9162 = vrot.lane.b32.xlu0 %v8243, 126
    %v9163 = vpop.permute.xlu0 %9162
    %9164 = vrot.lane.b32.xlu0 %v8245, 126
    %v9165 = vpop.permute.xlu0 %9164
    %v9182 = vcombine.low %v9135, %v9143
    %v9183 = vcombine.high %v9135, %v9143
    %v9185 = vunpack.c.l.s4 1983009808
    %v9186 = vunpack.c.0.s8 %v9185
    %v9187 = vlaneseq
    %v9188 = vshrl.u32 %v9187, 7
    %v9189 = vsub.s32 %v9186, %v9188
    %v9190 = vrot.slane %v9182, %v9189
    %v9192 = vunpack.c.l.s4 1983009808
    %v9193 = vunpack.c.0.s8 %v9192
    %v9194 = vlaneseq
    %v9195 = vshrl.u32 %v9194, 7
    %v9196 = vsub.s32 %v9193, %v9195
    %v9197 = vrot.slane %v9183, %v9196
    %v9198 = vcombine.low %v9139, %v9147
    %v9199 = vcombine.high %v9139, %v9147
    %v9201 = vunpack.c.l.s4 1983009808
    %v9202 = vunpack.c.0.s8 %v9201
    %v9203 = vlaneseq
    %v9204 = vshrl.u32 %v9203, 7
    %v9205 = vsub.s32 %v9202, %v9204
    %v9206 = vrot.slane %v9198, %v9205
    %v9208 = vunpack.c.l.s4 1983009808
    %v9209 = vunpack.c.0.s8 %v9208
    %v9210 = vlaneseq
    %v9211 = vshrl.u32 %v9210, 7
    %v9212 = vsub.s32 %v9209, %v9211
    %v9213 = vrot.slane %v9199, %v9212
    %v9214 = vcombine.low %v9190, %v9206
    %v9215 = vcombine.high %v9190, %v9206
    %v9217 = vunpack.c.l.s4 1934713408
    %v9218 = vunpack.c.0.s8 %v9217
    %v9219 = vlaneseq
    %v9220 = vshrl.u32 %v9219, 7
    %v9221 = vsub.s32 %v9218, %v9220
    %v9222 = vrot.slane %v9214, %v9221
    %v9224 = vunpack.c.l.s4 1934713408
    %v9225 = vunpack.c.0.s8 %v9224
    %v9226 = vlaneseq
    %v9227 = vshrl.u32 %v9226, 7
    %v9228 = vsub.s32 %v9225, %v9227
    %v9229 = vrot.slane %v9215, %v9228
    %v9230 = vcombine.low %v9197, %v9213
    %v9231 = vcombine.high %v9197, %v9213
    %v9233 = vunpack.c.l.s4 1934713408
    %v9234 = vunpack.c.0.s8 %v9233
    %v9235 = vlaneseq
    %v9236 = vshrl.u32 %v9235, 7
    %v9237 = vsub.s32 %v9234, %v9236
    %v9238 = vrot.slane %v9230, %v9237
    %v9240 = vunpack.c.l.s4 1934713408
    %v9241 = vunpack.c.0.s8 %v9240
    %v9242 = vlaneseq
    %v9243 = vshrl.u32 %v9242, 7
    %v9244 = vsub.s32 %v9241, %v9243
    %v9245 = vrot.slane %v9231, %v9244
    %v9246 = vcombine.high %v9222, 0.0
    %v9247 = vcombine.high %v9229, 0.0
    %v9248 = vcombine.high %v9238, 0.0
    %v9249 = vcombine.high %v9245, 0.0
    %v9250 = vcombine.low %v9137, %v9145
    %v9251 = vcombine.high %v9137, %v9145
    %v9253 = vunpack.c.l.s4 1983009808
    %v9254 = vunpack.c.0.s8 %v9253
    %v9255 = vlaneseq
    %v9256 = vshrl.u32 %v9255, 7
    %v9257 = vsub.s32 %v9254, %v9256
    %v9258 = vrot.slane %v9250, %v9257
    %v9260 = vunpack.c.l.s4 1983009808
    %v9261 = vunpack.c.0.s8 %v9260
    %v9262 = vlaneseq
    %v9263 = vshrl.u32 %v9262, 7
    %v9264 = vsub.s32 %v9261, %v9263
    %v9265 = vrot.slane %v9251, %v9264
    %v9266 = vcombine.low %v9141, %v9149
    %v9267 = vcombine.high %v9141, %v9149
    %v9269 = vunpack.c.l.s4 1983009808
    %v9270 = vunpack.c.0.s8 %v9269
    %v9271 = vlaneseq
    %v9272 = vshrl.u32 %v9271, 7
    %v9273 = vsub.s32 %v9270, %v9272
    %v9274 = vrot.slane %v9266, %v9273
    %v9276 = vunpack.c.l.s4 1983009808
    %v9277 = vunpack.c.0.s8 %v9276
    %v9278 = vlaneseq
    %v9279 = vshrl.u32 %v9278, 7
    %v9280 = vsub.s32 %v9277, %v9279
    %v9281 = vrot.slane %v9267, %v9280
    %v9282 = vcombine.low %v9258, %v9274
    %v9283 = vcombine.high %v9258, %v9274
    %v9285 = vunpack.c.l.s4 1934713408
    %v9286 = vunpack.c.0.s8 %v9285
    %v9287 = vlaneseq
    %v9288 = vshrl.u32 %v9287, 7
    %v9289 = vsub.s32 %v9286, %v9288
    %v9290 = vrot.slane %v9282, %v9289
    %v9292 = vunpack.c.l.s4 1934713408
    %v9293 = vunpack.c.0.s8 %v9292
    %v9294 = vlaneseq
    %v9295 = vshrl.u32 %v9294, 7
    %v9296 = vsub.s32 %v9293, %v9295
    %v9297 = vrot.slane %v9283, %v9296
    %v9298 = vcombine.low %v9265, %v9281
    %v9299 = vcombine.high %v9265, %v9281
    %v9301 = vunpack.c.l.s4 1934713408
    %v9302 = vunpack.c.0.s8 %v9301
    %v9303 = vlaneseq
    %v9304 = vshrl.u32 %v9303, 7
    %v9305 = vsub.s32 %v9302, %v9304
    %v9306 = vrot.slane %v9298, %v9305
    %v9308 = vunpack.c.l.s4 1934713408
    %v9309 = vunpack.c.0.s8 %v9308
    %v9310 = vlaneseq
    %v9311 = vshrl.u32 %v9310, 7
    %v9312 = vsub.s32 %v9309, %v9311
    %v9313 = vrot.slane %v9299, %v9312
    %v9314 = vcombine.high %v9290, 0.0
    %v9315 = vcombine.high %v9297, 0.0
    %v9316 = vcombine.high %v9306, 0.0
    %v9317 = vcombine.high %v9313, 0.0
    %v9318 = vcombine.low %v9151, %v9159
    %v9319 = vcombine.high %v9151, %v9159
    %v9321 = vunpack.c.l.s4 1983009808
    %v9322 = vunpack.c.0.s8 %v9321
    %v9323 = vlaneseq
    %v9324 = vshrl.u32 %v9323, 7
    %v9325 = vsub.s32 %v9322, %v9324
    %v9326 = vrot.slane %v9318, %v9325
    %v9328 = vunpack.c.l.s4 1983009808
    %v9329 = vunpack.c.0.s8 %v9328
    %v9330 = vlaneseq
    %v9331 = vshrl.u32 %v9330, 7
    %v9332 = vsub.s32 %v9329, %v9331
    %v9333 = vrot.slane %v9319, %v9332
    %v9334 = vcombine.low %v9155, %v9163
    %v9335 = vcombine.high %v9155, %v9163
    %v9337 = vunpack.c.l.s4 1983009808
    %v9338 = vunpack.c.0.s8 %v9337
    %v9339 = vlaneseq
    %v9340 = vshrl.u32 %v9339, 7
    %v9341 = vsub.s32 %v9338, %v9340
    %v9342 = vrot.slane %v9334, %v9341
    %v9344 = vunpack.c.l.s4 1983009808
    %v9345 = vunpack.c.0.s8 %v9344
    %v9346 = vlaneseq
    %v9347 = vshrl.u32 %v9346, 7
    %v9348 = vsub.s32 %v9345, %v9347
    %v9349 = vrot.slane %v9335, %v9348
    %v9350 = vcombine.low %v9326, %v9342
    %v9351 = vcombine.high %v9326, %v9342
    %v9353 = vunpack.c.l.s4 1934713408
    %v9354 = vunpack.c.0.s8 %v9353
    %v9355 = vlaneseq
    %v9356 = vshrl.u32 %v9355, 7
    %v9357 = vsub.s32 %v9354, %v9356
    %v9358 = vrot.slane %v9350, %v9357
    %v9360 = vunpack.c.l.s4 1934713408
    %v9361 = vunpack.c.0.s8 %v9360
    %v9362 = vlaneseq
    %v9363 = vshrl.u32 %v9362, 7
    %v9364 = vsub.s32 %v9361, %v9363
    %v9365 = vrot.slane %v9351, %v9364
    %v9366 = vcombine.low %v9333, %v9349
    %v9367 = vcombine.high %v9333, %v9349
    %v9369 = vunpack.c.l.s4 1934713408
    %v9370 = vunpack.c.0.s8 %v9369
    %v9371 = vlaneseq
    %v9372 = vshrl.u32 %v9371, 7
    %v9373 = vsub.s32 %v9370, %v9372
    %v9374 = vrot.slane %v9366, %v9373
    %v9376 = vunpack.c.l.s4 1934713408
    %v9377 = vunpack.c.0.s8 %v9376
    %v9378 = vlaneseq
    %v9379 = vshrl.u32 %v9378, 7
    %v9380 = vsub.s32 %v9377, %v9379
    %v9381 = vrot.slane %v9367, %v9380
    %v9382 = vcombine.high %v9358, 0.0
    %v9383 = vcombine.high %v9365, 0.0
    %v9384 = vcombine.high %v9374, 0.0
    %v9385 = vcombine.high %v9381, 0.0
    %v9386 = vcombine.low %v9153, %v9161
    %v9387 = vcombine.high %v9153, %v9161
    %v9389 = vunpack.c.l.s4 1983009808
    %v9390 = vunpack.c.0.s8 %v9389
    %v9391 = vlaneseq
    %v9392 = vshrl.u32 %v9391, 7
    %v9393 = vsub.s32 %v9390, %v9392
    %v9394 = vrot.slane %v9386, %v9393
    %v9396 = vunpack.c.l.s4 1983009808
    %v9397 = vunpack.c.0.s8 %v9396
    %v9398 = vlaneseq
    %v9399 = vshrl.u32 %v9398, 7
    %v9400 = vsub.s32 %v9397, %v9399
    %v9401 = vrot.slane %v9387, %v9400
    %v9402 = vcombine.low %v9157, %v9165
    %v9403 = vcombine.high %v9157, %v9165
    %v9405 = vunpack.c.l.s4 1983009808
    %v9406 = vunpack.c.0.s8 %v9405
    %v9407 = vlaneseq
    %v9408 = vshrl.u32 %v9407, 7
    %v9409 = vsub.s32 %v9406, %v9408
    %v9410 = vrot.slane %v9402, %v9409
    %v9412 = vunpack.c.l.s4 1983009808
    %v9413 = vunpack.c.0.s8 %v9412
    %v9414 = vlaneseq
    %v9415 = vshrl.u32 %v9414, 7
    %v9416 = vsub.s32 %v9413, %v9415
    %v9417 = vrot.slane %v9403, %v9416
    %v9418 = vcombine.low %v9394, %v9410
    %v9419 = vcombine.high %v9394, %v9410
    %v9421 = vunpack.c.l.s4 1934713408
    %v9422 = vunpack.c.0.s8 %v9421
    %v9423 = vlaneseq
    %v9424 = vshrl.u32 %v9423, 7
    %v9425 = vsub.s32 %v9422, %v9424
    %v9426 = vrot.slane %v9418, %v9425
    %v9428 = vunpack.c.l.s4 1934713408
    %v9429 = vunpack.c.0.s8 %v9428
    %v9430 = vlaneseq
    %v9431 = vshrl.u32 %v9430, 7
    %v9432 = vsub.s32 %v9429, %v9431
    %v9433 = vrot.slane %v9419, %v9432
    %v9434 = vcombine.low %v9401, %v9417
    %v9435 = vcombine.high %v9401, %v9417
    %v9437 = vunpack.c.l.s4 1934713408
    %v9438 = vunpack.c.0.s8 %v9437
    %v9439 = vlaneseq
    %v9440 = vshrl.u32 %v9439, 7
    %v9441 = vsub.s32 %v9438, %v9440
    %v9442 = vrot.slane %v9434, %v9441
    %v9444 = vunpack.c.l.s4 1934713408
    %v9445 = vunpack.c.0.s8 %v9444
    %v9446 = vlaneseq
    %v9447 = vshrl.u32 %v9446, 7
    %v9448 = vsub.s32 %v9445, %v9447
    %v9449 = vrot.slane %v9435, %v9448
    %v9450 = vcombine.high %v9426, 0.0
    %v9451 = vcombine.high %v9433, 0.0
    %v9452 = vcombine.high %v9442, 0.0
    %v9453 = vcombine.high %v9449, 0.0
    %9456 = vrot.lane.b32.xlu0 %v9246, 16
    %v9457 = vpop.permute.xlu0 %9456
    %9458 = vrot.lane.b32.xlu0 %v9382, 16
    %v9459 = vpop.permute.xlu0 %9458
    %9464 = vrot.lane.b32.xlu0 %v9229, 32
    %v9465 = vpop.permute.xlu0 %9464
    %9466 = vrot.lane.b32.xlu0 %v9365, 32
    %v9467 = vpop.permute.xlu0 %9466
    %9472 = vrot.lane.b32.xlu0 %v9247, 48
    %v9473 = vpop.permute.xlu0 %9472
    %9474 = vrot.lane.b32.xlu0 %v9383, 48
    %v9475 = vpop.permute.xlu0 %9474
    %9480 = vrot.lane.b32.xlu0 %v9238, 64
    %v9481 = vpop.permute.xlu0 %9480
    %9482 = vrot.lane.b32.xlu0 %v9374, 64
    %v9483 = vpop.permute.xlu0 %9482
    %9488 = vrot.lane.b32.xlu0 %v9248, 80
    %v9489 = vpop.permute.xlu0 %9488
    %9490 = vrot.lane.b32.xlu0 %v9384, 80
    %v9491 = vpop.permute.xlu0 %9490
    %9496 = vrot.lane.b32.xlu0 %v9245, 96
    %v9497 = vpop.permute.xlu0 %9496
    %9498 = vrot.lane.b32.xlu0 %v9381, 96
    %v9499 = vpop.permute.xlu0 %9498
    %9504 = vrot.lane.b32.xlu0 %v9249, 112
    %v9505 = vpop.permute.xlu0 %9504
    %9506 = vrot.lane.b32.xlu0 %v9385, 112
    %v9507 = vpop.permute.xlu0 %9506
    %9512 = vrot.lane.b32.xlu0 %v9314, 16
    %v9513 = vpop.permute.xlu0 %9512
    %9514 = vrot.lane.b32.xlu0 %v9450, 16
    %v9515 = vpop.permute.xlu0 %9514
    %9520 = vrot.lane.b32.xlu0 %v9297, 32
    %v9521 = vpop.permute.xlu0 %9520
    %9522 = vrot.lane.b32.xlu0 %v9433, 32
    %v9523 = vpop.permute.xlu0 %9522
    %9528 = vrot.lane.b32.xlu0 %v9315, 48
    %v9529 = vpop.permute.xlu0 %9528
    %9530 = vrot.lane.b32.xlu0 %v9451, 48
    %v9531 = vpop.permute.xlu0 %9530
    %9536 = vrot.lane.b32.xlu0 %v9306, 64
    %v9537 = vpop.permute.xlu0 %9536
    %9538 = vrot.lane.b32.xlu0 %v9442, 64
    %v9539 = vpop.permute.xlu0 %9538
    %9544 = vrot.lane.b32.xlu0 %v9316, 80
    %v9545 = vpop.permute.xlu0 %9544
    %9546 = vrot.lane.b32.xlu0 %v9452, 80
    %v9547 = vpop.permute.xlu0 %9546
    %9552 = vrot.lane.b32.xlu0 %v9313, 96
    %v9553 = vpop.permute.xlu0 %9552
    %9554 = vrot.lane.b32.xlu0 %v9449, 96
    %v9555 = vpop.permute.xlu0 %9554
    %9560 = vrot.lane.b32.xlu0 %v9317, 112
    %v9561 = vpop.permute.xlu0 %9560
    %9562 = vrot.lane.b32.xlu0 %v9453, 112
    %v9563 = vpop.permute.xlu0 %9562
    %v9566 = vsel %vm924, %v9222, %v9457
    %v9567 = vsel %vm924, %v9358, %v9459
    %v9568 = vsel %vm927, %v9566, %v9465
    %v9569 = vsel %vm927, %v9567, %v9467
    %v9570 = vsel %vm930, %v9568, %v9473
    %v9571 = vsel %vm930, %v9569, %v9475
    %v9572 = vsel %vm933, %v9570, %v9481
    %v9573 = vsel %vm933, %v9571, %v9483
    %v9574 = vsel %vm936, %v9572, %v9489
    %v9575 = vsel %vm936, %v9573, %v9491
    %v9576 = vsel %vm939, %v9574, %v9497
    %v9577 = vsel %vm939, %v9575, %v9499
    %v9578 = vsel %vm942, %v9576, %v9505
    %v9579 = vsel %vm942, %v9577, %v9507
    %v9580 = vsel %vm924, %v9290, %v9513
    %v9581 = vsel %vm924, %v9426, %v9515
    %v9582 = vsel %vm927, %v9580, %v9521
    %v9583 = vsel %vm927, %v9581, %v9523
    %v9584 = vsel %vm930, %v9582, %v9529
    %v9585 = vsel %vm930, %v9583, %v9531
    %v9586 = vsel %vm933, %v9584, %v9537
    %v9587 = vsel %vm933, %v9585, %v9539
    %v9588 = vsel %vm936, %v9586, %v9545
    %v9589 = vsel %vm936, %v9587, %v9547
    %v9590 = vsel %vm939, %v9588, %v9553
    %v9591 = vsel %vm939, %v9589, %v9555
    %v9592 = vsel %vm942, %v9590, %v9561
    %v9593 = vsel %vm942, %v9591, %v9563
    %v9598 = vrot.slane %v6334, 4
    %v9599 = vrot.slane %v6348, 4
    %v9600 = vrot.slane %v6335, 4
    %v9601 = vrot.slane %v6349, 4
    %v9610 = vrot.slane %v7270, 4
    %v9611 = vrot.slane %v7284, 4
    %v9612 = vrot.slane %v7271, 4
    %v9613 = vrot.slane %v7285, 4
    %v9622 = vrot.slane %v8190, 4
    %v9623 = vrot.slane %v8204, 4
    %v9624 = vrot.slane %v8191, 4
    %v9625 = vrot.slane %v8205, 4
    %v9634 = vrot.slane %v9118, 4
    %v9635 = vrot.slane %v9132, 4
    %v9636 = vrot.slane %v9119, 4
    %v9637 = vrot.slane %v9133, 4
    %v9642 = vsel %vm4729, %v5858, %v9598
    %v9643 = vsel %vm4729, %v5872, %v9599
    %v9644 = vsel %vm4729, %v5859, %v9600
    %v9645 = vsel %vm4729, %v5873, %v9601
    %v9646 = vsel %vm4729, %v6794, %v9610
    %v9647 = vsel %vm4729, %v6808, %v9611
    %v9648 = vsel %vm4729, %v6795, %v9612
    %v9649 = vsel %vm4729, %v6809, %v9613
    %v9650 = vsel %vm4729, %v7730, %v9622
    %v9651 = vsel %vm4729, %v7744, %v9623
    %v9652 = vsel %vm4729, %v7731, %v9624
    %v9653 = vsel %vm4729, %v7745, %v9625
    %v9654 = vsel %vm4729, %v8658, %v9634
    %v9655 = vsel %vm4729, %v8672, %v9635
    %v9656 = vsel %vm4729, %v8659, %v9636
    %v9657 = vsel %vm4729, %v8673, %v9637
    %v9658 = vld [vmem:[%s4] sm:$0xf]
    %v9660 = vsel %vm4747, %v9658, 0
    %v9663 = vsel %vm4729, %v9578, 0
    %v9666 = vsel %vm4729, %v9592, 0
    %9668 = vmatprep.subr.mxu0 %v9643
    %9669 = vmatpush1.msra.mxu0 %v9642
    %9670 = vmatprep.subr.mxu0 %v9647
    %9671 = vmatpush1.msra.mxu0 %v9646
    %9672 = vmatprep.subr.mxu0 %v9651
    %9673 = vmatpush1.msra.mxu0 %v9650
    %9674 = vmatprep.subr.mxu0 %v9655
    %9675 = vmatpush1.msra.mxu0 %v9654
    %9676 = vmatprep.subr.mxu0 %v9666
    %9677 = vmatpush1.msra.mxu0 %v9663
    %9678 = vmatprep.subr.mxu0 0.0
    %9679 = vmatpush1.msra.mxu0 0.0
    %9680 = vmatprep.subr.mxu0 0.0
    %9681 = vmatpush1.msra.mxu0 0.0
    %9682 = vmatprep.subr.mxu0 0.0
    %9683 = vmatpush1.msra.mxu0 0.0
    %9684 = vmatprep.subr.mxu0 0.0
    %9685 = vmatpush1.msra.mxu0 0.0
    %9686 = vmatprep.subr.mxu0 0.0
    %9687 = vmatpush1.msra.mxu0 0.0
    %9688 = vmatprep.subr.mxu0 0.0
    %9689 = vmatpush1.msra.mxu0 0.0
    %9690 = vmatprep.subr.mxu0 0.0
    %9691 = vmatpush1.msra.mxu0 0.0
    %9692 = vmatprep.subr.mxu0 0.0
    %9693 = vmatpush1.msra.mxu0 0.0
    %9694 = vmatprep.subr.mxu0 0.0
    %9695 = vmatpush1.msra.mxu0 0.0
    %9696 = vmatprep.subr.mxu0 0.0
    %9697 = vmatpush1.msra.mxu0 0.0
    %9698 = vmatprep.subr.mxu0 0.0
    %9699 = vmatpush1.msra.mxu0 0.0
    %9700 = vmatprep.subr.mxu0 0.0
    %9701 = vmatpush1.msra.mxu0 0.0
    %9702 = vmatprep.subr.mxu0 0.0
    %9703 = vmatpush1.msra.mxu0 0.0
    %9704 = vmatprep.subr.mxu0 0.0
    %9705 = vmatpush1.msra.mxu0 0.0
    %9706 = vmatprep.subr.mxu0 0.0
    %9707 = vmatpush1.msra.mxu0 0.0
    %9708 = vmatprep.subr.mxu0 0.0
    %9709 = vmatpush1.msra.mxu0 0.0
    %9710 = vmatprep.subr.mxu0 0.0
    %9711 = vmatpush1.msra.mxu0 0.0
    %9712 = vmatprep.subr.mxu0 0.0
    %9713 = vmatpush1.msra.mxu0 0.0
    %9714 = vmatprep.subr.mxu0 0.0
    %9715 = vmatpush1.msra.mxu0 0.0
    %9716 = vmatprep.subr.mxu0 0.0
    %9717 = vmatpush1.msra.mxu0 0.0
    %9718 = vmatprep.subr.mxu0 0.0
    %9719 = vmatpush1.msra.mxu0 0.0
    %9720 = vmatprep.subr.mxu0 0.0
    %9721 = vmatpush1.msra.mxu0 0.0
    %9722 = vmatprep.subr.mxu0 0.0
    %9723 = vmatpush1.msra.mxu0 0.0
    %9724 = vmatprep.subr.mxu0 0.0
    %9725 = vmatpush1.msra.mxu0 0.0
    %9726 = vmatprep.subr.mxu0 0.0
    %9727 = vmatpush1.msra.mxu0 0.0
    %9728 = vmatprep.subr.mxu0 0.0
    %9729 = vmatpush1.msra.mxu0 0.0
    %9730 = vmatprep.subr.mxu0 0.0
    %9731 = vmatpush1.msra.mxu0 0.0
    %9732 = vmatprep.mubr.f32.mxu0 0.0
    %9733 = vmatmul.mubr.f32.gmra.mrb[0].mxu0 %v9660
    %v9734 = vpop.f32.mrb[0].mxu0
    %v9735 = vadd.f32 0.0, %v9734
    %v9736 = vpop.f32.mrb[0].mxu0
    %v9737 = vadd.f32 0.0, %v9736
    %9738 = vdwg.mxu0
    %v9740 = vsel %vm4729, %v9579, 0
    %v9743 = vsel %vm4729, %v9593, 0
    %9745 = vmatprep.subr.mxu0 %v9645
    %9746 = vmatpush1.msra.mxu0 %v9644
    %9747 = vmatprep.subr.mxu0 %v9649
    %9748 = vmatpush1.msra.mxu0 %v9648
    %9749 = vmatprep.subr.mxu0 %v9653
    %9750 = vmatpush1.msra.mxu0 %v9652
    %9751 = vmatprep.subr.mxu0 %v9657
    %9752 = vmatpush1.msra.mxu0 %v9656
    %9753 = vmatprep.subr.mxu0 %v9743
    %9754 = vmatpush1.msra.mxu0 %v9740
    %9755 = vmatprep.subr.mxu0 0.0
    %9756 = vmatpush1.msra.mxu0 0.0
    %9757 = vmatprep.subr.mxu0 0.0
    %9758 = vmatpush1.msra.mxu0 0.0
    %9759 = vmatprep.subr.mxu0 0.0
    %9760 = vmatpush1.msra.mxu0 0.0
    %9761 = vmatprep.subr.mxu0 0.0
    %9762 = vmatpush1.msra.mxu0 0.0
    %9763 = vmatprep.subr.mxu0 0.0
    %9764 = vmatpush1.msra.mxu0 0.0
    %9765 = vmatprep.subr.mxu0 0.0
    %9766 = vmatpush1.msra.mxu0 0.0
    %9767 = vmatprep.subr.mxu0 0.0
    %9768 = vmatpush1.msra.mxu0 0.0
    %9769 = vmatprep.subr.mxu0 0.0
    %9770 = vmatpush1.msra.mxu0 0.0
    %9771 = vmatprep.subr.mxu0 0.0
    %9772 = vmatpush1.msra.mxu0 0.0
    %9773 = vmatprep.subr.mxu0 0.0
    %9774 = vmatpush1.msra.mxu0 0.0
    %9775 = vmatprep.subr.mxu0 0.0
    %9776 = vmatpush1.msra.mxu0 0.0
    %9777 = vmatprep.subr.mxu0 0.0
    %9778 = vmatpush1.msra.mxu0 0.0
    %9779 = vmatprep.subr.mxu0 0.0
    %9780 = vmatpush1.msra.mxu0 0.0
    %9781 = vmatprep.subr.mxu0 0.0
    %9782 = vmatpush1.msra.mxu0 0.0
    %9783 = vmatprep.subr.mxu0 0.0
    %9784 = vmatpush1.msra.mxu0 0.0
    %9785 = vmatprep.subr.mxu0 0.0
    %9786 = vmatpush1.msra.mxu0 0.0
    %9787 = vmatprep.subr.mxu0 0.0
    %9788 = vmatpush1.msra.mxu0 0.0
    %9789 = vmatprep.subr.mxu0 0.0
    %9790 = vmatpush1.msra.mxu0 0.0
    %9791 = vmatprep.subr.mxu0 0.0
    %9792 = vmatpush1.msra.mxu0 0.0
    %9793 = vmatprep.subr.mxu0 0.0
    %9794 = vmatpush1.msra.mxu0 0.0
    %9795 = vmatprep.subr.mxu0 0.0
    %9796 = vmatpush1.msra.mxu0 0.0
    %9797 = vmatprep.subr.mxu0 0.0
    %9798 = vmatpush1.msra.mxu0 0.0
    %9799 = vmatprep.subr.mxu0 0.0
    %9800 = vmatpush1.msra.mxu0 0.0
    %9801 = vmatprep.subr.mxu0 0.0
    %9802 = vmatpush1.msra.mxu0 0.0
    %9803 = vmatprep.subr.mxu0 0.0
    %9804 = vmatpush1.msra.mxu0 0.0
    %9805 = vmatprep.subr.mxu0 0.0
    %9806 = vmatpush1.msra.mxu0 0.0
    %9807 = vmatprep.subr.mxu0 0.0
    %9808 = vmatpush1.msra.mxu0 0.0
    %9809 = vmatprep.mubr.f32.mxu0 0.0
    %9810 = vmatmul.mubr.f32.gmra.mrb[0].mxu0 %v9660
    %v9811 = vpop.f32.mrb[0].mxu0
    %v9812 = vadd.f32 0.0, %v9811
    %v9813 = vpop.f32.mrb[0].mxu0
    %v9814 = vadd.f32 0.0, %v9813
    %9815 = vdwg.mxu0
    %v9816 = vsel %vm4729, %v9735, 0.0
    %v9817 = vsel %vm4729, %v9737, 0.0
    %v9818 = vadd.f32 %v9816, %v9817
    %9819 = vadd.xlane.f32.xlu0 %v9818
    %v9820 = vpop.xlane.xlu0 %9819
    %v9821 = vsel %vm4729, %v9812, 0.0
    %v9822 = vsel %vm4729, %v9814, 0.0
    %v9823 = vadd.f32 %v9821, %v9822
    %9824 = vadd.xlane.f32.xlu0 %v9823
    %v9825 = vpop.xlane.xlu0 %9824
    %v9826 = vsel %vm4729, %v9820, 0.0
    %v9827 = vsel %vm4729, %v9825, 0.0
    %v9828 = vadd.f32 %v9826, %v9827
    %v9829 = vmul.f32 %v9735, %v9735
    %v9830 = vmul.f32 %v9737, %v9737
    %v9831 = vmul.f32 %v9812, %v9812
    %v9832 = vmul.f32 %v9814, %v9814
    %v9833 = vsel %vm4729, %v9829, 0.0
    %v9834 = vsel %vm4729, %v9830, 0.0
    %v9835 = vadd.f32 %v9833, %v9834
    %9836 = vadd.xlane.f32.xlu0 %v9835
    %v9837 = vpop.xlane.xlu0 %9836
    %v9838 = vsel %vm4729, %v9831, 0.0
    %v9839 = vsel %vm4729, %v9832, 0.0
    %v9840 = vadd.f32 %v9838, %v9839
    %9841 = vadd.xlane.f32.xlu0 %v9840
    %v9842 = vpop.xlane.xlu0 %9841
    %v9843 = vsel %vm4729, %v9837, 0.0
    %v9844 = vsel %vm4729, %v9842, 0.0
    %v9845 = vadd.f32 %v9843, %v9844
    %v9846 = vmul.f32 %v9828, %v4923
    %v9847 = vmul.f32 %v9845, %v4923
    %v9848 = vmul.f32 %v9846, %v9846
    %v9849 = vsub.f32 %v9847, %v9848
    %v9850 = vadd.f32 %v9849, 1e-05
    %v9851 = vrsqrt.pop %v9850
    %v9852 = vsub.f32 %v9735, %v9846
    %v9853 = vsub.f32 %v9737, %v9846
    %v9854 = vsub.f32 %v9812, %v9846
    %v9855 = vsub.f32 %v9814, %v9846
    %v9856 = vmul.f32 %v9852, %v9851
    %v9857 = vmul.f32 %v9853, %v9851
    %v9858 = vmul.f32 %v9854, %v9851
    %v9859 = vmul.f32 %v9855, %v9851
    %v9860 = vld [vmem:[%s5] sm:$0xf]
    %9862 = vset.pattern.permute.xlu0 0
    %9863 = vperm.xlu0 %9862, %v9860
    %v9864 = vpop.permute.xlu0 %9863
    %v9866 = vmul.f32 %v9856, %v9864
    %v9867 = vmul.f32 %v9857, %v9864
    %v9868 = vmul.f32 %v9858, %v9864
    %v9869 = vmul.f32 %v9859, %v9864
    %v9870 = vld [vmem:[%s6] sm:$0xf]
    %9872 = vset.pattern.permute.xlu0 0
    %9873 = vperm.xlu0 %9872, %v9870
    %v9874 = vpop.permute.xlu0 %9873
    %v9876 = vadd.f32 %v9866, %v9874
    %v9877 = vadd.f32 %v9867, %v9874
    %v9878 = vadd.f32 %v9868, %v9874
    %v9879 = vadd.f32 %v9869, %v9874
    %v9880 = vcombine.high %v27, %v27
    %v9881 = vcombine.high %v28, %v28
    %v9884 = vadd.f32 %v9876, %v27
    %v9885 = vadd.f32 %v9877, %v9880
    %v9886 = vadd.f32 %v9878, %v28
    %v9887 = vadd.f32 %v9879, %v9881
    %v9892 = vcombine.low %v9884, %v9885
    %v9893 = vcombine.low %v9886, %v9887
    %9896 = vst [vmem:[#allocation3] sm:$0xff] %v9892
    %9897 = vst [vmem:[#allocation3 + $0x8] sm:$0xff] %v9893
    // Predicated region
    $region30: #{tpu_custom_call.1} parent=1 // pred_check
      _
    $region31: #{tpu_custom_call.1} parent=1 // pred_check_branch
      %9899 = sbr.rel (0) target = $region33
    $region32: #{tpu_custom_call.1} parent=1 // pred_region
      %s9901 = ssub.s32 256, 256
      %9902 = vsyncadd [#allocation4], %s9901
      %s9903 = sshll.u32 [#allocation3], 4
      %s9904 = int_to_ptr.vmem [resolvable:$true] %s9903
      %9909 = dma.vmem_to_hbm [thread:$0]  %s9904, 256, %s7, [#allocation4], 128, 128, 8
    $region33: #{tpu_custom_call.1} parent=1 // pred_fallthru
      _
    // Predicated region
    $region34: #{tpu_custom_call.1} parent=1 // pred_check
      _
    $region35: #{tpu_custom_call.1} parent=1 // pred_check_branch
      %9911 = sbr.rel (0) target = $region37
    $region36: #{tpu_custom_call.1} parent=1 // pred_region
      %9912 = dma.done [#allocation4], 256
    $region37: #{tpu_custom_call.1} parent=1 // pred_fallthru
      _
    %9913 = vsyncpa [#allocation4], 1

</llo_original>
